<compile_context>
chip_gen: v5e
topology: v5e:2x2
jax: 0.10.0
libtpu: 0.0.40
codegen_flags: <defaults>
</compile_context>

<pallas_src>
import functools
import math

import jax
import jax.numpy as jnp
from jax import lax
from jax.experimental import pallas as pl
from jax.experimental.pallas import tpu as pltpu


# Tile-size targets (largest 128-multiple divisor of HW <= target is used).
_QKV_T_HW = 1024
_ATTN_T_Q = 1024
_ATTN_T_K = 512
_GN_STATS_BYTES = 8 * 1024 * 1024     # target x-block bytes for the stats pass
_VMEM_LIMIT = 64 * 1024 * 1024        # <= physical VMEM on v5e/v6e/v7x


def _pick_tile(total, target):
    """Largest multiple of 128 that divides `total` and is <= target.

    Falls back to the full extent (always a legal block shape) when no such
    tile exists (e.g. total < 128)."""
    if total <= target:
        return total
    t = (target // 128) * 128
    while t >= 128:
        if total % t == 0:
            return t
        t -= 128
    return total


# ----------------------- GroupNorm statistics pre-pass ------------------------

def _gn_stats_kernel(x_ref, gamma_ref, beta_ref, scale_ref, shift_ref, *, eps):
    """x_ref: (1, Gb, Cg, HW). Emits per-channel scale/shift (f32) so that
    GroupNorm(x) == x * scale + shift."""
    n_groups = x_ref.shape[1]
    for g in range(n_groups):                         # static unroll over groups
        x = x_ref[0, g].astype(jnp.float32)           # (Cg, HW)
        mean = jnp.mean(x, keepdims=True)             # (1, 1)
        xc = x - mean
        var = jnp.mean(xc * xc, keepdims=True)        # (1, 1)
        inv = lax.rsqrt(var + eps)
        gamma = gamma_ref[g].astype(jnp.float32)      # (Cg, 1)
        beta = beta_ref[g].astype(jnp.float32)        # (Cg, 1)
        scale = gamma * inv                           # (Cg, 1)
        scale_ref[0, g] = scale.astype(scale_ref.dtype)
        shift_ref[0, g] = (beta - mean * scale).astype(shift_ref.dtype)


def group_norm_scale_shift(x, gamma, beta, num_groups, eps=1e-5):
    """x: (N, C, HW) -> per-channel (scale, shift), each (N, C, 1) f32."""
    N, C, HW = x.shape
    G = num_groups
    Cg = C // G
    bytes_per_group = Cg * HW * x.dtype.itemsize
    gb = min(G, max(1, _GN_STATS_BYTES // max(1, bytes_per_group)))
    while G % gb != 0:
        gb -= 1
    x4 = x.reshape(N, G, Cg, HW)
    gamma3 = gamma.reshape(G, Cg, 1)
    beta3 = beta.reshape(G, Cg, 1)
    scale4, shift4 = pl.pallas_call(
        functools.partial(_gn_stats_kernel, eps=eps),
        out_shape=(jax.ShapeDtypeStruct((N, G, Cg, 1), jnp.float32),
                   jax.ShapeDtypeStruct((N, G, Cg, 1), jnp.float32)),
        grid_spec=pltpu.PrefetchScalarGridSpec(
            num_scalar_prefetch=0,
            grid=(N, G // gb),
            in_specs=[
                pl.BlockSpec((1, gb, Cg, HW), lambda n, g: (n, g, 0, 0)),
                pl.BlockSpec((gb, Cg, 1), lambda n, g: (g, 0, 0)),
                pl.BlockSpec((gb, Cg, 1), lambda n, g: (g, 0, 0)),
            ],
            out_specs=[
                pl.BlockSpec((1, gb, Cg, 1), lambda n, g: (n, g, 0, 0)),
                pl.BlockSpec((1, gb, Cg, 1), lambda n, g: (n, g, 0, 0)),
            ],
        ),
        compiler_params=pltpu.CompilerParams(
            dimension_semantics=("parallel", "parallel")),
    )(x4, gamma3, beta3)
    return scale4.reshape(N, C, 1), shift4.reshape(N, C, 1)


# ------------------- fused GroupNorm-apply + QKV projection -------------------

def _qkv_kernel(x_ref, scale_ref, shift_ref, w_ref, b_ref, q_ref, k_ref, v_ref):
    # GroupNorm application in f32, then three bf16 MXU matmuls from static
    # row-views of the (3C, C) weight (no (3C, T) intermediate).
    xn = x_ref[0].astype(jnp.float32) * scale_ref[0] + shift_ref[0]   # (C, T) f32
    xb = xn.astype(jnp.bfloat16)
    C = q_ref.shape[1]
    q = jnp.dot(w_ref[0:C, :], xb, preferred_element_type=jnp.float32)
    q_ref[0] = (q + b_ref[0:C]).astype(q_ref.dtype)
    k = jnp.dot(w_ref[C:2 * C, :], xb, preferred_element_type=jnp.float32)
    k_ref[0] = (k + b_ref[C:2 * C]).astype(k_ref.dtype)
    v = jnp.dot(w_ref[2 * C:3 * C, :], xb, preferred_element_type=jnp.float32)
    v_ref[0] = (v + b_ref[2 * C:3 * C]).astype(v_ref.dtype)


def qkv_projection(x, gn_scale, gn_shift, w_in, b_in):
    """x: (N, C, HW); gn_scale/gn_shift: (N, C, 1) f32; w_in: (3C, C); b_in: (3C,).
    Returns q, k, v each (N, C, HW) in bf16."""
    N, C, HW = x.shape
    t_hw = _pick_tile(HW, _QKV_T_HW)
    w_bf = w_in.astype(jnp.bfloat16)
    b2 = b_in.astype(jnp.float32).reshape(3 * C, 1)
    out_shape = tuple(jax.ShapeDtypeStruct((N, C, HW), jnp.bfloat16)
                      for _ in range(3))
    q, k, v = pl.pallas_call(
        _qkv_kernel,
        out_shape=out_shape,
        grid_spec=pltpu.PrefetchScalarGridSpec(
            num_scalar_prefetch=0,
            grid=(N, HW // t_hw),
            in_specs=[
                pl.BlockSpec((1, C, t_hw), lambda n, s: (n, 0, s)),
                pl.BlockSpec((1, C, 1), lambda n, s: (n, 0, 0)),
                pl.BlockSpec((1, C, 1), lambda n, s: (n, 0, 0)),
                pl.BlockSpec((3 * C, C), lambda n, s: (0, 0)),
                pl.BlockSpec((3 * C, 1), lambda n, s: (0, 0)),
            ],
            out_specs=[
                pl.BlockSpec((1, C, t_hw), lambda n, s: (n, 0, s)),
                pl.BlockSpec((1, C, t_hw), lambda n, s: (n, 0, s)),
                pl.BlockSpec((1, C, t_hw), lambda n, s: (n, 0, s)),
            ],
        ),
        compiler_params=pltpu.CompilerParams(
            dimension_semantics=("parallel", "parallel"),
            vmem_limit_bytes=_VMEM_LIMIT),
    )(x, gn_scale, gn_shift, w_bf, b2)
    return q, k, v


# --------------- flash attention + output projection + residual --------------

def _attn_kernel(q_ref, k_ref, v_ref, res_ref, wo_ref, bo_ref, out_ref,
                 m_sc, l_sc, acc_sc, *, scale, t_k):
    ki = pl.program_id(2)

    @pl.when(ki == 0)
    def _init():
        m_sc[...] = jnp.full_like(m_sc, -jnp.inf)
        l_sc[...] = jnp.zeros_like(l_sc)
        acc_sc[...] = jnp.zeros_like(acc_sc)

    q = q_ref[0]                                        # (C, Tq) bf16
    # K / V blocks are the full (C, HW) per batch element (index constant over
    # qi/ki -> DMA'd once per image); slice the current kv chunk in-kernel.
    start = pl.multiple_of(ki * t_k, t_k)
    k = k_ref[0, :, pl.ds(start, t_k)]                  # (C, Tk) bf16
    v = v_ref[0, :, pl.ds(start, t_k)]                  # (C, Tk) bf16

    # Transposed scores: s[a, b] = <k[:, a], q[:, b]> * scale   -> (Tk, Tq) f32
    s = lax.dot_general(k, q, (((0,), (0,)), ((), ())),
                        preferred_element_type=jnp.float32) * scale
    m_new = jnp.maximum(m_sc[...], jnp.max(s, axis=0, keepdims=True))  # (1, Tq)
    alpha = jnp.exp(m_sc[...] - m_new)                                 # (1, Tq)
    p = jnp.exp(s - m_new)                                             # (Tk, Tq) f32
    l_sc[...] = alpha * l_sc[...] + jnp.sum(p, axis=0, keepdims=True)
    acc_sc[...] = alpha * acc_sc[...] + jnp.dot(
        v, p.astype(jnp.bfloat16), preferred_element_type=jnp.float32)  # (C, Tq)
    m_sc[...] = m_new

    @pl.when(ki == pl.num_programs(2) - 1)
    def _finalize():
        inv_l = pl.reciprocal(l_sc[...], approx=True)                  # (1, Tq)
        attn = (acc_sc[...] * inv_l).astype(jnp.bfloat16)              # (C, Tq)
        y = jnp.dot(wo_ref[...], attn, preferred_element_type=jnp.float32)
        y = y + bo_ref[...] + res_ref[0].astype(jnp.float32)
        out_ref[0] = y.astype(out_ref.dtype)


def attention_outproj_residual(q, k, v, residue, w_out, b_out):
    """q,k,v: (N, C, HW) bf16; residue: (N, C, HW); w_out: (C, C); b_out: (C,)."""
    N, C, HW = q.shape
    t_q = _pick_tile(HW, _ATTN_T_Q)
    t_k = _pick_tile(HW, _ATTN_T_K)
    w_bf = w_out.astype(jnp.bfloat16)
    bo2 = b_out.astype(jnp.float32).reshape(C, 1)
    scale = 1.0 / math.sqrt(C)       # single head -> d_head == C
    return pl.pallas_call(
        functools.partial(_attn_kernel, scale=scale, t_k=t_k),
        out_shape=jax.ShapeDtypeStruct((N, C, HW), residue.dtype),
        grid_spec=pltpu.PrefetchScalarGridSpec(
            num_scalar_prefetch=0,
            grid=(N, HW // t_q, HW // t_k),
            in_specs=[
                pl.BlockSpec((1, C, t_q), lambda n, qi, ki: (n, 0, qi)),
                pl.BlockSpec((1, C, HW), lambda n, qi, ki: (n, 0, 0)),   # K resident
                pl.BlockSpec((1, C, HW), lambda n, qi, ki: (n, 0, 0)),   # V resident
                pl.BlockSpec((1, C, t_q), lambda n, qi, ki: (n, 0, qi)),
                pl.BlockSpec((C, C), lambda n, qi, ki: (0, 0)),
                pl.BlockSpec((C, 1), lambda n, qi, ki: (0, 0)),
            ],
            out_specs=pl.BlockSpec((1, C, t_q), lambda n, qi, ki: (n, 0, qi)),
            scratch_shapes=[
                pltpu.VMEM((1, t_q), jnp.float32),    # running max
                pltpu.VMEM((1, t_q), jnp.float32),    # running sum
                pltpu.VMEM((C, t_q), jnp.float32),    # output accumulator
            ],
        ),
        compiler_params=pltpu.CompilerParams(
            dimension_semantics=("parallel", "parallel", "arbitrary"),
            vmem_limit_bytes=_VMEM_LIMIT),
    )(q, k, v, residue, w_bf, bo2)


# ------------------------------ full block ------------------------------------

def vae_attention_block(x_nchw, params, *, num_groups=32):
    N, C, H, W = x_nchw.shape
    assert C % num_groups == 0
    HW = H * W
    x = x_nchw.reshape(N, C, HW)
    gn_scale, gn_shift = group_norm_scale_shift(
        x, params["gn_gamma"], params["gn_beta"], num_groups)
    q, k, v = qkv_projection(x, gn_scale, gn_shift, params["w_in"], params["b_in"])
    out = attention_outproj_residual(q, k, v, x, params["w_out"], params["b_out"])
    return out.reshape(N, C, H, W)


# ------------------------------ pure-JAX reference ----------------------------

def reference(x, params, *, num_groups=32, eps=1e-5):
    N, C, H, W = x.shape
    HW = H * W
    pp = lax.Precision.HIGHEST
    xr = x.reshape(N, num_groups, C // num_groups, HW).astype(jnp.float32)
    mean = xr.mean(axis=(2, 3), keepdims=True)
    var = ((xr - mean) ** 2).mean(axis=(2, 3), keepdims=True)
    xn = (xr - mean) / jnp.sqrt(var + eps)
    xn = xn.reshape(N, C, HW) * params["gn_gamma"][None, :, None] \
        + params["gn_beta"][None, :, None]
    xs = jnp.transpose(xn, (0, 2, 1))                                  # (N, HW, C)
    qkv = jnp.einsum("nsc,dc->nsd", xs, params["w_in"], precision=pp) \
        + params["b_in"]
    q, k, v = jnp.split(qkv, 3, axis=-1)
    s = jnp.einsum("nqc,nkc->nqk", q, k, precision=pp) / math.sqrt(C)
    p = jax.nn.softmax(s, axis=-1)
    o = jnp.einsum("nqk,nkc->nqc", p, v, precision=pp)
    o = jnp.einsum("nsc,dc->nsd", o, params["w_out"], precision=pp) \
        + params["b_out"]
    o = jnp.transpose(o, (0, 2, 1)).reshape(N, C, H, W)
    return x + o


if __name__ == "__main__":
    key = jax.random.PRNGKey(0)
    ks = jax.random.split(key, 7)

    # Small shapes consistent with the module (GroupNorm(32, C) => C % 32 == 0).
    N, C, H, W = 2, 64, 16, 16
    x = jax.random.normal(ks[0], (N, C, H, W), dtype=jnp.float32)
    params = {
        "gn_gamma": 1.0 + 0.1 * jax.random.normal(ks[1], (C,), jnp.float32),
        "gn_beta": 0.1 * jax.random.normal(ks[2], (C,), jnp.float32),
        "w_in": jax.random.normal(ks[3], (3 * C, C), jnp.float32) / math.sqrt(C),
        "b_in": 0.1 * jax.random.normal(ks[4], (3 * C,), jnp.float32),
        "w_out": jax.random.normal(ks[5], (C, C), jnp.float32) / math.sqrt(C),
        "b_out": 0.1 * jax.random.normal(ks[6], (C,), jnp.float32),
    }

    out = jax.jit(vae_attention_block)(x, params)
    jax.block_until_ready(out)

    ref = reference(x, params)
    max_err = float(jnp.max(jnp.abs(out - ref)))
    rel_err = float(jnp.linalg.norm(out - ref) / jnp.linalg.norm(ref))
    # bf16 MXU operands + approx reciprocal -> loosened (but still tight) bounds.
    assert max_err < 0.15 and rel_err < 0.04, f"max_err={max_err} rel_err={rel_err}"

    print("KERNEL_OK")
</pallas_src>

<mosaic_0001>
module attributes {stable_mosaic.version = 11 : i64} {
  func.func @_gn_stats_kernel(%arg0: i32, %arg1: i32, %arg2: memref<1x32x2x256xf32, #tpu.memory_space<vmem>>, %arg3: memref<32x2x1xf32, #tpu.memory_space<vmem>>, %arg4: memref<32x2x1xf32, #tpu.memory_space<vmem>>, %arg5: memref<1x32x2x1xf32, #tpu.memory_space<vmem>>, %arg6: memref<1x32x2x1xf32, #tpu.memory_space<vmem>>) attributes {dimension_semantics = [#tpu.dimension_semantics<parallel>, #tpu.dimension_semantics<parallel>], iteration_bounds = array<i64: 2, 1>, scalar_prefetch = 0 : i64, scratch_operands = 0 : i64, tpu.core_type = #tpu.core_type<tc>, window_params = [{transform_indices = @transform_0, window_bounds = array<i64: 1, 32, 2, 256>}, {transform_indices = @transform_1, window_bounds = array<i64: 32, 2, 1>}, {transform_indices = @transform_2, window_bounds = array<i64: 32, 2, 1>}, {transform_indices = @transform_3, window_bounds = array<i64: 1, 32, 2, 1>}, {transform_indices = @transform_4, window_bounds = array<i64: 1, 32, 2, 1>}]} {
    %c0 = arith.constant 0 : index
    %c0_0 = arith.constant 0 : index
    %c0_1 = arith.constant 0 : index
    %c0_2 = arith.constant 0 : index
    %0 = vector.load %arg2[%c0, %c0_0, %c0_1, %c0_2] : memref<1x32x2x256xf32, #tpu.memory_space<vmem>>, vector<1x1x2x256xf32>
    %1 = vector.shape_cast %0 : vector<1x1x2x256xf32> to vector<2x256xf32>
    %2 = vector.shape_cast %1 : vector<2x256xf32> to vector<1x2x256xf32>
    %cst = arith.constant dense<0.000000e+00> : vector<1xf32>
    %3 = vector.multi_reduction <add>, %2, %cst [1, 2] : vector<1x2x256xf32> to vector<1xf32>
    %4 = vector.shape_cast %3 : vector<1xf32> to vector<1x1x1xf32>
    %5 = vector.extract %4[0, 0, 0] : f32 from vector<1x1x1xf32>
    %6 = vector.broadcast %5 : f32 to vector<1x1xf32>
    %cst_3 = arith.constant 5.120000e+02 : f32
    %7 = vector.broadcast %cst_3 : f32 to vector<1x1xf32>
    %8 = arith.divf %6, %7 : vector<1x1xf32>
    %9 = vector.broadcast %8 : vector<1x1xf32> to vector<2x256xf32>
    %10 = arith.subf %1, %9 : vector<2x256xf32>
    %11 = arith.mulf %10, %10 : vector<2x256xf32>
    %12 = vector.shape_cast %11 : vector<2x256xf32> to vector<1x2x256xf32>
    %cst_4 = arith.constant dense<0.000000e+00> : vector<1xf32>
    %13 = vector.multi_reduction <add>, %12, %cst_4 [1, 2] : vector<1x2x256xf32> to vector<1xf32>
    %14 = vector.shape_cast %13 : vector<1xf32> to vector<1x1x1xf32>
    %15 = vector.extract %14[0, 0, 0] : f32 from vector<1x1x1xf32>
    %16 = vector.broadcast %15 : f32 to vector<1x1xf32>
    %cst_5 = arith.constant 5.120000e+02 : f32
    %17 = vector.broadcast %cst_5 : f32 to vector<1x1xf32>
    %18 = arith.divf %16, %17 : vector<1x1xf32>
    %cst_6 = arith.constant 9.99999974E-6 : f32
    %19 = vector.broadcast %cst_6 : f32 to vector<1x1xf32>
    %20 = arith.addf %18, %19 : vector<1x1xf32>
    %21 = math.rsqrt %20 : vector<1x1xf32>
    %c0_7 = arith.constant 0 : index
    %c0_8 = arith.constant 0 : index
    %c0_9 = arith.constant 0 : index
    %22 = vector.load %arg3[%c0_7, %c0_8, %c0_9] : memref<32x2x1xf32, #tpu.memory_space<vmem>>, vector<1x2x1xf32>
    %23 = vector.shape_cast %22 : vector<1x2x1xf32> to vector<2x1xf32>
    %c0_10 = arith.constant 0 : index
    %c0_11 = arith.constant 0 : index
    %c0_12 = arith.constant 0 : index
    %24 = vector.load %arg4[%c0_10, %c0_11, %c0_12] : memref<32x2x1xf32, #tpu.memory_space<vmem>>, vector<1x2x1xf32>
    %25 = vector.shape_cast %24 : vector<1x2x1xf32> to vector<2x1xf32>
    %26 = vector.broadcast %21 : vector<1x1xf32> to vector<2x1xf32>
    %27 = arith.mulf %23, %26 : vector<2x1xf32>
    %c0_13 = arith.constant 0 : index
    %c0_14 = arith.constant 0 : index
    %c0_15 = arith.constant 0 : index
    %c0_16 = arith.constant 0 : index
    %28 = vector.load %arg5[%c0_13, %c0_14, %c0_15, %c0_16] : memref<1x32x2x1xf32, #tpu.memory_space<vmem>>, vector<1x1x2x1xf32>
    %29 = vector.shape_cast %28 : vector<1x1x2x1xf32> to vector<2x1xf32>
    %30 = vector.shape_cast %27 : vector<2x1xf32> to vector<1x1x2x1xf32>
    tpu.vector_store %arg5[%c0_13, %c0_14, %c0_15, %c0_16], %30 {strides = array<i32>} : memref<1x32x2x1xf32, #tpu.memory_space<vmem>>, vector<1x1x2x1xf32>,
    %31 = vector.broadcast %8 : vector<1x1xf32> to vector<2x1xf32>
    %32 = arith.mulf %31, %27 : vector<2x1xf32>
    %33 = arith.subf %25, %32 : vector<2x1xf32>
    %c0_17 = arith.constant 0 : index
    %c0_18 = arith.constant 0 : index
    %c0_19 = arith.constant 0 : index
    %c0_20 = arith.constant 0 : index
    %34 = vector.load %arg6[%c0_17, %c0_18, %c0_19, %c0_20] : memref<1x32x2x1xf32, #tpu.memory_space<vmem>>, vector<1x1x2x1xf32>
    %35 = vector.shape_cast %34 : vector<1x1x2x1xf32> to vector<2x1xf32>
    %36 = vector.shape_cast %33 : vector<2x1xf32> to vector<1x1x2x1xf32>
    tpu.vector_store %arg6[%c0_17, %c0_18, %c0_19, %c0_20], %36 {strides = array<i32>} : memref<1x32x2x1xf32, #tpu.memory_space<vmem>>, vector<1x1x2x1xf32>,
    %c0_21 = arith.constant 0 : index
    %c1 = arith.constant 1 : index
    %c0_22 = arith.constant 0 : index
    %c0_23 = arith.constant 0 : index
    %37 = vector.load %arg2[%c0_21, %c1, %c0_22, %c0_23] : memref<1x32x2x256xf32, #tpu.memory_space<vmem>>, vector<1x1x2x256xf32>
    %38 = vector.shape_cast %37 : vector<1x1x2x256xf32> to vector<2x256xf32>
    %39 = vector.shape_cast %38 : vector<2x256xf32> to vector<1x2x256xf32>
    %cst_24 = arith.constant dense<0.000000e+00> : vector<1xf32>
    %40 = vector.multi_reduction <add>, %39, %cst_24 [1, 2] : vector<1x2x256xf32> to vector<1xf32>
    %41 = vector.shape_cast %40 : vector<1xf32> to vector<1x1x1xf32>
    %42 = vector.extract %41[0, 0, 0] : f32 from vector<1x1x1xf32>
    %43 = vector.broadcast %42 : f32 to vector<1x1xf32>
    %cst_25 = arith.constant 5.120000e+02 : f32
    %44 = vector.broadcast %cst_25 : f32 to vector<1x1xf32>
    %45 = arith.divf %43, %44 : vector<1x1xf32>
    %46 = vector.broadcast %45 : vector<1x1xf32> to vector<2x256xf32>
    %47 = arith.subf %38, %46 : vector<2x256xf32>
    %48 = arith.mulf %47, %47 : vector<2x256xf32>
    %49 = vector.shape_cast %48 : vector<2x256xf32> to vector<1x2x256xf32>
    %cst_26 = arith.constant dense<0.000000e+00> : vector<1xf32>
    %50 = vector.multi_reduction <add>, %49, %cst_26 [1, 2] : vector<1x2x256xf32> to vector<1xf32>
    %51 = vector.shape_cast %50 : vector<1xf32> to vector<1x1x1xf32>
    %52 = vector.extract %51[0, 0, 0] : f32 from vector<1x1x1xf32>
    %53 = vector.broadcast %52 : f32 to vector<1x1xf32>
    %cst_27 = arith.constant 5.120000e+02 : f32
    %54 = vector.broadcast %cst_27 : f32 to vector<1x1xf32>
    %55 = arith.divf %53, %54 : vector<1x1xf32>
    %cst_28 = arith.constant 9.99999974E-6 : f32
    %56 = vector.broadcast %cst_28 : f32 to vector<1x1xf32>
    %57 = arith.addf %55, %56 : vector<1x1xf32>
    %58 = math.rsqrt %57 : vector<1x1xf32>
    %c1_29 = arith.constant 1 : index
    %c0_30 = arith.constant 0 : index
    %c0_31 = arith.constant 0 : index
    %59 = vector.load %arg3[%c1_29, %c0_30, %c0_31] : memref<32x2x1xf32, #tpu.memory_space<vmem>>, vector<1x2x1xf32>
    %60 = vector.shape_cast %59 : vector<1x2x1xf32> to vector<2x1xf32>
    %c1_32 = arith.constant 1 : index
    %c0_33 = arith.constant 0 : index
    %c0_34 = arith.constant 0 : index
    %61 = vector.load %arg4[%c1_32, %c0_33, %c0_34] : memref<32x2x1xf32, #tpu.memory_space<vmem>>, vector<1x2x1xf32>
    %62 = vector.shape_cast %61 : vector<1x2x1xf32> to vector<2x1xf32>
    %63 = vector.broadcast %58 : vector<1x1xf32> to vector<2x1xf32>
    %64 = arith.mulf %60, %63 : vector<2x1xf32>
    %c0_35 = arith.constant 0 : index
    %c1_36 = arith.constant 1 : index
    %c0_37 = arith.constant 0 : index
    %c0_38 = arith.constant 0 : index
    %65 = vector.load %arg5[%c0_35, %c1_36, %c0_37, %c0_38] : memref<1x32x2x1xf32, #tpu.memory_space<vmem>>, vector<1x1x2x1xf32>
    %66 = vector.shape_cast %65 : vector<1x1x2x1xf32> to vector<2x1xf32>
    %67 = vector.shape_cast %64 : vector<2x1xf32> to vector<1x1x2x1xf32>
    tpu.vector_store %arg5[%c0_35, %c1_36, %c0_37, %c0_38], %67 {strides = array<i32>} : memref<1x32x2x1xf32, #tpu.memory_space<vmem>>, vector<1x1x2x1xf32>,
    %68 = vector.broadcast %45 : vector<1x1xf32> to vector<2x1xf32>
    %69 = arith.mulf %68, %64 : vector<2x1xf32>
    %70 = arith.subf %62, %69 : vector<2x1xf32>
    %c0_39 = arith.constant 0 : index
    %c1_40 = arith.constant 1 : index
    %c0_41 = arith.constant 0 : index
    %c0_42 = arith.constant 0 : index
    %71 = vector.load %arg6[%c0_39, %c1_40, %c0_41, %c0_42] : memref<1x32x2x1xf32, #tpu.memory_space<vmem>>, vector<1x1x2x1xf32>
    %72 = vector.shape_cast %71 : vector<1x1x2x1xf32> to vector<2x1xf32>
    %73 = vector.shape_cast %70 : vector<2x1xf32> to vector<1x1x2x1xf32>
    tpu.vector_store %arg6[%c0_39, %c1_40, %c0_41, %c0_42], %73 {strides = array<i32>} : memref<1x32x2x1xf32, #tpu.memory_space<vmem>>, vector<1x1x2x1xf32>,
    %c0_43 = arith.constant 0 : index
    %c2 = arith.constant 2 : index
    %c0_44 = arith.constant 0 : index
    %c0_45 = arith.constant 0 : index
    %74 = vector.load %arg2[%c0_43, %c2, %c0_44, %c0_45] : memref<1x32x2x256xf32, #tpu.memory_space<vmem>>, vector<1x1x2x256xf32>
    %75 = vector.shape_cast %74 : vector<1x1x2x256xf32> to vector<2x256xf32>
    %76 = vector.shape_cast %75 : vector<2x256xf32> to vector<1x2x256xf32>
    %cst_46 = arith.constant dense<0.000000e+00> : vector<1xf32>
    %77 = vector.multi_reduction <add>, %76, %cst_46 [1, 2] : vector<1x2x256xf32> to vector<1xf32>
    %78 = vector.shape_cast %77 : vector<1xf32> to vector<1x1x1xf32>
    %79 = vector.extract %78[0, 0, 0] : f32 from vector<1x1x1xf32>
    %80 = vector.broadcast %79 : f32 to vector<1x1xf32>
    %cst_47 = arith.constant 5.120000e+02 : f32
    %81 = vector.broadcast %cst_47 : f32 to vector<1x1xf32>
    %82 = arith.divf %80, %81 : vector<1x1xf32>
    %83 = vector.broadcast %82 : vector<1x1xf32> to vector<2x256xf32>
    %84 = arith.subf %75, %83 : vector<2x256xf32>
    %85 = arith.mulf %84, %84 : vector<2x256xf32>
    %86 = vector.shape_cast %85 : vector<2x256xf32> to vector<1x2x256xf32>
    %cst_48 = arith.constant dense<0.000000e+00> : vector<1xf32>
    %87 = vector.multi_reduction <add>, %86, %cst_48 [1, 2] : vector<1x2x256xf32> to vector<1xf32>
    %88 = vector.shape_cast %87 : vector<1xf32> to vector<1x1x1xf32>
    %89 = vector.extract %88[0, 0, 0] : f32 from vector<1x1x1xf32>
    %90 = vector.broadcast %89 : f32 to vector<1x1xf32>
    %cst_49 = arith.constant 5.120000e+02 : f32
    %91 = vector.broadcast %cst_49 : f32 to vector<1x1xf32>
    %92 = arith.divf %90, %91 : vector<1x1xf32>
    %cst_50 = arith.constant 9.99999974E-6 : f32
    %93 = vector.broadcast %cst_50 : f32 to vector<1x1xf32>
    %94 = arith.addf %92, %93 : vector<1x1xf32>
    %95 = math.rsqrt %94 : vector<1x1xf32>
    %c2_51 = arith.constant 2 : index
    %c0_52 = arith.constant 0 : index
    %c0_53 = arith.constant 0 : index
    %96 = vector.load %arg3[%c2_51, %c0_52, %c0_53] : memref<32x2x1xf32, #tpu.memory_space<vmem>>, vector<1x2x1xf32>
    %97 = vector.shape_cast %96 : vector<1x2x1xf32> to vector<2x1xf32>
    %c2_54 = arith.constant 2 : index
    %c0_55 = arith.constant 0 : index
    %c0_56 = arith.constant 0 : index
    %98 = vector.load %arg4[%c2_54, %c0_55, %c0_56] : memref<32x2x1xf32, #tpu.memory_space<vmem>>, vector<1x2x1xf32>
    %99 = vector.shape_cast %98 : vector<1x2x1xf32> to vector<2x1xf32>
    %100 = vector.broadcast %95 : vector<1x1xf32> to vector<2x1xf32>
    %101 = arith.mulf %97, %100 : vector<2x1xf32>
    %c0_57 = arith.constant 0 : index
    %c2_58 = arith.constant 2 : index
    %c0_59 = arith.constant 0 : index
    %c0_60 = arith.constant 0 : index
    %102 = vector.load %arg5[%c0_57, %c2_58, %c0_59, %c0_60] : memref<1x32x2x1xf32, #tpu.memory_space<vmem>>, vector<1x1x2x1xf32>
    %103 = vector.shape_cast %102 : vector<1x1x2x1xf32> to vector<2x1xf32>
    %104 = vector.shape_cast %101 : vector<2x1xf32> to vector<1x1x2x1xf32>
    tpu.vector_store %arg5[%c0_57, %c2_58, %c0_59, %c0_60], %104 {strides = array<i32>} : memref<1x32x2x1xf32, #tpu.memory_space<vmem>>, vector<1x1x2x1xf32>,
    %105 = vector.broadcast %82 : vector<1x1xf32> to vector<2x1xf32>
    %106 = arith.mulf %105, %101 : vector<2x1xf32>
    %107 = arith.subf %99, %106 : vector<2x1xf32>
    %c0_61 = arith.constant 0 : index
    %c2_62 = arith.constant 2 : index
    %c0_63 = arith.constant 0 : index
    %c0_64 = arith.constant 0 : index
    %108 = vector.load %arg6[%c0_61, %c2_62, %c0_63, %c0_64] : memref<1x32x2x1xf32, #tpu.memory_space<vmem>>, vector<1x1x2x1xf32>
    %109 = vector.shape_cast %108 : vector<1x1x2x1xf32> to vector<2x1xf32>
    %110 = vector.shape_cast %107 : vector<2x1xf32> to vector<1x1x2x1xf32>
    tpu.vector_store %arg6[%c0_61, %c2_62, %c0_63, %c0_64], %110 {strides = array<i32>} : memref<1x32x2x1xf32, #tpu.memory_space<vmem>>, vector<1x1x2x1xf32>,
    %c0_65 = arith.constant 0 : index
    %c3 = arith.constant 3 : index
    %c0_66 = arith.constant 0 : index
    %c0_67 = arith.constant 0 : index
    %111 = vector.load %arg2[%c0_65, %c3, %c0_66, %c0_67] : memref<1x32x2x256xf32, #tpu.memory_space<vmem>>, vector<1x1x2x256xf32>
    %112 = vector.shape_cast %111 : vector<1x1x2x256xf32> to vector<2x256xf32>
    %113 = vector.shape_cast %112 : vector<2x256xf32> to vector<1x2x256xf32>
    %cst_68 = arith.constant dense<0.000000e+00> : vector<1xf32>
    %114 = vector.multi_reduction <add>, %113, %cst_68 [1, 2] : vector<1x2x256xf32> to vector<1xf32>
    %115 = vector.shape_cast %114 : vector<1xf32> to vector<1x1x1xf32>
    %116 = vector.extract %115[0, 0, 0] : f32 from vector<1x1x1xf32>
    %117 = vector.broadcast %116 : f32 to vector<1x1xf32>
    %cst_69 = arith.constant 5.120000e+02 : f32
    %118 = vector.broadcast %cst_69 : f32 to vector<1x1xf32>
    %119 = arith.divf %117, %118 : vector<1x1xf32>
    %120 = vector.broadcast %119 : vector<1x1xf32> to vector<2x256xf32>
    %121 = arith.subf %112, %120 : vector<2x256xf32>
    %122 = arith.mulf %121, %121 : vector<2x256xf32>
    %123 = vector.shape_cast %122 : vector<2x256xf32> to vector<1x2x256xf32>
    %cst_70 = arith.constant dense<0.000000e+00> : vector<1xf32>
    %124 = vector.multi_reduction <add>, %123, %cst_70 [1, 2] : vector<1x2x256xf32> to vector<1xf32>
    %125 = vector.shape_cast %124 : vector<1xf32> to vector<1x1x1xf32>
    %126 = vector.extract %125[0, 0, 0] : f32 from vector<1x1x1xf32>
    %127 = vector.broadcast %126 : f32 to vector<1x1xf32>
    %cst_71 = arith.constant 5.120000e+02 : f32
    %128 = vector.broadcast %cst_71 : f32 to vector<1x1xf32>
    %129 = arith.divf %127, %128 : vector<1x1xf32>
    %cst_72 = arith.constant 9.99999974E-6 : f32
    %130 = vector.broadcast %cst_72 : f32 to vector<1x1xf32>
    %131 = arith.addf %129, %130 : vector<1x1xf32>
    %132 = math.rsqrt %131 : vector<1x1xf32>
    %c3_73 = arith.constant 3 : index
    %c0_74 = arith.constant 0 : index
    %c0_75 = arith.constant 0 : index
    %133 = vector.load %arg3[%c3_73, %c0_74, %c0_75] : memref<32x2x1xf32, #tpu.memory_space<vmem>>, vector<1x2x1xf32>
    %134 = vector.shape_cast %133 : vector<1x2x1xf32> to vector<2x1xf32>
    %c3_76 = arith.constant 3 : index
    %c0_77 = arith.constant 0 : index
    %c0_78 = arith.constant 0 : index
    %135 = vector.load %arg4[%c3_76, %c0_77, %c0_78] : memref<32x2x1xf32, #tpu.memory_space<vmem>>, vector<1x2x1xf32>
    %136 = vector.shape_cast %135 : vector<1x2x1xf32> to vector<2x1xf32>
    %137 = vector.broadcast %132 : vector<1x1xf32> to vector<2x1xf32>
    %138 = arith.mulf %134, %137 : vector<2x1xf32>
    %c0_79 = arith.constant 0 : index
    %c3_80 = arith.constant 3 : index
    %c0_81 = arith.constant 0 : index
    %c0_82 = arith.constant 0 : index
    %139 = vector.load %arg5[%c0_79, %c3_80, %c0_81, %c0_82] : memref<1x32x2x1xf32, #tpu.memory_space<vmem>>, vector<1x1x2x1xf32>
    %140 = vector.shape_cast %139 : vector<1x1x2x1xf32> to vector<2x1xf32>
    %141 = vector.shape_cast %138 : vector<2x1xf32> to vector<1x1x2x1xf32>
    tpu.vector_store %arg5[%c0_79, %c3_80, %c0_81, %c0_82], %141 {strides = array<i32>} : memref<1x32x2x1xf32, #tpu.memory_space<vmem>>, vector<1x1x2x1xf32>,
    %142 = vector.broadcast %119 : vector<1x1xf32> to vector<2x1xf32>
    %143 = arith.mulf %142, %138 : vector<2x1xf32>
    %144 = arith.subf %136, %143 : vector<2x1xf32>
    %c0_83 = arith.constant 0 : index
    %c3_84 = arith.constant 3 : index
    %c0_85 = arith.constant 0 : index
    %c0_86 = arith.constant 0 : index
    %145 = vector.load %arg6[%c0_83, %c3_84, %c0_85, %c0_86] : memref<1x32x2x1xf32, #tpu.memory_space<vmem>>, vector<1x1x2x1xf32>
    %146 = vector.shape_cast %145 : vector<1x1x2x1xf32> to vector<2x1xf32>
    %147 = vector.shape_cast %144 : vector<2x1xf32> to vector<1x1x2x1xf32>
    tpu.vector_store %arg6[%c0_83, %c3_84, %c0_85, %c0_86], %147 {strides = array<i32>} : memref<1x32x2x1xf32, #tpu.memory_space<vmem>>, vector<1x1x2x1xf32>,
    %c0_87 = arith.constant 0 : index
    %c4 = arith.constant 4 : index
    %c0_88 = arith.constant 0 : index
    %c0_89 = arith.constant 0 : index
    %148 = vector.load %arg2[%c0_87, %c4, %c0_88, %c0_89] : memref<1x32x2x256xf32, #tpu.memory_space<vmem>>, vector<1x1x2x256xf32>
    %149 = vector.shape_cast %148 : vector<1x1x2x256xf32> to vector<2x256xf32>
    %150 = vector.shape_cast %149 : vector<2x256xf32> to vector<1x2x256xf32>
    %cst_90 = arith.constant dense<0.000000e+00> : vector<1xf32>
    %151 = vector.multi_reduction <add>, %150, %cst_90 [1, 2] : vector<1x2x256xf32> to vector<1xf32>
    %152 = vector.shape_cast %151 : vector<1xf32> to vector<1x1x1xf32>
    %153 = vector.extract %152[0, 0, 0] : f32 from vector<1x1x1xf32>
    %154 = vector.broadcast %153 : f32 to vector<1x1xf32>
    %cst_91 = arith.constant 5.120000e+02 : f32
    %155 = vector.broadcast %cst_91 : f32 to vector<1x1xf32>
    %156 = arith.divf %154, %155 : vector<1x1xf32>
    %157 = vector.broadcast %156 : vector<1x1xf32> to vector<2x256xf32>
    %158 = arith.subf %149, %157 : vector<2x256xf32>
    %159 = arith.mulf %158, %158 : vector<2x256xf32>
    %160 = vector.shape_cast %159 : vector<2x256xf32> to vector<1x2x256xf32>
    %cst_92 = arith.constant dense<0.000000e+00> : vector<1xf32>
    %161 = vector.multi_reduction <add>, %160, %cst_92 [1, 2] : vector<1x2x256xf32> to vector<1xf32>
    %162 = vector.shape_cast %161 : vector<1xf32> to vector<1x1x1xf32>
    %163 = vector.extract %162[0, 0, 0] : f32 from vector<1x1x1xf32>
    %164 = vector.broadcast %163 : f32 to vector<1x1xf32>
    %cst_93 = arith.constant 5.120000e+02 : f32
    %165 = vector.broadcast %cst_93 : f32 to vector<1x1xf32>
    %166 = arith.divf %164, %165 : vector<1x1xf32>
    %cst_94 = arith.constant 9.99999974E-6 : f32
    %167 = vector.broadcast %cst_94 : f32 to vector<1x1xf32>
    %168 = arith.addf %166, %167 : vector<1x1xf32>
    %169 = math.rsqrt %168 : vector<1x1xf32>
    %c4_95 = arith.constant 4 : index
    %c0_96 = arith.constant 0 : index
    %c0_97 = arith.constant 0 : index
    %170 = vector.load %arg3[%c4_95, %c0_96, %c0_97] : memref<32x2x1xf32, #tpu.memory_space<vmem>>, vector<1x2x1xf32>
    %171 = vector.shape_cast %170 : vector<1x2x1xf32> to vector<2x1xf32>
    %c4_98 = arith.constant 4 : index
    %c0_99 = arith.constant 0 : index
    %c0_100 = arith.constant 0 : index
    %172 = vector.load %arg4[%c4_98, %c0_99, %c0_100] : memref<32x2x1xf32, #tpu.memory_space<vmem>>, vector<1x2x1xf32>
    %173 = vector.shape_cast %172 : vector<1x2x1xf32> to vector<2x1xf32>
    %174 = vector.broadcast %169 : vector<1x1xf32> to vector<2x1xf32>
    %175 = arith.mulf %171, %174 : vector<2x1xf32>
    %c0_101 = arith.constant 0 : index
    %c4_102 = arith.constant 4 : index
    %c0_103 = arith.constant 0 : index
    %c0_104 = arith.constant 0 : index
    %176 = vector.load %arg5[%c0_101, %c4_102, %c0_103, %c0_104] : memref<1x32x2x1xf32, #tpu.memory_space<vmem>>, vector<1x1x2x1xf32>
    %177 = vector.shape_cast %176 : vector<1x1x2x1xf32> to vector<2x1xf32>
    %178 = vector.shape_cast %175 : vector<2x1xf32> to vector<1x1x2x1xf32>
    tpu.vector_store %arg5[%c0_101, %c4_102, %c0_103, %c0_104], %178 {strides = array<i32>} : memref<1x32x2x1xf32, #tpu.memory_space<vmem>>, vector<1x1x2x1xf32>,
    %179 = vector.broadcast %156 : vector<1x1xf32> to vector<2x1xf32>
    %180 = arith.mulf %179, %175 : vector<2x1xf32>
    %181 = arith.subf %173, %180 : vector<2x1xf32>
    %c0_105 = arith.constant 0 : index
    %c4_106 = arith.constant 4 : index
    %c0_107 = arith.constant 0 : index
    %c0_108 = arith.constant 0 : index
    %182 = vector.load %arg6[%c0_105, %c4_106, %c0_107, %c0_108] : memref<1x32x2x1xf32, #tpu.memory_space<vmem>>, vector<1x1x2x1xf32>
    %183 = vector.shape_cast %182 : vector<1x1x2x1xf32> to vector<2x1xf32>
    %184 = vector.shape_cast %181 : vector<2x1xf32> to vector<1x1x2x1xf32>
    tpu.vector_store %arg6[%c0_105, %c4_106, %c0_107, %c0_108], %184 {strides = array<i32>} : memref<1x32x2x1xf32, #tpu.memory_space<vmem>>, vector<1x1x2x1xf32>,
    %c0_109 = arith.constant 0 : index
    %c5 = arith.constant 5 : index
    %c0_110 = arith.constant 0 : index
    %c0_111 = arith.constant 0 : index
    %185 = vector.load %arg2[%c0_109, %c5, %c0_110, %c0_111] : memref<1x32x2x256xf32, #tpu.memory_space<vmem>>, vector<1x1x2x256xf32>
    %186 = vector.shape_cast %185 : vector<1x1x2x256xf32> to vector<2x256xf32>
    %187 = vector.shape_cast %186 : vector<2x256xf32> to vector<1x2x256xf32>
    %cst_112 = arith.constant dense<0.000000e+00> : vector<1xf32>
    %188 = vector.multi_reduction <add>, %187, %cst_112 [1, 2] : vector<1x2x256xf32> to vector<1xf32>
    %189 = vector.shape_cast %188 : vector<1xf32> to vector<1x1x1xf32>
    %190 = vector.extract %189[0, 0, 0] : f32 from vector<1x1x1xf32>
    %191 = vector.broadcast %190 : f32 to vector<1x1xf32>
    %cst_113 = arith.constant 5.120000e+02 : f32
    %192 = vector.broadcast %cst_113 : f32 to vector<1x1xf32>
    %193 = arith.divf %191, %192 : vector<1x1xf32>
    %194 = vector.broadcast %193 : vector<1x1xf32> to vector<2x256xf32>
    %195 = arith.subf %186, %194 : vector<2x256xf32>
    %196 = arith.mulf %195, %195 : vector<2x256xf32>
    %197 = vector.shape_cast %196 : vector<2x256xf32> to vector<1x2x256xf32>
    %cst_114 = arith.constant dense<0.000000e+00> : vector<1xf32>
    %198 = vector.multi_reduction <add>, %197, %cst_114 [1, 2] : vector<1x2x256xf32> to vector<1xf32>
    %199 = vector.shape_cast %198 : vector<1xf32> to vector<1x1x1xf32>
    %200 = vector.extract %199[0, 0, 0] : f32 from vector<1x1x1xf32>
    %201 = vector.broadcast %200 : f32 to vector<1x1xf32>
    %cst_115 = arith.constant 5.120000e+02 : f32
    %202 = vector.broadcast %cst_115 : f32 to vector<1x1xf32>
    %203 = arith.divf %201, %202 : vector<1x1xf32>
    %cst_116 = arith.constant 9.99999974E-6 : f32
    %204 = vector.broadcast %cst_116 : f32 to vector<1x1xf32>
    %205 = arith.addf %203, %204 : vector<1x1xf32>
    %206 = math.rsqrt %205 : vector<1x1xf32>
    %c5_117 = arith.constant 5 : index
    %c0_118 = arith.constant 0 : index
    %c0_119 = arith.constant 0 : index
    %207 = vector.load %arg3[%c5_117, %c0_118, %c0_119] : memref<32x2x1xf32, #tpu.memory_space<vmem>>, vector<1x2x1xf32>
    %208 = vector.shape_cast %207 : vector<1x2x1xf32> to vector<2x1xf32>
    %c5_120 = arith.constant 5 : index
    %c0_121 = arith.constant 0 : index
    %c0_122 = arith.constant 0 : index
    %209 = vector.load %arg4[%c5_120, %c0_121, %c0_122] : memref<32x2x1xf32, #tpu.memory_space<vmem>>, vector<1x2x1xf32>
    %210 = vector.shape_cast %209 : vector<1x2x1xf32> to vector<2x1xf32>
    %211 = vector.broadcast %206 : vector<1x1xf32> to vector<2x1xf32>
    %212 = arith.mulf %208, %211 : vector<2x1xf32>
    %c0_123 = arith.constant 0 : index
    %c5_124 = arith.constant 5 : index
    %c0_125 = arith.constant 0 : index
    %c0_126 = arith.constant 0 : index
    %213 = vector.load %arg5[%c0_123, %c5_124, %c0_125, %c0_126] : memref<1x32x2x1xf32, #tpu.memory_space<vmem>>, vector<1x1x2x1xf32>
    %214 = vector.shape_cast %213 : vector<1x1x2x1xf32> to vector<2x1xf32>
    %215 = vector.shape_cast %212 : vector<2x1xf32> to vector<1x1x2x1xf32>
    tpu.vector_store %arg5[%c0_123, %c5_124, %c0_125, %c0_126], %215 {strides = array<i32>} : memref<1x32x2x1xf32, #tpu.memory_space<vmem>>, vector<1x1x2x1xf32>,
    %216 = vector.broadcast %193 : vector<1x1xf32> to vector<2x1xf32>
    %217 = arith.mulf %216, %212 : vector<2x1xf32>
    %218 = arith.subf %210, %217 : vector<2x1xf32>
    %c0_127 = arith.constant 0 : index
    %c5_128 = arith.constant 5 : index
    %c0_129 = arith.constant 0 : index
    %c0_130 = arith.constant 0 : index
    %219 = vector.load %arg6[%c0_127, %c5_128, %c0_129, %c0_130] : memref<1x32x2x1xf32, #tpu.memory_space<vmem>>, vector<1x1x2x1xf32>
    %220 = vector.shape_cast %219 : vector<1x1x2x1xf32> to vector<2x1xf32>
    %221 = vector.shape_cast %218 : vector<2x1xf32> to vector<1x1x2x1xf32>
    tpu.vector_store %arg6[%c0_127, %c5_128, %c0_129, %c0_130], %221 {strides = array<i32>} : memref<1x32x2x1xf32, #tpu.memory_space<vmem>>, vector<1x1x2x1xf32>,
    %c0_131 = arith.constant 0 : index
    %c6 = arith.constant 6 : index
    %c0_132 = arith.constant 0 : index
    %c0_133 = arith.constant 0 : index
    %222 = vector.load %arg2[%c0_131, %c6, %c0_132, %c0_133] : memref<1x32x2x256xf32, #tpu.memory_space<vmem>>, vector<1x1x2x256xf32>
    %223 = vector.shape_cast %222 : vector<1x1x2x256xf32> to vector<2x256xf32>
    %224 = vector.shape_cast %223 : vector<2x256xf32> to vector<1x2x256xf32>
    %cst_134 = arith.constant dense<0.000000e+00> : vector<1xf32>
    %225 = vector.multi_reduction <add>, %224, %cst_134 [1, 2] : vector<1x2x256xf32> to vector<1xf32>
    %226 = vector.shape_cast %225 : vector<1xf32> to vector<1x1x1xf32>
    %227 = vector.extract %226[0, 0, 0] : f32 from vector<1x1x1xf32>
    %228 = vector.broadcast %227 : f32 to vector<1x1xf32>
    %cst_135 = arith.constant 5.120000e+02 : f32
    %229 = vector.broadcast %cst_135 : f32 to vector<1x1xf32>
    %230 = arith.divf %228, %229 : vector<1x1xf32>
    %231 = vector.broadcast %230 : vector<1x1xf32> to vector<2x256xf32>
    %232 = arith.subf %223, %231 : vector<2x256xf32>
    %233 = arith.mulf %232, %232 : vector<2x256xf32>
    %234 = vector.shape_cast %233 : vector<2x256xf32> to vector<1x2x256xf32>
    %cst_136 = arith.constant dense<0.000000e+00> : vector<1xf32>
    %235 = vector.multi_reduction <add>, %234, %cst_136 [1, 2] : vector<1x2x256xf32> to vector<1xf32>
    %236 = vector.shape_cast %235 : vector<1xf32> to vector<1x1x1xf32>
    %237 = vector.extract %236[0, 0, 0] : f32 from vector<1x1x1xf32>
    %238 = vector.broadcast %237 : f32 to vector<1x1xf32>
    %cst_137 = arith.constant 5.120000e+02 : f32
    %239 = vector.broadcast %cst_137 : f32 to vector<1x1xf32>
    %240 = arith.divf %238, %239 : vector<1x1xf32>
    %cst_138 = arith.constant 9.99999974E-6 : f32
    %241 = vector.broadcast %cst_138 : f32 to vector<1x1xf32>
    %242 = arith.addf %240, %241 : vector<1x1xf32>
    %243 = math.rsqrt %242 : vector<1x1xf32>
    %c6_139 = arith.constant 6 : index
    %c0_140 = arith.constant 0 : index
    %c0_141 = arith.constant 0 : index
    %244 = vector.load %arg3[%c6_139, %c0_140, %c0_141] : memref<32x2x1xf32, #tpu.memory_space<vmem>>, vector<1x2x1xf32>
    %245 = vector.shape_cast %244 : vector<1x2x1xf32> to vector<2x1xf32>
    %c6_142 = arith.constant 6 : index
    %c0_143 = arith.constant 0 : index
    %c0_144 = arith.constant 0 : index
    %246 = vector.load %arg4[%c6_142, %c0_143, %c0_144] : memref<32x2x1xf32, #tpu.memory_space<vmem>>, vector<1x2x1xf32>
    %247 = vector.shape_cast %246 : vector<1x2x1xf32> to vector<2x1xf32>
    %248 = vector.broadcast %243 : vector<1x1xf32> to vector<2x1xf32>
    %249 = arith.mulf %245, %248 : vector<2x1xf32>
    %c0_145 = arith.constant 0 : index
    %c6_146 = arith.constant 6 : index
    %c0_147 = arith.constant 0 : index
    %c0_148 = arith.constant 0 : index
    %250 = vector.load %arg5[%c0_145, %c6_146, %c0_147, %c0_148] : memref<1x32x2x1xf32, #tpu.memory_space<vmem>>, vector<1x1x2x1xf32>
    %251 = vector.shape_cast %250 : vector<1x1x2x1xf32> to vector<2x1xf32>
    %252 = vector.shape_cast %249 : vector<2x1xf32> to vector<1x1x2x1xf32>
    tpu.vector_store %arg5[%c0_145, %c6_146, %c0_147, %c0_148], %252 {strides = array<i32>} : memref<1x32x2x1xf32, #tpu.memory_space<vmem>>, vector<1x1x2x1xf32>,
    %253 = vector.broadcast %230 : vector<1x1xf32> to vector<2x1xf32>
    %254 = arith.mulf %253, %249 : vector<2x1xf32>
    %255 = arith.subf %247, %254 : vector<2x1xf32>
    %c0_149 = arith.constant 0 : index
    %c6_150 = arith.constant 6 : index
    %c0_151 = arith.constant 0 : index
    %c0_152 = arith.constant 0 : index
    %256 = vector.load %arg6[%c0_149, %c6_150, %c0_151, %c0_152] : memref<1x32x2x1xf32, #tpu.memory_space<vmem>>, vector<1x1x2x1xf32>
    %257 = vector.shape_cast %256 : vector<1x1x2x1xf32> to vector<2x1xf32>
    %258 = vector.shape_cast %255 : vector<2x1xf32> to vector<1x1x2x1xf32>
    tpu.vector_store %arg6[%c0_149, %c6_150, %c0_151, %c0_152], %258 {strides = array<i32>} : memref<1x32x2x1xf32, #tpu.memory_space<vmem>>, vector<1x1x2x1xf32>,
    %c0_153 = arith.constant 0 : index
    %c7 = arith.constant 7 : index
    %c0_154 = arith.constant 0 : index
    %c0_155 = arith.constant 0 : index
    %259 = vector.load %arg2[%c0_153, %c7, %c0_154, %c0_155] : memref<1x32x2x256xf32, #tpu.memory_space<vmem>>, vector<1x1x2x256xf32>
    %260 = vector.shape_cast %259 : vector<1x1x2x256xf32> to vector<2x256xf32>
    %261 = vector.shape_cast %260 : vector<2x256xf32> to vector<1x2x256xf32>
    %cst_156 = arith.constant dense<0.000000e+00> : vector<1xf32>
    %262 = vector.multi_reduction <add>, %261, %cst_156 [1, 2] : vector<1x2x256xf32> to vector<1xf32>
    %263 = vector.shape_cast %262 : vector<1xf32> to vector<1x1x1xf32>
    %264 = vector.extract %263[0, 0, 0] : f32 from vector<1x1x1xf32>
    %265 = vector.broadcast %264 : f32 to vector<1x1xf32>
    %cst_157 = arith.constant 5.120000e+02 : f32
    %266 = vector.broadcast %cst_157 : f32 to vector<1x1xf32>
    %267 = arith.divf %265, %266 : vector<1x1xf32>
    %268 = vector.broadcast %267 : vector<1x1xf32> to vector<2x256xf32>
    %269 = arith.subf %260, %268 : vector<2x256xf32>
    %270 = arith.mulf %269, %269 : vector<2x256xf32>
    %271 = vector.shape_cast %270 : vector<2x256xf32> to vector<1x2x256xf32>
    %cst_158 = arith.constant dense<0.000000e+00> : vector<1xf32>
    %272 = vector.multi_reduction <add>, %271, %cst_158 [1, 2] : vector<1x2x256xf32> to vector<1xf32>
    %273 = vector.shape_cast %272 : vector<1xf32> to vector<1x1x1xf32>
    %274 = vector.extract %273[0, 0, 0] : f32 from vector<1x1x1xf32>
    %275 = vector.broadcast %274 : f32 to vector<1x1xf32>
    %cst_159 = arith.constant 5.120000e+02 : f32
    %276 = vector.broadcast %cst_159 : f32 to vector<1x1xf32>
    %277 = arith.divf %275, %276 : vector<1x1xf32>
    %cst_160 = arith.constant 9.99999974E-6 : f32
    %278 = vector.broadcast %cst_160 : f32 to vector<1x1xf32>
    %279 = arith.addf %277, %278 : vector<1x1xf32>
    %280 = math.rsqrt %279 : vector<1x1xf32>
    %c7_161 = arith.constant 7 : index
    %c0_162 = arith.constant 0 : index
    %c0_163 = arith.constant 0 : index
    %281 = vector.load %arg3[%c7_161, %c0_162, %c0_163] : memref<32x2x1xf32, #tpu.memory_space<vmem>>, vector<1x2x1xf32>
    %282 = vector.shape_cast %281 : vector<1x2x1xf32> to vector<2x1xf32>
    %c7_164 = arith.constant 7 : index
    %c0_165 = arith.constant 0 : index
    %c0_166 = arith.constant 0 : index
    %283 = vector.load %arg4[%c7_164, %c0_165, %c0_166] : memref<32x2x1xf32, #tpu.memory_space<vmem>>, vector<1x2x1xf32>
    %284 = vector.shape_cast %283 : vector<1x2x1xf32> to vector<2x1xf32>
    %285 = vector.broadcast %280 : vector<1x1xf32> to vector<2x1xf32>
    %286 = arith.mulf %282, %285 : vector<2x1xf32>
    %c0_167 = arith.constant 0 : index
    %c7_168 = arith.constant 7 : index
    %c0_169 = arith.constant 0 : index
    %c0_170 = arith.constant 0 : index
    %287 = vector.load %arg5[%c0_167, %c7_168, %c0_169, %c0_170] : memref<1x32x2x1xf32, #tpu.memory_space<vmem>>, vector<1x1x2x1xf32>
    %288 = vector.shape_cast %287 : vector<1x1x2x1xf32> to vector<2x1xf32>
    %289 = vector.shape_cast %286 : vector<2x1xf32> to vector<1x1x2x1xf32>
    tpu.vector_store %arg5[%c0_167, %c7_168, %c0_169, %c0_170], %289 {strides = array<i32>} : memref<1x32x2x1xf32, #tpu.memory_space<vmem>>, vector<1x1x2x1xf32>,
    %290 = vector.broadcast %267 : vector<1x1xf32> to vector<2x1xf32>
    %291 = arith.mulf %290, %286 : vector<2x1xf32>
    %292 = arith.subf %284, %291 : vector<2x1xf32>
    %c0_171 = arith.constant 0 : index
    %c7_172 = arith.constant 7 : index
    %c0_173 = arith.constant 0 : index
    %c0_174 = arith.constant 0 : index
    %293 = vector.load %arg6[%c0_171, %c7_172, %c0_173, %c0_174] : memref<1x32x2x1xf32, #tpu.memory_space<vmem>>, vector<1x1x2x1xf32>
    %294 = vector.shape_cast %293 : vector<1x1x2x1xf32> to vector<2x1xf32>
    %295 = vector.shape_cast %292 : vector<2x1xf32> to vector<1x1x2x1xf32>
    tpu.vector_store %arg6[%c0_171, %c7_172, %c0_173, %c0_174], %295 {strides = array<i32>} : memref<1x32x2x1xf32, #tpu.memory_space<vmem>>, vector<1x1x2x1xf32>,
    %c0_175 = arith.constant 0 : index
    %c8 = arith.constant 8 : index
    %c0_176 = arith.constant 0 : index
    %c0_177 = arith.constant 0 : index
    %296 = vector.load %arg2[%c0_175, %c8, %c0_176, %c0_177] : memref<1x32x2x256xf32, #tpu.memory_space<vmem>>, vector<1x1x2x256xf32>
    %297 = vector.shape_cast %296 : vector<1x1x2x256xf32> to vector<2x256xf32>
    %298 = vector.shape_cast %297 : vector<2x256xf32> to vector<1x2x256xf32>
    %cst_178 = arith.constant dense<0.000000e+00> : vector<1xf32>
    %299 = vector.multi_reduction <add>, %298, %cst_178 [1, 2] : vector<1x2x256xf32> to vector<1xf32>
    %300 = vector.shape_cast %299 : vector<1xf32> to vector<1x1x1xf32>
    %301 = vector.extract %300[0, 0, 0] : f32 from vector<1x1x1xf32>
    %302 = vector.broadcast %301 : f32 to vector<1x1xf32>
    %cst_179 = arith.constant 5.120000e+02 : f32
    %303 = vector.broadcast %cst_179 : f32 to vector<1x1xf32>
    %304 = arith.divf %302, %303 : vector<1x1xf32>
    %305 = vector.broadcast %304 : vector<1x1xf32> to vector<2x256xf32>
    %306 = arith.subf %297, %305 : vector<2x256xf32>
    %307 = arith.mulf %306, %306 : vector<2x256xf32>
    %308 = vector.shape_cast %307 : vector<2x256xf32> to vector<1x2x256xf32>
    %cst_180 = arith.constant dense<0.000000e+00> : vector<1xf32>
    %309 = vector.multi_reduction <add>, %308, %cst_180 [1, 2] : vector<1x2x256xf32> to vector<1xf32>
    %310 = vector.shape_cast %309 : vector<1xf32> to vector<1x1x1xf32>
    %311 = vector.extract %310[0, 0, 0] : f32 from vector<1x1x1xf32>
    %312 = vector.broadcast %311 : f32 to vector<1x1xf32>
    %cst_181 = arith.constant 5.120000e+02 : f32
    %313 = vector.broadcast %cst_181 : f32 to vector<1x1xf32>
    %314 = arith.divf %312, %313 : vector<1x1xf32>
    %cst_182 = arith.constant 9.99999974E-6 : f32
    %315 = vector.broadcast %cst_182 : f32 to vector<1x1xf32>
    %316 = arith.addf %314, %315 : vector<1x1xf32>
    %317 = math.rsqrt %316 : vector<1x1xf32>
    %c8_183 = arith.constant 8 : index
    %c0_184 = arith.constant 0 : index
    %c0_185 = arith.constant 0 : index
    %318 = vector.load %arg3[%c8_183, %c0_184, %c0_185] : memref<32x2x1xf32, #tpu.memory_space<vmem>>, vector<1x2x1xf32>
    %319 = vector.shape_cast %318 : vector<1x2x1xf32> to vector<2x1xf32>
    %c8_186 = arith.constant 8 : index
    %c0_187 = arith.constant 0 : index
    %c0_188 = arith.constant 0 : index
    %320 = vector.load %arg4[%c8_186, %c0_187, %c0_188] : memref<32x2x1xf32, #tpu.memory_space<vmem>>, vector<1x2x1xf32>
    %321 = vector.shape_cast %320 : vector<1x2x1xf32> to vector<2x1xf32>
    %322 = vector.broadcast %317 : vector<1x1xf32> to vector<2x1xf32>
    %323 = arith.mulf %319, %322 : vector<2x1xf32>
    %c0_189 = arith.constant 0 : index
    %c8_190 = arith.constant 8 : index
    %c0_191 = arith.constant 0 : index
    %c0_192 = arith.constant 0 : index
    %324 = vector.load %arg5[%c0_189, %c8_190, %c0_191, %c0_192] : memref<1x32x2x1xf32, #tpu.memory_space<vmem>>, vector<1x1x2x1xf32>
    %325 = vector.shape_cast %324 : vector<1x1x2x1xf32> to vector<2x1xf32>
    %326 = vector.shape_cast %323 : vector<2x1xf32> to vector<1x1x2x1xf32>
    tpu.vector_store %arg5[%c0_189, %c8_190, %c0_191, %c0_192], %326 {strides = array<i32>} : memref<1x32x2x1xf32, #tpu.memory_space<vmem>>, vector<1x1x2x1xf32>,
    %327 = vector.broadcast %304 : vector<1x1xf32> to vector<2x1xf32>
    %328 = arith.mulf %327, %323 : vector<2x1xf32>
    %329 = arith.subf %321, %328 : vector<2x1xf32>
    %c0_193 = arith.constant 0 : index
    %c8_194 = arith.constant 8 : index
    %c0_195 = arith.constant 0 : index
    %c0_196 = arith.constant 0 : index
    %330 = vector.load %arg6[%c0_193, %c8_194, %c0_195, %c0_196] : memref<1x32x2x1xf32, #tpu.memory_space<vmem>>, vector<1x1x2x1xf32>
    %331 = vector.shape_cast %330 : vector<1x1x2x1xf32> to vector<2x1xf32>
    %332 = vector.shape_cast %329 : vector<2x1xf32> to vector<1x1x2x1xf32>
    tpu.vector_store %arg6[%c0_193, %c8_194, %c0_195, %c0_196], %332 {strides = array<i32>} : memref<1x32x2x1xf32, #tpu.memory_space<vmem>>, vector<1x1x2x1xf32>,
    %c0_197 = arith.constant 0 : index
    %c9 = arith.constant 9 : index
    %c0_198 = arith.constant 0 : index
    %c0_199 = arith.constant 0 : index
    %333 = vector.load %arg2[%c0_197, %c9, %c0_198, %c0_199] : memref<1x32x2x256xf32, #tpu.memory_space<vmem>>, vector<1x1x2x256xf32>
    %334 = vector.shape_cast %333 : vector<1x1x2x256xf32> to vector<2x256xf32>
    %335 = vector.shape_cast %334 : vector<2x256xf32> to vector<1x2x256xf32>
    %cst_200 = arith.constant dense<0.000000e+00> : vector<1xf32>
    %336 = vector.multi_reduction <add>, %335, %cst_200 [1, 2] : vector<1x2x256xf32> to vector<1xf32>
    %337 = vector.shape_cast %336 : vector<1xf32> to vector<1x1x1xf32>
    %338 = vector.extract %337[0, 0, 0] : f32 from vector<1x1x1xf32>
    %339 = vector.broadcast %338 : f32 to vector<1x1xf32>
    %cst_201 = arith.constant 5.120000e+02 : f32
    %340 = vector.broadcast %cst_201 : f32 to vector<1x1xf32>
    %341 = arith.divf %339, %340 : vector<1x1xf32>
    %342 = vector.broadcast %341 : vector<1x1xf32> to vector<2x256xf32>
    %343 = arith.subf %334, %342 : vector<2x256xf32>
    %344 = arith.mulf %343, %343 : vector<2x256xf32>
    %345 = vector.shape_cast %344 : vector<2x256xf32> to vector<1x2x256xf32>
    %cst_202 = arith.constant dense<0.000000e+00> : vector<1xf32>
    %346 = vector.multi_reduction <add>, %345, %cst_202 [1, 2] : vector<1x2x256xf32> to vector<1xf32>
    %347 = vector.shape_cast %346 : vector<1xf32> to vector<1x1x1xf32>
    %348 = vector.extract %347[0, 0, 0] : f32 from vector<1x1x1xf32>
    %349 = vector.broadcast %348 : f32 to vector<1x1xf32>
    %cst_203 = arith.constant 5.120000e+02 : f32
    %350 = vector.broadcast %cst_203 : f32 to vector<1x1xf32>
    %351 = arith.divf %349, %350 : vector<1x1xf32>
    %cst_204 = arith.constant 9.99999974E-6 : f32
    %352 = vector.broadcast %cst_204 : f32 to vector<1x1xf32>
    %353 = arith.addf %351, %352 : vector<1x1xf32>
    %354 = math.rsqrt %353 : vector<1x1xf32>
    %c9_205 = arith.constant 9 : index
    %c0_206 = arith.constant 0 : index
    %c0_207 = arith.constant 0 : index
    %355 = vector.load %arg3[%c9_205, %c0_206, %c0_207] : memref<32x2x1xf32, #tpu.memory_space<vmem>>, vector<1x2x1xf32>
    %356 = vector.shape_cast %355 : vector<1x2x1xf32> to vector<2x1xf32>
    %c9_208 = arith.constant 9 : index
    %c0_209 = arith.constant 0 : index
    %c0_210 = arith.constant 0 : index
    %357 = vector.load %arg4[%c9_208, %c0_209, %c0_210] : memref<32x2x1xf32, #tpu.memory_space<vmem>>, vector<1x2x1xf32>
    %358 = vector.shape_cast %357 : vector<1x2x1xf32> to vector<2x1xf32>
    %359 = vector.broadcast %354 : vector<1x1xf32> to vector<2x1xf32>
    %360 = arith.mulf %356, %359 : vector<2x1xf32>
    %c0_211 = arith.constant 0 : index
    %c9_212 = arith.constant 9 : index
    %c0_213 = arith.constant 0 : index
    %c0_214 = arith.constant 0 : index
    %361 = vector.load %arg5[%c0_211, %c9_212, %c0_213, %c0_214] : memref<1x32x2x1xf32, #tpu.memory_space<vmem>>, vector<1x1x2x1xf32>
    %362 = vector.shape_cast %361 : vector<1x1x2x1xf32> to vector<2x1xf32>
    %363 = vector.shape_cast %360 : vector<2x1xf32> to vector<1x1x2x1xf32>
    tpu.vector_store %arg5[%c0_211, %c9_212, %c0_213, %c0_214], %363 {strides = array<i32>} : memref<1x32x2x1xf32, #tpu.memory_space<vmem>>, vector<1x1x2x1xf32>,
    %364 = vector.broadcast %341 : vector<1x1xf32> to vector<2x1xf32>
    %365 = arith.mulf %364, %360 : vector<2x1xf32>
    %366 = arith.subf %358, %365 : vector<2x1xf32>
    %c0_215 = arith.constant 0 : index
    %c9_216 = arith.constant 9 : index
    %c0_217 = arith.constant 0 : index
    %c0_218 = arith.constant 0 : index
    %367 = vector.load %arg6[%c0_215, %c9_216, %c0_217, %c0_218] : memref<1x32x2x1xf32, #tpu.memory_space<vmem>>, vector<1x1x2x1xf32>
    %368 = vector.shape_cast %367 : vector<1x1x2x1xf32> to vector<2x1xf32>
    %369 = vector.shape_cast %366 : vector<2x1xf32> to vector<1x1x2x1xf32>
    tpu.vector_store %arg6[%c0_215, %c9_216, %c0_217, %c0_218], %369 {strides = array<i32>} : memref<1x32x2x1xf32, #tpu.memory_space<vmem>>, vector<1x1x2x1xf32>,
    %c0_219 = arith.constant 0 : index
    %c10 = arith.constant 10 : index
    %c0_220 = arith.constant 0 : index
    %c0_221 = arith.constant 0 : index
    %370 = vector.load %arg2[%c0_219, %c10, %c0_220, %c0_221] : memref<1x32x2x256xf32, #tpu.memory_space<vmem>>, vector<1x1x2x256xf32>
    %371 = vector.shape_cast %370 : vector<1x1x2x256xf32> to vector<2x256xf32>
    %372 = vector.shape_cast %371 : vector<2x256xf32> to vector<1x2x256xf32>
    %cst_222 = arith.constant dense<0.000000e+00> : vector<1xf32>
    %373 = vector.multi_reduction <add>, %372, %cst_222 [1, 2] : vector<1x2x256xf32> to vector<1xf32>
    %374 = vector.shape_cast %373 : vector<1xf32> to vector<1x1x1xf32>
    %375 = vector.extract %374[0, 0, 0] : f32 from vector<1x1x1xf32>
    %376 = vector.broadcast %375 : f32 to vector<1x1xf32>
    %cst_223 = arith.constant 5.120000e+02 : f32
    %377 = vector.broadcast %cst_223 : f32 to vector<1x1xf32>
    %378 = arith.divf %376, %377 : vector<1x1xf32>
    %379 = vector.broadcast %378 : vector<1x1xf32> to vector<2x256xf32>
    %380 = arith.subf %371, %379 : vector<2x256xf32>
    %381 = arith.mulf %380, %380 : vector<2x256xf32>
    %382 = vector.shape_cast %381 : vector<2x256xf32> to vector<1x2x256xf32>
    %cst_224 = arith.constant dense<0.000000e+00> : vector<1xf32>
    %383 = vector.multi_reduction <add>, %382, %cst_224 [1, 2] : vector<1x2x256xf32> to vector<1xf32>
    %384 = vector.shape_cast %383 : vector<1xf32> to vector<1x1x1xf32>
    %385 = vector.extract %384[0, 0, 0] : f32 from vector<1x1x1xf32>
    %386 = vector.broadcast %385 : f32 to vector<1x1xf32>
    %cst_225 = arith.constant 5.120000e+02 : f32
    %387 = vector.broadcast %cst_225 : f32 to vector<1x1xf32>
    %388 = arith.divf %386, %387 : vector<1x1xf32>
    %cst_226 = arith.constant 9.99999974E-6 : f32
    %389 = vector.broadcast %cst_226 : f32 to vector<1x1xf32>
    %390 = arith.addf %388, %389 : vector<1x1xf32>
    %391 = math.rsqrt %390 : vector<1x1xf32>
    %c10_227 = arith.constant 10 : index
    %c0_228 = arith.constant 0 : index
    %c0_229 = arith.constant 0 : index
    %392 = vector.load %arg3[%c10_227, %c0_228, %c0_229] : memref<32x2x1xf32, #tpu.memory_space<vmem>>, vector<1x2x1xf32>
    %393 = vector.shape_cast %392 : vector<1x2x1xf32> to vector<2x1xf32>
    %c10_230 = arith.constant 10 : index
    %c0_231 = arith.constant 0 : index
    %c0_232 = arith.constant 0 : index
    %394 = vector.load %arg4[%c10_230, %c0_231, %c0_232] : memref<32x2x1xf32, #tpu.memory_space<vmem>>, vector<1x2x1xf32>
    %395 = vector.shape_cast %394 : vector<1x2x1xf32> to vector<2x1xf32>
    %396 = vector.broadcast %391 : vector<1x1xf32> to vector<2x1xf32>
    %397 = arith.mulf %393, %396 : vector<2x1xf32>
    %c0_233 = arith.constant 0 : index
    %c10_234 = arith.constant 10 : index
    %c0_235 = arith.constant 0 : index
    %c0_236 = arith.constant 0 : index
    %398 = vector.load %arg5[%c0_233, %c10_234, %c0_235, %c0_236] : memref<1x32x2x1xf32, #tpu.memory_space<vmem>>, vector<1x1x2x1xf32>
    %399 = vector.shape_cast %398 : vector<1x1x2x1xf32> to vector<2x1xf32>
    %400 = vector.shape_cast %397 : vector<2x1xf32> to vector<1x1x2x1xf32>
    tpu.vector_store %arg5[%c0_233, %c10_234, %c0_235, %c0_236], %400 {strides = array<i32>} : memref<1x32x2x1xf32, #tpu.memory_space<vmem>>, vector<1x1x2x1xf32>,
    %401 = vector.broadcast %378 : vector<1x1xf32> to vector<2x1xf32>
    %402 = arith.mulf %401, %397 : vector<2x1xf32>
    %403 = arith.subf %395, %402 : vector<2x1xf32>
    %c0_237 = arith.constant 0 : index
    %c10_238 = arith.constant 10 : index
    %c0_239 = arith.constant 0 : index
    %c0_240 = arith.constant 0 : index
    %404 = vector.load %arg6[%c0_237, %c10_238, %c0_239, %c0_240] : memref<1x32x2x1xf32, #tpu.memory_space<vmem>>, vector<1x1x2x1xf32>
    %405 = vector.shape_cast %404 : vector<1x1x2x1xf32> to vector<2x1xf32>
    %406 = vector.shape_cast %403 : vector<2x1xf32> to vector<1x1x2x1xf32>
    tpu.vector_store %arg6[%c0_237, %c10_238, %c0_239, %c0_240], %406 {strides = array<i32>} : memref<1x32x2x1xf32, #tpu.memory_space<vmem>>, vector<1x1x2x1xf32>,
    %c0_241 = arith.constant 0 : index
    %c11 = arith.constant 11 : index
    %c0_242 = arith.constant 0 : index
    %c0_243 = arith.constant 0 : index
    %407 = vector.load %arg2[%c0_241, %c11, %c0_242, %c0_243] : memref<1x32x2x256xf32, #tpu.memory_space<vmem>>, vector<1x1x2x256xf32>
    %408 = vector.shape_cast %407 : vector<1x1x2x256xf32> to vector<2x256xf32>
    %409 = vector.shape_cast %408 : vector<2x256xf32> to vector<1x2x256xf32>
    %cst_244 = arith.constant dense<0.000000e+00> : vector<1xf32>
    %410 = vector.multi_reduction <add>, %409, %cst_244 [1, 2] : vector<1x2x256xf32> to vector<1xf32>
    %411 = vector.shape_cast %410 : vector<1xf32> to vector<1x1x1xf32>
    %412 = vector.extract %411[0, 0, 0] : f32 from vector<1x1x1xf32>
    %413 = vector.broadcast %412 : f32 to vector<1x1xf32>
    %cst_245 = arith.constant 5.120000e+02 : f32
    %414 = vector.broadcast %cst_245 : f32 to vector<1x1xf32>
    %415 = arith.divf %413, %414 : vector<1x1xf32>
    %416 = vector.broadcast %415 : vector<1x1xf32> to vector<2x256xf32>
    %417 = arith.subf %408, %416 : vector<2x256xf32>
    %418 = arith.mulf %417, %417 : vector<2x256xf32>
    %419 = vector.shape_cast %418 : vector<2x256xf32> to vector<1x2x256xf32>
    %cst_246 = arith.constant dense<0.000000e+00> : vector<1xf32>
    %420 = vector.multi_reduction <add>, %419, %cst_246 [1, 2] : vector<1x2x256xf32> to vector<1xf32>
    %421 = vector.shape_cast %420 : vector<1xf32> to vector<1x1x1xf32>
    %422 = vector.extract %421[0, 0, 0] : f32 from vector<1x1x1xf32>
    %423 = vector.broadcast %422 : f32 to vector<1x1xf32>
    %cst_247 = arith.constant 5.120000e+02 : f32
    %424 = vector.broadcast %cst_247 : f32 to vector<1x1xf32>
    %425 = arith.divf %423, %424 : vector<1x1xf32>
    %cst_248 = arith.constant 9.99999974E-6 : f32
    %426 = vector.broadcast %cst_248 : f32 to vector<1x1xf32>
    %427 = arith.addf %425, %426 : vector<1x1xf32>
    %428 = math.rsqrt %427 : vector<1x1xf32>
    %c11_249 = arith.constant 11 : index
    %c0_250 = arith.constant 0 : index
    %c0_251 = arith.constant 0 : index
    %429 = vector.load %arg3[%c11_249, %c0_250, %c0_251] : memref<32x2x1xf32, #tpu.memory_space<vmem>>, vector<1x2x1xf32>
    %430 = vector.shape_cast %429 : vector<1x2x1xf32> to vector<2x1xf32>
    %c11_252 = arith.constant 11 : index
    %c0_253 = arith.constant 0 : index
    %c0_254 = arith.constant 0 : index
    %431 = vector.load %arg4[%c11_252, %c0_253, %c0_254] : memref<32x2x1xf32, #tpu.memory_space<vmem>>, vector<1x2x1xf32>
    %432 = vector.shape_cast %431 : vector<1x2x1xf32> to vector<2x1xf32>
    %433 = vector.broadcast %428 : vector<1x1xf32> to vector<2x1xf32>
    %434 = arith.mulf %430, %433 : vector<2x1xf32>
    %c0_255 = arith.constant 0 : index
    %c11_256 = arith.constant 11 : index
    %c0_257 = arith.constant 0 : index
    %c0_258 = arith.constant 0 : index
    %435 = vector.load %arg5[%c0_255, %c11_256, %c0_257, %c0_258] : memref<1x32x2x1xf32, #tpu.memory_space<vmem>>, vector<1x1x2x1xf32>
    %436 = vector.shape_cast %435 : vector<1x1x2x1xf32> to vector<2x1xf32>
    %437 = vector.shape_cast %434 : vector<2x1xf32> to vector<1x1x2x1xf32>
    tpu.vector_store %arg5[%c0_255, %c11_256, %c0_257, %c0_258], %437 {strides = array<i32>} : memref<1x32x2x1xf32, #tpu.memory_space<vmem>>, vector<1x1x2x1xf32>,
    %438 = vector.broadcast %415 : vector<1x1xf32> to vector<2x1xf32>
    %439 = arith.mulf %438, %434 : vector<2x1xf32>
    %440 = arith.subf %432, %439 : vector<2x1xf32>
    %c0_259 = arith.constant 0 : index
    %c11_260 = arith.constant 11 : index
    %c0_261 = arith.constant 0 : index
    %c0_262 = arith.constant 0 : index
    %441 = vector.load %arg6[%c0_259, %c11_260, %c0_261, %c0_262] : memref<1x32x2x1xf32, #tpu.memory_space<vmem>>, vector<1x1x2x1xf32>
    %442 = vector.shape_cast %441 : vector<1x1x2x1xf32> to vector<2x1xf32>
    %443 = vector.shape_cast %440 : vector<2x1xf32> to vector<1x1x2x1xf32>
    tpu.vector_store %arg6[%c0_259, %c11_260, %c0_261, %c0_262], %443 {strides = array<i32>} : memref<1x32x2x1xf32, #tpu.memory_space<vmem>>, vector<1x1x2x1xf32>,
    %c0_263 = arith.constant 0 : index
    %c12 = arith.constant 12 : index
    %c0_264 = arith.constant 0 : index
    %c0_265 = arith.constant 0 : index
    %444 = vector.load %arg2[%c0_263, %c12, %c0_264, %c0_265] : memref<1x32x2x256xf32, #tpu.memory_space<vmem>>, vector<1x1x2x256xf32>
    %445 = vector.shape_cast %444 : vector<1x1x2x256xf32> to vector<2x256xf32>
    %446 = vector.shape_cast %445 : vector<2x256xf32> to vector<1x2x256xf32>
    %cst_266 = arith.constant dense<0.000000e+00> : vector<1xf32>
    %447 = vector.multi_reduction <add>, %446, %cst_266 [1, 2] : vector<1x2x256xf32> to vector<1xf32>
    %448 = vector.shape_cast %447 : vector<1xf32> to vector<1x1x1xf32>
    %449 = vector.extract %448[0, 0, 0] : f32 from vector<1x1x1xf32>
    %450 = vector.broadcast %449 : f32 to vector<1x1xf32>
    %cst_267 = arith.constant 5.120000e+02 : f32
    %451 = vector.broadcast %cst_267 : f32 to vector<1x1xf32>
    %452 = arith.divf %450, %451 : vector<1x1xf32>
    %453 = vector.broadcast %452 : vector<1x1xf32> to vector<2x256xf32>
    %454 = arith.subf %445, %453 : vector<2x256xf32>
    %455 = arith.mulf %454, %454 : vector<2x256xf32>
    %456 = vector.shape_cast %455 : vector<2x256xf32> to vector<1x2x256xf32>
    %cst_268 = arith.constant dense<0.000000e+00> : vector<1xf32>
    %457 = vector.multi_reduction <add>, %456, %cst_268 [1, 2] : vector<1x2x256xf32> to vector<1xf32>
    %458 = vector.shape_cast %457 : vector<1xf32> to vector<1x1x1xf32>
    %459 = vector.extract %458[0, 0, 0] : f32 from vector<1x1x1xf32>
    %460 = vector.broadcast %459 : f32 to vector<1x1xf32>
    %cst_269 = arith.constant 5.120000e+02 : f32
    %461 = vector.broadcast %cst_269 : f32 to vector<1x1xf32>
    %462 = arith.divf %460, %461 : vector<1x1xf32>
    %cst_270 = arith.constant 9.99999974E-6 : f32
    %463 = vector.broadcast %cst_270 : f32 to vector<1x1xf32>
    %464 = arith.addf %462, %463 : vector<1x1xf32>
    %465 = math.rsqrt %464 : vector<1x1xf32>
    %c12_271 = arith.constant 12 : index
    %c0_272 = arith.constant 0 : index
    %c0_273 = arith.constant 0 : index
    %466 = vector.load %arg3[%c12_271, %c0_272, %c0_273] : memref<32x2x1xf32, #tpu.memory_space<vmem>>, vector<1x2x1xf32>
    %467 = vector.shape_cast %466 : vector<1x2x1xf32> to vector<2x1xf32>
    %c12_274 = arith.constant 12 : index
    %c0_275 = arith.constant 0 : index
    %c0_276 = arith.constant 0 : index
    %468 = vector.load %arg4[%c12_274, %c0_275, %c0_276] : memref<32x2x1xf32, #tpu.memory_space<vmem>>, vector<1x2x1xf32>
    %469 = vector.shape_cast %468 : vector<1x2x1xf32> to vector<2x1xf32>
    %470 = vector.broadcast %465 : vector<1x1xf32> to vector<2x1xf32>
    %471 = arith.mulf %467, %470 : vector<2x1xf32>
    %c0_277 = arith.constant 0 : index
    %c12_278 = arith.constant 12 : index
    %c0_279 = arith.constant 0 : index
    %c0_280 = arith.constant 0 : index
    %472 = vector.load %arg5[%c0_277, %c12_278, %c0_279, %c0_280] : memref<1x32x2x1xf32, #tpu.memory_space<vmem>>, vector<1x1x2x1xf32>
    %473 = vector.shape_cast %472 : vector<1x1x2x1xf32> to vector<2x1xf32>
    %474 = vector.shape_cast %471 : vector<2x1xf32> to vector<1x1x2x1xf32>
    tpu.vector_store %arg5[%c0_277, %c12_278, %c0_279, %c0_280], %474 {strides = array<i32>} : memref<1x32x2x1xf32, #tpu.memory_space<vmem>>, vector<1x1x2x1xf32>,
    %475 = vector.broadcast %452 : vector<1x1xf32> to vector<2x1xf32>
    %476 = arith.mulf %475, %471 : vector<2x1xf32>
    %477 = arith.subf %469, %476 : vector<2x1xf32>
    %c0_281 = arith.constant 0 : index
    %c12_282 = arith.constant 12 : index
    %c0_283 = arith.constant 0 : index
    %c0_284 = arith.constant 0 : index
    %478 = vector.load %arg6[%c0_281, %c12_282, %c0_283, %c0_284] : memref<1x32x2x1xf32, #tpu.memory_space<vmem>>, vector<1x1x2x1xf32>
    %479 = vector.shape_cast %478 : vector<1x1x2x1xf32> to vector<2x1xf32>
    %480 = vector.shape_cast %477 : vector<2x1xf32> to vector<1x1x2x1xf32>
    tpu.vector_store %arg6[%c0_281, %c12_282, %c0_283, %c0_284], %480 {strides = array<i32>} : memref<1x32x2x1xf32, #tpu.memory_space<vmem>>, vector<1x1x2x1xf32>,
    %c0_285 = arith.constant 0 : index
    %c13 = arith.constant 13 : index
    %c0_286 = arith.constant 0 : index
    %c0_287 = arith.constant 0 : index
    %481 = vector.load %arg2[%c0_285, %c13, %c0_286, %c0_287] : memref<1x32x2x256xf32, #tpu.memory_space<vmem>>, vector<1x1x2x256xf32>
    %482 = vector.shape_cast %481 : vector<1x1x2x256xf32> to vector<2x256xf32>
    %483 = vector.shape_cast %482 : vector<2x256xf32> to vector<1x2x256xf32>
    %cst_288 = arith.constant dense<0.000000e+00> : vector<1xf32>
    %484 = vector.multi_reduction <add>, %483, %cst_288 [1, 2] : vector<1x2x256xf32> to vector<1xf32>
    %485 = vector.shape_cast %484 : vector<1xf32> to vector<1x1x1xf32>
    %486 = vector.extract %485[0, 0, 0] : f32 from vector<1x1x1xf32>
    %487 = vector.broadcast %486 : f32 to vector<1x1xf32>
    %cst_289 = arith.constant 5.120000e+02 : f32
    %488 = vector.broadcast %cst_289 : f32 to vector<1x1xf32>
    %489 = arith.divf %487, %488 : vector<1x1xf32>
    %490 = vector.broadcast %489 : vector<1x1xf32> to vector<2x256xf32>
    %491 = arith.subf %482, %490 : vector<2x256xf32>
    %492 = arith.mulf %491, %491 : vector<2x256xf32>
    %493 = vector.shape_cast %492 : vector<2x256xf32> to vector<1x2x256xf32>
    %cst_290 = arith.constant dense<0.000000e+00> : vector<1xf32>
    %494 = vector.multi_reduction <add>, %493, %cst_290 [1, 2] : vector<1x2x256xf32> to vector<1xf32>
    %495 = vector.shape_cast %494 : vector<1xf32> to vector<1x1x1xf32>
    %496 = vector.extract %495[0, 0, 0] : f32 from vector<1x1x1xf32>
    %497 = vector.broadcast %496 : f32 to vector<1x1xf32>
    %cst_291 = arith.constant 5.120000e+02 : f32
    %498 = vector.broadcast %cst_291 : f32 to vector<1x1xf32>
    %499 = arith.divf %497, %498 : vector<1x1xf32>
    %cst_292 = arith.constant 9.99999974E-6 : f32
    %500 = vector.broadcast %cst_292 : f32 to vector<1x1xf32>
    %501 = arith.addf %499, %500 : vector<1x1xf32>
    %502 = math.rsqrt %501 : vector<1x1xf32>
    %c13_293 = arith.constant 13 : index
    %c0_294 = arith.constant 0 : index
    %c0_295 = arith.constant 0 : index
    %503 = vector.load %arg3[%c13_293, %c0_294, %c0_295] : memref<32x2x1xf32, #tpu.memory_space<vmem>>, vector<1x2x1xf32>
    %504 = vector.shape_cast %503 : vector<1x2x1xf32> to vector<2x1xf32>
    %c13_296 = arith.constant 13 : index
    %c0_297 = arith.constant 0 : index
    %c0_298 = arith.constant 0 : index
    %505 = vector.load %arg4[%c13_296, %c0_297, %c0_298] : memref<32x2x1xf32, #tpu.memory_space<vmem>>, vector<1x2x1xf32>
    %506 = vector.shape_cast %505 : vector<1x2x1xf32> to vector<2x1xf32>
    %507 = vector.broadcast %502 : vector<1x1xf32> to vector<2x1xf32>
    %508 = arith.mulf %504, %507 : vector<2x1xf32>
    %c0_299 = arith.constant 0 : index
    %c13_300 = arith.constant 13 : index
    %c0_301 = arith.constant 0 : index
    %c0_302 = arith.constant 0 : index
    %509 = vector.load %arg5[%c0_299, %c13_300, %c0_301, %c0_302] : memref<1x32x2x1xf32, #tpu.memory_space<vmem>>, vector<1x1x2x1xf32>
    %510 = vector.shape_cast %509 : vector<1x1x2x1xf32> to vector<2x1xf32>
    %511 = vector.shape_cast %508 : vector<2x1xf32> to vector<1x1x2x1xf32>
    tpu.vector_store %arg5[%c0_299, %c13_300, %c0_301, %c0_302], %511 {strides = array<i32>} : memref<1x32x2x1xf32, #tpu.memory_space<vmem>>, vector<1x1x2x1xf32>,
    %512 = vector.broadcast %489 : vector<1x1xf32> to vector<2x1xf32>
    %513 = arith.mulf %512, %508 : vector<2x1xf32>
    %514 = arith.subf %506, %513 : vector<2x1xf32>
    %c0_303 = arith.constant 0 : index
    %c13_304 = arith.constant 13 : index
    %c0_305 = arith.constant 0 : index
    %c0_306 = arith.constant 0 : index
    %515 = vector.load %arg6[%c0_303, %c13_304, %c0_305, %c0_306] : memref<1x32x2x1xf32, #tpu.memory_space<vmem>>, vector<1x1x2x1xf32>
    %516 = vector.shape_cast %515 : vector<1x1x2x1xf32> to vector<2x1xf32>
    %517 = vector.shape_cast %514 : vector<2x1xf32> to vector<1x1x2x1xf32>
    tpu.vector_store %arg6[%c0_303, %c13_304, %c0_305, %c0_306], %517 {strides = array<i32>} : memref<1x32x2x1xf32, #tpu.memory_space<vmem>>, vector<1x1x2x1xf32>,
    %c0_307 = arith.constant 0 : index
    %c14 = arith.constant 14 : index
    %c0_308 = arith.constant 0 : index
    %c0_309 = arith.constant 0 : index
    %518 = vector.load %arg2[%c0_307, %c14, %c0_308, %c0_309] : memref<1x32x2x256xf32, #tpu.memory_space<vmem>>, vector<1x1x2x256xf32>
    %519 = vector.shape_cast %518 : vector<1x1x2x256xf32> to vector<2x256xf32>
    %520 = vector.shape_cast %519 : vector<2x256xf32> to vector<1x2x256xf32>
    %cst_310 = arith.constant dense<0.000000e+00> : vector<1xf32>
    %521 = vector.multi_reduction <add>, %520, %cst_310 [1, 2] : vector<1x2x256xf32> to vector<1xf32>
    %522 = vector.shape_cast %521 : vector<1xf32> to vector<1x1x1xf32>
    %523 = vector.extract %522[0, 0, 0] : f32 from vector<1x1x1xf32>
    %524 = vector.broadcast %523 : f32 to vector<1x1xf32>
    %cst_311 = arith.constant 5.120000e+02 : f32
    %525 = vector.broadcast %cst_311 : f32 to vector<1x1xf32>
    %526 = arith.divf %524, %525 : vector<1x1xf32>
    %527 = vector.broadcast %526 : vector<1x1xf32> to vector<2x256xf32>
    %528 = arith.subf %519, %527 : vector<2x256xf32>
    %529 = arith.mulf %528, %528 : vector<2x256xf32>
    %530 = vector.shape_cast %529 : vector<2x256xf32> to vector<1x2x256xf32>
    %cst_312 = arith.constant dense<0.000000e+00> : vector<1xf32>
    %531 = vector.multi_reduction <add>, %530, %cst_312 [1, 2] : vector<1x2x256xf32> to vector<1xf32>
    %532 = vector.shape_cast %531 : vector<1xf32> to vector<1x1x1xf32>
    %533 = vector.extract %532[0, 0, 0] : f32 from vector<1x1x1xf32>
    %534 = vector.broadcast %533 : f32 to vector<1x1xf32>
    %cst_313 = arith.constant 5.120000e+02 : f32
    %535 = vector.broadcast %cst_313 : f32 to vector<1x1xf32>
    %536 = arith.divf %534, %535 : vector<1x1xf32>
    %cst_314 = arith.constant 9.99999974E-6 : f32
    %537 = vector.broadcast %cst_314 : f32 to vector<1x1xf32>
    %538 = arith.addf %536, %537 : vector<1x1xf32>
    %539 = math.rsqrt %538 : vector<1x1xf32>
    %c14_315 = arith.constant 14 : index
    %c0_316 = arith.constant 0 : index
    %c0_317 = arith.constant 0 : index
    %540 = vector.load %arg3[%c14_315, %c0_316, %c0_317] : memref<32x2x1xf32, #tpu.memory_space<vmem>>, vector<1x2x1xf32>
    %541 = vector.shape_cast %540 : vector<1x2x1xf32> to vector<2x1xf32>
    %c14_318 = arith.constant 14 : index
    %c0_319 = arith.constant 0 : index
    %c0_320 = arith.constant 0 : index
    %542 = vector.load %arg4[%c14_318, %c0_319, %c0_320] : memref<32x2x1xf32, #tpu.memory_space<vmem>>, vector<1x2x1xf32>
    %543 = vector.shape_cast %542 : vector<1x2x1xf32> to vector<2x1xf32>
    %544 = vector.broadcast %539 : vector<1x1xf32> to vector<2x1xf32>
    %545 = arith.mulf %541, %544 : vector<2x1xf32>
    %c0_321 = arith.constant 0 : index
    %c14_322 = arith.constant 14 : index
    %c0_323 = arith.constant 0 : index
    %c0_324 = arith.constant 0 : index
    %546 = vector.load %arg5[%c0_321, %c14_322, %c0_323, %c0_324] : memref<1x32x2x1xf32, #tpu.memory_space<vmem>>, vector<1x1x2x1xf32>
    %547 = vector.shape_cast %546 : vector<1x1x2x1xf32> to vector<2x1xf32>
    %548 = vector.shape_cast %545 : vector<2x1xf32> to vector<1x1x2x1xf32>
    tpu.vector_store %arg5[%c0_321, %c14_322, %c0_323, %c0_324], %548 {strides = array<i32>} : memref<1x32x2x1xf32, #tpu.memory_space<vmem>>, vector<1x1x2x1xf32>,
    %549 = vector.broadcast %526 : vector<1x1xf32> to vector<2x1xf32>
    %550 = arith.mulf %549, %545 : vector<2x1xf32>
    %551 = arith.subf %543, %550 : vector<2x1xf32>
    %c0_325 = arith.constant 0 : index
    %c14_326 = arith.constant 14 : index
    %c0_327 = arith.constant 0 : index
    %c0_328 = arith.constant 0 : index
    %552 = vector.load %arg6[%c0_325, %c14_326, %c0_327, %c0_328] : memref<1x32x2x1xf32, #tpu.memory_space<vmem>>, vector<1x1x2x1xf32>
    %553 = vector.shape_cast %552 : vector<1x1x2x1xf32> to vector<2x1xf32>
    %554 = vector.shape_cast %551 : vector<2x1xf32> to vector<1x1x2x1xf32>
    tpu.vector_store %arg6[%c0_325, %c14_326, %c0_327, %c0_328], %554 {strides = array<i32>} : memref<1x32x2x1xf32, #tpu.memory_space<vmem>>, vector<1x1x2x1xf32>,
    %c0_329 = arith.constant 0 : index
    %c15 = arith.constant 15 : index
    %c0_330 = arith.constant 0 : index
    %c0_331 = arith.constant 0 : index
    %555 = vector.load %arg2[%c0_329, %c15, %c0_330, %c0_331] : memref<1x32x2x256xf32, #tpu.memory_space<vmem>>, vector<1x1x2x256xf32>
    %556 = vector.shape_cast %555 : vector<1x1x2x256xf32> to vector<2x256xf32>
    %557 = vector.shape_cast %556 : vector<2x256xf32> to vector<1x2x256xf32>
    %cst_332 = arith.constant dense<0.000000e+00> : vector<1xf32>
    %558 = vector.multi_reduction <add>, %557, %cst_332 [1, 2] : vector<1x2x256xf32> to vector<1xf32>
    %559 = vector.shape_cast %558 : vector<1xf32> to vector<1x1x1xf32>
    %560 = vector.extract %559[0, 0, 0] : f32 from vector<1x1x1xf32>
    %561 = vector.broadcast %560 : f32 to vector<1x1xf32>
    %cst_333 = arith.constant 5.120000e+02 : f32
    %562 = vector.broadcast %cst_333 : f32 to vector<1x1xf32>
    %563 = arith.divf %561, %562 : vector<1x1xf32>
    %564 = vector.broadcast %563 : vector<1x1xf32> to vector<2x256xf32>
    %565 = arith.subf %556, %564 : vector<2x256xf32>
    %566 = arith.mulf %565, %565 : vector<2x256xf32>
    %567 = vector.shape_cast %566 : vector<2x256xf32> to vector<1x2x256xf32>
    %cst_334 = arith.constant dense<0.000000e+00> : vector<1xf32>
    %568 = vector.multi_reduction <add>, %567, %cst_334 [1, 2] : vector<1x2x256xf32> to vector<1xf32>
    %569 = vector.shape_cast %568 : vector<1xf32> to vector<1x1x1xf32>
    %570 = vector.extract %569[0, 0, 0] : f32 from vector<1x1x1xf32>
    %571 = vector.broadcast %570 : f32 to vector<1x1xf32>
    %cst_335 = arith.constant 5.120000e+02 : f32
    %572 = vector.broadcast %cst_335 : f32 to vector<1x1xf32>
    %573 = arith.divf %571, %572 : vector<1x1xf32>
    %cst_336 = arith.constant 9.99999974E-6 : f32
    %574 = vector.broadcast %cst_336 : f32 to vector<1x1xf32>
    %575 = arith.addf %573, %574 : vector<1x1xf32>
    %576 = math.rsqrt %575 : vector<1x1xf32>
    %c15_337 = arith.constant 15 : index
    %c0_338 = arith.constant 0 : index
    %c0_339 = arith.constant 0 : index
    %577 = vector.load %arg3[%c15_337, %c0_338, %c0_339] : memref<32x2x1xf32, #tpu.memory_space<vmem>>, vector<1x2x1xf32>
    %578 = vector.shape_cast %577 : vector<1x2x1xf32> to vector<2x1xf32>
    %c15_340 = arith.constant 15 : index
    %c0_341 = arith.constant 0 : index
    %c0_342 = arith.constant 0 : index
    %579 = vector.load %arg4[%c15_340, %c0_341, %c0_342] : memref<32x2x1xf32, #tpu.memory_space<vmem>>, vector<1x2x1xf32>
    %580 = vector.shape_cast %579 : vector<1x2x1xf32> to vector<2x1xf32>
    %581 = vector.broadcast %576 : vector<1x1xf32> to vector<2x1xf32>
    %582 = arith.mulf %578, %581 : vector<2x1xf32>
    %c0_343 = arith.constant 0 : index
    %c15_344 = arith.constant 15 : index
    %c0_345 = arith.constant 0 : index
    %c0_346 = arith.constant 0 : index
    %583 = vector.load %arg5[%c0_343, %c15_344, %c0_345, %c0_346] : memref<1x32x2x1xf32, #tpu.memory_space<vmem>>, vector<1x1x2x1xf32>
    %584 = vector.shape_cast %583 : vector<1x1x2x1xf32> to vector<2x1xf32>
    %585 = vector.shape_cast %582 : vector<2x1xf32> to vector<1x1x2x1xf32>
    tpu.vector_store %arg5[%c0_343, %c15_344, %c0_345, %c0_346], %585 {strides = array<i32>} : memref<1x32x2x1xf32, #tpu.memory_space<vmem>>, vector<1x1x2x1xf32>,
    %586 = vector.broadcast %563 : vector<1x1xf32> to vector<2x1xf32>
    %587 = arith.mulf %586, %582 : vector<2x1xf32>
    %588 = arith.subf %580, %587 : vector<2x1xf32>
    %c0_347 = arith.constant 0 : index
    %c15_348 = arith.constant 15 : index
    %c0_349 = arith.constant 0 : index
    %c0_350 = arith.constant 0 : index
    %589 = vector.load %arg6[%c0_347, %c15_348, %c0_349, %c0_350] : memref<1x32x2x1xf32, #tpu.memory_space<vmem>>, vector<1x1x2x1xf32>
    %590 = vector.shape_cast %589 : vector<1x1x2x1xf32> to vector<2x1xf32>
    %591 = vector.shape_cast %588 : vector<2x1xf32> to vector<1x1x2x1xf32>
    tpu.vector_store %arg6[%c0_347, %c15_348, %c0_349, %c0_350], %591 {strides = array<i32>} : memref<1x32x2x1xf32, #tpu.memory_space<vmem>>, vector<1x1x2x1xf32>,
    %c0_351 = arith.constant 0 : index
    %c16 = arith.constant 16 : index
    %c0_352 = arith.constant 0 : index
    %c0_353 = arith.constant 0 : index
    %592 = vector.load %arg2[%c0_351, %c16, %c0_352, %c0_353] : memref<1x32x2x256xf32, #tpu.memory_space<vmem>>, vector<1x1x2x256xf32>
    %593 = vector.shape_cast %592 : vector<1x1x2x256xf32> to vector<2x256xf32>
    %594 = vector.shape_cast %593 : vector<2x256xf32> to vector<1x2x256xf32>
    %cst_354 = arith.constant dense<0.000000e+00> : vector<1xf32>
    %595 = vector.multi_reduction <add>, %594, %cst_354 [1, 2] : vector<1x2x256xf32> to vector<1xf32>
    %596 = vector.shape_cast %595 : vector<1xf32> to vector<1x1x1xf32>
    %597 = vector.extract %596[0, 0, 0] : f32 from vector<1x1x1xf32>
    %598 = vector.broadcast %597 : f32 to vector<1x1xf32>
    %cst_355 = arith.constant 5.120000e+02 : f32
    %599 = vector.broadcast %cst_355 : f32 to vector<1x1xf32>
    %600 = arith.divf %598, %599 : vector<1x1xf32>
    %601 = vector.broadcast %600 : vector<1x1xf32> to vector<2x256xf32>
    %602 = arith.subf %593, %601 : vector<2x256xf32>
    %603 = arith.mulf %602, %602 : vector<2x256xf32>
    %604 = vector.shape_cast %603 : vector<2x256xf32> to vector<1x2x256xf32>
    %cst_356 = arith.constant dense<0.000000e+00> : vector<1xf32>
    %605 = vector.multi_reduction <add>, %604, %cst_356 [1, 2] : vector<1x2x256xf32> to vector<1xf32>
    %606 = vector.shape_cast %605 : vector<1xf32> to vector<1x1x1xf32>
    %607 = vector.extract %606[0, 0, 0] : f32 from vector<1x1x1xf32>
    %608 = vector.broadcast %607 : f32 to vector<1x1xf32>
    %cst_357 = arith.constant 5.120000e+02 : f32
    %609 = vector.broadcast %cst_357 : f32 to vector<1x1xf32>
    %610 = arith.divf %608, %609 : vector<1x1xf32>
    %cst_358 = arith.constant 9.99999974E-6 : f32
    %611 = vector.broadcast %cst_358 : f32 to vector<1x1xf32>
    %612 = arith.addf %610, %611 : vector<1x1xf32>
    %613 = math.rsqrt %612 : vector<1x1xf32>
    %c16_359 = arith.constant 16 : index
    %c0_360 = arith.constant 0 : index
    %c0_361 = arith.constant 0 : index
    %614 = vector.load %arg3[%c16_359, %c0_360, %c0_361] : memref<32x2x1xf32, #tpu.memory_space<vmem>>, vector<1x2x1xf32>
    %615 = vector.shape_cast %614 : vector<1x2x1xf32> to vector<2x1xf32>
    %c16_362 = arith.constant 16 : index
    %c0_363 = arith.constant 0 : index
    %c0_364 = arith.constant 0 : index
    %616 = vector.load %arg4[%c16_362, %c0_363, %c0_364] : memref<32x2x1xf32, #tpu.memory_space<vmem>>, vector<1x2x1xf32>
    %617 = vector.shape_cast %616 : vector<1x2x1xf32> to vector<2x1xf32>
    %618 = vector.broadcast %613 : vector<1x1xf32> to vector<2x1xf32>
    %619 = arith.mulf %615, %618 : vector<2x1xf32>
    %c0_365 = arith.constant 0 : index
    %c16_366 = arith.constant 16 : index
    %c0_367 = arith.constant 0 : index
    %c0_368 = arith.constant 0 : index
    %620 = vector.load %arg5[%c0_365, %c16_366, %c0_367, %c0_368] : memref<1x32x2x1xf32, #tpu.memory_space<vmem>>, vector<1x1x2x1xf32>
    %621 = vector.shape_cast %620 : vector<1x1x2x1xf32> to vector<2x1xf32>
    %622 = vector.shape_cast %619 : vector<2x1xf32> to vector<1x1x2x1xf32>
    tpu.vector_store %arg5[%c0_365, %c16_366, %c0_367, %c0_368], %622 {strides = array<i32>} : memref<1x32x2x1xf32, #tpu.memory_space<vmem>>, vector<1x1x2x1xf32>,
    %623 = vector.broadcast %600 : vector<1x1xf32> to vector<2x1xf32>
    %624 = arith.mulf %623, %619 : vector<2x1xf32>
    %625 = arith.subf %617, %624 : vector<2x1xf32>
    %c0_369 = arith.constant 0 : index
    %c16_370 = arith.constant 16 : index
    %c0_371 = arith.constant 0 : index
    %c0_372 = arith.constant 0 : index
    %626 = vector.load %arg6[%c0_369, %c16_370, %c0_371, %c0_372] : memref<1x32x2x1xf32, #tpu.memory_space<vmem>>, vector<1x1x2x1xf32>
    %627 = vector.shape_cast %626 : vector<1x1x2x1xf32> to vector<2x1xf32>
    %628 = vector.shape_cast %625 : vector<2x1xf32> to vector<1x1x2x1xf32>
    tpu.vector_store %arg6[%c0_369, %c16_370, %c0_371, %c0_372], %628 {strides = array<i32>} : memref<1x32x2x1xf32, #tpu.memory_space<vmem>>, vector<1x1x2x1xf32>,
    %c0_373 = arith.constant 0 : index
    %c17 = arith.constant 17 : index
    %c0_374 = arith.constant 0 : index
    %c0_375 = arith.constant 0 : index
    %629 = vector.load %arg2[%c0_373, %c17, %c0_374, %c0_375] : memref<1x32x2x256xf32, #tpu.memory_space<vmem>>, vector<1x1x2x256xf32>
    %630 = vector.shape_cast %629 : vector<1x1x2x256xf32> to vector<2x256xf32>
    %631 = vector.shape_cast %630 : vector<2x256xf32> to vector<1x2x256xf32>
    %cst_376 = arith.constant dense<0.000000e+00> : vector<1xf32>
    %632 = vector.multi_reduction <add>, %631, %cst_376 [1, 2] : vector<1x2x256xf32> to vector<1xf32>
    %633 = vector.shape_cast %632 : vector<1xf32> to vector<1x1x1xf32>
    %634 = vector.extract %633[0, 0, 0] : f32 from vector<1x1x1xf32>
    %635 = vector.broadcast %634 : f32 to vector<1x1xf32>
    %cst_377 = arith.constant 5.120000e+02 : f32
    %636 = vector.broadcast %cst_377 : f32 to vector<1x1xf32>
    %637 = arith.divf %635, %636 : vector<1x1xf32>
    %638 = vector.broadcast %637 : vector<1x1xf32> to vector<2x256xf32>
    %639 = arith.subf %630, %638 : vector<2x256xf32>
    %640 = arith.mulf %639, %639 : vector<2x256xf32>
    %641 = vector.shape_cast %640 : vector<2x256xf32> to vector<1x2x256xf32>
    %cst_378 = arith.constant dense<0.000000e+00> : vector<1xf32>
    %642 = vector.multi_reduction <add>, %641, %cst_378 [1, 2] : vector<1x2x256xf32> to vector<1xf32>
    %643 = vector.shape_cast %642 : vector<1xf32> to vector<1x1x1xf32>
    %644 = vector.extract %643[0, 0, 0] : f32 from vector<1x1x1xf32>
    %645 = vector.broadcast %644 : f32 to vector<1x1xf32>
    %cst_379 = arith.constant 5.120000e+02 : f32
    %646 = vector.broadcast %cst_379 : f32 to vector<1x1xf32>
    %647 = arith.divf %645, %646 : vector<1x1xf32>
    %cst_380 = arith.constant 9.99999974E-6 : f32
    %648 = vector.broadcast %cst_380 : f32 to vector<1x1xf32>
    %649 = arith.addf %647, %648 : vector<1x1xf32>
    %650 = math.rsqrt %649 : vector<1x1xf32>
    %c17_381 = arith.constant 17 : index
    %c0_382 = arith.constant 0 : index
    %c0_383 = arith.constant 0 : index
    %651 = vector.load %arg3[%c17_381, %c0_382, %c0_383] : memref<32x2x1xf32, #tpu.memory_space<vmem>>, vector<1x2x1xf32>
    %652 = vector.shape_cast %651 : vector<1x2x1xf32> to vector<2x1xf32>
    %c17_384 = arith.constant 17 : index
    %c0_385 = arith.constant 0 : index
    %c0_386 = arith.constant 0 : index
    %653 = vector.load %arg4[%c17_384, %c0_385, %c0_386] : memref<32x2x1xf32, #tpu.memory_space<vmem>>, vector<1x2x1xf32>
    %654 = vector.shape_cast %653 : vector<1x2x1xf32> to vector<2x1xf32>
    %655 = vector.broadcast %650 : vector<1x1xf32> to vector<2x1xf32>
    %656 = arith.mulf %652, %655 : vector<2x1xf32>
    %c0_387 = arith.constant 0 : index
    %c17_388 = arith.constant 17 : index
    %c0_389 = arith.constant 0 : index
    %c0_390 = arith.constant 0 : index
    %657 = vector.load %arg5[%c0_387, %c17_388, %c0_389, %c0_390] : memref<1x32x2x1xf32, #tpu.memory_space<vmem>>, vector<1x1x2x1xf32>
    %658 = vector.shape_cast %657 : vector<1x1x2x1xf32> to vector<2x1xf32>
    %659 = vector.shape_cast %656 : vector<2x1xf32> to vector<1x1x2x1xf32>
    tpu.vector_store %arg5[%c0_387, %c17_388, %c0_389, %c0_390], %659 {strides = array<i32>} : memref<1x32x2x1xf32, #tpu.memory_space<vmem>>, vector<1x1x2x1xf32>,
    %660 = vector.broadcast %637 : vector<1x1xf32> to vector<2x1xf32>
    %661 = arith.mulf %660, %656 : vector<2x1xf32>
    %662 = arith.subf %654, %661 : vector<2x1xf32>
    %c0_391 = arith.constant 0 : index
    %c17_392 = arith.constant 17 : index
    %c0_393 = arith.constant 0 : index
    %c0_394 = arith.constant 0 : index
    %663 = vector.load %arg6[%c0_391, %c17_392, %c0_393, %c0_394] : memref<1x32x2x1xf32, #tpu.memory_space<vmem>>, vector<1x1x2x1xf32>
    %664 = vector.shape_cast %663 : vector<1x1x2x1xf32> to vector<2x1xf32>
    %665 = vector.shape_cast %662 : vector<2x1xf32> to vector<1x1x2x1xf32>
    tpu.vector_store %arg6[%c0_391, %c17_392, %c0_393, %c0_394], %665 {strides = array<i32>} : memref<1x32x2x1xf32, #tpu.memory_space<vmem>>, vector<1x1x2x1xf32>,
    %c0_395 = arith.constant 0 : index
    %c18 = arith.constant 18 : index
    %c0_396 = arith.constant 0 : index
    %c0_397 = arith.constant 0 : index
    %666 = vector.load %arg2[%c0_395, %c18, %c0_396, %c0_397] : memref<1x32x2x256xf32, #tpu.memory_space<vmem>>, vector<1x1x2x256xf32>
    %667 = vector.shape_cast %666 : vector<1x1x2x256xf32> to vector<2x256xf32>
    %668 = vector.shape_cast %667 : vector<2x256xf32> to vector<1x2x256xf32>
    %cst_398 = arith.constant dense<0.000000e+00> : vector<1xf32>
    %669 = vector.multi_reduction <add>, %668, %cst_398 [1, 2] : vector<1x2x256xf32> to vector<1xf32>
    %670 = vector.shape_cast %669 : vector<1xf32> to vector<1x1x1xf32>
    %671 = vector.extract %670[0, 0, 0] : f32 from vector<1x1x1xf32>
    %672 = vector.broadcast %671 : f32 to vector<1x1xf32>
    %cst_399 = arith.constant 5.120000e+02 : f32
    %673 = vector.broadcast %cst_399 : f32 to vector<1x1xf32>
    %674 = arith.divf %672, %673 : vector<1x1xf32>
    %675 = vector.broadcast %674 : vector<1x1xf32> to vector<2x256xf32>
    %676 = arith.subf %667, %675 : vector<2x256xf32>
    %677 = arith.mulf %676, %676 : vector<2x256xf32>
    %678 = vector.shape_cast %677 : vector<2x256xf32> to vector<1x2x256xf32>
    %cst_400 = arith.constant dense<0.000000e+00> : vector<1xf32>
    %679 = vector.multi_reduction <add>, %678, %cst_400 [1, 2] : vector<1x2x256xf32> to vector<1xf32>
    %680 = vector.shape_cast %679 : vector<1xf32> to vector<1x1x1xf32>
    %681 = vector.extract %680[0, 0, 0] : f32 from vector<1x1x1xf32>
    %682 = vector.broadcast %681 : f32 to vector<1x1xf32>
    %cst_401 = arith.constant 5.120000e+02 : f32
    %683 = vector.broadcast %cst_401 : f32 to vector<1x1xf32>
    %684 = arith.divf %682, %683 : vector<1x1xf32>
    %cst_402 = arith.constant 9.99999974E-6 : f32
    %685 = vector.broadcast %cst_402 : f32 to vector<1x1xf32>
    %686 = arith.addf %684, %685 : vector<1x1xf32>
    %687 = math.rsqrt %686 : vector<1x1xf32>
    %c18_403 = arith.constant 18 : index
    %c0_404 = arith.constant 0 : index
    %c0_405 = arith.constant 0 : index
    %688 = vector.load %arg3[%c18_403, %c0_404, %c0_405] : memref<32x2x1xf32, #tpu.memory_space<vmem>>, vector<1x2x1xf32>
    %689 = vector.shape_cast %688 : vector<1x2x1xf32> to vector<2x1xf32>
    %c18_406 = arith.constant 18 : index
    %c0_407 = arith.constant 0 : index
    %c0_408 = arith.constant 0 : index
    %690 = vector.load %arg4[%c18_406, %c0_407, %c0_408] : memref<32x2x1xf32, #tpu.memory_space<vmem>>, vector<1x2x1xf32>
    %691 = vector.shape_cast %690 : vector<1x2x1xf32> to vector<2x1xf32>
    %692 = vector.broadcast %687 : vector<1x1xf32> to vector<2x1xf32>
    %693 = arith.mulf %689, %692 : vector<2x1xf32>
    %c0_409 = arith.constant 0 : index
    %c18_410 = arith.constant 18 : index
    %c0_411 = arith.constant 0 : index
    %c0_412 = arith.constant 0 : index
    %694 = vector.load %arg5[%c0_409, %c18_410, %c0_411, %c0_412] : memref<1x32x2x1xf32, #tpu.memory_space<vmem>>, vector<1x1x2x1xf32>
    %695 = vector.shape_cast %694 : vector<1x1x2x1xf32> to vector<2x1xf32>
    %696 = vector.shape_cast %693 : vector<2x1xf32> to vector<1x1x2x1xf32>
    tpu.vector_store %arg5[%c0_409, %c18_410, %c0_411, %c0_412], %696 {strides = array<i32>} : memref<1x32x2x1xf32, #tpu.memory_space<vmem>>, vector<1x1x2x1xf32>,
    %697 = vector.broadcast %674 : vector<1x1xf32> to vector<2x1xf32>
    %698 = arith.mulf %697, %693 : vector<2x1xf32>
    %699 = arith.subf %691, %698 : vector<2x1xf32>
    %c0_413 = arith.constant 0 : index
    %c18_414 = arith.constant 18 : index
    %c0_415 = arith.constant 0 : index
    %c0_416 = arith.constant 0 : index
    %700 = vector.load %arg6[%c0_413, %c18_414, %c0_415, %c0_416] : memref<1x32x2x1xf32, #tpu.memory_space<vmem>>, vector<1x1x2x1xf32>
    %701 = vector.shape_cast %700 : vector<1x1x2x1xf32> to vector<2x1xf32>
    %702 = vector.shape_cast %699 : vector<2x1xf32> to vector<1x1x2x1xf32>
    tpu.vector_store %arg6[%c0_413, %c18_414, %c0_415, %c0_416], %702 {strides = array<i32>} : memref<1x32x2x1xf32, #tpu.memory_space<vmem>>, vector<1x1x2x1xf32>,
    %c0_417 = arith.constant 0 : index
    %c19 = arith.constant 19 : index
    %c0_418 = arith.constant 0 : index
    %c0_419 = arith.constant 0 : index
    %703 = vector.load %arg2[%c0_417, %c19, %c0_418, %c0_419] : memref<1x32x2x256xf32, #tpu.memory_space<vmem>>, vector<1x1x2x256xf32>
    %704 = vector.shape_cast %703 : vector<1x1x2x256xf32> to vector<2x256xf32>
    %705 = vector.shape_cast %704 : vector<2x256xf32> to vector<1x2x256xf32>
    %cst_420 = arith.constant dense<0.000000e+00> : vector<1xf32>
    %706 = vector.multi_reduction <add>, %705, %cst_420 [1, 2] : vector<1x2x256xf32> to vector<1xf32>
    %707 = vector.shape_cast %706 : vector<1xf32> to vector<1x1x1xf32>
    %708 = vector.extract %707[0, 0, 0] : f32 from vector<1x1x1xf32>
    %709 = vector.broadcast %708 : f32 to vector<1x1xf32>
    %cst_421 = arith.constant 5.120000e+02 : f32
    %710 = vector.broadcast %cst_421 : f32 to vector<1x1xf32>
    %711 = arith.divf %709, %710 : vector<1x1xf32>
    %712 = vector.broadcast %711 : vector<1x1xf32> to vector<2x256xf32>
    %713 = arith.subf %704, %712 : vector<2x256xf32>
    %714 = arith.mulf %713, %713 : vector<2x256xf32>
    %715 = vector.shape_cast %714 : vector<2x256xf32> to vector<1x2x256xf32>
    %cst_422 = arith.constant dense<0.000000e+00> : vector<1xf32>
    %716 = vector.multi_reduction <add>, %715, %cst_422 [1, 2] : vector<1x2x256xf32> to vector<1xf32>
    %717 = vector.shape_cast %716 : vector<1xf32> to vector<1x1x1xf32>
    %718 = vector.extract %717[0, 0, 0] : f32 from vector<1x1x1xf32>
    %719 = vector.broadcast %718 : f32 to vector<1x1xf32>
    %cst_423 = arith.constant 5.120000e+02 : f32
    %720 = vector.broadcast %cst_423 : f32 to vector<1x1xf32>
    %721 = arith.divf %719, %720 : vector<1x1xf32>
    %cst_424 = arith.constant 9.99999974E-6 : f32
    %722 = vector.broadcast %cst_424 : f32 to vector<1x1xf32>
    %723 = arith.addf %721, %722 : vector<1x1xf32>
    %724 = math.rsqrt %723 : vector<1x1xf32>
    %c19_425 = arith.constant 19 : index
    %c0_426 = arith.constant 0 : index
    %c0_427 = arith.constant 0 : index
    %725 = vector.load %arg3[%c19_425, %c0_426, %c0_427] : memref<32x2x1xf32, #tpu.memory_space<vmem>>, vector<1x2x1xf32>
    %726 = vector.shape_cast %725 : vector<1x2x1xf32> to vector<2x1xf32>
    %c19_428 = arith.constant 19 : index
    %c0_429 = arith.constant 0 : index
    %c0_430 = arith.constant 0 : index
    %727 = vector.load %arg4[%c19_428, %c0_429, %c0_430] : memref<32x2x1xf32, #tpu.memory_space<vmem>>, vector<1x2x1xf32>
    %728 = vector.shape_cast %727 : vector<1x2x1xf32> to vector<2x1xf32>
    %729 = vector.broadcast %724 : vector<1x1xf32> to vector<2x1xf32>
    %730 = arith.mulf %726, %729 : vector<2x1xf32>
    %c0_431 = arith.constant 0 : index
    %c19_432 = arith.constant 19 : index
    %c0_433 = arith.constant 0 : index
    %c0_434 = arith.constant 0 : index
    %731 = vector.load %arg5[%c0_431, %c19_432, %c0_433, %c0_434] : memref<1x32x2x1xf32, #tpu.memory_space<vmem>>, vector<1x1x2x1xf32>
    %732 = vector.shape_cast %731 : vector<1x1x2x1xf32> to vector<2x1xf32>
    %733 = vector.shape_cast %730 : vector<2x1xf32> to vector<1x1x2x1xf32>
    tpu.vector_store %arg5[%c0_431, %c19_432, %c0_433, %c0_434], %733 {strides = array<i32>} : memref<1x32x2x1xf32, #tpu.memory_space<vmem>>, vector<1x1x2x1xf32>,
    %734 = vector.broadcast %711 : vector<1x1xf32> to vector<2x1xf32>
    %735 = arith.mulf %734, %730 : vector<2x1xf32>
    %736 = arith.subf %728, %735 : vector<2x1xf32>
    %c0_435 = arith.constant 0 : index
    %c19_436 = arith.constant 19 : index
    %c0_437 = arith.constant 0 : index
    %c0_438 = arith.constant 0 : index
    %737 = vector.load %arg6[%c0_435, %c19_436, %c0_437, %c0_438] : memref<1x32x2x1xf32, #tpu.memory_space<vmem>>, vector<1x1x2x1xf32>
    %738 = vector.shape_cast %737 : vector<1x1x2x1xf32> to vector<2x1xf32>
    %739 = vector.shape_cast %736 : vector<2x1xf32> to vector<1x1x2x1xf32>
    tpu.vector_store %arg6[%c0_435, %c19_436, %c0_437, %c0_438], %739 {strides = array<i32>} : memref<1x32x2x1xf32, #tpu.memory_space<vmem>>, vector<1x1x2x1xf32>,
    %c0_439 = arith.constant 0 : index
    %c20 = arith.constant 20 : index
    %c0_440 = arith.constant 0 : index
    %c0_441 = arith.constant 0 : index
    %740 = vector.load %arg2[%c0_439, %c20, %c0_440, %c0_441] : memref<1x32x2x256xf32, #tpu.memory_space<vmem>>, vector<1x1x2x256xf32>
    %741 = vector.shape_cast %740 : vector<1x1x2x256xf32> to vector<2x256xf32>
    %742 = vector.shape_cast %741 : vector<2x256xf32> to vector<1x2x256xf32>
    %cst_442 = arith.constant dense<0.000000e+00> : vector<1xf32>
    %743 = vector.multi_reduction <add>, %742, %cst_442 [1, 2] : vector<1x2x256xf32> to vector<1xf32>
    %744 = vector.shape_cast %743 : vector<1xf32> to vector<1x1x1xf32>
    %745 = vector.extract %744[0, 0, 0] : f32 from vector<1x1x1xf32>
    %746 = vector.broadcast %745 : f32 to vector<1x1xf32>
    %cst_443 = arith.constant 5.120000e+02 : f32
    %747 = vector.broadcast %cst_443 : f32 to vector<1x1xf32>
    %748 = arith.divf %746, %747 : vector<1x1xf32>
    %749 = vector.broadcast %748 : vector<1x1xf32> to vector<2x256xf32>
    %750 = arith.subf %741, %749 : vector<2x256xf32>
    %751 = arith.mulf %750, %750 : vector<2x256xf32>
    %752 = vector.shape_cast %751 : vector<2x256xf32> to vector<1x2x256xf32>
    %cst_444 = arith.constant dense<0.000000e+00> : vector<1xf32>
    %753 = vector.multi_reduction <add>, %752, %cst_444 [1, 2] : vector<1x2x256xf32> to vector<1xf32>
    %754 = vector.shape_cast %753 : vector<1xf32> to vector<1x1x1xf32>
    %755 = vector.extract %754[0, 0, 0] : f32 from vector<1x1x1xf32>
    %756 = vector.broadcast %755 : f32 to vector<1x1xf32>
    %cst_445 = arith.constant 5.120000e+02 : f32
    %757 = vector.broadcast %cst_445 : f32 to vector<1x1xf32>
    %758 = arith.divf %756, %757 : vector<1x1xf32>
    %cst_446 = arith.constant 9.99999974E-6 : f32
    %759 = vector.broadcast %cst_446 : f32 to vector<1x1xf32>
    %760 = arith.addf %758, %759 : vector<1x1xf32>
    %761 = math.rsqrt %760 : vector<1x1xf32>
    %c20_447 = arith.constant 20 : index
    %c0_448 = arith.constant 0 : index
    %c0_449 = arith.constant 0 : index
    %762 = vector.load %arg3[%c20_447, %c0_448, %c0_449] : memref<32x2x1xf32, #tpu.memory_space<vmem>>, vector<1x2x1xf32>
    %763 = vector.shape_cast %762 : vector<1x2x1xf32> to vector<2x1xf32>
    %c20_450 = arith.constant 20 : index
    %c0_451 = arith.constant 0 : index
    %c0_452 = arith.constant 0 : index
    %764 = vector.load %arg4[%c20_450, %c0_451, %c0_452] : memref<32x2x1xf32, #tpu.memory_space<vmem>>, vector<1x2x1xf32>
    %765 = vector.shape_cast %764 : vector<1x2x1xf32> to vector<2x1xf32>
    %766 = vector.broadcast %761 : vector<1x1xf32> to vector<2x1xf32>
    %767 = arith.mulf %763, %766 : vector<2x1xf32>
    %c0_453 = arith.constant 0 : index
    %c20_454 = arith.constant 20 : index
    %c0_455 = arith.constant 0 : index
    %c0_456 = arith.constant 0 : index
    %768 = vector.load %arg5[%c0_453, %c20_454, %c0_455, %c0_456] : memref<1x32x2x1xf32, #tpu.memory_space<vmem>>, vector<1x1x2x1xf32>
    %769 = vector.shape_cast %768 : vector<1x1x2x1xf32> to vector<2x1xf32>
    %770 = vector.shape_cast %767 : vector<2x1xf32> to vector<1x1x2x1xf32>
    tpu.vector_store %arg5[%c0_453, %c20_454, %c0_455, %c0_456], %770 {strides = array<i32>} : memref<1x32x2x1xf32, #tpu.memory_space<vmem>>, vector<1x1x2x1xf32>,
    %771 = vector.broadcast %748 : vector<1x1xf32> to vector<2x1xf32>
    %772 = arith.mulf %771, %767 : vector<2x1xf32>
    %773 = arith.subf %765, %772 : vector<2x1xf32>
    %c0_457 = arith.constant 0 : index
    %c20_458 = arith.constant 20 : index
    %c0_459 = arith.constant 0 : index
    %c0_460 = arith.constant 0 : index
    %774 = vector.load %arg6[%c0_457, %c20_458, %c0_459, %c0_460] : memref<1x32x2x1xf32, #tpu.memory_space<vmem>>, vector<1x1x2x1xf32>
    %775 = vector.shape_cast %774 : vector<1x1x2x1xf32> to vector<2x1xf32>
    %776 = vector.shape_cast %773 : vector<2x1xf32> to vector<1x1x2x1xf32>
    tpu.vector_store %arg6[%c0_457, %c20_458, %c0_459, %c0_460], %776 {strides = array<i32>} : memref<1x32x2x1xf32, #tpu.memory_space<vmem>>, vector<1x1x2x1xf32>,
    %c0_461 = arith.constant 0 : index
    %c21 = arith.constant 21 : index
    %c0_462 = arith.constant 0 : index
    %c0_463 = arith.constant 0 : index
    %777 = vector.load %arg2[%c0_461, %c21, %c0_462, %c0_463] : memref<1x32x2x256xf32, #tpu.memory_space<vmem>>, vector<1x1x2x256xf32>
    %778 = vector.shape_cast %777 : vector<1x1x2x256xf32> to vector<2x256xf32>
    %779 = vector.shape_cast %778 : vector<2x256xf32> to vector<1x2x256xf32>
    %cst_464 = arith.constant dense<0.000000e+00> : vector<1xf32>
    %780 = vector.multi_reduction <add>, %779, %cst_464 [1, 2] : vector<1x2x256xf32> to vector<1xf32>
    %781 = vector.shape_cast %780 : vector<1xf32> to vector<1x1x1xf32>
    %782 = vector.extract %781[0, 0, 0] : f32 from vector<1x1x1xf32>
    %783 = vector.broadcast %782 : f32 to vector<1x1xf32>
    %cst_465 = arith.constant 5.120000e+02 : f32
    %784 = vector.broadcast %cst_465 : f32 to vector<1x1xf32>
    %785 = arith.divf %783, %784 : vector<1x1xf32>
    %786 = vector.broadcast %785 : vector<1x1xf32> to vector<2x256xf32>
    %787 = arith.subf %778, %786 : vector<2x256xf32>
    %788 = arith.mulf %787, %787 : vector<2x256xf32>
    %789 = vector.shape_cast %788 : vector<2x256xf32> to vector<1x2x256xf32>
    %cst_466 = arith.constant dense<0.000000e+00> : vector<1xf32>
    %790 = vector.multi_reduction <add>, %789, %cst_466 [1, 2] : vector<1x2x256xf32> to vector<1xf32>
    %791 = vector.shape_cast %790 : vector<1xf32> to vector<1x1x1xf32>
    %792 = vector.extract %791[0, 0, 0] : f32 from vector<1x1x1xf32>
    %793 = vector.broadcast %792 : f32 to vector<1x1xf32>
    %cst_467 = arith.constant 5.120000e+02 : f32
    %794 = vector.broadcast %cst_467 : f32 to vector<1x1xf32>
    %795 = arith.divf %793, %794 : vector<1x1xf32>
    %cst_468 = arith.constant 9.99999974E-6 : f32
    %796 = vector.broadcast %cst_468 : f32 to vector<1x1xf32>
    %797 = arith.addf %795, %796 : vector<1x1xf32>
    %798 = math.rsqrt %797 : vector<1x1xf32>
    %c21_469 = arith.constant 21 : index
    %c0_470 = arith.constant 0 : index
    %c0_471 = arith.constant 0 : index
    %799 = vector.load %arg3[%c21_469, %c0_470, %c0_471] : memref<32x2x1xf32, #tpu.memory_space<vmem>>, vector<1x2x1xf32>
    %800 = vector.shape_cast %799 : vector<1x2x1xf32> to vector<2x1xf32>
    %c21_472 = arith.constant 21 : index
    %c0_473 = arith.constant 0 : index
    %c0_474 = arith.constant 0 : index
    %801 = vector.load %arg4[%c21_472, %c0_473, %c0_474] : memref<32x2x1xf32, #tpu.memory_space<vmem>>, vector<1x2x1xf32>
    %802 = vector.shape_cast %801 : vector<1x2x1xf32> to vector<2x1xf32>
    %803 = vector.broadcast %798 : vector<1x1xf32> to vector<2x1xf32>
    %804 = arith.mulf %800, %803 : vector<2x1xf32>
    %c0_475 = arith.constant 0 : index
    %c21_476 = arith.constant 21 : index
    %c0_477 = arith.constant 0 : index
    %c0_478 = arith.constant 0 : index
    %805 = vector.load %arg5[%c0_475, %c21_476, %c0_477, %c0_478] : memref<1x32x2x1xf32, #tpu.memory_space<vmem>>, vector<1x1x2x1xf32>
    %806 = vector.shape_cast %805 : vector<1x1x2x1xf32> to vector<2x1xf32>
    %807 = vector.shape_cast %804 : vector<2x1xf32> to vector<1x1x2x1xf32>
    tpu.vector_store %arg5[%c0_475, %c21_476, %c0_477, %c0_478], %807 {strides = array<i32>} : memref<1x32x2x1xf32, #tpu.memory_space<vmem>>, vector<1x1x2x1xf32>,
    %808 = vector.broadcast %785 : vector<1x1xf32> to vector<2x1xf32>
    %809 = arith.mulf %808, %804 : vector<2x1xf32>
    %810 = arith.subf %802, %809 : vector<2x1xf32>
    %c0_479 = arith.constant 0 : index
    %c21_480 = arith.constant 21 : index
    %c0_481 = arith.constant 0 : index
    %c0_482 = arith.constant 0 : index
    %811 = vector.load %arg6[%c0_479, %c21_480, %c0_481, %c0_482] : memref<1x32x2x1xf32, #tpu.memory_space<vmem>>, vector<1x1x2x1xf32>
    %812 = vector.shape_cast %811 : vector<1x1x2x1xf32> to vector<2x1xf32>
    %813 = vector.shape_cast %810 : vector<2x1xf32> to vector<1x1x2x1xf32>
    tpu.vector_store %arg6[%c0_479, %c21_480, %c0_481, %c0_482], %813 {strides = array<i32>} : memref<1x32x2x1xf32, #tpu.memory_space<vmem>>, vector<1x1x2x1xf32>,
    %c0_483 = arith.constant 0 : index
    %c22 = arith.constant 22 : index
    %c0_484 = arith.constant 0 : index
    %c0_485 = arith.constant 0 : index
    %814 = vector.load %arg2[%c0_483, %c22, %c0_484, %c0_485] : memref<1x32x2x256xf32, #tpu.memory_space<vmem>>, vector<1x1x2x256xf32>
    %815 = vector.shape_cast %814 : vector<1x1x2x256xf32> to vector<2x256xf32>
    %816 = vector.shape_cast %815 : vector<2x256xf32> to vector<1x2x256xf32>
    %cst_486 = arith.constant dense<0.000000e+00> : vector<1xf32>
    %817 = vector.multi_reduction <add>, %816, %cst_486 [1, 2] : vector<1x2x256xf32> to vector<1xf32>
    %818 = vector.shape_cast %817 : vector<1xf32> to vector<1x1x1xf32>
    %819 = vector.extract %818[0, 0, 0] : f32 from vector<1x1x1xf32>
    %820 = vector.broadcast %819 : f32 to vector<1x1xf32>
    %cst_487 = arith.constant 5.120000e+02 : f32
    %821 = vector.broadcast %cst_487 : f32 to vector<1x1xf32>
    %822 = arith.divf %820, %821 : vector<1x1xf32>
    %823 = vector.broadcast %822 : vector<1x1xf32> to vector<2x256xf32>
    %824 = arith.subf %815, %823 : vector<2x256xf32>
    %825 = arith.mulf %824, %824 : vector<2x256xf32>
    %826 = vector.shape_cast %825 : vector<2x256xf32> to vector<1x2x256xf32>
    %cst_488 = arith.constant dense<0.000000e+00> : vector<1xf32>
    %827 = vector.multi_reduction <add>, %826, %cst_488 [1, 2] : vector<1x2x256xf32> to vector<1xf32>
    %828 = vector.shape_cast %827 : vector<1xf32> to vector<1x1x1xf32>
    %829 = vector.extract %828[0, 0, 0] : f32 from vector<1x1x1xf32>
    %830 = vector.broadcast %829 : f32 to vector<1x1xf32>
    %cst_489 = arith.constant 5.120000e+02 : f32
    %831 = vector.broadcast %cst_489 : f32 to vector<1x1xf32>
    %832 = arith.divf %830, %831 : vector<1x1xf32>
    %cst_490 = arith.constant 9.99999974E-6 : f32
    %833 = vector.broadcast %cst_490 : f32 to vector<1x1xf32>
    %834 = arith.addf %832, %833 : vector<1x1xf32>
    %835 = math.rsqrt %834 : vector<1x1xf32>
    %c22_491 = arith.constant 22 : index
    %c0_492 = arith.constant 0 : index
    %c0_493 = arith.constant 0 : index
    %836 = vector.load %arg3[%c22_491, %c0_492, %c0_493] : memref<32x2x1xf32, #tpu.memory_space<vmem>>, vector<1x2x1xf32>
    %837 = vector.shape_cast %836 : vector<1x2x1xf32> to vector<2x1xf32>
    %c22_494 = arith.constant 22 : index
    %c0_495 = arith.constant 0 : index
    %c0_496 = arith.constant 0 : index
    %838 = vector.load %arg4[%c22_494, %c0_495, %c0_496] : memref<32x2x1xf32, #tpu.memory_space<vmem>>, vector<1x2x1xf32>
    %839 = vector.shape_cast %838 : vector<1x2x1xf32> to vector<2x1xf32>
    %840 = vector.broadcast %835 : vector<1x1xf32> to vector<2x1xf32>
    %841 = arith.mulf %837, %840 : vector<2x1xf32>
    %c0_497 = arith.constant 0 : index
    %c22_498 = arith.constant 22 : index
    %c0_499 = arith.constant 0 : index
    %c0_500 = arith.constant 0 : index
    %842 = vector.load %arg5[%c0_497, %c22_498, %c0_499, %c0_500] : memref<1x32x2x1xf32, #tpu.memory_space<vmem>>, vector<1x1x2x1xf32>
    %843 = vector.shape_cast %842 : vector<1x1x2x1xf32> to vector<2x1xf32>
    %844 = vector.shape_cast %841 : vector<2x1xf32> to vector<1x1x2x1xf32>
    tpu.vector_store %arg5[%c0_497, %c22_498, %c0_499, %c0_500], %844 {strides = array<i32>} : memref<1x32x2x1xf32, #tpu.memory_space<vmem>>, vector<1x1x2x1xf32>,
    %845 = vector.broadcast %822 : vector<1x1xf32> to vector<2x1xf32>
    %846 = arith.mulf %845, %841 : vector<2x1xf32>
    %847 = arith.subf %839, %846 : vector<2x1xf32>
    %c0_501 = arith.constant 0 : index
    %c22_502 = arith.constant 22 : index
    %c0_503 = arith.constant 0 : index
    %c0_504 = arith.constant 0 : index
    %848 = vector.load %arg6[%c0_501, %c22_502, %c0_503, %c0_504] : memref<1x32x2x1xf32, #tpu.memory_space<vmem>>, vector<1x1x2x1xf32>
    %849 = vector.shape_cast %848 : vector<1x1x2x1xf32> to vector<2x1xf32>
    %850 = vector.shape_cast %847 : vector<2x1xf32> to vector<1x1x2x1xf32>
    tpu.vector_store %arg6[%c0_501, %c22_502, %c0_503, %c0_504], %850 {strides = array<i32>} : memref<1x32x2x1xf32, #tpu.memory_space<vmem>>, vector<1x1x2x1xf32>,
    %c0_505 = arith.constant 0 : index
    %c23 = arith.constant 23 : index
    %c0_506 = arith.constant 0 : index
    %c0_507 = arith.constant 0 : index
    %851 = vector.load %arg2[%c0_505, %c23, %c0_506, %c0_507] : memref<1x32x2x256xf32, #tpu.memory_space<vmem>>, vector<1x1x2x256xf32>
    %852 = vector.shape_cast %851 : vector<1x1x2x256xf32> to vector<2x256xf32>
    %853 = vector.shape_cast %852 : vector<2x256xf32> to vector<1x2x256xf32>
    %cst_508 = arith.constant dense<0.000000e+00> : vector<1xf32>
    %854 = vector.multi_reduction <add>, %853, %cst_508 [1, 2] : vector<1x2x256xf32> to vector<1xf32>
    %855 = vector.shape_cast %854 : vector<1xf32> to vector<1x1x1xf32>
    %856 = vector.extract %855[0, 0, 0] : f32 from vector<1x1x1xf32>
    %857 = vector.broadcast %856 : f32 to vector<1x1xf32>
    %cst_509 = arith.constant 5.120000e+02 : f32
    %858 = vector.broadcast %cst_509 : f32 to vector<1x1xf32>
    %859 = arith.divf %857, %858 : vector<1x1xf32>
    %860 = vector.broadcast %859 : vector<1x1xf32> to vector<2x256xf32>
    %861 = arith.subf %852, %860 : vector<2x256xf32>
    %862 = arith.mulf %861, %861 : vector<2x256xf32>
    %863 = vector.shape_cast %862 : vector<2x256xf32> to vector<1x2x256xf32>
    %cst_510 = arith.constant dense<0.000000e+00> : vector<1xf32>
    %864 = vector.multi_reduction <add>, %863, %cst_510 [1, 2] : vector<1x2x256xf32> to vector<1xf32>
    %865 = vector.shape_cast %864 : vector<1xf32> to vector<1x1x1xf32>
    %866 = vector.extract %865[0, 0, 0] : f32 from vector<1x1x1xf32>
    %867 = vector.broadcast %866 : f32 to vector<1x1xf32>
    %cst_511 = arith.constant 5.120000e+02 : f32
    %868 = vector.broadcast %cst_511 : f32 to vector<1x1xf32>
    %869 = arith.divf %867, %868 : vector<1x1xf32>
    %cst_512 = arith.constant 9.99999974E-6 : f32
    %870 = vector.broadcast %cst_512 : f32 to vector<1x1xf32>
    %871 = arith.addf %869, %870 : vector<1x1xf32>
    %872 = math.rsqrt %871 : vector<1x1xf32>
    %c23_513 = arith.constant 23 : index
    %c0_514 = arith.constant 0 : index
    %c0_515 = arith.constant 0 : index
    %873 = vector.load %arg3[%c23_513, %c0_514, %c0_515] : memref<32x2x1xf32, #tpu.memory_space<vmem>>, vector<1x2x1xf32>
    %874 = vector.shape_cast %873 : vector<1x2x1xf32> to vector<2x1xf32>
    %c23_516 = arith.constant 23 : index
    %c0_517 = arith.constant 0 : index
    %c0_518 = arith.constant 0 : index
    %875 = vector.load %arg4[%c23_516, %c0_517, %c0_518] : memref<32x2x1xf32, #tpu.memory_space<vmem>>, vector<1x2x1xf32>
    %876 = vector.shape_cast %875 : vector<1x2x1xf32> to vector<2x1xf32>
    %877 = vector.broadcast %872 : vector<1x1xf32> to vector<2x1xf32>
    %878 = arith.mulf %874, %877 : vector<2x1xf32>
    %c0_519 = arith.constant 0 : index
    %c23_520 = arith.constant 23 : index
    %c0_521 = arith.constant 0 : index
    %c0_522 = arith.constant 0 : index
    %879 = vector.load %arg5[%c0_519, %c23_520, %c0_521, %c0_522] : memref<1x32x2x1xf32, #tpu.memory_space<vmem>>, vector<1x1x2x1xf32>
    %880 = vector.shape_cast %879 : vector<1x1x2x1xf32> to vector<2x1xf32>
    %881 = vector.shape_cast %878 : vector<2x1xf32> to vector<1x1x2x1xf32>
    tpu.vector_store %arg5[%c0_519, %c23_520, %c0_521, %c0_522], %881 {strides = array<i32>} : memref<1x32x2x1xf32, #tpu.memory_space<vmem>>, vector<1x1x2x1xf32>,
    %882 = vector.broadcast %859 : vector<1x1xf32> to vector<2x1xf32>
    %883 = arith.mulf %882, %878 : vector<2x1xf32>
    %884 = arith.subf %876, %883 : vector<2x1xf32>
    %c0_523 = arith.constant 0 : index
    %c23_524 = arith.constant 23 : index
    %c0_525 = arith.constant 0 : index
    %c0_526 = arith.constant 0 : index
    %885 = vector.load %arg6[%c0_523, %c23_524, %c0_525, %c0_526] : memref<1x32x2x1xf32, #tpu.memory_space<vmem>>, vector<1x1x2x1xf32>
    %886 = vector.shape_cast %885 : vector<1x1x2x1xf32> to vector<2x1xf32>
    %887 = vector.shape_cast %884 : vector<2x1xf32> to vector<1x1x2x1xf32>
    tpu.vector_store %arg6[%c0_523, %c23_524, %c0_525, %c0_526], %887 {strides = array<i32>} : memref<1x32x2x1xf32, #tpu.memory_space<vmem>>, vector<1x1x2x1xf32>,
    %c0_527 = arith.constant 0 : index
    %c24 = arith.constant 24 : index
    %c0_528 = arith.constant 0 : index
    %c0_529 = arith.constant 0 : index
    %888 = vector.load %arg2[%c0_527, %c24, %c0_528, %c0_529] : memref<1x32x2x256xf32, #tpu.memory_space<vmem>>, vector<1x1x2x256xf32>
    %889 = vector.shape_cast %888 : vector<1x1x2x256xf32> to vector<2x256xf32>
    %890 = vector.shape_cast %889 : vector<2x256xf32> to vector<1x2x256xf32>
    %cst_530 = arith.constant dense<0.000000e+00> : vector<1xf32>
    %891 = vector.multi_reduction <add>, %890, %cst_530 [1, 2] : vector<1x2x256xf32> to vector<1xf32>
    %892 = vector.shape_cast %891 : vector<1xf32> to vector<1x1x1xf32>
    %893 = vector.extract %892[0, 0, 0] : f32 from vector<1x1x1xf32>
    %894 = vector.broadcast %893 : f32 to vector<1x1xf32>
    %cst_531 = arith.constant 5.120000e+02 : f32
    %895 = vector.broadcast %cst_531 : f32 to vector<1x1xf32>
    %896 = arith.divf %894, %895 : vector<1x1xf32>
    %897 = vector.broadcast %896 : vector<1x1xf32> to vector<2x256xf32>
    %898 = arith.subf %889, %897 : vector<2x256xf32>
    %899 = arith.mulf %898, %898 : vector<2x256xf32>
    %900 = vector.shape_cast %899 : vector<2x256xf32> to vector<1x2x256xf32>
    %cst_532 = arith.constant dense<0.000000e+00> : vector<1xf32>
    %901 = vector.multi_reduction <add>, %900, %cst_532 [1, 2] : vector<1x2x256xf32> to vector<1xf32>
    %902 = vector.shape_cast %901 : vector<1xf32> to vector<1x1x1xf32>
    %903 = vector.extract %902[0, 0, 0] : f32 from vector<1x1x1xf32>
    %904 = vector.broadcast %903 : f32 to vector<1x1xf32>
    %cst_533 = arith.constant 5.120000e+02 : f32
    %905 = vector.broadcast %cst_533 : f32 to vector<1x1xf32>
    %906 = arith.divf %904, %905 : vector<1x1xf32>
    %cst_534 = arith.constant 9.99999974E-6 : f32
    %907 = vector.broadcast %cst_534 : f32 to vector<1x1xf32>
    %908 = arith.addf %906, %907 : vector<1x1xf32>
    %909 = math.rsqrt %908 : vector<1x1xf32>
    %c24_535 = arith.constant 24 : index
    %c0_536 = arith.constant 0 : index
    %c0_537 = arith.constant 0 : index
    %910 = vector.load %arg3[%c24_535, %c0_536, %c0_537] : memref<32x2x1xf32, #tpu.memory_space<vmem>>, vector<1x2x1xf32>
    %911 = vector.shape_cast %910 : vector<1x2x1xf32> to vector<2x1xf32>
    %c24_538 = arith.constant 24 : index
    %c0_539 = arith.constant 0 : index
    %c0_540 = arith.constant 0 : index
    %912 = vector.load %arg4[%c24_538, %c0_539, %c0_540] : memref<32x2x1xf32, #tpu.memory_space<vmem>>, vector<1x2x1xf32>
    %913 = vector.shape_cast %912 : vector<1x2x1xf32> to vector<2x1xf32>
    %914 = vector.broadcast %909 : vector<1x1xf32> to vector<2x1xf32>
    %915 = arith.mulf %911, %914 : vector<2x1xf32>
    %c0_541 = arith.constant 0 : index
    %c24_542 = arith.constant 24 : index
    %c0_543 = arith.constant 0 : index
    %c0_544 = arith.constant 0 : index
    %916 = vector.load %arg5[%c0_541, %c24_542, %c0_543, %c0_544] : memref<1x32x2x1xf32, #tpu.memory_space<vmem>>, vector<1x1x2x1xf32>
    %917 = vector.shape_cast %916 : vector<1x1x2x1xf32> to vector<2x1xf32>
    %918 = vector.shape_cast %915 : vector<2x1xf32> to vector<1x1x2x1xf32>
    tpu.vector_store %arg5[%c0_541, %c24_542, %c0_543, %c0_544], %918 {strides = array<i32>} : memref<1x32x2x1xf32, #tpu.memory_space<vmem>>, vector<1x1x2x1xf32>,
    %919 = vector.broadcast %896 : vector<1x1xf32> to vector<2x1xf32>
    %920 = arith.mulf %919, %915 : vector<2x1xf32>
    %921 = arith.subf %913, %920 : vector<2x1xf32>
    %c0_545 = arith.constant 0 : index
    %c24_546 = arith.constant 24 : index
    %c0_547 = arith.constant 0 : index
    %c0_548 = arith.constant 0 : index
    %922 = vector.load %arg6[%c0_545, %c24_546, %c0_547, %c0_548] : memref<1x32x2x1xf32, #tpu.memory_space<vmem>>, vector<1x1x2x1xf32>
    %923 = vector.shape_cast %922 : vector<1x1x2x1xf32> to vector<2x1xf32>
    %924 = vector.shape_cast %921 : vector<2x1xf32> to vector<1x1x2x1xf32>
    tpu.vector_store %arg6[%c0_545, %c24_546, %c0_547, %c0_548], %924 {strides = array<i32>} : memref<1x32x2x1xf32, #tpu.memory_space<vmem>>, vector<1x1x2x1xf32>,
    %c0_549 = arith.constant 0 : index
    %c25 = arith.constant 25 : index
    %c0_550 = arith.constant 0 : index
    %c0_551 = arith.constant 0 : index
    %925 = vector.load %arg2[%c0_549, %c25, %c0_550, %c0_551] : memref<1x32x2x256xf32, #tpu.memory_space<vmem>>, vector<1x1x2x256xf32>
    %926 = vector.shape_cast %925 : vector<1x1x2x256xf32> to vector<2x256xf32>
    %927 = vector.shape_cast %926 : vector<2x256xf32> to vector<1x2x256xf32>
    %cst_552 = arith.constant dense<0.000000e+00> : vector<1xf32>
    %928 = vector.multi_reduction <add>, %927, %cst_552 [1, 2] : vector<1x2x256xf32> to vector<1xf32>
    %929 = vector.shape_cast %928 : vector<1xf32> to vector<1x1x1xf32>
    %930 = vector.extract %929[0, 0, 0] : f32 from vector<1x1x1xf32>
    %931 = vector.broadcast %930 : f32 to vector<1x1xf32>
    %cst_553 = arith.constant 5.120000e+02 : f32
    %932 = vector.broadcast %cst_553 : f32 to vector<1x1xf32>
    %933 = arith.divf %931, %932 : vector<1x1xf32>
    %934 = vector.broadcast %933 : vector<1x1xf32> to vector<2x256xf32>
    %935 = arith.subf %926, %934 : vector<2x256xf32>
    %936 = arith.mulf %935, %935 : vector<2x256xf32>
    %937 = vector.shape_cast %936 : vector<2x256xf32> to vector<1x2x256xf32>
    %cst_554 = arith.constant dense<0.000000e+00> : vector<1xf32>
    %938 = vector.multi_reduction <add>, %937, %cst_554 [1, 2] : vector<1x2x256xf32> to vector<1xf32>
    %939 = vector.shape_cast %938 : vector<1xf32> to vector<1x1x1xf32>
    %940 = vector.extract %939[0, 0, 0] : f32 from vector<1x1x1xf32>
    %941 = vector.broadcast %940 : f32 to vector<1x1xf32>
    %cst_555 = arith.constant 5.120000e+02 : f32
    %942 = vector.broadcast %cst_555 : f32 to vector<1x1xf32>
    %943 = arith.divf %941, %942 : vector<1x1xf32>
    %cst_556 = arith.constant 9.99999974E-6 : f32
    %944 = vector.broadcast %cst_556 : f32 to vector<1x1xf32>
    %945 = arith.addf %943, %944 : vector<1x1xf32>
    %946 = math.rsqrt %945 : vector<1x1xf32>
    %c25_557 = arith.constant 25 : index
    %c0_558 = arith.constant 0 : index
    %c0_559 = arith.constant 0 : index
    %947 = vector.load %arg3[%c25_557, %c0_558, %c0_559] : memref<32x2x1xf32, #tpu.memory_space<vmem>>, vector<1x2x1xf32>
    %948 = vector.shape_cast %947 : vector<1x2x1xf32> to vector<2x1xf32>
    %c25_560 = arith.constant 25 : index
    %c0_561 = arith.constant 0 : index
    %c0_562 = arith.constant 0 : index
    %949 = vector.load %arg4[%c25_560, %c0_561, %c0_562] : memref<32x2x1xf32, #tpu.memory_space<vmem>>, vector<1x2x1xf32>
    %950 = vector.shape_cast %949 : vector<1x2x1xf32> to vector<2x1xf32>
    %951 = vector.broadcast %946 : vector<1x1xf32> to vector<2x1xf32>
    %952 = arith.mulf %948, %951 : vector<2x1xf32>
    %c0_563 = arith.constant 0 : index
    %c25_564 = arith.constant 25 : index
    %c0_565 = arith.constant 0 : index
    %c0_566 = arith.constant 0 : index
    %953 = vector.load %arg5[%c0_563, %c25_564, %c0_565, %c0_566] : memref<1x32x2x1xf32, #tpu.memory_space<vmem>>, vector<1x1x2x1xf32>
    %954 = vector.shape_cast %953 : vector<1x1x2x1xf32> to vector<2x1xf32>
    %955 = vector.shape_cast %952 : vector<2x1xf32> to vector<1x1x2x1xf32>
    tpu.vector_store %arg5[%c0_563, %c25_564, %c0_565, %c0_566], %955 {strides = array<i32>} : memref<1x32x2x1xf32, #tpu.memory_space<vmem>>, vector<1x1x2x1xf32>,
    %956 = vector.broadcast %933 : vector<1x1xf32> to vector<2x1xf32>
    %957 = arith.mulf %956, %952 : vector<2x1xf32>
    %958 = arith.subf %950, %957 : vector<2x1xf32>
    %c0_567 = arith.constant 0 : index
    %c25_568 = arith.constant 25 : index
    %c0_569 = arith.constant 0 : index
    %c0_570 = arith.constant 0 : index
    %959 = vector.load %arg6[%c0_567, %c25_568, %c0_569, %c0_570] : memref<1x32x2x1xf32, #tpu.memory_space<vmem>>, vector<1x1x2x1xf32>
    %960 = vector.shape_cast %959 : vector<1x1x2x1xf32> to vector<2x1xf32>
    %961 = vector.shape_cast %958 : vector<2x1xf32> to vector<1x1x2x1xf32>
    tpu.vector_store %arg6[%c0_567, %c25_568, %c0_569, %c0_570], %961 {strides = array<i32>} : memref<1x32x2x1xf32, #tpu.memory_space<vmem>>, vector<1x1x2x1xf32>,
    %c0_571 = arith.constant 0 : index
    %c26 = arith.constant 26 : index
    %c0_572 = arith.constant 0 : index
    %c0_573 = arith.constant 0 : index
    %962 = vector.load %arg2[%c0_571, %c26, %c0_572, %c0_573] : memref<1x32x2x256xf32, #tpu.memory_space<vmem>>, vector<1x1x2x256xf32>
    %963 = vector.shape_cast %962 : vector<1x1x2x256xf32> to vector<2x256xf32>
    %964 = vector.shape_cast %963 : vector<2x256xf32> to vector<1x2x256xf32>
    %cst_574 = arith.constant dense<0.000000e+00> : vector<1xf32>
    %965 = vector.multi_reduction <add>, %964, %cst_574 [1, 2] : vector<1x2x256xf32> to vector<1xf32>
    %966 = vector.shape_cast %965 : vector<1xf32> to vector<1x1x1xf32>
    %967 = vector.extract %966[0, 0, 0] : f32 from vector<1x1x1xf32>
    %968 = vector.broadcast %967 : f32 to vector<1x1xf32>
    %cst_575 = arith.constant 5.120000e+02 : f32
    %969 = vector.broadcast %cst_575 : f32 to vector<1x1xf32>
    %970 = arith.divf %968, %969 : vector<1x1xf32>
    %971 = vector.broadcast %970 : vector<1x1xf32> to vector<2x256xf32>
    %972 = arith.subf %963, %971 : vector<2x256xf32>
    %973 = arith.mulf %972, %972 : vector<2x256xf32>
    %974 = vector.shape_cast %973 : vector<2x256xf32> to vector<1x2x256xf32>
    %cst_576 = arith.constant dense<0.000000e+00> : vector<1xf32>
    %975 = vector.multi_reduction <add>, %974, %cst_576 [1, 2] : vector<1x2x256xf32> to vector<1xf32>
    %976 = vector.shape_cast %975 : vector<1xf32> to vector<1x1x1xf32>
    %977 = vector.extract %976[0, 0, 0] : f32 from vector<1x1x1xf32>
    %978 = vector.broadcast %977 : f32 to vector<1x1xf32>
    %cst_577 = arith.constant 5.120000e+02 : f32
    %979 = vector.broadcast %cst_577 : f32 to vector<1x1xf32>
    %980 = arith.divf %978, %979 : vector<1x1xf32>
    %cst_578 = arith.constant 9.99999974E-6 : f32
    %981 = vector.broadcast %cst_578 : f32 to vector<1x1xf32>
    %982 = arith.addf %980, %981 : vector<1x1xf32>
    %983 = math.rsqrt %982 : vector<1x1xf32>
    %c26_579 = arith.constant 26 : index
    %c0_580 = arith.constant 0 : index
    %c0_581 = arith.constant 0 : index
    %984 = vector.load %arg3[%c26_579, %c0_580, %c0_581] : memref<32x2x1xf32, #tpu.memory_space<vmem>>, vector<1x2x1xf32>
    %985 = vector.shape_cast %984 : vector<1x2x1xf32> to vector<2x1xf32>
    %c26_582 = arith.constant 26 : index
    %c0_583 = arith.constant 0 : index
    %c0_584 = arith.constant 0 : index
    %986 = vector.load %arg4[%c26_582, %c0_583, %c0_584] : memref<32x2x1xf32, #tpu.memory_space<vmem>>, vector<1x2x1xf32>
    %987 = vector.shape_cast %986 : vector<1x2x1xf32> to vector<2x1xf32>
    %988 = vector.broadcast %983 : vector<1x1xf32> to vector<2x1xf32>
    %989 = arith.mulf %985, %988 : vector<2x1xf32>
    %c0_585 = arith.constant 0 : index
    %c26_586 = arith.constant 26 : index
    %c0_587 = arith.constant 0 : index
    %c0_588 = arith.constant 0 : index
    %990 = vector.load %arg5[%c0_585, %c26_586, %c0_587, %c0_588] : memref<1x32x2x1xf32, #tpu.memory_space<vmem>>, vector<1x1x2x1xf32>
    %991 = vector.shape_cast %990 : vector<1x1x2x1xf32> to vector<2x1xf32>
    %992 = vector.shape_cast %989 : vector<2x1xf32> to vector<1x1x2x1xf32>
    tpu.vector_store %arg5[%c0_585, %c26_586, %c0_587, %c0_588], %992 {strides = array<i32>} : memref<1x32x2x1xf32, #tpu.memory_space<vmem>>, vector<1x1x2x1xf32>,
    %993 = vector.broadcast %970 : vector<1x1xf32> to vector<2x1xf32>
    %994 = arith.mulf %993, %989 : vector<2x1xf32>
    %995 = arith.subf %987, %994 : vector<2x1xf32>
    %c0_589 = arith.constant 0 : index
    %c26_590 = arith.constant 26 : index
    %c0_591 = arith.constant 0 : index
    %c0_592 = arith.constant 0 : index
    %996 = vector.load %arg6[%c0_589, %c26_590, %c0_591, %c0_592] : memref<1x32x2x1xf32, #tpu.memory_space<vmem>>, vector<1x1x2x1xf32>
    %997 = vector.shape_cast %996 : vector<1x1x2x1xf32> to vector<2x1xf32>
    %998 = vector.shape_cast %995 : vector<2x1xf32> to vector<1x1x2x1xf32>
    tpu.vector_store %arg6[%c0_589, %c26_590, %c0_591, %c0_592], %998 {strides = array<i32>} : memref<1x32x2x1xf32, #tpu.memory_space<vmem>>, vector<1x1x2x1xf32>,
    %c0_593 = arith.constant 0 : index
    %c27 = arith.constant 27 : index
    %c0_594 = arith.constant 0 : index
    %c0_595 = arith.constant 0 : index
    %999 = vector.load %arg2[%c0_593, %c27, %c0_594, %c0_595] : memref<1x32x2x256xf32, #tpu.memory_space<vmem>>, vector<1x1x2x256xf32>
    %1000 = vector.shape_cast %999 : vector<1x1x2x256xf32> to vector<2x256xf32>
    %1001 = vector.shape_cast %1000 : vector<2x256xf32> to vector<1x2x256xf32>
    %cst_596 = arith.constant dense<0.000000e+00> : vector<1xf32>
    %1002 = vector.multi_reduction <add>, %1001, %cst_596 [1, 2] : vector<1x2x256xf32> to vector<1xf32>
    %1003 = vector.shape_cast %1002 : vector<1xf32> to vector<1x1x1xf32>
    %1004 = vector.extract %1003[0, 0, 0] : f32 from vector<1x1x1xf32>
    %1005 = vector.broadcast %1004 : f32 to vector<1x1xf32>
    %cst_597 = arith.constant 5.120000e+02 : f32
    %1006 = vector.broadcast %cst_597 : f32 to vector<1x1xf32>
    %1007 = arith.divf %1005, %1006 : vector<1x1xf32>
    %1008 = vector.broadcast %1007 : vector<1x1xf32> to vector<2x256xf32>
    %1009 = arith.subf %1000, %1008 : vector<2x256xf32>
    %1010 = arith.mulf %1009, %1009 : vector<2x256xf32>
    %1011 = vector.shape_cast %1010 : vector<2x256xf32> to vector<1x2x256xf32>
    %cst_598 = arith.constant dense<0.000000e+00> : vector<1xf32>
    %1012 = vector.multi_reduction <add>, %1011, %cst_598 [1, 2] : vector<1x2x256xf32> to vector<1xf32>
    %1013 = vector.shape_cast %1012 : vector<1xf32> to vector<1x1x1xf32>
    %1014 = vector.extract %1013[0, 0, 0] : f32 from vector<1x1x1xf32>
    %1015 = vector.broadcast %1014 : f32 to vector<1x1xf32>
    %cst_599 = arith.constant 5.120000e+02 : f32
    %1016 = vector.broadcast %cst_599 : f32 to vector<1x1xf32>
    %1017 = arith.divf %1015, %1016 : vector<1x1xf32>
    %cst_600 = arith.constant 9.99999974E-6 : f32
    %1018 = vector.broadcast %cst_600 : f32 to vector<1x1xf32>
    %1019 = arith.addf %1017, %1018 : vector<1x1xf32>
    %1020 = math.rsqrt %1019 : vector<1x1xf32>
    %c27_601 = arith.constant 27 : index
    %c0_602 = arith.constant 0 : index
    %c0_603 = arith.constant 0 : index
    %1021 = vector.load %arg3[%c27_601, %c0_602, %c0_603] : memref<32x2x1xf32, #tpu.memory_space<vmem>>, vector<1x2x1xf32>
    %1022 = vector.shape_cast %1021 : vector<1x2x1xf32> to vector<2x1xf32>
    %c27_604 = arith.constant 27 : index
    %c0_605 = arith.constant 0 : index
    %c0_606 = arith.constant 0 : index
    %1023 = vector.load %arg4[%c27_604, %c0_605, %c0_606] : memref<32x2x1xf32, #tpu.memory_space<vmem>>, vector<1x2x1xf32>
    %1024 = vector.shape_cast %1023 : vector<1x2x1xf32> to vector<2x1xf32>
    %1025 = vector.broadcast %1020 : vector<1x1xf32> to vector<2x1xf32>
    %1026 = arith.mulf %1022, %1025 : vector<2x1xf32>
    %c0_607 = arith.constant 0 : index
    %c27_608 = arith.constant 27 : index
    %c0_609 = arith.constant 0 : index
    %c0_610 = arith.constant 0 : index
    %1027 = vector.load %arg5[%c0_607, %c27_608, %c0_609, %c0_610] : memref<1x32x2x1xf32, #tpu.memory_space<vmem>>, vector<1x1x2x1xf32>
    %1028 = vector.shape_cast %1027 : vector<1x1x2x1xf32> to vector<2x1xf32>
    %1029 = vector.shape_cast %1026 : vector<2x1xf32> to vector<1x1x2x1xf32>
    tpu.vector_store %arg5[%c0_607, %c27_608, %c0_609, %c0_610], %1029 {strides = array<i32>} : memref<1x32x2x1xf32, #tpu.memory_space<vmem>>, vector<1x1x2x1xf32>,
    %1030 = vector.broadcast %1007 : vector<1x1xf32> to vector<2x1xf32>
    %1031 = arith.mulf %1030, %1026 : vector<2x1xf32>
    %1032 = arith.subf %1024, %1031 : vector<2x1xf32>
    %c0_611 = arith.constant 0 : index
    %c27_612 = arith.constant 27 : index
    %c0_613 = arith.constant 0 : index
    %c0_614 = arith.constant 0 : index
    %1033 = vector.load %arg6[%c0_611, %c27_612, %c0_613, %c0_614] : memref<1x32x2x1xf32, #tpu.memory_space<vmem>>, vector<1x1x2x1xf32>
    %1034 = vector.shape_cast %1033 : vector<1x1x2x1xf32> to vector<2x1xf32>
    %1035 = vector.shape_cast %1032 : vector<2x1xf32> to vector<1x1x2x1xf32>
    tpu.vector_store %arg6[%c0_611, %c27_612, %c0_613, %c0_614], %1035 {strides = array<i32>} : memref<1x32x2x1xf32, #tpu.memory_space<vmem>>, vector<1x1x2x1xf32>,
    %c0_615 = arith.constant 0 : index
    %c28 = arith.constant 28 : index
    %c0_616 = arith.constant 0 : index
    %c0_617 = arith.constant 0 : index
    %1036 = vector.load %arg2[%c0_615, %c28, %c0_616, %c0_617] : memref<1x32x2x256xf32, #tpu.memory_space<vmem>>, vector<1x1x2x256xf32>
    %1037 = vector.shape_cast %1036 : vector<1x1x2x256xf32> to vector<2x256xf32>
    %1038 = vector.shape_cast %1037 : vector<2x256xf32> to vector<1x2x256xf32>
    %cst_618 = arith.constant dense<0.000000e+00> : vector<1xf32>
    %1039 = vector.multi_reduction <add>, %1038, %cst_618 [1, 2] : vector<1x2x256xf32> to vector<1xf32>
    %1040 = vector.shape_cast %1039 : vector<1xf32> to vector<1x1x1xf32>
    %1041 = vector.extract %1040[0, 0, 0] : f32 from vector<1x1x1xf32>
    %1042 = vector.broadcast %1041 : f32 to vector<1x1xf32>
    %cst_619 = arith.constant 5.120000e+02 : f32
    %1043 = vector.broadcast %cst_619 : f32 to vector<1x1xf32>
    %1044 = arith.divf %1042, %1043 : vector<1x1xf32>
    %1045 = vector.broadcast %1044 : vector<1x1xf32> to vector<2x256xf32>
    %1046 = arith.subf %1037, %1045 : vector<2x256xf32>
    %1047 = arith.mulf %1046, %1046 : vector<2x256xf32>
    %1048 = vector.shape_cast %1047 : vector<2x256xf32> to vector<1x2x256xf32>
    %cst_620 = arith.constant dense<0.000000e+00> : vector<1xf32>
    %1049 = vector.multi_reduction <add>, %1048, %cst_620 [1, 2] : vector<1x2x256xf32> to vector<1xf32>
    %1050 = vector.shape_cast %1049 : vector<1xf32> to vector<1x1x1xf32>
    %1051 = vector.extract %1050[0, 0, 0] : f32 from vector<1x1x1xf32>
    %1052 = vector.broadcast %1051 : f32 to vector<1x1xf32>
    %cst_621 = arith.constant 5.120000e+02 : f32
    %1053 = vector.broadcast %cst_621 : f32 to vector<1x1xf32>
    %1054 = arith.divf %1052, %1053 : vector<1x1xf32>
    %cst_622 = arith.constant 9.99999974E-6 : f32
    %1055 = vector.broadcast %cst_622 : f32 to vector<1x1xf32>
    %1056 = arith.addf %1054, %1055 : vector<1x1xf32>
    %1057 = math.rsqrt %1056 : vector<1x1xf32>
    %c28_623 = arith.constant 28 : index
    %c0_624 = arith.constant 0 : index
    %c0_625 = arith.constant 0 : index
    %1058 = vector.load %arg3[%c28_623, %c0_624, %c0_625] : memref<32x2x1xf32, #tpu.memory_space<vmem>>, vector<1x2x1xf32>
    %1059 = vector.shape_cast %1058 : vector<1x2x1xf32> to vector<2x1xf32>
    %c28_626 = arith.constant 28 : index
    %c0_627 = arith.constant 0 : index
    %c0_628 = arith.constant 0 : index
    %1060 = vector.load %arg4[%c28_626, %c0_627, %c0_628] : memref<32x2x1xf32, #tpu.memory_space<vmem>>, vector<1x2x1xf32>
    %1061 = vector.shape_cast %1060 : vector<1x2x1xf32> to vector<2x1xf32>
    %1062 = vector.broadcast %1057 : vector<1x1xf32> to vector<2x1xf32>
    %1063 = arith.mulf %1059, %1062 : vector<2x1xf32>
    %c0_629 = arith.constant 0 : index
    %c28_630 = arith.constant 28 : index
    %c0_631 = arith.constant 0 : index
    %c0_632 = arith.constant 0 : index
    %1064 = vector.load %arg5[%c0_629, %c28_630, %c0_631, %c0_632] : memref<1x32x2x1xf32, #tpu.memory_space<vmem>>, vector<1x1x2x1xf32>
    %1065 = vector.shape_cast %1064 : vector<1x1x2x1xf32> to vector<2x1xf32>
    %1066 = vector.shape_cast %1063 : vector<2x1xf32> to vector<1x1x2x1xf32>
    tpu.vector_store %arg5[%c0_629, %c28_630, %c0_631, %c0_632], %1066 {strides = array<i32>} : memref<1x32x2x1xf32, #tpu.memory_space<vmem>>, vector<1x1x2x1xf32>,
    %1067 = vector.broadcast %1044 : vector<1x1xf32> to vector<2x1xf32>
    %1068 = arith.mulf %1067, %1063 : vector<2x1xf32>
    %1069 = arith.subf %1061, %1068 : vector<2x1xf32>
    %c0_633 = arith.constant 0 : index
    %c28_634 = arith.constant 28 : index
    %c0_635 = arith.constant 0 : index
    %c0_636 = arith.constant 0 : index
    %1070 = vector.load %arg6[%c0_633, %c28_634, %c0_635, %c0_636] : memref<1x32x2x1xf32, #tpu.memory_space<vmem>>, vector<1x1x2x1xf32>
    %1071 = vector.shape_cast %1070 : vector<1x1x2x1xf32> to vector<2x1xf32>
    %1072 = vector.shape_cast %1069 : vector<2x1xf32> to vector<1x1x2x1xf32>
    tpu.vector_store %arg6[%c0_633, %c28_634, %c0_635, %c0_636], %1072 {strides = array<i32>} : memref<1x32x2x1xf32, #tpu.memory_space<vmem>>, vector<1x1x2x1xf32>,
    %c0_637 = arith.constant 0 : index
    %c29 = arith.constant 29 : index
    %c0_638 = arith.constant 0 : index
    %c0_639 = arith.constant 0 : index
    %1073 = vector.load %arg2[%c0_637, %c29, %c0_638, %c0_639] : memref<1x32x2x256xf32, #tpu.memory_space<vmem>>, vector<1x1x2x256xf32>
    %1074 = vector.shape_cast %1073 : vector<1x1x2x256xf32> to vector<2x256xf32>
    %1075 = vector.shape_cast %1074 : vector<2x256xf32> to vector<1x2x256xf32>
    %cst_640 = arith.constant dense<0.000000e+00> : vector<1xf32>
    %1076 = vector.multi_reduction <add>, %1075, %cst_640 [1, 2] : vector<1x2x256xf32> to vector<1xf32>
    %1077 = vector.shape_cast %1076 : vector<1xf32> to vector<1x1x1xf32>
    %1078 = vector.extract %1077[0, 0, 0] : f32 from vector<1x1x1xf32>
    %1079 = vector.broadcast %1078 : f32 to vector<1x1xf32>
    %cst_641 = arith.constant 5.120000e+02 : f32
    %1080 = vector.broadcast %cst_641 : f32 to vector<1x1xf32>
    %1081 = arith.divf %1079, %1080 : vector<1x1xf32>
    %1082 = vector.broadcast %1081 : vector<1x1xf32> to vector<2x256xf32>
    %1083 = arith.subf %1074, %1082 : vector<2x256xf32>
    %1084 = arith.mulf %1083, %1083 : vector<2x256xf32>
    %1085 = vector.shape_cast %1084 : vector<2x256xf32> to vector<1x2x256xf32>
    %cst_642 = arith.constant dense<0.000000e+00> : vector<1xf32>
    %1086 = vector.multi_reduction <add>, %1085, %cst_642 [1, 2] : vector<1x2x256xf32> to vector<1xf32>
    %1087 = vector.shape_cast %1086 : vector<1xf32> to vector<1x1x1xf32>
    %1088 = vector.extract %1087[0, 0, 0] : f32 from vector<1x1x1xf32>
    %1089 = vector.broadcast %1088 : f32 to vector<1x1xf32>
    %cst_643 = arith.constant 5.120000e+02 : f32
    %1090 = vector.broadcast %cst_643 : f32 to vector<1x1xf32>
    %1091 = arith.divf %1089, %1090 : vector<1x1xf32>
    %cst_644 = arith.constant 9.99999974E-6 : f32
    %1092 = vector.broadcast %cst_644 : f32 to vector<1x1xf32>
    %1093 = arith.addf %1091, %1092 : vector<1x1xf32>
    %1094 = math.rsqrt %1093 : vector<1x1xf32>
    %c29_645 = arith.constant 29 : index
    %c0_646 = arith.constant 0 : index
    %c0_647 = arith.constant 0 : index
    %1095 = vector.load %arg3[%c29_645, %c0_646, %c0_647] : memref<32x2x1xf32, #tpu.memory_space<vmem>>, vector<1x2x1xf32>
    %1096 = vector.shape_cast %1095 : vector<1x2x1xf32> to vector<2x1xf32>
    %c29_648 = arith.constant 29 : index
    %c0_649 = arith.constant 0 : index
    %c0_650 = arith.constant 0 : index
    %1097 = vector.load %arg4[%c29_648, %c0_649, %c0_650] : memref<32x2x1xf32, #tpu.memory_space<vmem>>, vector<1x2x1xf32>
    %1098 = vector.shape_cast %1097 : vector<1x2x1xf32> to vector<2x1xf32>
    %1099 = vector.broadcast %1094 : vector<1x1xf32> to vector<2x1xf32>
    %1100 = arith.mulf %1096, %1099 : vector<2x1xf32>
    %c0_651 = arith.constant 0 : index
    %c29_652 = arith.constant 29 : index
    %c0_653 = arith.constant 0 : index
    %c0_654 = arith.constant 0 : index
    %1101 = vector.load %arg5[%c0_651, %c29_652, %c0_653, %c0_654] : memref<1x32x2x1xf32, #tpu.memory_space<vmem>>, vector<1x1x2x1xf32>
    %1102 = vector.shape_cast %1101 : vector<1x1x2x1xf32> to vector<2x1xf32>
    %1103 = vector.shape_cast %1100 : vector<2x1xf32> to vector<1x1x2x1xf32>
    tpu.vector_store %arg5[%c0_651, %c29_652, %c0_653, %c0_654], %1103 {strides = array<i32>} : memref<1x32x2x1xf32, #tpu.memory_space<vmem>>, vector<1x1x2x1xf32>,
    %1104 = vector.broadcast %1081 : vector<1x1xf32> to vector<2x1xf32>
    %1105 = arith.mulf %1104, %1100 : vector<2x1xf32>
    %1106 = arith.subf %1098, %1105 : vector<2x1xf32>
    %c0_655 = arith.constant 0 : index
    %c29_656 = arith.constant 29 : index
    %c0_657 = arith.constant 0 : index
    %c0_658 = arith.constant 0 : index
    %1107 = vector.load %arg6[%c0_655, %c29_656, %c0_657, %c0_658] : memref<1x32x2x1xf32, #tpu.memory_space<vmem>>, vector<1x1x2x1xf32>
    %1108 = vector.shape_cast %1107 : vector<1x1x2x1xf32> to vector<2x1xf32>
    %1109 = vector.shape_cast %1106 : vector<2x1xf32> to vector<1x1x2x1xf32>
    tpu.vector_store %arg6[%c0_655, %c29_656, %c0_657, %c0_658], %1109 {strides = array<i32>} : memref<1x32x2x1xf32, #tpu.memory_space<vmem>>, vector<1x1x2x1xf32>,
    %c0_659 = arith.constant 0 : index
    %c30 = arith.constant 30 : index
    %c0_660 = arith.constant 0 : index
    %c0_661 = arith.constant 0 : index
    %1110 = vector.load %arg2[%c0_659, %c30, %c0_660, %c0_661] : memref<1x32x2x256xf32, #tpu.memory_space<vmem>>, vector<1x1x2x256xf32>
    %1111 = vector.shape_cast %1110 : vector<1x1x2x256xf32> to vector<2x256xf32>
    %1112 = vector.shape_cast %1111 : vector<2x256xf32> to vector<1x2x256xf32>
    %cst_662 = arith.constant dense<0.000000e+00> : vector<1xf32>
    %1113 = vector.multi_reduction <add>, %1112, %cst_662 [1, 2] : vector<1x2x256xf32> to vector<1xf32>
    %1114 = vector.shape_cast %1113 : vector<1xf32> to vector<1x1x1xf32>
    %1115 = vector.extract %1114[0, 0, 0] : f32 from vector<1x1x1xf32>
    %1116 = vector.broadcast %1115 : f32 to vector<1x1xf32>
    %cst_663 = arith.constant 5.120000e+02 : f32
    %1117 = vector.broadcast %cst_663 : f32 to vector<1x1xf32>
    %1118 = arith.divf %1116, %1117 : vector<1x1xf32>
    %1119 = vector.broadcast %1118 : vector<1x1xf32> to vector<2x256xf32>
    %1120 = arith.subf %1111, %1119 : vector<2x256xf32>
    %1121 = arith.mulf %1120, %1120 : vector<2x256xf32>
    %1122 = vector.shape_cast %1121 : vector<2x256xf32> to vector<1x2x256xf32>
    %cst_664 = arith.constant dense<0.000000e+00> : vector<1xf32>
    %1123 = vector.multi_reduction <add>, %1122, %cst_664 [1, 2] : vector<1x2x256xf32> to vector<1xf32>
    %1124 = vector.shape_cast %1123 : vector<1xf32> to vector<1x1x1xf32>
    %1125 = vector.extract %1124[0, 0, 0] : f32 from vector<1x1x1xf32>
    %1126 = vector.broadcast %1125 : f32 to vector<1x1xf32>
    %cst_665 = arith.constant 5.120000e+02 : f32
    %1127 = vector.broadcast %cst_665 : f32 to vector<1x1xf32>
    %1128 = arith.divf %1126, %1127 : vector<1x1xf32>
    %cst_666 = arith.constant 9.99999974E-6 : f32
    %1129 = vector.broadcast %cst_666 : f32 to vector<1x1xf32>
    %1130 = arith.addf %1128, %1129 : vector<1x1xf32>
    %1131 = math.rsqrt %1130 : vector<1x1xf32>
    %c30_667 = arith.constant 30 : index
    %c0_668 = arith.constant 0 : index
    %c0_669 = arith.constant 0 : index
    %1132 = vector.load %arg3[%c30_667, %c0_668, %c0_669] : memref<32x2x1xf32, #tpu.memory_space<vmem>>, vector<1x2x1xf32>
    %1133 = vector.shape_cast %1132 : vector<1x2x1xf32> to vector<2x1xf32>
    %c30_670 = arith.constant 30 : index
    %c0_671 = arith.constant 0 : index
    %c0_672 = arith.constant 0 : index
    %1134 = vector.load %arg4[%c30_670, %c0_671, %c0_672] : memref<32x2x1xf32, #tpu.memory_space<vmem>>, vector<1x2x1xf32>
    %1135 = vector.shape_cast %1134 : vector<1x2x1xf32> to vector<2x1xf32>
    %1136 = vector.broadcast %1131 : vector<1x1xf32> to vector<2x1xf32>
    %1137 = arith.mulf %1133, %1136 : vector<2x1xf32>
    %c0_673 = arith.constant 0 : index
    %c30_674 = arith.constant 30 : index
    %c0_675 = arith.constant 0 : index
    %c0_676 = arith.constant 0 : index
    %1138 = vector.load %arg5[%c0_673, %c30_674, %c0_675, %c0_676] : memref<1x32x2x1xf32, #tpu.memory_space<vmem>>, vector<1x1x2x1xf32>
    %1139 = vector.shape_cast %1138 : vector<1x1x2x1xf32> to vector<2x1xf32>
    %1140 = vector.shape_cast %1137 : vector<2x1xf32> to vector<1x1x2x1xf32>
    tpu.vector_store %arg5[%c0_673, %c30_674, %c0_675, %c0_676], %1140 {strides = array<i32>} : memref<1x32x2x1xf32, #tpu.memory_space<vmem>>, vector<1x1x2x1xf32>,
    %1141 = vector.broadcast %1118 : vector<1x1xf32> to vector<2x1xf32>
    %1142 = arith.mulf %1141, %1137 : vector<2x1xf32>
    %1143 = arith.subf %1135, %1142 : vector<2x1xf32>
    %c0_677 = arith.constant 0 : index
    %c30_678 = arith.constant 30 : index
    %c0_679 = arith.constant 0 : index
    %c0_680 = arith.constant 0 : index
    %1144 = vector.load %arg6[%c0_677, %c30_678, %c0_679, %c0_680] : memref<1x32x2x1xf32, #tpu.memory_space<vmem>>, vector<1x1x2x1xf32>
    %1145 = vector.shape_cast %1144 : vector<1x1x2x1xf32> to vector<2x1xf32>
    %1146 = vector.shape_cast %1143 : vector<2x1xf32> to vector<1x1x2x1xf32>
    tpu.vector_store %arg6[%c0_677, %c30_678, %c0_679, %c0_680], %1146 {strides = array<i32>} : memref<1x32x2x1xf32, #tpu.memory_space<vmem>>, vector<1x1x2x1xf32>,
    %c0_681 = arith.constant 0 : index
    %c31 = arith.constant 31 : index
    %c0_682 = arith.constant 0 : index
    %c0_683 = arith.constant 0 : index
    %1147 = vector.load %arg2[%c0_681, %c31, %c0_682, %c0_683] : memref<1x32x2x256xf32, #tpu.memory_space<vmem>>, vector<1x1x2x256xf32>
    %1148 = vector.shape_cast %1147 : vector<1x1x2x256xf32> to vector<2x256xf32>
    %1149 = vector.shape_cast %1148 : vector<2x256xf32> to vector<1x2x256xf32>
    %cst_684 = arith.constant dense<0.000000e+00> : vector<1xf32>
    %1150 = vector.multi_reduction <add>, %1149, %cst_684 [1, 2] : vector<1x2x256xf32> to vector<1xf32>
    %1151 = vector.shape_cast %1150 : vector<1xf32> to vector<1x1x1xf32>
    %1152 = vector.extract %1151[0, 0, 0] : f32 from vector<1x1x1xf32>
    %1153 = vector.broadcast %1152 : f32 to vector<1x1xf32>
    %cst_685 = arith.constant 5.120000e+02 : f32
    %1154 = vector.broadcast %cst_685 : f32 to vector<1x1xf32>
    %1155 = arith.divf %1153, %1154 : vector<1x1xf32>
    %1156 = vector.broadcast %1155 : vector<1x1xf32> to vector<2x256xf32>
    %1157 = arith.subf %1148, %1156 : vector<2x256xf32>
    %1158 = arith.mulf %1157, %1157 : vector<2x256xf32>
    %1159 = vector.shape_cast %1158 : vector<2x256xf32> to vector<1x2x256xf32>
    %cst_686 = arith.constant dense<0.000000e+00> : vector<1xf32>
    %1160 = vector.multi_reduction <add>, %1159, %cst_686 [1, 2] : vector<1x2x256xf32> to vector<1xf32>
    %1161 = vector.shape_cast %1160 : vector<1xf32> to vector<1x1x1xf32>
    %1162 = vector.extract %1161[0, 0, 0] : f32 from vector<1x1x1xf32>
    %1163 = vector.broadcast %1162 : f32 to vector<1x1xf32>
    %cst_687 = arith.constant 5.120000e+02 : f32
    %1164 = vector.broadcast %cst_687 : f32 to vector<1x1xf32>
    %1165 = arith.divf %1163, %1164 : vector<1x1xf32>
    %cst_688 = arith.constant 9.99999974E-6 : f32
    %1166 = vector.broadcast %cst_688 : f32 to vector<1x1xf32>
    %1167 = arith.addf %1165, %1166 : vector<1x1xf32>
    %1168 = math.rsqrt %1167 : vector<1x1xf32>
    %c31_689 = arith.constant 31 : index
    %c0_690 = arith.constant 0 : index
    %c0_691 = arith.constant 0 : index
    %1169 = vector.load %arg3[%c31_689, %c0_690, %c0_691] : memref<32x2x1xf32, #tpu.memory_space<vmem>>, vector<1x2x1xf32>
    %1170 = vector.shape_cast %1169 : vector<1x2x1xf32> to vector<2x1xf32>
    %c31_692 = arith.constant 31 : index
    %c0_693 = arith.constant 0 : index
    %c0_694 = arith.constant 0 : index
    %1171 = vector.load %arg4[%c31_692, %c0_693, %c0_694] : memref<32x2x1xf32, #tpu.memory_space<vmem>>, vector<1x2x1xf32>
    %1172 = vector.shape_cast %1171 : vector<1x2x1xf32> to vector<2x1xf32>
    %1173 = vector.broadcast %1168 : vector<1x1xf32> to vector<2x1xf32>
    %1174 = arith.mulf %1170, %1173 : vector<2x1xf32>
    %c0_695 = arith.constant 0 : index
    %c31_696 = arith.constant 31 : index
    %c0_697 = arith.constant 0 : index
    %c0_698 = arith.constant 0 : index
    %1175 = vector.load %arg5[%c0_695, %c31_696, %c0_697, %c0_698] : memref<1x32x2x1xf32, #tpu.memory_space<vmem>>, vector<1x1x2x1xf32>
    %1176 = vector.shape_cast %1175 : vector<1x1x2x1xf32> to vector<2x1xf32>
    %1177 = vector.shape_cast %1174 : vector<2x1xf32> to vector<1x1x2x1xf32>
    tpu.vector_store %arg5[%c0_695, %c31_696, %c0_697, %c0_698], %1177 {strides = array<i32>} : memref<1x32x2x1xf32, #tpu.memory_space<vmem>>, vector<1x1x2x1xf32>,
    %1178 = vector.broadcast %1155 : vector<1x1xf32> to vector<2x1xf32>
    %1179 = arith.mulf %1178, %1174 : vector<2x1xf32>
    %1180 = arith.subf %1172, %1179 : vector<2x1xf32>
    %c0_699 = arith.constant 0 : index
    %c31_700 = arith.constant 31 : index
    %c0_701 = arith.constant 0 : index
    %c0_702 = arith.constant 0 : index
    %1181 = vector.load %arg6[%c0_699, %c31_700, %c0_701, %c0_702] : memref<1x32x2x1xf32, #tpu.memory_space<vmem>>, vector<1x1x2x1xf32>
    %1182 = vector.shape_cast %1181 : vector<1x1x2x1xf32> to vector<2x1xf32>
    %1183 = vector.shape_cast %1180 : vector<2x1xf32> to vector<1x1x2x1xf32>
    tpu.vector_store %arg6[%c0_699, %c31_700, %c0_701, %c0_702], %1183 {strides = array<i32>} : memref<1x32x2x1xf32, #tpu.memory_space<vmem>>, vector<1x1x2x1xf32>,
    return
  }
  func.func @transform_0(%arg0: i32, %arg1: i32) -> (i32, i32, i32, i32) {
    %c0_i32 = arith.constant 0 : i32
    %c0_i32_0 = arith.constant 0 : i32
    %c0_i32_1 = arith.constant 0 : i32
    return %arg0, %arg1, %c0_i32, %c0_i32_0 : i32, i32, i32, i32
  }
  func.func @transform_1(%arg0: i32, %arg1: i32) -> (i32, i32, i32) {
    %c0_i32 = arith.constant 0 : i32
    %c0_i32_0 = arith.constant 0 : i32
    %c0_i32_1 = arith.constant 0 : i32
    return %arg1, %c0_i32, %c0_i32_0 : i32, i32, i32
  }
  func.func @transform_2(%arg0: i32, %arg1: i32) -> (i32, i32, i32) {
    %c0_i32 = arith.constant 0 : i32
    %c0_i32_0 = arith.constant 0 : i32
    %c0_i32_1 = arith.constant 0 : i32
    return %arg1, %c0_i32, %c0_i32_0 : i32, i32, i32
  }
  func.func @transform_3(%arg0: i32, %arg1: i32) -> (i32, i32, i32, i32) {
    %c0_i32 = arith.constant 0 : i32
    %c0_i32_0 = arith.constant 0 : i32
    %c0_i32_1 = arith.constant 0 : i32
    return %arg0, %arg1, %c0_i32, %c0_i32_0 : i32, i32, i32, i32
  }
  func.func @transform_4(%arg0: i32, %arg1: i32) -> (i32, i32, i32, i32) {
    %c0_i32 = arith.constant 0 : i32
    %c0_i32_0 = arith.constant 0 : i32
    %c0_i32_1 = arith.constant 0 : i32
    return %arg0, %arg1, %c0_i32, %c0_i32_0 : i32, i32, i32, i32
  }
}

module attributes {stable_mosaic.version = 11 : i64} {
  func.func @_qkv_kernel(%arg0: i32, %arg1: i32, %arg2: memref<1x64x256xf32, #tpu.memory_space<vmem>>, %arg3: memref<1x64x1xf32, #tpu.memory_space<vmem>>, %arg4: memref<1x64x1xf32, #tpu.memory_space<vmem>>, %arg5: memref<192x64xbf16, #tpu.memory_space<vmem>>, %arg6: memref<192x1xf32, #tpu.memory_space<vmem>>, %arg7: memref<1x64x256xbf16, #tpu.memory_space<vmem>>, %arg8: memref<1x64x256xbf16, #tpu.memory_space<vmem>>, %arg9: memref<1x64x256xbf16, #tpu.memory_space<vmem>>) attributes {dimension_semantics = [#tpu.dimension_semantics<parallel>, #tpu.dimension_semantics<parallel>], iteration_bounds = array<i64: 2, 1>, scalar_prefetch = 0 : i64, scratch_operands = 0 : i64, tpu.core_type = #tpu.core_type<tc>, window_params = [{transform_indices = @transform_0, window_bounds = array<i64: 1, 64, 256>}, {transform_indices = @transform_1, window_bounds = array<i64: 1, 64, 1>}, {transform_indices = @transform_2, window_bounds = array<i64: 1, 64, 1>}, {pipeline_mode = #tpu.pipeline_mode<synchronous>, transform_indices = @transform_3, window_bounds = array<i64: 192, 64>}, {pipeline_mode = #tpu.pipeline_mode<synchronous>, transform_indices = @transform_4, window_bounds = array<i64: 192, 1>}, {transform_indices = @transform_5, window_bounds = array<i64: 1, 64, 256>}, {transform_indices = @transform_6, window_bounds = array<i64: 1, 64, 256>}, {transform_indices = @transform_7, window_bounds = array<i64: 1, 64, 256>}]} {
    %c0 = arith.constant 0 : index
    %c0_0 = arith.constant 0 : index
    %c0_1 = arith.constant 0 : index
    %0 = vector.load %arg2[%c0, %c0_0, %c0_1] : memref<1x64x256xf32, #tpu.memory_space<vmem>>, vector<1x64x256xf32>
    %1 = vector.shape_cast %0 : vector<1x64x256xf32> to vector<64x256xf32>
    %c0_2 = arith.constant 0 : index
    %c0_3 = arith.constant 0 : index
    %c0_4 = arith.constant 0 : index
    %2 = vector.load %arg3[%c0_2, %c0_3, %c0_4] : memref<1x64x1xf32, #tpu.memory_space<vmem>>, vector<1x64x1xf32>
    %3 = vector.shape_cast %2 : vector<1x64x1xf32> to vector<64x1xf32>
    %4 = vector.broadcast %3 : vector<64x1xf32> to vector<64x256xf32>
    %5 = arith.mulf %1, %4 : vector<64x256xf32>
    %c0_5 = arith.constant 0 : index
    %c0_6 = arith.constant 0 : index
    %c0_7 = arith.constant 0 : index
    %6 = vector.load %arg4[%c0_5, %c0_6, %c0_7] : memref<1x64x1xf32, #tpu.memory_space<vmem>>, vector<1x64x1xf32>
    %7 = vector.shape_cast %6 : vector<1x64x1xf32> to vector<64x1xf32>
    %8 = vector.broadcast %7 : vector<64x1xf32> to vector<64x256xf32>
    %9 = arith.addf %5, %8 : vector<64x256xf32>
    %10 = arith.truncf %9 : vector<64x256xf32> to vector<64x256xbf16>
    %c0_8 = arith.constant 0 : index
    %c0_9 = arith.constant 0 : index
    %11 = vector.load %arg5[%c0_8, %c0_9] : memref<192x64xbf16, #tpu.memory_space<vmem>>, vector<64x64xbf16>
    %cst = arith.constant dense<0.000000e+00> : vector<64x256xf32>
    %12 = tpu.matmul %11, %10, %cst {dimension_numbers = #tpu.dot_dimension_numbers<[1], [0], [0], [1], [0, 0, 1, 1], [], []>} : vector<64x64xbf16>, vector<64x256xbf16>, vector<64x256xf32> -> vector<64x256xf32>
    %c0_10 = arith.constant 0 : index
    %c0_11 = arith.constant 0 : index
    %13 = vector.load %arg6[%c0_10, %c0_11] : memref<192x1xf32, #tpu.memory_space<vmem>>, vector<64x1xf32>
    %14 = vector.broadcast %13 : vector<64x1xf32> to vector<64x256xf32>
    %15 = arith.addf %12, %14 : vector<64x256xf32>
    %16 = arith.truncf %15 : vector<64x256xf32> to vector<64x256xbf16>
    %c0_12 = arith.constant 0 : index
    %c0_13 = arith.constant 0 : index
    %c0_14 = arith.constant 0 : index
    %17 = vector.load %arg7[%c0_12, %c0_13, %c0_14] : memref<1x64x256xbf16, #tpu.memory_space<vmem>>, vector<1x64x256xbf16>
    %18 = vector.shape_cast %17 : vector<1x64x256xbf16> to vector<64x256xbf16>
    %19 = vector.shape_cast %16 : vector<64x256xbf16> to vector<1x64x256xbf16>
    tpu.vector_store %arg7[%c0_12, %c0_13, %c0_14], %19 {strides = array<i32>} : memref<1x64x256xbf16, #tpu.memory_space<vmem>>, vector<1x64x256xbf16>,
    %c64 = arith.constant 64 : index
    %c0_15 = arith.constant 0 : index
    %20 = vector.load %arg5[%c64, %c0_15] : memref<192x64xbf16, #tpu.memory_space<vmem>>, vector<64x64xbf16>
    %cst_16 = arith.constant dense<0.000000e+00> : vector<64x256xf32>
    %21 = tpu.matmul %20, %10, %cst_16 {dimension_numbers = #tpu.dot_dimension_numbers<[1], [0], [0], [1], [0, 0, 1, 1], [], []>} : vector<64x64xbf16>, vector<64x256xbf16>, vector<64x256xf32> -> vector<64x256xf32>
    %c64_17 = arith.constant 64 : index
    %c0_18 = arith.constant 0 : index
    %22 = vector.load %arg6[%c64_17, %c0_18] : memref<192x1xf32, #tpu.memory_space<vmem>>, vector<64x1xf32>
    %23 = vector.broadcast %22 : vector<64x1xf32> to vector<64x256xf32>
    %24 = arith.addf %21, %23 : vector<64x256xf32>
    %25 = arith.truncf %24 : vector<64x256xf32> to vector<64x256xbf16>
    %c0_19 = arith.constant 0 : index
    %c0_20 = arith.constant 0 : index
    %c0_21 = arith.constant 0 : index
    %26 = vector.load %arg8[%c0_19, %c0_20, %c0_21] : memref<1x64x256xbf16, #tpu.memory_space<vmem>>, vector<1x64x256xbf16>
    %27 = vector.shape_cast %26 : vector<1x64x256xbf16> to vector<64x256xbf16>
    %28 = vector.shape_cast %25 : vector<64x256xbf16> to vector<1x64x256xbf16>
    tpu.vector_store %arg8[%c0_19, %c0_20, %c0_21], %28 {strides = array<i32>} : memref<1x64x256xbf16, #tpu.memory_space<vmem>>, vector<1x64x256xbf16>,
    %c128 = arith.constant 128 : index
    %c0_22 = arith.constant 0 : index
    %29 = vector.load %arg5[%c128, %c0_22] : memref<192x64xbf16, #tpu.memory_space<vmem>>, vector<64x64xbf16>
    %cst_23 = arith.constant dense<0.000000e+00> : vector<64x256xf32>
    %30 = tpu.matmul %29, %10, %cst_23 {dimension_numbers = #tpu.dot_dimension_numbers<[1], [0], [0], [1], [0, 0, 1, 1], [], []>} : vector<64x64xbf16>, vector<64x256xbf16>, vector<64x256xf32> -> vector<64x256xf32>
    %c128_24 = arith.constant 128 : index
    %c0_25 = arith.constant 0 : index
    %31 = vector.load %arg6[%c128_24, %c0_25] : memref<192x1xf32, #tpu.memory_space<vmem>>, vector<64x1xf32>
    %32 = vector.broadcast %31 : vector<64x1xf32> to vector<64x256xf32>
    %33 = arith.addf %30, %32 : vector<64x256xf32>
    %34 = arith.truncf %33 : vector<64x256xf32> to vector<64x256xbf16>
    %c0_26 = arith.constant 0 : index
    %c0_27 = arith.constant 0 : index
    %c0_28 = arith.constant 0 : index
    %35 = vector.load %arg9[%c0_26, %c0_27, %c0_28] : memref<1x64x256xbf16, #tpu.memory_space<vmem>>, vector<1x64x256xbf16>
    %36 = vector.shape_cast %35 : vector<1x64x256xbf16> to vector<64x256xbf16>
    %37 = vector.shape_cast %34 : vector<64x256xbf16> to vector<1x64x256xbf16>
    tpu.vector_store %arg9[%c0_26, %c0_27, %c0_28], %37 {strides = array<i32>} : memref<1x64x256xbf16, #tpu.memory_space<vmem>>, vector<1x64x256xbf16>,
    return
  }
  func.func @transform_0(%arg0: i32, %arg1: i32) -> (i32, i32, i32) {
    %c0_i32 = arith.constant 0 : i32
    %c0_i32_0 = arith.constant 0 : i32
    return %arg0, %c0_i32, %arg1 : i32, i32, i32
  }
  func.func @transform_1(%arg0: i32, %arg1: i32) -> (i32, i32, i32) {
    %c0_i32 = arith.constant 0 : i32
    %c0_i32_0 = arith.constant 0 : i32
    %c0_i32_1 = arith.constant 0 : i32
    return %arg0, %c0_i32, %c0_i32_0 : i32, i32, i32
  }
  func.func @transform_2(%arg0: i32, %arg1: i32) -> (i32, i32, i32) {
    %c0_i32 = arith.constant 0 : i32
    %c0_i32_0 = arith.constant 0 : i32
    %c0_i32_1 = arith.constant 0 : i32
    return %arg0, %c0_i32, %c0_i32_0 : i32, i32, i32
  }
  func.func @transform_3(%arg0: i32, %arg1: i32) -> (i32, i32) {
    %c0_i32 = arith.constant 0 : i32
    %c0_i32_0 = arith.constant 0 : i32
    %c0_i32_1 = arith.constant 0 : i32
    return %c0_i32, %c0_i32_0 : i32, i32
  }
  func.func @transform_4(%arg0: i32, %arg1: i32) -> (i32, i32) {
    %c0_i32 = arith.constant 0 : i32
    %c0_i32_0 = arith.constant 0 : i32
    %c0_i32_1 = arith.constant 0 : i32
    return %c0_i32, %c0_i32_0 : i32, i32
  }
  func.func @transform_5(%arg0: i32, %arg1: i32) -> (i32, i32, i32) {
    %c0_i32 = arith.constant 0 : i32
    %c0_i32_0 = arith.constant 0 : i32
    return %arg0, %c0_i32, %arg1 : i32, i32, i32
  }
  func.func @transform_6(%arg0: i32, %arg1: i32) -> (i32, i32, i32) {
    %c0_i32 = arith.constant 0 : i32
    %c0_i32_0 = arith.constant 0 : i32
    return %arg0, %c0_i32, %arg1 : i32, i32, i32
  }
  func.func @transform_7(%arg0: i32, %arg1: i32) -> (i32, i32, i32) {
    %c0_i32 = arith.constant 0 : i32
    %c0_i32_0 = arith.constant 0 : i32
    return %arg0, %c0_i32, %arg1 : i32, i32, i32
  }
}

module attributes {stable_mosaic.version = 11 : i64} {
  func.func @_attn_kernel(%arg0: i32, %arg1: i32, %arg2: i32, %arg3: memref<1x64x256xbf16, #tpu.memory_space<vmem>>, %arg4: memref<1x64x256xbf16, #tpu.memory_space<vmem>>, %arg5: memref<1x64x256xbf16, #tpu.memory_space<vmem>>, %arg6: memref<1x64x256xf32, #tpu.memory_space<vmem>>, %arg7: memref<64x64xbf16, #tpu.memory_space<vmem>>, %arg8: memref<64x1xf32, #tpu.memory_space<vmem>>, %arg9: memref<1x64x256xf32, #tpu.memory_space<vmem>>, %arg10: memref<1x256xf32, #tpu.memory_space<vmem>>, %arg11: memref<1x256xf32, #tpu.memory_space<vmem>>, %arg12: memref<64x256xf32, #tpu.memory_space<vmem>>) attributes {dimension_semantics = [#tpu.dimension_semantics<parallel>, #tpu.dimension_semantics<parallel>, #tpu.dimension_semantics<arbitrary>], iteration_bounds = array<i64: 2, 1, 1>, scalar_prefetch = 0 : i64, scratch_operands = 3 : i64, tpu.core_type = #tpu.core_type<tc>, window_params = [{transform_indices = @transform_0, window_bounds = array<i64: 1, 64, 256>}, {transform_indices = @transform_1, window_bounds = array<i64: 1, 64, 256>}, {transform_indices = @transform_2, window_bounds = array<i64: 1, 64, 256>}, {transform_indices = @transform_3, window_bounds = array<i64: 1, 64, 256>}, {pipeline_mode = #tpu.pipeline_mode<synchronous>, transform_indices = @transform_4, window_bounds = array<i64: 64, 64>}, {pipeline_mode = #tpu.pipeline_mode<synchronous>, transform_indices = @transform_5, window_bounds = array<i64: 64, 1>}, {transform_indices = @transform_6, window_bounds = array<i64: 1, 64, 256>}]} {
    %c0_i32 = arith.constant 0 : i32
    %0 = arith.cmpi eq, %arg2, %c0_i32 : i32
    %1 = arith.extui %0 : i1 to i32
    %c0_i32_0 = arith.constant 0 : i32
    %2 = arith.cmpi ne, %1, %c0_i32_0 : i32
    scf.if %2 {
      %cst_27 = arith.constant 0xFF800000 : f32
      %43 = vector.broadcast %cst_27 : f32 to vector<1x256xf32>
      %c0_28 = arith.constant 0 : index
      %c0_29 = arith.constant 0 : index
      %44 = vector.load %arg10[%c0_28, %c0_29] : memref<1x256xf32, #tpu.memory_space<vmem>>, vector<1x256xf32>
      tpu.vector_store %arg10[%c0_28, %c0_29], %43 {strides = array<i32>} : memref<1x256xf32, #tpu.memory_space<vmem>>, vector<1x256xf32>,
      %cst_30 = arith.constant 0.000000e+00 : f32
      %45 = vector.broadcast %cst_30 : f32 to vector<1x256xf32>
      %c0_31 = arith.constant 0 : index
      %c0_32 = arith.constant 0 : index
      %46 = vector.load %arg11[%c0_31, %c0_32] : memref<1x256xf32, #tpu.memory_space<vmem>>, vector<1x256xf32>
      tpu.vector_store %arg11[%c0_31, %c0_32], %45 {strides = array<i32>} : memref<1x256xf32, #tpu.memory_space<vmem>>, vector<1x256xf32>,
      %cst_33 = arith.constant 0.000000e+00 : f32
      %47 = vector.broadcast %cst_33 : f32 to vector<64x256xf32>
      %c0_34 = arith.constant 0 : index
      %c0_35 = arith.constant 0 : index
      %48 = vector.load %arg12[%c0_34, %c0_35] : memref<64x256xf32, #tpu.memory_space<vmem>>, vector<64x256xf32>
      tpu.vector_store %arg12[%c0_34, %c0_35], %47 {strides = array<i32>} : memref<64x256xf32, #tpu.memory_space<vmem>>, vector<64x256xf32>,
    } else {
    }
    %c0 = arith.constant 0 : index
    %c0_1 = arith.constant 0 : index
    %c0_2 = arith.constant 0 : index
    %3 = vector.load %arg3[%c0, %c0_1, %c0_2] : memref<1x64x256xbf16, #tpu.memory_space<vmem>>, vector<1x64x256xbf16>
    %4 = vector.shape_cast %3 : vector<1x64x256xbf16> to vector<64x256xbf16>
    %c256_i32 = arith.constant 256 : i32
    %5 = arith.muli %arg2, %c256_i32 : i32
    %6 = tpu.assume_multiple %5, 256 : i32
    %c0_3 = arith.constant 0 : index
    %c0_4 = arith.constant 0 : index
    %7 = arith.index_cast %6 : i32 to index
    %8 = vector.load %arg4[%c0_3, %c0_4, %7] : memref<1x64x256xbf16, #tpu.memory_space<vmem>>, vector<1x64x256xbf16>
    %9 = vector.shape_cast %8 : vector<1x64x256xbf16> to vector<64x256xbf16>
    %c0_5 = arith.constant 0 : index
    %c0_6 = arith.constant 0 : index
    %10 = arith.index_cast %6 : i32 to index
    %11 = vector.load %arg5[%c0_5, %c0_6, %10] : memref<1x64x256xbf16, #tpu.memory_space<vmem>>, vector<1x64x256xbf16>
    %12 = vector.shape_cast %11 : vector<1x64x256xbf16> to vector<64x256xbf16>
    %cst = arith.constant dense<0.000000e+00> : vector<256x256xf32>
    %13 = tpu.matmul %9, %4, %cst {dimension_numbers = #tpu.dot_dimension_numbers<[0], [0], [1], [1], [0, 1, 1, 1], [], []>} : vector<64x256xbf16>, vector<64x256xbf16>, vector<256x256xf32> -> vector<256x256xf32>
    %cst_7 = arith.constant 1.250000e-01 : f32
    %14 = vector.broadcast %cst_7 : f32 to vector<256x256xf32>
    %15 = arith.mulf %13, %14 : vector<256x256xf32>
    %c0_8 = arith.constant 0 : index
    %c0_9 = arith.constant 0 : index
    %16 = vector.load %arg10[%c0_8, %c0_9] : memref<1x256xf32, #tpu.memory_space<vmem>>, vector<1x256xf32>
    %cst_10 = arith.constant dense<0xFF800000> : vector<256xf32>
    %17 = vector.multi_reduction <maximumf>, %15, %cst_10 [0] : vector<256x256xf32> to vector<256xf32>
    %18 = vector.shape_cast %17 : vector<256xf32> to vector<1x256xf32>
    %19 = arith.maximumf %16, %18 : vector<1x256xf32>
    %c0_11 = arith.constant 0 : index
    %c0_12 = arith.constant 0 : index
    %20 = vector.load %arg10[%c0_11, %c0_12] : memref<1x256xf32, #tpu.memory_space<vmem>>, vector<1x256xf32>
    %21 = arith.subf %20, %19 : vector<1x256xf32>
    %22 = math.exp %21 : vector<1x256xf32>
    %23 = vector.broadcast %19 : vector<1x256xf32> to vector<256x256xf32>
    %24 = arith.subf %15, %23 : vector<256x256xf32>
    %25 = math.exp %24 : vector<256x256xf32>
    %c0_13 = arith.constant 0 : index
    %c0_14 = arith.constant 0 : index
    %26 = vector.load %arg11[%c0_13, %c0_14] : memref<1x256xf32, #tpu.memory_space<vmem>>, vector<1x256xf32>
    %27 = arith.mulf %22, %26 : vector<1x256xf32>
    %cst_15 = arith.constant dense<0.000000e+00> : vector<256xf32>
    %28 = vector.multi_reduction <add>, %25, %cst_15 [0] : vector<256x256xf32> to vector<256xf32>
    %29 = vector.shape_cast %28 : vector<256xf32> to vector<1x256xf32>
    %30 = arith.addf %27, %29 : vector<1x256xf32>
    %c0_16 = arith.constant 0 : index
    %c0_17 = arith.constant 0 : index
    %31 = vector.load %arg11[%c0_16, %c0_17] : memref<1x256xf32, #tpu.memory_space<vmem>>, vector<1x256xf32>
    tpu.vector_store %arg11[%c0_16, %c0_17], %30 {strides = array<i32>} : memref<1x256xf32, #tpu.memory_space<vmem>>, vector<1x256xf32>,
    %c0_18 = arith.constant 0 : index
    %c0_19 = arith.constant 0 : index
    %32 = vector.load %arg12[%c0_18, %c0_19] : memref<64x256xf32, #tpu.memory_space<vmem>>, vector<64x256xf32>
    %33 = vector.broadcast %22 : vector<1x256xf32> to vector<64x256xf32>
    %34 = arith.mulf %33, %32 : vector<64x256xf32>
    %35 = arith.truncf %25 : vector<256x256xf32> to vector<256x256xbf16>
    %cst_20 = arith.constant dense<0.000000e+00> : vector<64x256xf32>
    %36 = tpu.matmul %12, %35, %cst_20 {dimension_numbers = #tpu.dot_dimension_numbers<[1], [0], [0], [1], [0, 0, 1, 1], [], []>} : vector<64x256xbf16>, vector<256x256xbf16>, vector<64x256xf32> -> vector<64x256xf32>
    %37 = arith.addf %34, %36 : vector<64x256xf32>
    %c0_21 = arith.constant 0 : index
    %c0_22 = arith.constant 0 : index
    %38 = vector.load %arg12[%c0_21, %c0_22] : memref<64x256xf32, #tpu.memory_space<vmem>>, vector<64x256xf32>
    tpu.vector_store %arg12[%c0_21, %c0_22], %37 {strides = array<i32>} : memref<64x256xf32, #tpu.memory_space<vmem>>, vector<64x256xf32>,
    %c0_23 = arith.constant 0 : index
    %c0_24 = arith.constant 0 : index
    %39 = vector.load %arg10[%c0_23, %c0_24] : memref<1x256xf32, #tpu.memory_space<vmem>>, vector<1x256xf32>
    tpu.vector_store %arg10[%c0_23, %c0_24], %19 {strides = array<i32>} : memref<1x256xf32, #tpu.memory_space<vmem>>, vector<1x256xf32>,
    %c0_i32_25 = arith.constant 0 : i32
    %40 = arith.cmpi eq, %arg2, %c0_i32_25 : i32
    %41 = arith.extui %40 : i1 to i32
    %c0_i32_26 = arith.constant 0 : i32
    %42 = arith.cmpi ne, %41, %c0_i32_26 : i32
    scf.if %42 {
      %c0_27 = arith.constant 0 : index
      %c0_28 = arith.constant 0 : index
      %43 = vector.load %arg11[%c0_27, %c0_28] : memref<1x256xf32, #tpu.memory_space<vmem>>, vector<1x256xf32>
      %44 = tpu.reciprocal %43 {approx = true} : vector<1x256xf32> -> vector<1x256xf32>
      %c0_29 = arith.constant 0 : index
      %c0_30 = arith.constant 0 : index
      %45 = vector.load %arg12[%c0_29, %c0_30] : memref<64x256xf32, #tpu.memory_space<vmem>>, vector<64x256xf32>
      %46 = vector.broadcast %44 : vector<1x256xf32> to vector<64x256xf32>
      %47 = arith.mulf %45, %46 : vector<64x256xf32>
      %48 = arith.truncf %47 : vector<64x256xf32> to vector<64x256xbf16>
      %c0_31 = arith.constant 0 : index
      %c0_32 = arith.constant 0 : index
      %49 = vector.load %arg7[%c0_31, %c0_32] : memref<64x64xbf16, #tpu.memory_space<vmem>>, vector<64x64xbf16>
      %cst_33 = arith.constant dense<0.000000e+00> : vector<64x256xf32>
      %50 = tpu.matmul %49, %48, %cst_33 {dimension_numbers = #tpu.dot_dimension_numbers<[1], [0], [0], [1], [0, 0, 1, 1], [], []>} : vector<64x64xbf16>, vector<64x256xbf16>, vector<64x256xf32> -> vector<64x256xf32>
      %c0_34 = arith.constant 0 : index
      %c0_35 = arith.constant 0 : index
      %51 = vector.load %arg8[%c0_34, %c0_35] : memref<64x1xf32, #tpu.memory_space<vmem>>, vector<64x1xf32>
      %52 = vector.broadcast %51 : vector<64x1xf32> to vector<64x256xf32>
      %53 = arith.addf %50, %52 : vector<64x256xf32>
      %c0_36 = arith.constant 0 : index
      %c0_37 = arith.constant 0 : index
      %c0_38 = arith.constant 0 : index
      %54 = vector.load %arg6[%c0_36, %c0_37, %c0_38] : memref<1x64x256xf32, #tpu.memory_space<vmem>>, vector<1x64x256xf32>
      %55 = vector.shape_cast %54 : vector<1x64x256xf32> to vector<64x256xf32>
      %56 = arith.addf %53, %55 : vector<64x256xf32>
      %c0_39 = arith.constant 0 : index
      %c0_40 = arith.constant 0 : index
      %c0_41 = arith.constant 0 : index
      %57 = vector.load %arg9[%c0_39, %c0_40, %c0_41] : memref<1x64x256xf32, #tpu.memory_space<vmem>>, vector<1x64x256xf32>
      %58 = vector.shape_cast %57 : vector<1x64x256xf32> to vector<64x256xf32>
      %59 = vector.shape_cast %56 : vector<64x256xf32> to vector<1x64x256xf32>
      tpu.vector_store %arg9[%c0_39, %c0_40, %c0_41], %59 {strides = array<i32>} : memref<1x64x256xf32, #tpu.memory_space<vmem>>, vector<1x64x256xf32>,
    } else {
    }
    return
  }
  func.func @transform_0(%arg0: i32, %arg1: i32, %arg2: i32) -> (i32, i32, i32) {
    %c0_i32 = arith.constant 0 : i32
    %c0_i32_0 = arith.constant 0 : i32
    return %arg0, %c0_i32, %arg1 : i32, i32, i32
  }
  func.func @transform_1(%arg0: i32, %arg1: i32, %arg2: i32) -> (i32, i32, i32) {
    %c0_i32 = arith.constant 0 : i32
    %c0_i32_0 = arith.constant 0 : i32
    %c0_i32_1 = arith.constant 0 : i32
    return %arg0, %c0_i32, %c0_i32_0 : i32, i32, i32
  }
  func.func @transform_2(%arg0: i32, %arg1: i32, %arg2: i32) -> (i32, i32, i32) {
    %c0_i32 = arith.constant 0 : i32
    %c0_i32_0 = arith.constant 0 : i32
    %c0_i32_1 = arith.constant 0 : i32
    return %arg0, %c0_i32, %c0_i32_0 : i32, i32, i32
  }
  func.func @transform_3(%arg0: i32, %arg1: i32, %arg2: i32) -> (i32, i32, i32) {
    %c0_i32 = arith.constant 0 : i32
    %c0_i32_0 = arith.constant 0 : i32
    return %arg0, %c0_i32, %arg1 : i32, i32, i32
  }
  func.func @transform_4(%arg0: i32, %arg1: i32, %arg2: i32) -> (i32, i32) {
    %c0_i32 = arith.constant 0 : i32
    %c0_i32_0 = arith.constant 0 : i32
    %c0_i32_1 = arith.constant 0 : i32
    return %c0_i32, %c0_i32_0 : i32, i32
  }
  func.func @transform_5(%arg0: i32, %arg1: i32, %arg2: i32) -> (i32, i32) {
    %c0_i32 = arith.constant 0 : i32
    %c0_i32_0 = arith.constant 0 : i32
    %c0_i32_1 = arith.constant 0 : i32
    return %c0_i32, %c0_i32_0 : i32, i32
  }
  func.func @transform_6(%arg0: i32, %arg1: i32, %arg2: i32) -> (i32, i32, i32) {
    %c0_i32 = arith.constant 0 : i32
    %c0_i32_0 = arith.constant 0 : i32
    return %arg0, %c0_i32, %arg1 : i32, i32, i32
  }
}

</mosaic_0001>

<llo_original>
// kernel: vae_attention_block.4
$region0: #{vae_attention_block.4}
  #allocation0 [shape = 'u32[]', space=smem, size = 0x4, offset = 0x4, fixed_abs, tag = 'smem constant byte address 0x4 - core index']
  #allocation1 [shape = 'u32[72,128]{1,0:T(1,128)}', space=vmem, size = 0x9000, scoped, tag = 'internal scratch']
  %s0 = inlined_call_operand.vmem [shape: f32[2,64,256], index: 0, kind: input, shape index: {}]
  %s1 = inlined_call_operand.vmem [shape: f32[2,64,1], index: 1, kind: input, shape index: {}]
  %s2 = inlined_call_operand.vmem [shape: f32[2,64,1], index: 2, kind: input, shape index: {}]
  %s3 = inlined_call_operand.vmem [shape: bf16[192,64], index: 3, kind: input, shape index: {}]
  %s4 = inlined_call_operand.vmem [shape: f32[192,1], index: 4, kind: input, shape index: {}]
  %s5 = inlined_call_operand.vmem [shape: bf16[2,64,256], index: 5, kind: output, shape index: {0}]
  %s6 = inlined_call_operand.vmem [shape: bf16[2,64,256], index: 6, kind: output, shape index: {1}]
  %s7 = inlined_call_operand.vmem [shape: bf16[2,64,256], index: 7, kind: output, shape index: {2}]
  %8 = xla_tuple %s5, %s6, %s7
  %s9 = sld [smem:[#allocation0]]
  $region69: #{vae_attention_block.4} parent=0
    _
  %s11 = ssub.s32 1, %s9
  %s12 = scalar_select 0, %s11, %s9
  loop: start=0, step=1, limit=4
  $region2: #{vae_attention_block.4} parent=0 // loop_pre_header
    _
  $region3: #{vae_attention_block.4} parent=0 // loop_header
    %s14 = sphi 0, %s18
    %p15 = scmp.ge.s32.totalorder %s14, 4
    %s21 = sphi 0, %s33
    %s22 = sphi 0, %s29
    %s23 = sphi 0, %s21
    %s24 = sphi 0, %s22
    %s25 = sphi 0, %s23
    %s26 = sphi 0, %s24
    %s38 = sphi 0, %s40
    %s41 = sphi 0, %s38
    %s42 = sphi 0, %s41
    %s58 = sphi 0, %s42
    %s64 = sphi 0, %s66
    %s67 = sphi 0, %s64
    %s68 = sphi 0, %s67
    %s84 = sphi 0, %s68
    %s90 = sphi 0, %s92
    %s93 = sphi 0, %s90
    %s94 = sphi 0, %s93
    %s110 = sphi 0, %s94
    %s114 = sphi 0, %s114
    %s116 = sphi 0, %s114
    %s117 = sphi 0, %s116
    %s131 = sphi 0, %s117
    %s135 = sphi 0, %s135
    %s137 = sphi 0, %s135
    %s138 = sphi 0, %s137
    %s152 = sphi 0, %s138
    %s160 = sphi 0, %s162
    %s163 = sphi 0, %s160
    %s164 = sphi 0, %s163
    %s180 = sphi 0, %s164
    %s188 = sphi 0, %s190
    %s191 = sphi 0, %s188
    %s192 = sphi 0, %s191
    %s208 = sphi 0, %s192
    %s216 = sphi 0, %s218
    %s219 = sphi 0, %s216
    %s220 = sphi 0, %s219
    %s236 = sphi 0, %s220
  $region4: #{vae_attention_block.4} parent=0 // loop_header_branch
    %17 = sbr.rel (%p15) target = $region8
  $region5: #{vae_attention_block.4} parent=0 // loop_body
    %s19 = ssub.s32 %s14, 1
    %s20 = ssub.s32 %s14, 2
    %s27 = sadd.s32 1, %s22
    %p28 = scmp.ge.s32.totalorder %s27, 1
    %s29 = scalar_select %p28, 0, %s27
    %s30 = sadd.s32 1, %s21
    %s31 = scalar_select %p28, %s30, %s21
    %p32 = scmp.ge.s32.totalorder %s31, 2
    %s33 = scalar_select %p32, 0, %s31
    %s34 = ssub.s32 %s21, %s33
    %s35 = ssub.s32 %s22, %s29
    %s36 = sor.u32 %s34, %s35
    %p37 = scmp.eq.s32.totalorder %s36, 0
    %s39 = sadd.s32 %s38, 1
    %s40 = scalar_select %p37, %s38, %s39
    %p43 = pneg %p37
    %p44 = scmp.eq.s32.totalorder %s14, 1
    %p45 = por %p43, %p44
    %p46 = scmp.ne.s32.totalorder %s38, %s41
    %p47 = scmp.eq.s32.totalorder %s14, 0
    %p48 = por %p46, %p47
    %p49 = scmp.ne.s32.totalorder %s38, %s41
    %p50 = scmp.eq.s32.totalorder %s19, 1
    %p51 = por %p49, %p50
    %p52 = scmp.ne.s32.totalorder %s41, %s42
    %p53 = scmp.eq.s32.totalorder %s19, 0
    %p54 = por %p52, %p53
    %p55 = scmp.ne.s32.totalorder %s41, %s42
    %p56 = scmp.eq.s32.totalorder %s20, 1
    %p57 = por %p55, %p56
    %p59 = scmp.ne.s32.totalorder %s42, %s58
    %p60 = scmp.eq.s32.totalorder %s20, 0
    %p61 = por %p59, %p60
    %s62 = ssub.s32 %s21, %s33
    %p63 = scmp.eq.s32.totalorder %s62, 0
    %s65 = sadd.s32 %s64, 1
    %s66 = scalar_select %p63, %s64, %s65
    %p69 = pneg %p63
    %p70 = scmp.eq.s32.totalorder %s14, 1
    %p71 = por %p69, %p70
    %p72 = scmp.ne.s32.totalorder %s64, %s67
    %p73 = scmp.eq.s32.totalorder %s14, 0
    %p74 = por %p72, %p73
    %p75 = scmp.ne.s32.totalorder %s64, %s67
    %p76 = scmp.eq.s32.totalorder %s19, 1
    %p77 = por %p75, %p76
    %p78 = scmp.ne.s32.totalorder %s67, %s68
    %p79 = scmp.eq.s32.totalorder %s19, 0
    %p80 = por %p78, %p79
    %p81 = scmp.ne.s32.totalorder %s67, %s68
    %p82 = scmp.eq.s32.totalorder %s20, 1
    %p83 = por %p81, %p82
    %p85 = scmp.ne.s32.totalorder %s68, %s84
    %p86 = scmp.eq.s32.totalorder %s20, 0
    %p87 = por %p85, %p86
    %s88 = ssub.s32 %s21, %s33
    %p89 = scmp.eq.s32.totalorder %s88, 0
    %s91 = sadd.s32 %s90, 1
    %s92 = scalar_select %p89, %s90, %s91
    %p95 = pneg %p89
    %p96 = scmp.eq.s32.totalorder %s14, 1
    %p97 = por %p95, %p96
    %p98 = scmp.ne.s32.totalorder %s90, %s93
    %p99 = scmp.eq.s32.totalorder %s14, 0
    %p100 = por %p98, %p99
    %p101 = scmp.ne.s32.totalorder %s90, %s93
    %p102 = scmp.eq.s32.totalorder %s19, 1
    %p103 = por %p101, %p102
    %p104 = scmp.ne.s32.totalorder %s93, %s94
    %p105 = scmp.eq.s32.totalorder %s19, 0
    %p106 = por %p104, %p105
    %p107 = scmp.ne.s32.totalorder %s93, %s94
    %p108 = scmp.eq.s32.totalorder %s20, 1
    %p109 = por %p107, %p108
    %p111 = scmp.ne.s32.totalorder %s94, %s110
    %p112 = scmp.eq.s32.totalorder %s20, 0
    %p113 = por %p111, %p112
    %s115 = sadd.s32 %s114, 1
    %p118 = scmp.eq.s32.totalorder %s14, 1
    %p119 = scmp.ne.s32.totalorder %s114, %s116
    %p120 = scmp.eq.s32.totalorder %s14, 0
    %p121 = por %p119, %p120
    %p122 = scmp.ne.s32.totalorder %s114, %s116
    %p123 = scmp.eq.s32.totalorder %s19, 1
    %p124 = por %p122, %p123
    %p125 = scmp.ne.s32.totalorder %s116, %s117
    %p126 = scmp.eq.s32.totalorder %s19, 0
    %p127 = por %p125, %p126
    %p128 = scmp.ne.s32.totalorder %s116, %s117
    %p129 = scmp.eq.s32.totalorder %s20, 1
    %p130 = por %p128, %p129
    %p132 = scmp.ne.s32.totalorder %s117, %s131
    %p133 = scmp.eq.s32.totalorder %s20, 0
    %p134 = por %p132, %p133
    %s136 = sadd.s32 %s135, 1
    %p139 = scmp.eq.s32.totalorder %s14, 1
    %p140 = scmp.ne.s32.totalorder %s135, %s137
    %p141 = scmp.eq.s32.totalorder %s14, 0
    %p142 = por %p140, %p141
    %p143 = scmp.ne.s32.totalorder %s135, %s137
    %p144 = scmp.eq.s32.totalorder %s19, 1
    %p145 = por %p143, %p144
    %p146 = scmp.ne.s32.totalorder %s137, %s138
    %p147 = scmp.eq.s32.totalorder %s19, 0
    %p148 = por %p146, %p147
    %p149 = scmp.ne.s32.totalorder %s137, %s138
    %p150 = scmp.eq.s32.totalorder %s20, 1
    %p151 = por %p149, %p150
    %p153 = scmp.ne.s32.totalorder %s138, %s152
    %p154 = scmp.eq.s32.totalorder %s20, 0
    %p155 = por %p153, %p154
    %s156 = ssub.s32 %s21, %s33
    %s157 = ssub.s32 %s22, %s29
    %s158 = sor.u32 %s156, %s157
    %p159 = scmp.eq.s32.totalorder %s158, 0
    %s161 = sadd.s32 %s160, 1
    %s162 = scalar_select %p159, %s160, %s161
    %p165 = pneg %p159
    %p166 = scmp.eq.s32.totalorder %s14, 1
    %p167 = por %p165, %p166
    %p168 = scmp.ne.s32.totalorder %s160, %s163
    %p169 = scmp.eq.s32.totalorder %s14, 0
    %p170 = por %p168, %p169
    %p171 = scmp.ne.s32.totalorder %s160, %s163
    %p172 = scmp.eq.s32.totalorder %s19, 1
    %p173 = por %p171, %p172
    %p174 = scmp.ne.s32.totalorder %s163, %s164
    %p175 = scmp.eq.s32.totalorder %s19, 0
    %p176 = por %p174, %p175
    %p177 = scmp.ne.s32.totalorder %s163, %s164
    %p178 = scmp.eq.s32.totalorder %s20, 1
    %p179 = por %p177, %p178
    %p181 = scmp.ne.s32.totalorder %s164, %s180
    %p182 = scmp.eq.s32.totalorder %s20, 0
    %p183 = por %p181, %p182
    %s184 = ssub.s32 %s21, %s33
    %s185 = ssub.s32 %s22, %s29
    %s186 = sor.u32 %s184, %s185
    %p187 = scmp.eq.s32.totalorder %s186, 0
    %s189 = sadd.s32 %s188, 1
    %s190 = scalar_select %p187, %s188, %s189
    %p193 = pneg %p187
    %p194 = scmp.eq.s32.totalorder %s14, 1
    %p195 = por %p193, %p194
    %p196 = scmp.ne.s32.totalorder %s188, %s191
    %p197 = scmp.eq.s32.totalorder %s14, 0
    %p198 = por %p196, %p197
    %p199 = scmp.ne.s32.totalorder %s188, %s191
    %p200 = scmp.eq.s32.totalorder %s19, 1
    %p201 = por %p199, %p200
    %p202 = scmp.ne.s32.totalorder %s191, %s192
    %p203 = scmp.eq.s32.totalorder %s19, 0
    %p204 = por %p202, %p203
    %p205 = scmp.ne.s32.totalorder %s191, %s192
    %p206 = scmp.eq.s32.totalorder %s20, 1
    %p207 = por %p205, %p206
    %p209 = scmp.ne.s32.totalorder %s192, %s208
    %p210 = scmp.eq.s32.totalorder %s20, 0
    %p211 = por %p209, %p210
    %s212 = ssub.s32 %s21, %s33
    %s213 = ssub.s32 %s22, %s29
    %s214 = sor.u32 %s212, %s213
    %p215 = scmp.eq.s32.totalorder %s214, 0
    %s217 = sadd.s32 %s216, 1
    %s218 = scalar_select %p215, %s216, %s217
    %p221 = pneg %p215
    %p222 = scmp.eq.s32.totalorder %s14, 1
    %p223 = por %p221, %p222
    %p224 = scmp.ne.s32.totalorder %s216, %s219
    %p225 = scmp.eq.s32.totalorder %s14, 0
    %p226 = por %p224, %p225
    %p227 = scmp.ne.s32.totalorder %s216, %s219
    %p228 = scmp.eq.s32.totalorder %s19, 1
    %p229 = por %p227, %p228
    %p230 = scmp.ne.s32.totalorder %s219, %s220
    %p231 = scmp.eq.s32.totalorder %s19, 0
    %p232 = por %p230, %p231
    %p233 = scmp.ne.s32.totalorder %s219, %s220
    %p234 = scmp.eq.s32.totalorder %s20, 1
    %p235 = por %p233, %p234
    %p237 = scmp.ne.s32.totalorder %s220, %s236
    %p238 = scmp.eq.s32.totalorder %s20, 0
    %p239 = por %p237, %p238
    %p240 = scmp.le.s32.totalorder 1, %s14
    %p241 = scmp.lt.s32.totalorder %s14, 3
    %p242 = pnand %p240, %p241
    %p243 = pneg %p242
    // Predicated region
    $region9: #{vae_attention_block.4} parent=5 // pred_check
      _
    $region10: #{vae_attention_block.4} parent=5 // pred_check_branch
      %245 = sbr.rel (%p242) target = $region12
    $region11: #{vae_attention_block.4} parent=5 // pred_region
      %s246 = ssub.s32 %s14, 1
      // Predicated region
      $region13: #{vae_attention_block.4} parent=11 // pred_check
        %p247 = pneg %p127
      $region14: #{vae_attention_block.4} parent=11 // pred_check_branch
        %249 = sbr.rel (%p247) target = $region16
      $region15: #{vae_attention_block.4} parent=11 // pred_region
        _
      $region16: #{vae_attention_block.4} parent=11 // pred_fallthru
        _
      // Predicated region
      $region17: #{vae_attention_block.4} parent=11 // pred_check
        %p250 = pneg %p148
      $region18: #{vae_attention_block.4} parent=11 // pred_check_branch
        %252 = sbr.rel (%p250) target = $region20
      $region19: #{vae_attention_block.4} parent=11 // pred_region
        _
      $region20: #{vae_attention_block.4} parent=11 // pred_fallthru
        _
    $region12: #{vae_attention_block.4} parent=5 // pred_fallthru
      _
    %p253 = scmp.lt.s32.totalorder %s14, 2
    // Predicated region
    $region21: #{vae_attention_block.4} parent=5 // pred_check
      %p254 = pneg %p253
    $region22: #{vae_attention_block.4} parent=5 // pred_check_branch
      %256 = sbr.rel (%p254) target = $region24
    $region23: #{vae_attention_block.4} parent=5 // pred_region
      // Predicated region
      $region25: #{vae_attention_block.4} parent=23 // pred_check
        %p257 = pneg %p48
      $region26: #{vae_attention_block.4} parent=23 // pred_check_branch
        %259 = sbr.rel (%p257) target = $region28
      $region27: #{vae_attention_block.4} parent=23 // pred_region
        %s260 = smul.u32 2, %s22
        %p261 = scmp.lt.s32.totalorder %s21, 1
        %s262 = scalar_select %p261, %s21, 1
        %p263 = scmp.lt.s32.totalorder %s260, 1
        %s264 = scalar_select %p263, %s260, 1
        %s265 = smul.addr %s262, 16
        %s266 = sadd.s32 %s264, %s265
        %s267 = smul.addr %s266, 8
        %s268 = scalar_lea.vmem %s0, %s267
        %s269 = smul.u32 2, %s22
      $region28: #{vae_attention_block.4} parent=23 // pred_fallthru
        _
      // Predicated region
      $region29: #{vae_attention_block.4} parent=23 // pred_check
        %p270 = pneg %p74
      $region30: #{vae_attention_block.4} parent=23 // pred_check_branch
        %272 = sbr.rel (%p270) target = $region32
      $region31: #{vae_attention_block.4} parent=23 // pred_region
        %p273 = scmp.lt.s32.totalorder %s21, 1
        %s274 = scalar_select %p273, %s21, 1
        %s275 = smul.addr %s274, 8
        %s276 = smul.addr %s275, 8
        %s277 = scalar_lea.vmem %s1, %s276
      $region32: #{vae_attention_block.4} parent=23 // pred_fallthru
        _
      // Predicated region
      $region33: #{vae_attention_block.4} parent=23 // pred_check
        %p278 = pneg %p100
      $region34: #{vae_attention_block.4} parent=23 // pred_check_branch
        %280 = sbr.rel (%p278) target = $region36
      $region35: #{vae_attention_block.4} parent=23 // pred_region
        %p281 = scmp.lt.s32.totalorder %s21, 1
        %s282 = scalar_select %p281, %s21, 1
        %s283 = smul.addr %s282, 8
        %s284 = smul.addr %s283, 8
        %s285 = scalar_lea.vmem %s2, %s284
      $region36: #{vae_attention_block.4} parent=23 // pred_fallthru
        _
    $region24: #{vae_attention_block.4} parent=5 // pred_fallthru
      _
    %p286 = scmp.le.s32.totalorder 1, %s14
    %p287 = scmp.lt.s32.totalorder %s14, 3
    %p288 = pnand %p286, %p287
    %p289 = pneg %p288
    // Predicated region
    $region37: #{vae_attention_block.4} parent=5 // pred_check
      _
    $region38: #{vae_attention_block.4} parent=5 // pred_check_branch
      %291 = sbr.rel (%p288) target = $region40
    $region39: #{vae_attention_block.4} parent=5 // pred_region
      %s292 = ssub.s32 %s14, 1
      %s293 = smul.u32 2, %s24
      %p294 = scmp.lt.s32.totalorder %s23, 1
      %s295 = scalar_select %p294, %s23, 1
      %p296 = scmp.lt.s32.totalorder %s293, 1
      %s297 = scalar_select %p296, %s293, 1
      %s298 = smul.addr %s295, 16
      %s299 = sadd.s32 %s297, %s298
      %s300 = smul.addr %s299, 8
      %s301 = scalar_lea.vmem %s0, %s300
      %p302 = pneg %p54
      %p303 = pneg %p51
      %p304 = scmp.lt.s32.totalorder %s23, 1
      %s305 = scalar_select %p304, %s23, 1
      %s306 = smul.addr %s305, 8
      %s307 = smul.addr %s306, 8
      %s308 = scalar_lea.vmem %s1, %s307
      %p309 = pneg %p80
      %p310 = pneg %p77
      %p311 = scmp.lt.s32.totalorder %s23, 1
      %s312 = scalar_select %p311, %s23, 1
      %s313 = smul.addr %s312, 8
      %s314 = smul.addr %s313, 8
      %s315 = scalar_lea.vmem %s2, %s314
      %p316 = pneg %p106
      %p317 = pneg %p103
      %p318 = pneg %p127
      %p319 = pneg %p124
      %p320 = pneg %p148
      %p321 = pneg %p145
      %p322 = pneg %p176
      %p323 = pneg %p173
      %s324 = smul.u32 2, %s24
      %p325 = scmp.lt.s32.totalorder %s23, 1
      %s326 = scalar_select %p325, %s23, 1
      %p327 = scmp.lt.s32.totalorder %s324, 1
      %s328 = scalar_select %p327, %s324, 1
      %s329 = smul.addr %s326, 16
      %s330 = sadd.s32 %s328, %s329
      %s331 = smul.addr %s330, 4
      %s332 = scalar_lea.vmem %s5, %s331
      %p333 = pneg %p204
      %p334 = pneg %p201
      %s335 = smul.u32 2, %s24
      %p336 = scmp.lt.s32.totalorder %s23, 1
      %s337 = scalar_select %p336, %s23, 1
      %p338 = scmp.lt.s32.totalorder %s335, 1
      %s339 = scalar_select %p338, %s335, 1
      %s340 = smul.addr %s337, 16
      %s341 = sadd.s32 %s339, %s340
      %s342 = smul.addr %s341, 4
      %s343 = scalar_lea.vmem %s6, %s342
      %p344 = pneg %p232
      %p345 = pneg %p229
      %s346 = smul.u32 2, %s24
      %p347 = scmp.lt.s32.totalorder %s23, 1
      %s348 = scalar_select %p347, %s23, 1
      %p349 = scmp.lt.s32.totalorder %s346, 1
      %s350 = scalar_select %p349, %s346, 1
      %s351 = smul.addr %s348, 16
      %s352 = sadd.s32 %s350, %s351
      %s353 = smul.addr %s352, 4
      %s354 = scalar_lea.vmem %s7, %s353
      %s355 = smul.u32 2, %s24
      %p356 = scmp.lt.s32.totalorder %s23, 1
      %s357 = scalar_select %p356, %s23, 1
      %p358 = scmp.lt.s32.totalorder %s355, 1
      %s359 = scalar_select %p358, %s355, 1
      %s360 = smul.addr %s357, 16
      %s361 = sadd.s32 %s359, %s360
      %s362 = smul.addr %s361, 8
      %s363 = scalar_lea.vmem %s0, %s362
      %s364 = smul.u32 2, %s24
      %p365 = scmp.lt.s32.totalorder %s23, 1
      %s366 = scalar_select %p365, %s23, 1
      %s367 = smul.addr %s366, 8
      %s368 = smul.addr %s367, 8
      %s369 = scalar_lea.vmem %s1, %s368
      %p370 = scmp.lt.s32.totalorder %s23, 1
      %s371 = scalar_select %p370, %s23, 1
      %s372 = smul.addr %s371, 8
      %s373 = smul.addr %s372, 8
      %s374 = scalar_lea.vmem %s2, %s373
      %s375 = smul.u32 2, %s24
      %p376 = scmp.lt.s32.totalorder %s23, 1
      %s377 = scalar_select %p376, %s23, 1
      %p378 = scmp.lt.s32.totalorder %s375, 1
      %s379 = scalar_select %p378, %s375, 1
      %s380 = smul.addr %s377, 16
      %s381 = sadd.s32 %s379, %s380
      %s382 = smul.addr %s381, 4
      %s383 = scalar_lea.vmem %s5, %s382
      %s384 = smul.u32 2, %s24
      %s385 = smul.u32 2, %s24
      %p386 = scmp.lt.s32.totalorder %s23, 1
      %s387 = scalar_select %p386, %s23, 1
      %p388 = scmp.lt.s32.totalorder %s385, 1
      %s389 = scalar_select %p388, %s385, 1
      %s390 = smul.addr %s387, 16
      %s391 = sadd.s32 %s389, %s390
      %s392 = smul.addr %s391, 4
      %s393 = scalar_lea.vmem %s6, %s392
      %s394 = smul.u32 2, %s24
      %s395 = smul.u32 2, %s24
      %p396 = scmp.lt.s32.totalorder %s23, 1
      %s397 = scalar_select %p396, %s23, 1
      %p398 = scmp.lt.s32.totalorder %s395, 1
      %s399 = scalar_select %p398, %s395, 1
      %s400 = smul.addr %s397, 16
      %s401 = sadd.s32 %s399, %s400
      %s402 = smul.addr %s401, 4
      %s403 = scalar_lea.vmem %s7, %s402
      %s404 = smul.u32 2, %s24
      %v406 = vld [vmem:[%s363] sm:$0xff]
      %v407 = vld [vmem:[%s363 + $0x8] sm:$0xff]
      %v408 = vld [vmem:[%s363 + $0x10] sm:$0xff]
      %v409 = vld [vmem:[%s363 + $0x18] sm:$0xff]
      %v410 = vld [vmem:[%s363 + $0x20] sm:$0xff]
      %v411 = vld [vmem:[%s363 + $0x28] sm:$0xff]
      %v412 = vld [vmem:[%s363 + $0x30] sm:$0xff]
      %v413 = vld [vmem:[%s363 + $0x38] sm:$0xff]
      %v414 = vld [vmem:[%s363 + $0x40] sm:$0xff]
      %v415 = vld [vmem:[%s363 + $0x48] sm:$0xff]
      %v416 = vld [vmem:[%s363 + $0x50] sm:$0xff]
      %v417 = vld [vmem:[%s363 + $0x58] sm:$0xff]
      %v418 = vld [vmem:[%s363 + $0x60] sm:$0xff]
      %v419 = vld [vmem:[%s363 + $0x68] sm:$0xff]
      %v420 = vld [vmem:[%s363 + $0x70] sm:$0xff]
      %v421 = vld [vmem:[%s363 + $0x78] sm:$0xff]
      %v422 = vld [vmem:[%s369] sm:$0xff]
      %v423 = vld [vmem:[%s369 + $0x8] sm:$0xff]
      %v424 = vld [vmem:[%s369 + $0x10] sm:$0xff]
      %v425 = vld [vmem:[%s369 + $0x18] sm:$0xff]
      %v426 = vld [vmem:[%s369 + $0x20] sm:$0xff]
      %v427 = vld [vmem:[%s369 + $0x28] sm:$0xff]
      %v428 = vld [vmem:[%s369 + $0x30] sm:$0xff]
      %v429 = vld [vmem:[%s369 + $0x38] sm:$0xff]
      %431 = vset.pattern.permute.xlu0 0
      %432 = vperm.xlu0 %431, %v422
      %v433 = vpop.permute.xlu0 %432
      %436 = vset.pattern.permute.xlu0 0
      %437 = vperm.xlu0 %436, %v423
      %v438 = vpop.permute.xlu0 %437
      %441 = vset.pattern.permute.xlu0 0
      %442 = vperm.xlu0 %441, %v424
      %v443 = vpop.permute.xlu0 %442
      %446 = vset.pattern.permute.xlu0 0
      %447 = vperm.xlu0 %446, %v425
      %v448 = vpop.permute.xlu0 %447
      %451 = vset.pattern.permute.xlu0 0
      %452 = vperm.xlu0 %451, %v426
      %v453 = vpop.permute.xlu0 %452
      %456 = vset.pattern.permute.xlu0 0
      %457 = vperm.xlu0 %456, %v427
      %v458 = vpop.permute.xlu0 %457
      %461 = vset.pattern.permute.xlu0 0
      %462 = vperm.xlu0 %461, %v428
      %v463 = vpop.permute.xlu0 %462
      %466 = vset.pattern.permute.xlu0 0
      %467 = vperm.xlu0 %466, %v429
      %v468 = vpop.permute.xlu0 %467
      %v470 = vmul.f32 %v406, %v433
      %v471 = vmul.f32 %v407, %v433
      %v472 = vmul.f32 %v408, %v438
      %v473 = vmul.f32 %v409, %v438
      %v474 = vmul.f32 %v410, %v443
      %v475 = vmul.f32 %v411, %v443
      %v476 = vmul.f32 %v412, %v448
      %v477 = vmul.f32 %v413, %v448
      %v478 = vmul.f32 %v414, %v453
      %v479 = vmul.f32 %v415, %v453
      %v480 = vmul.f32 %v416, %v458
      %v481 = vmul.f32 %v417, %v458
      %v482 = vmul.f32 %v418, %v463
      %v483 = vmul.f32 %v419, %v463
      %v484 = vmul.f32 %v420, %v468
      %v485 = vmul.f32 %v421, %v468
      %v486 = vld [vmem:[%s374] sm:$0xff]
      %v487 = vld [vmem:[%s374 + $0x8] sm:$0xff]
      %v488 = vld [vmem:[%s374 + $0x10] sm:$0xff]
      %v489 = vld [vmem:[%s374 + $0x18] sm:$0xff]
      %v490 = vld [vmem:[%s374 + $0x20] sm:$0xff]
      %v491 = vld [vmem:[%s374 + $0x28] sm:$0xff]
      %v492 = vld [vmem:[%s374 + $0x30] sm:$0xff]
      %v493 = vld [vmem:[%s374 + $0x38] sm:$0xff]
      %495 = vset.pattern.permute.xlu0 0
      %496 = vperm.xlu0 %495, %v486
      %v497 = vpop.permute.xlu0 %496
      %500 = vset.pattern.permute.xlu0 0
      %501 = vperm.xlu0 %500, %v487
      %v502 = vpop.permute.xlu0 %501
      %505 = vset.pattern.permute.xlu0 0
      %506 = vperm.xlu0 %505, %v488
      %v507 = vpop.permute.xlu0 %506
      %510 = vset.pattern.permute.xlu0 0
      %511 = vperm.xlu0 %510, %v489
      %v512 = vpop.permute.xlu0 %511
      %515 = vset.pattern.permute.xlu0 0
      %516 = vperm.xlu0 %515, %v490
      %v517 = vpop.permute.xlu0 %516
      %520 = vset.pattern.permute.xlu0 0
      %521 = vperm.xlu0 %520, %v491
      %v522 = vpop.permute.xlu0 %521
      %525 = vset.pattern.permute.xlu0 0
      %526 = vperm.xlu0 %525, %v492
      %v527 = vpop.permute.xlu0 %526
      %530 = vset.pattern.permute.xlu0 0
      %531 = vperm.xlu0 %530, %v493
      %v532 = vpop.permute.xlu0 %531
      %v534 = vadd.f32 %v470, %v497
      %v535 = vadd.f32 %v471, %v497
      %v536 = vadd.f32 %v472, %v502
      %v537 = vadd.f32 %v473, %v502
      %v538 = vadd.f32 %v474, %v507
      %v539 = vadd.f32 %v475, %v507
      %v540 = vadd.f32 %v476, %v512
      %v541 = vadd.f32 %v477, %v512
      %v542 = vadd.f32 %v478, %v517
      %v543 = vadd.f32 %v479, %v517
      %v544 = vadd.f32 %v480, %v522
      %v545 = vadd.f32 %v481, %v522
      %v546 = vadd.f32 %v482, %v527
      %v547 = vadd.f32 %v483, %v527
      %v548 = vadd.f32 %v484, %v532
      %v549 = vadd.f32 %v485, %v532
      %v550 = vpack.c.bf16 %v536, %v534
      %v551 = vpack.c.bf16 %v537, %v535
      %v552 = vpack.c.bf16 %v540, %v538
      %v553 = vpack.c.bf16 %v541, %v539
      %v554 = vpack.c.bf16 %v544, %v542
      %v555 = vpack.c.bf16 %v545, %v543
      %v556 = vpack.c.bf16 %v548, %v546
      %v557 = vpack.c.bf16 %v549, %v547
      %v558 = vld [vmem:[%s3] sm:$0xf]
      %v559 = vld [vmem:[%s3 + $0x4] sm:$0xf]
      %v560 = vld [vmem:[%s3 + $0x8] sm:$0xf]
      %v561 = vld [vmem:[%s3 + $0xc] sm:$0xf]
      %v562 = vld [vmem:[%s3 + $0x10] sm:$0xf]
      %v563 = vld [vmem:[%s3 + $0x14] sm:$0xf]
      %v564 = vld [vmem:[%s3 + $0x18] sm:$0xf]
      %v565 = vld [vmem:[%s3 + $0x1c] sm:$0xf]
      %v566 = vld [vmem:[%s4] sm:$0xff]
      %v567 = vld [vmem:[%s4 + $0x8] sm:$0xff]
      %v568 = vld [vmem:[%s4 + $0x10] sm:$0xff]
      %v569 = vld [vmem:[%s4 + $0x18] sm:$0xff]
      %v570 = vld [vmem:[%s4 + $0x20] sm:$0xff]
      %v571 = vld [vmem:[%s4 + $0x28] sm:$0xff]
      %v572 = vld [vmem:[%s4 + $0x30] sm:$0xff]
      %v573 = vld [vmem:[%s4 + $0x38] sm:$0xff]
      %575 = vset.pattern.permute.xlu0 0
      %576 = vperm.xlu0 %575, %v566
      %v577 = vpop.permute.xlu0 %576
      %580 = vset.pattern.permute.xlu0 0
      %581 = vperm.xlu0 %580, %v567
      %v582 = vpop.permute.xlu0 %581
      %585 = vset.pattern.permute.xlu0 0
      %586 = vperm.xlu0 %585, %v568
      %v587 = vpop.permute.xlu0 %586
      %590 = vset.pattern.permute.xlu0 0
      %591 = vperm.xlu0 %590, %v569
      %v592 = vpop.permute.xlu0 %591
      %595 = vset.pattern.permute.xlu0 0
      %596 = vperm.xlu0 %595, %v570
      %v597 = vpop.permute.xlu0 %596
      %600 = vset.pattern.permute.xlu0 0
      %601 = vperm.xlu0 %600, %v571
      %v602 = vpop.permute.xlu0 %601
      %605 = vset.pattern.permute.xlu0 0
      %606 = vperm.xlu0 %605, %v572
      %v607 = vpop.permute.xlu0 %606
      %610 = vset.pattern.permute.xlu0 0
      %611 = vperm.xlu0 %610, %v573
      %v612 = vpop.permute.xlu0 %611
      %v622 = vunpack.c.l.b16 %v558
      %v623 = vunpack.c.l.b16 %v559
      %v624 = vunpack.c.l.b16 %v560
      %v625 = vunpack.c.l.b16 %v561
      %v626 = vunpack.c.l.b16 %v562
      %v627 = vunpack.c.l.b16 %v563
      %v628 = vunpack.c.l.b16 %v564
      %v629 = vunpack.c.l.b16 %v565
      %v630 = vpack.c.b16 %v623, %v622
      %v631 = vpack.c.b16 %v625, %v624
      %v632 = vpack.c.b16 %v627, %v626
      %v633 = vpack.c.b16 %v629, %v628
      %vm634 = vcmask 523264
      %v636 = vsel %vm634, %v630, 0
      %v639 = vsel %vm634, %v631, 0
      %v642 = vsel %vm634, %v632, 0
      %v645 = vsel %vm634, %v633, 0
      %647 = vmatpush.bf16.msra.mxu0 0
      %648 = vmatpush.bf16.msra.mxu0 0
      %649 = vmatpush.bf16.msra.mxu0 0
      %650 = vmatpush.bf16.msra.mxu0 0
      %651 = vmatpush.bf16.msra.mxu0 %v556
      %652 = vmatpush.bf16.msra.mxu0 %v554
      %653 = vmatpush.bf16.msra.mxu0 %v552
      %654 = vmatpush.bf16.msra.mxu0 %v550
      %655 = vmatmul.bf16.gmra.mxu0 %v636
      %v656 = vpop.f32.mrf.mxu0
      %v657 = vadd.f32 %v577, %v656
      %v658 = vpop.f32.mrf.mxu0
      %v659 = vadd.f32 %v582, %v658
      %660 = vmatmul.bf16.gmra.mxu0 %v639
      %v661 = vpop.f32.mrf.mxu0
      %v662 = vadd.f32 %v587, %v661
      %v663 = vpop.f32.mrf.mxu0
      %v664 = vadd.f32 %v592, %v663
      %665 = vmatmul.bf16.gmra.mxu0 %v642
      %v666 = vpop.f32.mrf.mxu0
      %v667 = vadd.f32 %v597, %v666
      %v668 = vpop.f32.mrf.mxu0
      %v669 = vadd.f32 %v602, %v668
      %670 = vmatmul.bf16.gmra.mxu0 %v645
      %v671 = vpop.f32.mrf.mxu0
      %v672 = vadd.f32 %v607, %v671
      %v673 = vpop.f32.mrf.mxu0
      %v674 = vadd.f32 %v612, %v673
      %675 = vdwg.mxu0
      %676 = vmatpush.bf16.msra.mxu0 0
      %677 = vmatpush.bf16.msra.mxu0 0
      %678 = vmatpush.bf16.msra.mxu0 0
      %679 = vmatpush.bf16.msra.mxu0 0
      %680 = vmatpush.bf16.msra.mxu0 %v557
      %681 = vmatpush.bf16.msra.mxu0 %v555
      %682 = vmatpush.bf16.msra.mxu0 %v553
      %683 = vmatpush.bf16.msra.mxu0 %v551
      %684 = vmatmul.bf16.gmra.mxu0 %v636
      %v685 = vpop.f32.mrf.mxu0
      %v686 = vadd.f32 %v577, %v685
      %v687 = vpop.f32.mrf.mxu0
      %v688 = vadd.f32 %v582, %v687
      %689 = vmatmul.bf16.gmra.mxu0 %v639
      %v690 = vpop.f32.mrf.mxu0
      %v691 = vadd.f32 %v587, %v690
      %v692 = vpop.f32.mrf.mxu0
      %v693 = vadd.f32 %v592, %v692
      %694 = vmatmul.bf16.gmra.mxu0 %v642
      %v695 = vpop.f32.mrf.mxu0
      %v696 = vadd.f32 %v597, %v695
      %v697 = vpop.f32.mrf.mxu0
      %v698 = vadd.f32 %v602, %v697
      %699 = vmatmul.bf16.gmra.mxu0 %v645
      %v700 = vpop.f32.mrf.mxu0
      %v701 = vadd.f32 %v607, %v700
      %v702 = vpop.f32.mrf.mxu0
      %v703 = vadd.f32 %v612, %v702
      %704 = vdwg.mxu0
      %v705 = vpack.c.bf16 %v686, %v657
      %v706 = vpack.c.bf16 %v688, %v659
      %v707 = vpack.c.bf16 %v691, %v662
      %v708 = vpack.c.bf16 %v693, %v664
      %v709 = vpack.c.bf16 %v696, %v667
      %v710 = vpack.c.bf16 %v698, %v669
      %v711 = vpack.c.bf16 %v701, %v672
      %v712 = vpack.c.bf16 %v703, %v674
      %713 = vst [vmem:[%s383] sm:$0xff] %v705
      %714 = vst [vmem:[%s383 + $0x8] sm:$0xff] %v706
      %715 = vst [vmem:[%s383 + $0x10] sm:$0xff] %v707
      %716 = vst [vmem:[%s383 + $0x18] sm:$0xff] %v708
      %717 = vst [vmem:[%s383 + $0x20] sm:$0xff] %v709
      %718 = vst [vmem:[%s383 + $0x28] sm:$0xff] %v710
      %719 = vst [vmem:[%s383 + $0x30] sm:$0xff] %v711
      %720 = vst [vmem:[%s383 + $0x38] sm:$0xff] %v712
      %v721 = vld [vmem:[%s3 + $0x20] sm:$0xf]
      %v722 = vld [vmem:[%s3 + $0x24] sm:$0xf]
      %v723 = vld [vmem:[%s3 + $0x28] sm:$0xf]
      %v724 = vld [vmem:[%s3 + $0x2c] sm:$0xf]
      %v725 = vld [vmem:[%s3 + $0x30] sm:$0xf]
      %v726 = vld [vmem:[%s3 + $0x34] sm:$0xf]
      %v727 = vld [vmem:[%s3 + $0x38] sm:$0xf]
      %v728 = vld [vmem:[%s3 + $0x3c] sm:$0xf]
      %v729 = vld [vmem:[%s4 + $0x40] sm:$0xff]
      %v730 = vld [vmem:[%s4 + $0x48] sm:$0xff]
      %v731 = vld [vmem:[%s4 + $0x50] sm:$0xff]
      %v732 = vld [vmem:[%s4 + $0x58] sm:$0xff]
      %v733 = vld [vmem:[%s4 + $0x60] sm:$0xff]
      %v734 = vld [vmem:[%s4 + $0x68] sm:$0xff]
      %v735 = vld [vmem:[%s4 + $0x70] sm:$0xff]
      %v736 = vld [vmem:[%s4 + $0x78] sm:$0xff]
      %738 = vset.pattern.permute.xlu0 0
      %739 = vperm.xlu0 %738, %v729
      %v740 = vpop.permute.xlu0 %739
      %743 = vset.pattern.permute.xlu0 0
      %744 = vperm.xlu0 %743, %v730
      %v745 = vpop.permute.xlu0 %744
      %748 = vset.pattern.permute.xlu0 0
      %749 = vperm.xlu0 %748, %v731
      %v750 = vpop.permute.xlu0 %749
      %753 = vset.pattern.permute.xlu0 0
      %754 = vperm.xlu0 %753, %v732
      %v755 = vpop.permute.xlu0 %754
      %758 = vset.pattern.permute.xlu0 0
      %759 = vperm.xlu0 %758, %v733
      %v760 = vpop.permute.xlu0 %759
      %763 = vset.pattern.permute.xlu0 0
      %764 = vperm.xlu0 %763, %v734
      %v765 = vpop.permute.xlu0 %764
      %768 = vset.pattern.permute.xlu0 0
      %769 = vperm.xlu0 %768, %v735
      %v770 = vpop.permute.xlu0 %769
      %773 = vset.pattern.permute.xlu0 0
      %774 = vperm.xlu0 %773, %v736
      %v775 = vpop.permute.xlu0 %774
      %v785 = vunpack.c.l.b16 %v721
      %v786 = vunpack.c.l.b16 %v722
      %v787 = vunpack.c.l.b16 %v723
      %v788 = vunpack.c.l.b16 %v724
      %v789 = vunpack.c.l.b16 %v725
      %v790 = vunpack.c.l.b16 %v726
      %v791 = vunpack.c.l.b16 %v727
      %v792 = vunpack.c.l.b16 %v728
      %v793 = vpack.c.b16 %v786, %v785
      %v794 = vpack.c.b16 %v788, %v787
      %v795 = vpack.c.b16 %v790, %v789
      %v796 = vpack.c.b16 %v792, %v791
      %v798 = vsel %vm634, %v793, 0
      %v801 = vsel %vm634, %v794, 0
      %v804 = vsel %vm634, %v795, 0
      %v807 = vsel %vm634, %v796, 0
      %809 = vmatpush.bf16.msra.mxu0 0
      %810 = vmatpush.bf16.msra.mxu0 0
      %811 = vmatpush.bf16.msra.mxu0 0
      %812 = vmatpush.bf16.msra.mxu0 0
      %813 = vmatpush.bf16.msra.mxu0 %v556
      %814 = vmatpush.bf16.msra.mxu0 %v554
      %815 = vmatpush.bf16.msra.mxu0 %v552
      %816 = vmatpush.bf16.msra.mxu0 %v550
      %817 = vmatmul.bf16.gmra.mxu0 %v798
      %v818 = vpop.f32.mrf.mxu0
      %v819 = vadd.f32 %v740, %v818
      %v820 = vpop.f32.mrf.mxu0
      %v821 = vadd.f32 %v745, %v820
      %822 = vmatmul.bf16.gmra.mxu0 %v801
      %v823 = vpop.f32.mrf.mxu0
      %v824 = vadd.f32 %v750, %v823
      %v825 = vpop.f32.mrf.mxu0
      %v826 = vadd.f32 %v755, %v825
      %827 = vmatmul.bf16.gmra.mxu0 %v804
      %v828 = vpop.f32.mrf.mxu0
      %v829 = vadd.f32 %v760, %v828
      %v830 = vpop.f32.mrf.mxu0
      %v831 = vadd.f32 %v765, %v830
      %832 = vmatmul.bf16.gmra.mxu0 %v807
      %v833 = vpop.f32.mrf.mxu0
      %v834 = vadd.f32 %v770, %v833
      %v835 = vpop.f32.mrf.mxu0
      %v836 = vadd.f32 %v775, %v835
      %837 = vdwg.mxu0
      %838 = vmatpush.bf16.msra.mxu0 0
      %839 = vmatpush.bf16.msra.mxu0 0
      %840 = vmatpush.bf16.msra.mxu0 0
      %841 = vmatpush.bf16.msra.mxu0 0
      %842 = vmatpush.bf16.msra.mxu0 %v557
      %843 = vmatpush.bf16.msra.mxu0 %v555
      %844 = vmatpush.bf16.msra.mxu0 %v553
      %845 = vmatpush.bf16.msra.mxu0 %v551
      %846 = vmatmul.bf16.gmra.mxu0 %v798
      %v847 = vpop.f32.mrf.mxu0
      %v848 = vadd.f32 %v740, %v847
      %v849 = vpop.f32.mrf.mxu0
      %v850 = vadd.f32 %v745, %v849
      %851 = vmatmul.bf16.gmra.mxu0 %v801
      %v852 = vpop.f32.mrf.mxu0
      %v853 = vadd.f32 %v750, %v852
      %v854 = vpop.f32.mrf.mxu0
      %v855 = vadd.f32 %v755, %v854
      %856 = vmatmul.bf16.gmra.mxu0 %v804
      %v857 = vpop.f32.mrf.mxu0
      %v858 = vadd.f32 %v760, %v857
      %v859 = vpop.f32.mrf.mxu0
      %v860 = vadd.f32 %v765, %v859
      %861 = vmatmul.bf16.gmra.mxu0 %v807
      %v862 = vpop.f32.mrf.mxu0
      %v863 = vadd.f32 %v770, %v862
      %v864 = vpop.f32.mrf.mxu0
      %v865 = vadd.f32 %v775, %v864
      %866 = vdwg.mxu0
      %v867 = vpack.c.bf16 %v848, %v819
      %v868 = vpack.c.bf16 %v850, %v821
      %v869 = vpack.c.bf16 %v853, %v824
      %v870 = vpack.c.bf16 %v855, %v826
      %v871 = vpack.c.bf16 %v858, %v829
      %v872 = vpack.c.bf16 %v860, %v831
      %v873 = vpack.c.bf16 %v863, %v834
      %v874 = vpack.c.bf16 %v865, %v836
      %875 = vst [vmem:[%s393] sm:$0xff] %v867
      %876 = vst [vmem:[%s393 + $0x8] sm:$0xff] %v868
      %877 = vst [vmem:[%s393 + $0x10] sm:$0xff] %v869
      %878 = vst [vmem:[%s393 + $0x18] sm:$0xff] %v870
      %879 = vst [vmem:[%s393 + $0x20] sm:$0xff] %v871
      %880 = vst [vmem:[%s393 + $0x28] sm:$0xff] %v872
      %881 = vst [vmem:[%s393 + $0x30] sm:$0xff] %v873
      %882 = vst [vmem:[%s393 + $0x38] sm:$0xff] %v874
      %v883 = vld [vmem:[%s3 + $0x40] sm:$0xf]
      %v884 = vld [vmem:[%s3 + $0x44] sm:$0xf]
      %v885 = vld [vmem:[%s3 + $0x48] sm:$0xf]
      %v886 = vld [vmem:[%s3 + $0x4c] sm:$0xf]
      %v887 = vld [vmem:[%s3 + $0x50] sm:$0xf]
      %v888 = vld [vmem:[%s3 + $0x54] sm:$0xf]
      %v889 = vld [vmem:[%s3 + $0x58] sm:$0xf]
      %v890 = vld [vmem:[%s3 + $0x5c] sm:$0xf]
      %v891 = vld [vmem:[%s4 + $0x80] sm:$0xff]
      %v892 = vld [vmem:[%s4 + $0x88] sm:$0xff]
      %v893 = vld [vmem:[%s4 + $0x90] sm:$0xff]
      %v894 = vld [vmem:[%s4 + $0x98] sm:$0xff]
      %v895 = vld [vmem:[%s4 + $0xa0] sm:$0xff]
      %v896 = vld [vmem:[%s4 + $0xa8] sm:$0xff]
      %v897 = vld [vmem:[%s4 + $0xb0] sm:$0xff]
      %v898 = vld [vmem:[%s4 + $0xb8] sm:$0xff]
      %900 = vset.pattern.permute.xlu0 0
      %901 = vperm.xlu0 %900, %v891
      %v902 = vpop.permute.xlu0 %901
      %905 = vset.pattern.permute.xlu0 0
      %906 = vperm.xlu0 %905, %v892
      %v907 = vpop.permute.xlu0 %906
      %910 = vset.pattern.permute.xlu0 0
      %911 = vperm.xlu0 %910, %v893
      %v912 = vpop.permute.xlu0 %911
      %915 = vset.pattern.permute.xlu0 0
      %916 = vperm.xlu0 %915, %v894
      %v917 = vpop.permute.xlu0 %916
      %920 = vset.pattern.permute.xlu0 0
      %921 = vperm.xlu0 %920, %v895
      %v922 = vpop.permute.xlu0 %921
      %925 = vset.pattern.permute.xlu0 0
      %926 = vperm.xlu0 %925, %v896
      %v927 = vpop.permute.xlu0 %926
      %930 = vset.pattern.permute.xlu0 0
      %931 = vperm.xlu0 %930, %v897
      %v932 = vpop.permute.xlu0 %931
      %935 = vset.pattern.permute.xlu0 0
      %936 = vperm.xlu0 %935, %v898
      %v937 = vpop.permute.xlu0 %936
      %v947 = vunpack.c.l.b16 %v883
      %v948 = vunpack.c.l.b16 %v884
      %v949 = vunpack.c.l.b16 %v885
      %v950 = vunpack.c.l.b16 %v886
      %v951 = vunpack.c.l.b16 %v887
      %v952 = vunpack.c.l.b16 %v888
      %v953 = vunpack.c.l.b16 %v889
      %v954 = vunpack.c.l.b16 %v890
      %v955 = vpack.c.b16 %v948, %v947
      %v956 = vpack.c.b16 %v950, %v949
      %v957 = vpack.c.b16 %v952, %v951
      %v958 = vpack.c.b16 %v954, %v953
      %v960 = vsel %vm634, %v955, 0
      %v963 = vsel %vm634, %v956, 0
      %v966 = vsel %vm634, %v957, 0
      %v969 = vsel %vm634, %v958, 0
      %971 = vmatpush.bf16.msra.mxu0 0
      %972 = vmatpush.bf16.msra.mxu0 0
      %973 = vmatpush.bf16.msra.mxu0 0
      %974 = vmatpush.bf16.msra.mxu0 0
      %975 = vmatpush.bf16.msra.mxu0 %v556
      %976 = vmatpush.bf16.msra.mxu0 %v554
      %977 = vmatpush.bf16.msra.mxu0 %v552
      %978 = vmatpush.bf16.msra.mxu0 %v550
      %979 = vmatmul.bf16.gmra.mxu0 %v960
      %v980 = vpop.f32.mrf.mxu0
      %v981 = vadd.f32 %v902, %v980
      %v982 = vpop.f32.mrf.mxu0
      %v983 = vadd.f32 %v907, %v982
      %984 = vmatmul.bf16.gmra.mxu0 %v963
      %v985 = vpop.f32.mrf.mxu0
      %v986 = vadd.f32 %v912, %v985
      %v987 = vpop.f32.mrf.mxu0
      %v988 = vadd.f32 %v917, %v987
      %989 = vmatmul.bf16.gmra.mxu0 %v966
      %v990 = vpop.f32.mrf.mxu0
      %v991 = vadd.f32 %v922, %v990
      %v992 = vpop.f32.mrf.mxu0
      %v993 = vadd.f32 %v927, %v992
      %994 = vmatmul.bf16.gmra.mxu0 %v969
      %v995 = vpop.f32.mrf.mxu0
      %v996 = vadd.f32 %v932, %v995
      %v997 = vpop.f32.mrf.mxu0
      %v998 = vadd.f32 %v937, %v997
      %999 = vdwg.mxu0
      %1000 = vmatpush.bf16.msra.mxu0 0
      %1001 = vmatpush.bf16.msra.mxu0 0
      %1002 = vmatpush.bf16.msra.mxu0 0
      %1003 = vmatpush.bf16.msra.mxu0 0
      %1004 = vmatpush.bf16.msra.mxu0 %v557
      %1005 = vmatpush.bf16.msra.mxu0 %v555
      %1006 = vmatpush.bf16.msra.mxu0 %v553
      %1007 = vmatpush.bf16.msra.mxu0 %v551
      %1008 = vmatmul.bf16.gmra.mxu0 %v960
      %v1009 = vpop.f32.mrf.mxu0
      %v1010 = vadd.f32 %v902, %v1009
      %v1011 = vpop.f32.mrf.mxu0
      %v1012 = vadd.f32 %v907, %v1011
      %1013 = vmatmul.bf16.gmra.mxu0 %v963
      %v1014 = vpop.f32.mrf.mxu0
      %v1015 = vadd.f32 %v912, %v1014
      %v1016 = vpop.f32.mrf.mxu0
      %v1017 = vadd.f32 %v917, %v1016
      %1018 = vmatmul.bf16.gmra.mxu0 %v966
      %v1019 = vpop.f32.mrf.mxu0
      %v1020 = vadd.f32 %v922, %v1019
      %v1021 = vpop.f32.mrf.mxu0
      %v1022 = vadd.f32 %v927, %v1021
      %1023 = vmatmul.bf16.gmra.mxu0 %v969
      %v1024 = vpop.f32.mrf.mxu0
      %v1025 = vadd.f32 %v932, %v1024
      %v1026 = vpop.f32.mrf.mxu0
      %v1027 = vadd.f32 %v937, %v1026
      %1028 = vdwg.mxu0
      %v1029 = vpack.c.bf16 %v1010, %v981
      %v1030 = vpack.c.bf16 %v1012, %v983
      %v1031 = vpack.c.bf16 %v1015, %v986
      %v1032 = vpack.c.bf16 %v1017, %v988
      %v1033 = vpack.c.bf16 %v1020, %v991
      %v1034 = vpack.c.bf16 %v1022, %v993
      %v1035 = vpack.c.bf16 %v1025, %v996
      %v1036 = vpack.c.bf16 %v1027, %v998
      %1037 = vst [vmem:[%s403] sm:$0xff] %v1029
      %1038 = vst [vmem:[%s403 + $0x8] sm:$0xff] %v1030
      %1039 = vst [vmem:[%s403 + $0x10] sm:$0xff] %v1031
      %1040 = vst [vmem:[%s403 + $0x18] sm:$0xff] %v1032
      %1041 = vst [vmem:[%s403 + $0x20] sm:$0xff] %v1033
      %1042 = vst [vmem:[%s403 + $0x28] sm:$0xff] %v1034
      %1043 = vst [vmem:[%s403 + $0x30] sm:$0xff] %v1035
      %1044 = vst [vmem:[%s403 + $0x38] sm:$0xff] %v1036
      %s1045 = smul.u32 2, %s24
      %p1046 = scmp.lt.s32.totalorder %s23, 1
      %s1047 = scalar_select %p1046, %s23, 1
      %p1048 = scmp.lt.s32.totalorder %s1045, 1
      %s1049 = scalar_select %p1048, %s1045, 1
      %s1050 = smul.addr %s1047, 16
      %s1051 = sadd.s32 %s1049, %s1050
      %s1052 = smul.addr %s1051, 4
      %s1053 = scalar_lea.vmem %s5, %s1052
      %s1054 = smul.u32 2, %s24
      %p1055 = scmp.lt.s32.totalorder %s23, 1
      %s1056 = scalar_select %p1055, %s23, 1
      %p1057 = scmp.lt.s32.totalorder %s1054, 1
      %s1058 = scalar_select %p1057, %s1054, 1
      %s1059 = smul.addr %s1056, 16
      %s1060 = sadd.s32 %s1058, %s1059
      %s1061 = smul.addr %s1060, 4
      %s1062 = scalar_lea.vmem %s6, %s1061
      %s1063 = smul.u32 2, %s24
      %p1064 = scmp.lt.s32.totalorder %s23, 1
      %s1065 = scalar_select %p1064, %s23, 1
      %p1066 = scmp.lt.s32.totalorder %s1063, 1
      %s1067 = scalar_select %p1066, %s1063, 1
      %s1068 = smul.addr %s1065, 16
      %s1069 = sadd.s32 %s1067, %s1068
      %s1070 = smul.addr %s1069, 4
      %s1071 = scalar_lea.vmem %s7, %s1070
      // Predicated region
      $region41: #{vae_attention_block.4} parent=39 // pred_check
        %p1072 = pneg %p173
      $region42: #{vae_attention_block.4} parent=39 // pred_check_branch
        %1074 = sbr.rel (%p1072) target = $region44
      $region43: #{vae_attention_block.4} parent=39 // pred_region
        %s1075 = smul.u32 2, %s24
      $region44: #{vae_attention_block.4} parent=39 // pred_fallthru
        _
      // Predicated region
      $region45: #{vae_attention_block.4} parent=39 // pred_check
        %p1076 = pneg %p201
      $region46: #{vae_attention_block.4} parent=39 // pred_check_branch
        %1078 = sbr.rel (%p1076) target = $region48
      $region47: #{vae_attention_block.4} parent=39 // pred_region
        %s1079 = smul.u32 2, %s24
      $region48: #{vae_attention_block.4} parent=39 // pred_fallthru
        _
      // Predicated region
      $region49: #{vae_attention_block.4} parent=39 // pred_check
        %p1080 = pneg %p229
      $region50: #{vae_attention_block.4} parent=39 // pred_check_branch
        %1082 = sbr.rel (%p1080) target = $region52
      $region51: #{vae_attention_block.4} parent=39 // pred_region
        %s1083 = smul.u32 2, %s24
      $region52: #{vae_attention_block.4} parent=39 // pred_fallthru
        _
    $region40: #{vae_attention_block.4} parent=5 // pred_fallthru
      _
    %p1084 = scmp.le.s32.totalorder 2, %s14
    // Predicated region
    $region53: #{vae_attention_block.4} parent=5 // pred_check
      %p1085 = pneg %p1084
    $region54: #{vae_attention_block.4} parent=5 // pred_check_branch
      %1087 = sbr.rel (%p1085) target = $region56
    $region55: #{vae_attention_block.4} parent=5 // pred_region
      %s1088 = ssub.s32 %s14, 2
      // Predicated region
      $region57: #{vae_attention_block.4} parent=55 // pred_check
        %p1089 = pneg %p179
      $region58: #{vae_attention_block.4} parent=55 // pred_check_branch
        %1091 = sbr.rel (%p1089) target = $region60
      $region59: #{vae_attention_block.4} parent=55 // pred_region
        %s1092 = smul.u32 2, %s26
        %p1093 = scmp.lt.s32.totalorder %s25, 1
        %s1094 = scalar_select %p1093, %s25, 1
        %p1095 = scmp.lt.s32.totalorder %s1092, 1
        %s1096 = scalar_select %p1095, %s1092, 1
        %s1097 = smul.addr %s1094, 16
        %s1098 = sadd.s32 %s1096, %s1097
        %s1099 = smul.addr %s1098, 4
        %s1100 = scalar_lea.vmem %s5, %s1099
      $region60: #{vae_attention_block.4} parent=55 // pred_fallthru
        _
      // Predicated region
      $region61: #{vae_attention_block.4} parent=55 // pred_check
        %p1101 = pneg %p207
      $region62: #{vae_attention_block.4} parent=55 // pred_check_branch
        %1103 = sbr.rel (%p1101) target = $region64
      $region63: #{vae_attention_block.4} parent=55 // pred_region
        %s1104 = smul.u32 2, %s26
        %p1105 = scmp.lt.s32.totalorder %s25, 1
        %s1106 = scalar_select %p1105, %s25, 1
        %p1107 = scmp.lt.s32.totalorder %s1104, 1
        %s1108 = scalar_select %p1107, %s1104, 1
        %s1109 = smul.addr %s1106, 16
        %s1110 = sadd.s32 %s1108, %s1109
        %s1111 = smul.addr %s1110, 4
        %s1112 = scalar_lea.vmem %s6, %s1111
      $region64: #{vae_attention_block.4} parent=55 // pred_fallthru
        _
      // Predicated region
      $region65: #{vae_attention_block.4} parent=55 // pred_check
        %p1113 = pneg %p235
      $region66: #{vae_attention_block.4} parent=55 // pred_check_branch
        %1115 = sbr.rel (%p1113) target = $region68
      $region67: #{vae_attention_block.4} parent=55 // pred_region
        %s1116 = smul.u32 2, %s26
        %p1117 = scmp.lt.s32.totalorder %s25, 1
        %s1118 = scalar_select %p1117, %s25, 1
        %p1119 = scmp.lt.s32.totalorder %s1116, 1
        %s1120 = scalar_select %p1119, %s1116, 1
        %s1121 = smul.addr %s1118, 16
        %s1122 = sadd.s32 %s1120, %s1121
        %s1123 = smul.addr %s1122, 4
        %s1124 = scalar_lea.vmem %s7, %s1123
      $region68: #{vae_attention_block.4} parent=55 // pred_fallthru
        _
    $region56: #{vae_attention_block.4} parent=5 // pred_fallthru
      _
  $region6: #{vae_attention_block.4} parent=0 // loop_footer
    %s18 = sadd.s32 1, %s14
  $region7: #{vae_attention_block.4} parent=0 // loop_footer_branch
    %13 = sbr.rel target = $region3
  $region8: #{vae_attention_block.4} parent=0 // loop_exit
    _

// kernel: vae_attention_block.5
$region0: #{vae_attention_block.5}
  #allocation0 [shape = 'u32[]', space=smem, size = 0x4, offset = 0x4, fixed_abs, tag = 'smem constant byte address 0x4 - core index']
  #allocation1 [shape = 'u32[72,128]{1,0:T(1,128)}', space=vmem, size = 0x9000, scoped, tag = 'internal scratch']
  #allocation2 [shape = 'f32[1,256]{1,0:T(1,128)}', space=vmem, size = 0x400, scoped, tag = 'scratch operand']
  #allocation3 [shape = 'f32[1,256]{1,0:T(1,128)}', space=vmem, size = 0x400, scoped, tag = 'scratch operand']
  #allocation4 [shape = 'f32[64,256]{1,0:T(8,128)}', space=vmem, size = 0x10000, scoped, tag = 'scratch operand']
  %s0 = inlined_call_operand.vmem [shape: bf16[2,64,256], index: 0, kind: input, shape index: {}]
  %s1 = inlined_call_operand.vmem [shape: bf16[2,64,256], index: 1, kind: input, shape index: {}]
  %s2 = inlined_call_operand.vmem [shape: bf16[2,64,256], index: 2, kind: input, shape index: {}]
  %s3 = inlined_call_operand.vmem [shape: f32[2,64,256], index: 3, kind: input, shape index: {}]
  %s4 = inlined_call_operand.vmem [shape: bf16[64,64], index: 4, kind: input, shape index: {}]
  %s5 = inlined_call_operand.vmem [shape: f32[64,1], index: 5, kind: input, shape index: {}]
  %s6 = inlined_call_operand.vmem [shape: f32[2,64,256], index: 6, kind: output, shape index: {}]
  %s7 = sld [smem:[#allocation0]]
  $region65: #{vae_attention_block.5} parent=0
    _
  %s9 = ssub.s32 1, %s7
  %s10 = scalar_select 0, %s9, %s7
  loop: start=0, step=1, limit=4
  $region2: #{vae_attention_block.5} parent=0 // loop_pre_header
    _
  $region3: #{vae_attention_block.5} parent=0 // loop_header
    %s12 = sphi 0, %s16
    %p13 = scmp.ge.s32.totalorder %s12, 4
    %s19 = sphi 0, %s38
    %s20 = sphi 0, %s34
    %s21 = sphi 0, %s30
    %s22 = sphi 0, %s19
    %s23 = sphi 0, %s20
    %s24 = sphi 0, %s21
    %s25 = sphi 0, %s22
    %s26 = sphi 0, %s23
    %s27 = sphi 0, %s24
    %s43 = sphi 0, %s45
    %s46 = sphi 0, %s43
    %s47 = sphi 0, %s46
    %s63 = sphi 0, %s47
    %s69 = sphi 0, %s71
    %s72 = sphi 0, %s69
    %s73 = sphi 0, %s72
    %s89 = sphi 0, %s73
    %s95 = sphi 0, %s97
    %s98 = sphi 0, %s95
    %s99 = sphi 0, %s98
    %s115 = sphi 0, %s99
    %s123 = sphi 0, %s125
    %s126 = sphi 0, %s123
    %s127 = sphi 0, %s126
    %s143 = sphi 0, %s127
    %s147 = sphi 0, %s147
    %s149 = sphi 0, %s147
    %s150 = sphi 0, %s149
    %s164 = sphi 0, %s150
    %s168 = sphi 0, %s168
    %s170 = sphi 0, %s168
    %s171 = sphi 0, %s170
    %s185 = sphi 0, %s171
    %s193 = sphi 0, %s195
    %s196 = sphi 0, %s193
    %s197 = sphi 0, %s196
    %s213 = sphi 0, %s197
  $region4: #{vae_attention_block.5} parent=0 // loop_header_branch
    %15 = sbr.rel (%p13) target = $region8
  $region5: #{vae_attention_block.5} parent=0 // loop_body
    %s17 = ssub.s32 %s12, 1
    %s18 = ssub.s32 %s12, 2
    %s28 = sadd.s32 1, %s21
    %p29 = scmp.ge.s32.totalorder %s28, 1
    %s30 = scalar_select %p29, 0, %s28
    %s31 = sadd.s32 1, %s20
    %s32 = scalar_select %p29, %s31, %s20
    %p33 = scmp.ge.s32.totalorder %s32, 1
    %s34 = scalar_select %p33, 0, %s32
    %s35 = sadd.s32 1, %s19
    %s36 = scalar_select %p33, %s35, %s19
    %p37 = scmp.ge.s32.totalorder %s36, 2
    %s38 = scalar_select %p37, 0, %s36
    %s39 = ssub.s32 %s19, %s38
    %s40 = ssub.s32 %s20, %s34
    %s41 = sor.u32 %s39, %s40
    %p42 = scmp.eq.s32.totalorder %s41, 0
    %s44 = sadd.s32 %s43, 1
    %s45 = scalar_select %p42, %s43, %s44
    %p48 = pneg %p42
    %p49 = scmp.eq.s32.totalorder %s12, 1
    %p50 = por %p48, %p49
    %p51 = scmp.ne.s32.totalorder %s43, %s46
    %p52 = scmp.eq.s32.totalorder %s12, 0
    %p53 = por %p51, %p52
    %p54 = scmp.ne.s32.totalorder %s43, %s46
    %p55 = scmp.eq.s32.totalorder %s17, 1
    %p56 = por %p54, %p55
    %p57 = scmp.ne.s32.totalorder %s46, %s47
    %p58 = scmp.eq.s32.totalorder %s17, 0
    %p59 = por %p57, %p58
    %p60 = scmp.ne.s32.totalorder %s46, %s47
    %p61 = scmp.eq.s32.totalorder %s18, 1
    %p62 = por %p60, %p61
    %p64 = scmp.ne.s32.totalorder %s47, %s63
    %p65 = scmp.eq.s32.totalorder %s18, 0
    %p66 = por %p64, %p65
    %s67 = ssub.s32 %s19, %s38
    %p68 = scmp.eq.s32.totalorder %s67, 0
    %s70 = sadd.s32 %s69, 1
    %s71 = scalar_select %p68, %s69, %s70
    %p74 = pneg %p68
    %p75 = scmp.eq.s32.totalorder %s12, 1
    %p76 = por %p74, %p75
    %p77 = scmp.ne.s32.totalorder %s69, %s72
    %p78 = scmp.eq.s32.totalorder %s12, 0
    %p79 = por %p77, %p78
    %p80 = scmp.ne.s32.totalorder %s69, %s72
    %p81 = scmp.eq.s32.totalorder %s17, 1
    %p82 = por %p80, %p81
    %p83 = scmp.ne.s32.totalorder %s72, %s73
    %p84 = scmp.eq.s32.totalorder %s17, 0
    %p85 = por %p83, %p84
    %p86 = scmp.ne.s32.totalorder %s72, %s73
    %p87 = scmp.eq.s32.totalorder %s18, 1
    %p88 = por %p86, %p87
    %p90 = scmp.ne.s32.totalorder %s73, %s89
    %p91 = scmp.eq.s32.totalorder %s18, 0
    %p92 = por %p90, %p91
    %s93 = ssub.s32 %s19, %s38
    %p94 = scmp.eq.s32.totalorder %s93, 0
    %s96 = sadd.s32 %s95, 1
    %s97 = scalar_select %p94, %s95, %s96
    %p100 = pneg %p94
    %p101 = scmp.eq.s32.totalorder %s12, 1
    %p102 = por %p100, %p101
    %p103 = scmp.ne.s32.totalorder %s95, %s98
    %p104 = scmp.eq.s32.totalorder %s12, 0
    %p105 = por %p103, %p104
    %p106 = scmp.ne.s32.totalorder %s95, %s98
    %p107 = scmp.eq.s32.totalorder %s17, 1
    %p108 = por %p106, %p107
    %p109 = scmp.ne.s32.totalorder %s98, %s99
    %p110 = scmp.eq.s32.totalorder %s17, 0
    %p111 = por %p109, %p110
    %p112 = scmp.ne.s32.totalorder %s98, %s99
    %p113 = scmp.eq.s32.totalorder %s18, 1
    %p114 = por %p112, %p113
    %p116 = scmp.ne.s32.totalorder %s99, %s115
    %p117 = scmp.eq.s32.totalorder %s18, 0
    %p118 = por %p116, %p117
    %s119 = ssub.s32 %s19, %s38
    %s120 = ssub.s32 %s20, %s34
    %s121 = sor.u32 %s119, %s120
    %p122 = scmp.eq.s32.totalorder %s121, 0
    %s124 = sadd.s32 %s123, 1
    %s125 = scalar_select %p122, %s123, %s124
    %p128 = pneg %p122
    %p129 = scmp.eq.s32.totalorder %s12, 1
    %p130 = por %p128, %p129
    %p131 = scmp.ne.s32.totalorder %s123, %s126
    %p132 = scmp.eq.s32.totalorder %s12, 0
    %p133 = por %p131, %p132
    %p134 = scmp.ne.s32.totalorder %s123, %s126
    %p135 = scmp.eq.s32.totalorder %s17, 1
    %p136 = por %p134, %p135
    %p137 = scmp.ne.s32.totalorder %s126, %s127
    %p138 = scmp.eq.s32.totalorder %s17, 0
    %p139 = por %p137, %p138
    %p140 = scmp.ne.s32.totalorder %s126, %s127
    %p141 = scmp.eq.s32.totalorder %s18, 1
    %p142 = por %p140, %p141
    %p144 = scmp.ne.s32.totalorder %s127, %s143
    %p145 = scmp.eq.s32.totalorder %s18, 0
    %p146 = por %p144, %p145
    %s148 = sadd.s32 %s147, 1
    %p151 = scmp.eq.s32.totalorder %s12, 1
    %p152 = scmp.ne.s32.totalorder %s147, %s149
    %p153 = scmp.eq.s32.totalorder %s12, 0
    %p154 = por %p152, %p153
    %p155 = scmp.ne.s32.totalorder %s147, %s149
    %p156 = scmp.eq.s32.totalorder %s17, 1
    %p157 = por %p155, %p156
    %p158 = scmp.ne.s32.totalorder %s149, %s150
    %p159 = scmp.eq.s32.totalorder %s17, 0
    %p160 = por %p158, %p159
    %p161 = scmp.ne.s32.totalorder %s149, %s150
    %p162 = scmp.eq.s32.totalorder %s18, 1
    %p163 = por %p161, %p162
    %p165 = scmp.ne.s32.totalorder %s150, %s164
    %p166 = scmp.eq.s32.totalorder %s18, 0
    %p167 = por %p165, %p166
    %s169 = sadd.s32 %s168, 1
    %p172 = scmp.eq.s32.totalorder %s12, 1
    %p173 = scmp.ne.s32.totalorder %s168, %s170
    %p174 = scmp.eq.s32.totalorder %s12, 0
    %p175 = por %p173, %p174
    %p176 = scmp.ne.s32.totalorder %s168, %s170
    %p177 = scmp.eq.s32.totalorder %s17, 1
    %p178 = por %p176, %p177
    %p179 = scmp.ne.s32.totalorder %s170, %s171
    %p180 = scmp.eq.s32.totalorder %s17, 0
    %p181 = por %p179, %p180
    %p182 = scmp.ne.s32.totalorder %s170, %s171
    %p183 = scmp.eq.s32.totalorder %s18, 1
    %p184 = por %p182, %p183
    %p186 = scmp.ne.s32.totalorder %s171, %s185
    %p187 = scmp.eq.s32.totalorder %s18, 0
    %p188 = por %p186, %p187
    %s189 = ssub.s32 %s19, %s38
    %s190 = ssub.s32 %s20, %s34
    %s191 = sor.u32 %s189, %s190
    %p192 = scmp.eq.s32.totalorder %s191, 0
    %s194 = sadd.s32 %s193, 1
    %s195 = scalar_select %p192, %s193, %s194
    %p198 = pneg %p192
    %p199 = scmp.eq.s32.totalorder %s12, 1
    %p200 = por %p198, %p199
    %p201 = scmp.ne.s32.totalorder %s193, %s196
    %p202 = scmp.eq.s32.totalorder %s12, 0
    %p203 = por %p201, %p202
    %p204 = scmp.ne.s32.totalorder %s193, %s196
    %p205 = scmp.eq.s32.totalorder %s17, 1
    %p206 = por %p204, %p205
    %p207 = scmp.ne.s32.totalorder %s196, %s197
    %p208 = scmp.eq.s32.totalorder %s17, 0
    %p209 = por %p207, %p208
    %p210 = scmp.ne.s32.totalorder %s196, %s197
    %p211 = scmp.eq.s32.totalorder %s18, 1
    %p212 = por %p210, %p211
    %p214 = scmp.ne.s32.totalorder %s197, %s213
    %p215 = scmp.eq.s32.totalorder %s18, 0
    %p216 = por %p214, %p215
    %p217 = scmp.le.s32.totalorder 1, %s12
    %p218 = scmp.lt.s32.totalorder %s12, 3
    %p219 = pnand %p217, %p218
    %p220 = pneg %p219
    // Predicated region
    $region9: #{vae_attention_block.5} parent=5 // pred_check
      _
    $region10: #{vae_attention_block.5} parent=5 // pred_check_branch
      %222 = sbr.rel (%p219) target = $region12
    $region11: #{vae_attention_block.5} parent=5 // pred_region
      %s223 = ssub.s32 %s12, 1
      // Predicated region
      $region13: #{vae_attention_block.5} parent=11 // pred_check
        %p224 = pneg %p160
      $region14: #{vae_attention_block.5} parent=11 // pred_check_branch
        %226 = sbr.rel (%p224) target = $region16
      $region15: #{vae_attention_block.5} parent=11 // pred_region
        _
      $region16: #{vae_attention_block.5} parent=11 // pred_fallthru
        _
      // Predicated region
      $region17: #{vae_attention_block.5} parent=11 // pred_check
        %p227 = pneg %p181
      $region18: #{vae_attention_block.5} parent=11 // pred_check_branch
        %229 = sbr.rel (%p227) target = $region20
      $region19: #{vae_attention_block.5} parent=11 // pred_region
        _
      $region20: #{vae_attention_block.5} parent=11 // pred_fallthru
        _
    $region12: #{vae_attention_block.5} parent=5 // pred_fallthru
      _
    %p230 = scmp.lt.s32.totalorder %s12, 2
    // Predicated region
    $region21: #{vae_attention_block.5} parent=5 // pred_check
      %p231 = pneg %p230
    $region22: #{vae_attention_block.5} parent=5 // pred_check_branch
      %233 = sbr.rel (%p231) target = $region24
    $region23: #{vae_attention_block.5} parent=5 // pred_region
      // Predicated region
      $region25: #{vae_attention_block.5} parent=23 // pred_check
        %p234 = pneg %p53
      $region26: #{vae_attention_block.5} parent=23 // pred_check_branch
        %236 = sbr.rel (%p234) target = $region28
      $region27: #{vae_attention_block.5} parent=23 // pred_region
        %s237 = smul.u32 2, %s20
        %p238 = scmp.lt.s32.totalorder %s19, 1
        %s239 = scalar_select %p238, %s19, 1
        %p240 = scmp.lt.s32.totalorder %s237, 1
        %s241 = scalar_select %p240, %s237, 1
        %s242 = smul.addr %s239, 16
        %s243 = sadd.s32 %s241, %s242
        %s244 = smul.addr %s243, 4
        %s245 = scalar_lea.vmem %s0, %s244
        %s246 = smul.u32 2, %s20
      $region28: #{vae_attention_block.5} parent=23 // pred_fallthru
        _
      // Predicated region
      $region29: #{vae_attention_block.5} parent=23 // pred_check
        %p247 = pneg %p79
      $region30: #{vae_attention_block.5} parent=23 // pred_check_branch
        %249 = sbr.rel (%p247) target = $region32
      $region31: #{vae_attention_block.5} parent=23 // pred_region
        %p250 = scmp.lt.s32.totalorder %s19, 1
        %s251 = scalar_select %p250, %s19, 1
        %s252 = smul.addr %s251, 16
        %s253 = smul.addr %s252, 4
        %s254 = scalar_lea.vmem %s1, %s253
      $region32: #{vae_attention_block.5} parent=23 // pred_fallthru
        _
      // Predicated region
      $region33: #{vae_attention_block.5} parent=23 // pred_check
        %p255 = pneg %p105
      $region34: #{vae_attention_block.5} parent=23 // pred_check_branch
        %257 = sbr.rel (%p255) target = $region36
      $region35: #{vae_attention_block.5} parent=23 // pred_region
        %p258 = scmp.lt.s32.totalorder %s19, 1
        %s259 = scalar_select %p258, %s19, 1
        %s260 = smul.addr %s259, 16
        %s261 = smul.addr %s260, 4
        %s262 = scalar_lea.vmem %s2, %s261
      $region36: #{vae_attention_block.5} parent=23 // pred_fallthru
        _
      // Predicated region
      $region37: #{vae_attention_block.5} parent=23 // pred_check
        %p263 = pneg %p133
      $region38: #{vae_attention_block.5} parent=23 // pred_check_branch
        %265 = sbr.rel (%p263) target = $region40
      $region39: #{vae_attention_block.5} parent=23 // pred_region
        %s266 = smul.u32 2, %s20
        %p267 = scmp.lt.s32.totalorder %s19, 1
        %s268 = scalar_select %p267, %s19, 1
        %p269 = scmp.lt.s32.totalorder %s266, 1
        %s270 = scalar_select %p269, %s266, 1
        %s271 = smul.addr %s268, 16
        %s272 = sadd.s32 %s270, %s271
        %s273 = smul.addr %s272, 8
        %s274 = scalar_lea.vmem %s3, %s273
        %s275 = smul.u32 2, %s20
      $region40: #{vae_attention_block.5} parent=23 // pred_fallthru
        _
    $region24: #{vae_attention_block.5} parent=5 // pred_fallthru
      _
    %p276 = scmp.le.s32.totalorder 1, %s12
    %p277 = scmp.lt.s32.totalorder %s12, 3
    %p278 = pnand %p276, %p277
    %p279 = pneg %p278
    // Predicated region
    $region41: #{vae_attention_block.5} parent=5 // pred_check
      _
    $region42: #{vae_attention_block.5} parent=5 // pred_check_branch
      %281 = sbr.rel (%p278) target = $region44
    $region43: #{vae_attention_block.5} parent=5 // pred_region
      %s282 = ssub.s32 %s12, 1
      %s283 = smul.u32 2, %s23
      %p284 = scmp.lt.s32.totalorder %s22, 1
      %s285 = scalar_select %p284, %s22, 1
      %p286 = scmp.lt.s32.totalorder %s283, 1
      %s287 = scalar_select %p286, %s283, 1
      %s288 = smul.addr %s285, 16
      %s289 = sadd.s32 %s287, %s288
      %s290 = smul.addr %s289, 4
      %s291 = scalar_lea.vmem %s0, %s290
      %p292 = pneg %p59
      %p293 = pneg %p56
      %p294 = scmp.lt.s32.totalorder %s22, 1
      %s295 = scalar_select %p294, %s22, 1
      %s296 = smul.addr %s295, 16
      %s297 = smul.addr %s296, 4
      %s298 = scalar_lea.vmem %s1, %s297
      %p299 = pneg %p85
      %p300 = pneg %p82
      %p301 = scmp.lt.s32.totalorder %s22, 1
      %s302 = scalar_select %p301, %s22, 1
      %s303 = smul.addr %s302, 16
      %s304 = smul.addr %s303, 4
      %s305 = scalar_lea.vmem %s2, %s304
      %p306 = pneg %p111
      %p307 = pneg %p108
      %s308 = smul.u32 2, %s23
      %p309 = scmp.lt.s32.totalorder %s22, 1
      %s310 = scalar_select %p309, %s22, 1
      %p311 = scmp.lt.s32.totalorder %s308, 1
      %s312 = scalar_select %p311, %s308, 1
      %s313 = smul.addr %s310, 16
      %s314 = sadd.s32 %s312, %s313
      %s315 = smul.addr %s314, 8
      %s316 = scalar_lea.vmem %s3, %s315
      %p317 = pneg %p139
      %p318 = pneg %p136
      %p319 = pneg %p160
      %p320 = pneg %p157
      %p321 = pneg %p181
      %p322 = pneg %p178
      %p323 = pneg %p209
      %p324 = pneg %p206
      %s325 = smul.u32 2, %s23
      %p326 = scmp.lt.s32.totalorder %s22, 1
      %s327 = scalar_select %p326, %s22, 1
      %p328 = scmp.lt.s32.totalorder %s325, 1
      %s329 = scalar_select %p328, %s325, 1
      %s330 = smul.addr %s327, 16
      %s331 = sadd.s32 %s329, %s330
      %s332 = smul.addr %s331, 8
      %s333 = scalar_lea.vmem %s6, %s332
      %s334 = smul.u32 2, %s23
      %p335 = scmp.lt.s32.totalorder %s22, 1
      %s336 = scalar_select %p335, %s22, 1
      %p337 = scmp.lt.s32.totalorder %s334, 1
      %s338 = scalar_select %p337, %s334, 1
      %s339 = smul.addr %s336, 16
      %s340 = sadd.s32 %s338, %s339
      %s341 = smul.addr %s340, 4
      %s342 = scalar_lea.vmem %s0, %s341
      %s343 = smul.u32 2, %s23
      %p344 = scmp.lt.s32.totalorder %s22, 1
      %s345 = scalar_select %p344, %s22, 1
      %s346 = smul.addr %s345, 16
      %s347 = smul.addr %s346, 4
      %s348 = scalar_lea.vmem %s1, %s347
      %p349 = scmp.lt.s32.totalorder %s22, 1
      %s350 = scalar_select %p349, %s22, 1
      %s351 = smul.addr %s350, 16
      %s352 = smul.addr %s351, 4
      %s353 = scalar_lea.vmem %s2, %s352
      %s354 = smul.u32 2, %s23
      %p355 = scmp.lt.s32.totalorder %s22, 1
      %s356 = scalar_select %p355, %s22, 1
      %p357 = scmp.lt.s32.totalorder %s354, 1
      %s358 = scalar_select %p357, %s354, 1
      %s359 = smul.addr %s356, 16
      %s360 = sadd.s32 %s358, %s359
      %s361 = smul.addr %s360, 8
      %s362 = scalar_lea.vmem %s3, %s361
      %s363 = smul.u32 2, %s23
      %s364 = smul.u32 2, %s23
      %p365 = scmp.lt.s32.totalorder %s22, 1
      %s366 = scalar_select %p365, %s22, 1
      %p367 = scmp.lt.s32.totalorder %s364, 1
      %s368 = scalar_select %p367, %s364, 1
      %s369 = smul.addr %s366, 16
      %s370 = sadd.s32 %s368, %s369
      %s371 = smul.addr %s370, 8
      %s372 = scalar_lea.vmem %s6, %s371
      %s373 = smul.u32 2, %s23
      %p375 = scmp.eq.s32.totalorder %s24, 0
      // Predicated region
      $region45: #{vae_attention_block.5} parent=43 // pred_check
        %p376 = pneg %p375
      $region46: #{vae_attention_block.5} parent=43 // pred_check_branch
        %378 = sbr.rel (%p376) target = $region48
      $region47: #{vae_attention_block.5} parent=43 // pred_region
        %v379 = vlaneseq
        %vm380 = vcmp.ge.s32.totalorder %v379, 0
        %vm381 = vcmp.lt.s32.totalorder %v379, 256
        %vm382 = vmand %vm380, %vm381
        %383 = vst.msk [vmem:[#allocation2] sm:$0x3] %vm382, -inf
        %384 = vst.msk [vmem:[#allocation3] sm:$0x3] %vm382, 0.0
        %385 = vst [vmem:[#allocation4] sm:$0xff] 0.0
        %386 = vst [vmem:[#allocation4 + $0x8] sm:$0xff] 0.0
        %387 = vst [vmem:[#allocation4 + $0x10] sm:$0xff] 0.0
        %388 = vst [vmem:[#allocation4 + $0x18] sm:$0xff] 0.0
        %389 = vst [vmem:[#allocation4 + $0x20] sm:$0xff] 0.0
        %390 = vst [vmem:[#allocation4 + $0x28] sm:$0xff] 0.0
        %391 = vst [vmem:[#allocation4 + $0x30] sm:$0xff] 0.0
        %392 = vst [vmem:[#allocation4 + $0x38] sm:$0xff] 0.0
        %393 = vst [vmem:[#allocation4 + $0x40] sm:$0xff] 0.0
        %394 = vst [vmem:[#allocation4 + $0x48] sm:$0xff] 0.0
        %395 = vst [vmem:[#allocation4 + $0x50] sm:$0xff] 0.0
        %396 = vst [vmem:[#allocation4 + $0x58] sm:$0xff] 0.0
        %397 = vst [vmem:[#allocation4 + $0x60] sm:$0xff] 0.0
        %398 = vst [vmem:[#allocation4 + $0x68] sm:$0xff] 0.0
        %399 = vst [vmem:[#allocation4 + $0x70] sm:$0xff] 0.0
        %400 = vst [vmem:[#allocation4 + $0x78] sm:$0xff] 0.0
      $region48: #{vae_attention_block.5} parent=43 // pred_fallthru
        _
      %v401 = vld [vmem:[%s342] sm:$0xff]
      %v402 = vld [vmem:[%s342 + $0x8] sm:$0xff]
      %v403 = vld [vmem:[%s342 + $0x10] sm:$0xff]
      %v404 = vld [vmem:[%s342 + $0x18] sm:$0xff]
      %v405 = vld [vmem:[%s342 + $0x20] sm:$0xff]
      %v406 = vld [vmem:[%s342 + $0x28] sm:$0xff]
      %v407 = vld [vmem:[%s342 + $0x30] sm:$0xff]
      %v408 = vld [vmem:[%s342 + $0x38] sm:$0xff]
      %s409 = smul.u32 %s24, 256
      %s410 = sshra.s32 %s409, 7
      %s411 = sand.u32 %s409, 127
      %s412 = smul.addr %s410, 4
      %s413 = scalar_lea.vmem %s348, %s412
      %v414 = vld [vmem:[%s413] sm:$0xff]
      %v415 = vld [vmem:[%s413 + $0x8] sm:$0xff]
      %v416 = vld [vmem:[%s413 + $0x10] sm:$0xff]
      %v417 = vld [vmem:[%s413 + $0x18] sm:$0xff]
      %v418 = vld [vmem:[%s413 + $0x20] sm:$0xff]
      %v419 = vld [vmem:[%s413 + $0x28] sm:$0xff]
      %v420 = vld [vmem:[%s413 + $0x30] sm:$0xff]
      %v421 = vld [vmem:[%s413 + $0x38] sm:$0xff]
      %s422 = smul.addr %s410, 4
      %s423 = scalar_lea.vmem %s353, %s422
      %v424 = vld [vmem:[%s423] sm:$0xff]
      %v425 = vld [vmem:[%s423 + $0x8] sm:$0xff]
      %v426 = vld [vmem:[%s423 + $0x10] sm:$0xff]
      %v427 = vld [vmem:[%s423 + $0x18] sm:$0xff]
      %v428 = vld [vmem:[%s423 + $0x20] sm:$0xff]
      %v429 = vld [vmem:[%s423 + $0x28] sm:$0xff]
      %v430 = vld [vmem:[%s423 + $0x30] sm:$0xff]
      %v431 = vld [vmem:[%s423 + $0x38] sm:$0xff]
      %v440 = vunpack.c.l.b16 %v414
      %v441 = vunpack.c.h.b16 %v414
      %v442 = vunpack.c.l.b16 %v415
      %v443 = vunpack.c.h.b16 %v415
      %v444 = vunpack.c.l.b16 %v416
      %v445 = vunpack.c.h.b16 %v416
      %v446 = vunpack.c.l.b16 %v417
      %v447 = vunpack.c.h.b16 %v417
      %v448 = vunpack.c.l.b16 %v418
      %v449 = vunpack.c.h.b16 %v418
      %v450 = vunpack.c.l.b16 %v419
      %v451 = vunpack.c.h.b16 %v419
      %v452 = vunpack.c.l.b16 %v420
      %v453 = vunpack.c.h.b16 %v420
      %v454 = vunpack.c.l.b16 %v421
      %v455 = vunpack.c.h.b16 %v421
      %v456 = vpack.c.b16 %v442, %v440
      %v457 = vpack.c.b16 %v443, %v441
      %v458 = vpack.c.b16 %v446, %v444
      %v459 = vpack.c.b16 %v447, %v445
      %v460 = vpack.c.b16 %v450, %v448
      %v461 = vpack.c.b16 %v451, %v449
      %v462 = vpack.c.b16 %v454, %v452
      %v463 = vpack.c.b16 %v455, %v453
      %472 = vxpose.binary.xlu0.c.b16.start [1/16] %v457, %v456, 128
      %473 = vxpose.binary.xlu0.c.b16.cont [2/16] %v459, %v458, 128
      %474 = vxpose.binary.xlu0.c.b16.cont [3/16] %v461, %v460, 128
      %475 = vxpose.binary.xlu0.c.b16.cont [4/16] %v463, %v462, 128
      %476 = vxpose.binary.xlu0.c.b16.cont [5/16] 0, 0, 128
      %477 = vxpose.binary.xlu0.c.b16.cont [6/16] 0, 0, 128
      %478 = vxpose.binary.xlu0.c.b16.cont [7/16] 0, 0, 128
      %479 = vxpose.binary.xlu0.c.b16.end [8/16] 0, 0, 128
      %v480 = vpop.trf.xlu0
      %v481 = vpop.trf.xlu0
      %v482 = vpop.trf.xlu0
      %v483 = vpop.trf.xlu0
      %v484 = vpop.trf.xlu0
      %v485 = vpop.trf.xlu0
      %v486 = vpop.trf.xlu0
      %v487 = vpop.trf.xlu0
      %v488 = vpop.trf.xlu0
      %v489 = vpop.trf.xlu0
      %v490 = vpop.trf.xlu0
      %v491 = vpop.trf.xlu0
      %v492 = vpop.trf.xlu0
      %v493 = vpop.trf.xlu0
      %v494 = vpop.trf.xlu0
      %v495 = vpop.trf.xlu0
      %v504 = vunpack.c.l.b16 %v401
      %v505 = vunpack.c.h.b16 %v401
      %v506 = vunpack.c.l.b16 %v402
      %v507 = vunpack.c.h.b16 %v402
      %v508 = vunpack.c.l.b16 %v403
      %v509 = vunpack.c.h.b16 %v403
      %v510 = vunpack.c.l.b16 %v404
      %v511 = vunpack.c.h.b16 %v404
      %v512 = vunpack.c.l.b16 %v405
      %v513 = vunpack.c.h.b16 %v405
      %v514 = vunpack.c.l.b16 %v406
      %v515 = vunpack.c.h.b16 %v406
      %v516 = vunpack.c.l.b16 %v407
      %v517 = vunpack.c.h.b16 %v407
      %v518 = vunpack.c.l.b16 %v408
      %v519 = vunpack.c.h.b16 %v408
      %v520 = vpack.c.b16 %v506, %v504
      %v521 = vpack.c.b16 %v507, %v505
      %v522 = vpack.c.b16 %v510, %v508
      %v523 = vpack.c.b16 %v511, %v509
      %v524 = vpack.c.b16 %v514, %v512
      %v525 = vpack.c.b16 %v515, %v513
      %v526 = vpack.c.b16 %v518, %v516
      %v527 = vpack.c.b16 %v519, %v517
      %vm536 = vcmask 523264
      %v538 = vsel %vm536, %v480, 0
      %v541 = vsel %vm536, %v482, 0
      %v544 = vsel %vm536, %v484, 0
      %v547 = vsel %vm536, %v486, 0
      %v550 = vsel %vm536, %v488, 0
      %v553 = vsel %vm536, %v490, 0
      %v556 = vsel %vm536, %v492, 0
      %v559 = vsel %vm536, %v494, 0
      %v562 = vsel %vm536, %v481, 0
      %v565 = vsel %vm536, %v483, 0
      %v568 = vsel %vm536, %v485, 0
      %v571 = vsel %vm536, %v487, 0
      %v574 = vsel %vm536, %v489, 0
      %v577 = vsel %vm536, %v491, 0
      %v580 = vsel %vm536, %v493, 0
      %v583 = vsel %vm536, %v495, 0
      %585 = vmatpush.bf16.msra.mxu0 0
      %586 = vmatpush.bf16.msra.mxu0 0
      %587 = vmatpush.bf16.msra.mxu0 0
      %588 = vmatpush.bf16.msra.mxu0 0
      %589 = vmatpush.bf16.msra.mxu0 %v526
      %590 = vmatpush.bf16.msra.mxu0 %v524
      %591 = vmatpush.bf16.msra.mxu0 %v522
      %592 = vmatpush.bf16.msra.mxu0 %v520
      %593 = vmatmul.bf16.gmra.mxu0 %v538
      %v594 = vpop.f32.mrf.mxu0
      %v595 = vadd.f32 0.0, %v594
      %v596 = vpop.f32.mrf.mxu0
      %v597 = vadd.f32 0.0, %v596
      %598 = vmatmul.bf16.gmra.mxu0 %v541
      %v599 = vpop.f32.mrf.mxu0
      %v600 = vadd.f32 0.0, %v599
      %v601 = vpop.f32.mrf.mxu0
      %v602 = vadd.f32 0.0, %v601
      %603 = vmatmul.bf16.gmra.mxu0 %v544
      %v604 = vpop.f32.mrf.mxu0
      %v605 = vadd.f32 0.0, %v604
      %v606 = vpop.f32.mrf.mxu0
      %v607 = vadd.f32 0.0, %v606
      %608 = vmatmul.bf16.gmra.mxu0 %v547
      %v609 = vpop.f32.mrf.mxu0
      %v610 = vadd.f32 0.0, %v609
      %v611 = vpop.f32.mrf.mxu0
      %v612 = vadd.f32 0.0, %v611
      %613 = vmatmul.bf16.gmra.mxu0 %v550
      %v614 = vpop.f32.mrf.mxu0
      %v615 = vadd.f32 0.0, %v614
      %v616 = vpop.f32.mrf.mxu0
      %v617 = vadd.f32 0.0, %v616
      %618 = vmatmul.bf16.gmra.mxu0 %v553
      %v619 = vpop.f32.mrf.mxu0
      %v620 = vadd.f32 0.0, %v619
      %v621 = vpop.f32.mrf.mxu0
      %v622 = vadd.f32 0.0, %v621
      %623 = vmatmul.bf16.gmra.mxu0 %v556
      %v624 = vpop.f32.mrf.mxu0
      %v625 = vadd.f32 0.0, %v624
      %v626 = vpop.f32.mrf.mxu0
      %v627 = vadd.f32 0.0, %v626
      %628 = vmatmul.bf16.gmra.mxu0 %v559
      %v629 = vpop.f32.mrf.mxu0
      %v630 = vadd.f32 0.0, %v629
      %v631 = vpop.f32.mrf.mxu0
      %v632 = vadd.f32 0.0, %v631
      %633 = vmatmul.bf16.gmra.mxu0 %v562
      %v634 = vpop.f32.mrf.mxu0
      %v635 = vadd.f32 0.0, %v634
      %v636 = vpop.f32.mrf.mxu0
      %v637 = vadd.f32 0.0, %v636
      %638 = vmatmul.bf16.gmra.mxu0 %v565
      %v639 = vpop.f32.mrf.mxu0
      %v640 = vadd.f32 0.0, %v639
      %v641 = vpop.f32.mrf.mxu0
      %v642 = vadd.f32 0.0, %v641
      %643 = vmatmul.bf16.gmra.mxu0 %v568
      %v644 = vpop.f32.mrf.mxu0
      %v645 = vadd.f32 0.0, %v644
      %v646 = vpop.f32.mrf.mxu0
      %v647 = vadd.f32 0.0, %v646
      %648 = vmatmul.bf16.gmra.mxu0 %v571
      %v649 = vpop.f32.mrf.mxu0
      %v650 = vadd.f32 0.0, %v649
      %v651 = vpop.f32.mrf.mxu0
      %v652 = vadd.f32 0.0, %v651
      %653 = vmatmul.bf16.gmra.mxu0 %v574
      %v654 = vpop.f32.mrf.mxu0
      %v655 = vadd.f32 0.0, %v654
      %v656 = vpop.f32.mrf.mxu0
      %v657 = vadd.f32 0.0, %v656
      %658 = vmatmul.bf16.gmra.mxu0 %v577
      %v659 = vpop.f32.mrf.mxu0
      %v660 = vadd.f32 0.0, %v659
      %v661 = vpop.f32.mrf.mxu0
      %v662 = vadd.f32 0.0, %v661
      %663 = vmatmul.bf16.gmra.mxu0 %v580
      %v664 = vpop.f32.mrf.mxu0
      %v665 = vadd.f32 0.0, %v664
      %v666 = vpop.f32.mrf.mxu0
      %v667 = vadd.f32 0.0, %v666
      %668 = vmatmul.bf16.gmra.mxu0 %v583
      %v669 = vpop.f32.mrf.mxu0
      %v670 = vadd.f32 0.0, %v669
      %v671 = vpop.f32.mrf.mxu0
      %v672 = vadd.f32 0.0, %v671
      %673 = vdwg.mxu0
      %674 = vmatpush.bf16.msra.mxu0 0
      %675 = vmatpush.bf16.msra.mxu0 0
      %676 = vmatpush.bf16.msra.mxu0 0
      %677 = vmatpush.bf16.msra.mxu0 0
      %678 = vmatpush.bf16.msra.mxu0 %v527
      %679 = vmatpush.bf16.msra.mxu0 %v525
      %680 = vmatpush.bf16.msra.mxu0 %v523
      %681 = vmatpush.bf16.msra.mxu0 %v521
      %682 = vmatmul.bf16.gmra.mxu0 %v538
      %v683 = vpop.f32.mrf.mxu0
      %v684 = vadd.f32 0.0, %v683
      %v685 = vpop.f32.mrf.mxu0
      %v686 = vadd.f32 0.0, %v685
      %687 = vmatmul.bf16.gmra.mxu0 %v541
      %v688 = vpop.f32.mrf.mxu0
      %v689 = vadd.f32 0.0, %v688
      %v690 = vpop.f32.mrf.mxu0
      %v691 = vadd.f32 0.0, %v690
      %692 = vmatmul.bf16.gmra.mxu0 %v544
      %v693 = vpop.f32.mrf.mxu0
      %v694 = vadd.f32 0.0, %v693
      %v695 = vpop.f32.mrf.mxu0
      %v696 = vadd.f32 0.0, %v695
      %697 = vmatmul.bf16.gmra.mxu0 %v547
      %v698 = vpop.f32.mrf.mxu0
      %v699 = vadd.f32 0.0, %v698
      %v700 = vpop.f32.mrf.mxu0
      %v701 = vadd.f32 0.0, %v700
      %702 = vmatmul.bf16.gmra.mxu0 %v550
      %v703 = vpop.f32.mrf.mxu0
      %v704 = vadd.f32 0.0, %v703
      %v705 = vpop.f32.mrf.mxu0
      %v706 = vadd.f32 0.0, %v705
      %707 = vmatmul.bf16.gmra.mxu0 %v553
      %v708 = vpop.f32.mrf.mxu0
      %v709 = vadd.f32 0.0, %v708
      %v710 = vpop.f32.mrf.mxu0
      %v711 = vadd.f32 0.0, %v710
      %712 = vmatmul.bf16.gmra.mxu0 %v556
      %v713 = vpop.f32.mrf.mxu0
      %v714 = vadd.f32 0.0, %v713
      %v715 = vpop.f32.mrf.mxu0
      %v716 = vadd.f32 0.0, %v715
      %717 = vmatmul.bf16.gmra.mxu0 %v559
      %v718 = vpop.f32.mrf.mxu0
      %v719 = vadd.f32 0.0, %v718
      %v720 = vpop.f32.mrf.mxu0
      %v721 = vadd.f32 0.0, %v720
      %722 = vmatmul.bf16.gmra.mxu0 %v562
      %v723 = vpop.f32.mrf.mxu0
      %v724 = vadd.f32 0.0, %v723
      %v725 = vpop.f32.mrf.mxu0
      %v726 = vadd.f32 0.0, %v725
      %727 = vmatmul.bf16.gmra.mxu0 %v565
      %v728 = vpop.f32.mrf.mxu0
      %v729 = vadd.f32 0.0, %v728
      %v730 = vpop.f32.mrf.mxu0
      %v731 = vadd.f32 0.0, %v730
      %732 = vmatmul.bf16.gmra.mxu0 %v568
      %v733 = vpop.f32.mrf.mxu0
      %v734 = vadd.f32 0.0, %v733
      %v735 = vpop.f32.mrf.mxu0
      %v736 = vadd.f32 0.0, %v735
      %737 = vmatmul.bf16.gmra.mxu0 %v571
      %v738 = vpop.f32.mrf.mxu0
      %v739 = vadd.f32 0.0, %v738
      %v740 = vpop.f32.mrf.mxu0
      %v741 = vadd.f32 0.0, %v740
      %742 = vmatmul.bf16.gmra.mxu0 %v574
      %v743 = vpop.f32.mrf.mxu0
      %v744 = vadd.f32 0.0, %v743
      %v745 = vpop.f32.mrf.mxu0
      %v746 = vadd.f32 0.0, %v745
      %747 = vmatmul.bf16.gmra.mxu0 %v577
      %v748 = vpop.f32.mrf.mxu0
      %v749 = vadd.f32 0.0, %v748
      %v750 = vpop.f32.mrf.mxu0
      %v751 = vadd.f32 0.0, %v750
      %752 = vmatmul.bf16.gmra.mxu0 %v580
      %v753 = vpop.f32.mrf.mxu0
      %v754 = vadd.f32 0.0, %v753
      %v755 = vpop.f32.mrf.mxu0
      %v756 = vadd.f32 0.0, %v755
      %757 = vmatmul.bf16.gmra.mxu0 %v583
      %v758 = vpop.f32.mrf.mxu0
      %v759 = vadd.f32 0.0, %v758
      %v760 = vpop.f32.mrf.mxu0
      %v761 = vadd.f32 0.0, %v760
      %762 = vdwg.mxu0
      %v763 = vmul.f32 %v595, 0.125
      %v764 = vmul.f32 %v684, 0.125
      %v765 = vmul.f32 %v597, 0.125
      %v766 = vmul.f32 %v686, 0.125
      %v767 = vmul.f32 %v600, 0.125
      %v768 = vmul.f32 %v689, 0.125
      %v769 = vmul.f32 %v602, 0.125
      %v770 = vmul.f32 %v691, 0.125
      %v771 = vmul.f32 %v605, 0.125
      %v772 = vmul.f32 %v694, 0.125
      %v773 = vmul.f32 %v607, 0.125
      %v774 = vmul.f32 %v696, 0.125
      %v775 = vmul.f32 %v610, 0.125
      %v776 = vmul.f32 %v699, 0.125
      %v777 = vmul.f32 %v612, 0.125
      %v778 = vmul.f32 %v701, 0.125
      %v779 = vmul.f32 %v615, 0.125
      %v780 = vmul.f32 %v704, 0.125
      %v781 = vmul.f32 %v617, 0.125
      %v782 = vmul.f32 %v706, 0.125
      %v783 = vmul.f32 %v620, 0.125
      %v784 = vmul.f32 %v709, 0.125
      %v785 = vmul.f32 %v622, 0.125
      %v786 = vmul.f32 %v711, 0.125
      %v787 = vmul.f32 %v625, 0.125
      %v788 = vmul.f32 %v714, 0.125
      %v789 = vmul.f32 %v627, 0.125
      %v790 = vmul.f32 %v716, 0.125
      %v791 = vmul.f32 %v630, 0.125
      %v792 = vmul.f32 %v719, 0.125
      %v793 = vmul.f32 %v632, 0.125
      %v794 = vmul.f32 %v721, 0.125
      %v795 = vmul.f32 %v635, 0.125
      %v796 = vmul.f32 %v724, 0.125
      %v797 = vmul.f32 %v637, 0.125
      %v798 = vmul.f32 %v726, 0.125
      %v799 = vmul.f32 %v640, 0.125
      %v800 = vmul.f32 %v729, 0.125
      %v801 = vmul.f32 %v642, 0.125
      %v802 = vmul.f32 %v731, 0.125
      %v803 = vmul.f32 %v645, 0.125
      %v804 = vmul.f32 %v734, 0.125
      %v805 = vmul.f32 %v647, 0.125
      %v806 = vmul.f32 %v736, 0.125
      %v807 = vmul.f32 %v650, 0.125
      %v808 = vmul.f32 %v739, 0.125
      %v809 = vmul.f32 %v652, 0.125
      %v810 = vmul.f32 %v741, 0.125
      %v811 = vmul.f32 %v655, 0.125
      %v812 = vmul.f32 %v744, 0.125
      %v813 = vmul.f32 %v657, 0.125
      %v814 = vmul.f32 %v746, 0.125
      %v815 = vmul.f32 %v660, 0.125
      %v816 = vmul.f32 %v749, 0.125
      %v817 = vmul.f32 %v662, 0.125
      %v818 = vmul.f32 %v751, 0.125
      %v819 = vmul.f32 %v665, 0.125
      %v820 = vmul.f32 %v754, 0.125
      %v821 = vmul.f32 %v667, 0.125
      %v822 = vmul.f32 %v756, 0.125
      %v823 = vmul.f32 %v670, 0.125
      %v824 = vmul.f32 %v759, 0.125
      %v825 = vmul.f32 %v672, 0.125
      %v826 = vmul.f32 %v761, 0.125
      %v827 = vld [vmem:[#allocation2] sm:$0x3]
      %v828 = vmax.f32 %v763, %v767
      %v829 = vmax.f32 %v765, %v769
      %v830 = vmax.f32 %v828, %v771
      %v831 = vmax.f32 %v829, %v773
      %v832 = vmax.f32 %v830, %v775
      %v833 = vmax.f32 %v831, %v777
      %v834 = vmax.f32 %v832, %v779
      %v835 = vmax.f32 %v833, %v781
      %v836 = vmax.f32 %v834, %v783
      %v837 = vmax.f32 %v835, %v785
      %v838 = vmax.f32 %v836, %v787
      %v839 = vmax.f32 %v837, %v789
      %v840 = vmax.f32 %v838, %v791
      %v841 = vmax.f32 %v839, %v793
      %v842 = vmax.f32 %v840, %v795
      %v843 = vmax.f32 %v841, %v797
      %v844 = vmax.f32 %v842, %v799
      %v845 = vmax.f32 %v843, %v801
      %v846 = vmax.f32 %v844, %v803
      %v847 = vmax.f32 %v845, %v805
      %v848 = vmax.f32 %v846, %v807
      %v849 = vmax.f32 %v847, %v809
      %v850 = vmax.f32 %v848, %v811
      %v851 = vmax.f32 %v849, %v813
      %v852 = vmax.f32 %v850, %v815
      %v853 = vmax.f32 %v851, %v817
      %v854 = vmax.f32 %v852, %v819
      %v855 = vmax.f32 %v853, %v821
      %v856 = vmax.f32 %v854, %v823
      %v857 = vmax.f32 %v855, %v825
      %v858 = vmax.f32 %v856, %v857
      %v859 = vrot.slane %v858, 4
      %v860 = vmax.f32 %v858, %v859
      %v861 = vrot.slane %v860, 2
      %v862 = vmax.f32 %v860, %v861
      %v863 = vrot.slane %v862, 1
      %v864 = vmax.f32 %v862, %v863
      %v865 = vmax.f32 %v764, %v768
      %v866 = vmax.f32 %v766, %v770
      %v867 = vmax.f32 %v865, %v772
      %v868 = vmax.f32 %v866, %v774
      %v869 = vmax.f32 %v867, %v776
      %v870 = vmax.f32 %v868, %v778
      %v871 = vmax.f32 %v869, %v780
      %v872 = vmax.f32 %v870, %v782
      %v873 = vmax.f32 %v871, %v784
      %v874 = vmax.f32 %v872, %v786
      %v875 = vmax.f32 %v873, %v788
      %v876 = vmax.f32 %v874, %v790
      %v877 = vmax.f32 %v875, %v792
      %v878 = vmax.f32 %v876, %v794
      %v879 = vmax.f32 %v877, %v796
      %v880 = vmax.f32 %v878, %v798
      %v881 = vmax.f32 %v879, %v800
      %v882 = vmax.f32 %v880, %v802
      %v883 = vmax.f32 %v881, %v804
      %v884 = vmax.f32 %v882, %v806
      %v885 = vmax.f32 %v883, %v808
      %v886 = vmax.f32 %v884, %v810
      %v887 = vmax.f32 %v885, %v812
      %v888 = vmax.f32 %v886, %v814
      %v889 = vmax.f32 %v887, %v816
      %v890 = vmax.f32 %v888, %v818
      %v891 = vmax.f32 %v889, %v820
      %v892 = vmax.f32 %v890, %v822
      %v893 = vmax.f32 %v891, %v824
      %v894 = vmax.f32 %v892, %v826
      %v895 = vmax.f32 %v893, %v894
      %v896 = vrot.slane %v895, 4
      %v897 = vmax.f32 %v895, %v896
      %v898 = vrot.slane %v897, 2
      %v899 = vmax.f32 %v897, %v898
      %v900 = vrot.slane %v899, 1
      %v901 = vmax.f32 %v899, %v900
      %v904 = vrot.slane %v901, 7
      %vm905 = vcmask 1040384
      %v906 = vsel %vm905, %v864, %v904
      %v908 = vmax.f32 %v827, %v906
      %v909 = vsub.f32 %v827, %v908
      %v910 = vmul.f32 %v909, 1.442695
      %v911 = vpow.pop %v910
      %v913 = vperm.slane %v908, 0
      %v914 = vperm.slane %v908, 1
      %v917 = vsub.f32 %v763, %v913
      %v918 = vsub.f32 %v764, %v914
      %v919 = vsub.f32 %v765, %v913
      %v920 = vsub.f32 %v766, %v914
      %v921 = vsub.f32 %v767, %v913
      %v922 = vsub.f32 %v768, %v914
      %v923 = vsub.f32 %v769, %v913
      %v924 = vsub.f32 %v770, %v914
      %v925 = vsub.f32 %v771, %v913
      %v926 = vsub.f32 %v772, %v914
      %v927 = vsub.f32 %v773, %v913
      %v928 = vsub.f32 %v774, %v914
      %v929 = vsub.f32 %v775, %v913
      %v930 = vsub.f32 %v776, %v914
      %v931 = vsub.f32 %v777, %v913
      %v932 = vsub.f32 %v778, %v914
      %v933 = vsub.f32 %v779, %v913
      %v934 = vsub.f32 %v780, %v914
      %v935 = vsub.f32 %v781, %v913
      %v936 = vsub.f32 %v782, %v914
      %v937 = vsub.f32 %v783, %v913
      %v938 = vsub.f32 %v784, %v914
      %v939 = vsub.f32 %v785, %v913
      %v940 = vsub.f32 %v786, %v914
      %v941 = vsub.f32 %v787, %v913
      %v942 = vsub.f32 %v788, %v914
      %v943 = vsub.f32 %v789, %v913
      %v944 = vsub.f32 %v790, %v914
      %v945 = vsub.f32 %v791, %v913
      %v946 = vsub.f32 %v792, %v914
      %v947 = vsub.f32 %v793, %v913
      %v948 = vsub.f32 %v794, %v914
      %v949 = vsub.f32 %v795, %v913
      %v950 = vsub.f32 %v796, %v914
      %v951 = vsub.f32 %v797, %v913
      %v952 = vsub.f32 %v798, %v914
      %v953 = vsub.f32 %v799, %v913
      %v954 = vsub.f32 %v800, %v914
      %v955 = vsub.f32 %v801, %v913
      %v956 = vsub.f32 %v802, %v914
      %v957 = vsub.f32 %v803, %v913
      %v958 = vsub.f32 %v804, %v914
      %v959 = vsub.f32 %v805, %v913
      %v960 = vsub.f32 %v806, %v914
      %v961 = vsub.f32 %v807, %v913
      %v962 = vsub.f32 %v808, %v914
      %v963 = vsub.f32 %v809, %v913
      %v964 = vsub.f32 %v810, %v914
      %v965 = vsub.f32 %v811, %v913
      %v966 = vsub.f32 %v812, %v914
      %v967 = vsub.f32 %v813, %v913
      %v968 = vsub.f32 %v814, %v914
      %v969 = vsub.f32 %v815, %v913
      %v970 = vsub.f32 %v816, %v914
      %v971 = vsub.f32 %v817, %v913
      %v972 = vsub.f32 %v818, %v914
      %v973 = vsub.f32 %v819, %v913
      %v974 = vsub.f32 %v820, %v914
      %v975 = vsub.f32 %v821, %v913
      %v976 = vsub.f32 %v822, %v914
      %v977 = vsub.f32 %v823, %v913
      %v978 = vsub.f32 %v824, %v914
      %v979 = vsub.f32 %v825, %v913
      %v980 = vsub.f32 %v826, %v914
      %v981 = vmul.f32 %v917, 1.442695
      %v982 = vpow.pop %v981
      %v983 = vmul.f32 %v918, 1.442695
      %v984 = vpow.pop %v983
      %v985 = vmul.f32 %v919, 1.442695
      %v986 = vpow.pop %v985
      %v987 = vmul.f32 %v920, 1.442695
      %v988 = vpow.pop %v987
      %v989 = vmul.f32 %v921, 1.442695
      %v990 = vpow.pop %v989
      %v991 = vmul.f32 %v922, 1.442695
      %v992 = vpow.pop %v991
      %v993 = vmul.f32 %v923, 1.442695
      %v994 = vpow.pop %v993
      %v995 = vmul.f32 %v924, 1.442695
      %v996 = vpow.pop %v995
      %v997 = vmul.f32 %v925, 1.442695
      %v998 = vpow.pop %v997
      %v999 = vmul.f32 %v926, 1.442695
      %v1000 = vpow.pop %v999
      %v1001 = vmul.f32 %v927, 1.442695
      %v1002 = vpow.pop %v1001
      %v1003 = vmul.f32 %v928, 1.442695
      %v1004 = vpow.pop %v1003
      %v1005 = vmul.f32 %v929, 1.442695
      %v1006 = vpow.pop %v1005
      %v1007 = vmul.f32 %v930, 1.442695
      %v1008 = vpow.pop %v1007
      %v1009 = vmul.f32 %v931, 1.442695
      %v1010 = vpow.pop %v1009
      %v1011 = vmul.f32 %v932, 1.442695
      %v1012 = vpow.pop %v1011
      %v1013 = vmul.f32 %v933, 1.442695
      %v1014 = vpow.pop %v1013
      %v1015 = vmul.f32 %v934, 1.442695
      %v1016 = vpow.pop %v1015
      %v1017 = vmul.f32 %v935, 1.442695
      %v1018 = vpow.pop %v1017
      %v1019 = vmul.f32 %v936, 1.442695
      %v1020 = vpow.pop %v1019
      %v1021 = vmul.f32 %v937, 1.442695
      %v1022 = vpow.pop %v1021
      %v1023 = vmul.f32 %v938, 1.442695
      %v1024 = vpow.pop %v1023
      %v1025 = vmul.f32 %v939, 1.442695
      %v1026 = vpow.pop %v1025
      %v1027 = vmul.f32 %v940, 1.442695
      %v1028 = vpow.pop %v1027
      %v1029 = vmul.f32 %v941, 1.442695
      %v1030 = vpow.pop %v1029
      %v1031 = vmul.f32 %v942, 1.442695
      %v1032 = vpow.pop %v1031
      %v1033 = vmul.f32 %v943, 1.442695
      %v1034 = vpow.pop %v1033
      %v1035 = vmul.f32 %v944, 1.442695
      %v1036 = vpow.pop %v1035
      %v1037 = vmul.f32 %v945, 1.442695
      %v1038 = vpow.pop %v1037
      %v1039 = vmul.f32 %v946, 1.442695
      %v1040 = vpow.pop %v1039
      %v1041 = vmul.f32 %v947, 1.442695
      %v1042 = vpow.pop %v1041
      %v1043 = vmul.f32 %v948, 1.442695
      %v1044 = vpow.pop %v1043
      %v1045 = vmul.f32 %v949, 1.442695
      %v1046 = vpow.pop %v1045
      %v1047 = vmul.f32 %v950, 1.442695
      %v1048 = vpow.pop %v1047
      %v1049 = vmul.f32 %v951, 1.442695
      %v1050 = vpow.pop %v1049
      %v1051 = vmul.f32 %v952, 1.442695
      %v1052 = vpow.pop %v1051
      %v1053 = vmul.f32 %v953, 1.442695
      %v1054 = vpow.pop %v1053
      %v1055 = vmul.f32 %v954, 1.442695
      %v1056 = vpow.pop %v1055
      %v1057 = vmul.f32 %v955, 1.442695
      %v1058 = vpow.pop %v1057
      %v1059 = vmul.f32 %v956, 1.442695
      %v1060 = vpow.pop %v1059
      %v1061 = vmul.f32 %v957, 1.442695
      %v1062 = vpow.pop %v1061
      %v1063 = vmul.f32 %v958, 1.442695
      %v1064 = vpow.pop %v1063
      %v1065 = vmul.f32 %v959, 1.442695
      %v1066 = vpow.pop %v1065
      %v1067 = vmul.f32 %v960, 1.442695
      %v1068 = vpow.pop %v1067
      %v1069 = vmul.f32 %v961, 1.442695
      %v1070 = vpow.pop %v1069
      %v1071 = vmul.f32 %v962, 1.442695
      %v1072 = vpow.pop %v1071
      %v1073 = vmul.f32 %v963, 1.442695
      %v1074 = vpow.pop %v1073
      %v1075 = vmul.f32 %v964, 1.442695
      %v1076 = vpow.pop %v1075
      %v1077 = vmul.f32 %v965, 1.442695
      %v1078 = vpow.pop %v1077
      %v1079 = vmul.f32 %v966, 1.442695
      %v1080 = vpow.pop %v1079
      %v1081 = vmul.f32 %v967, 1.442695
      %v1082 = vpow.pop %v1081
      %v1083 = vmul.f32 %v968, 1.442695
      %v1084 = vpow.pop %v1083
      %v1085 = vmul.f32 %v969, 1.442695
      %v1086 = vpow.pop %v1085
      %v1087 = vmul.f32 %v970, 1.442695
      %v1088 = vpow.pop %v1087
      %v1089 = vmul.f32 %v971, 1.442695
      %v1090 = vpow.pop %v1089
      %v1091 = vmul.f32 %v972, 1.442695
      %v1092 = vpow.pop %v1091
      %v1093 = vmul.f32 %v973, 1.442695
      %v1094 = vpow.pop %v1093
      %v1095 = vmul.f32 %v974, 1.442695
      %v1096 = vpow.pop %v1095
      %v1097 = vmul.f32 %v975, 1.442695
      %v1098 = vpow.pop %v1097
      %v1099 = vmul.f32 %v976, 1.442695
      %v1100 = vpow.pop %v1099
      %v1101 = vmul.f32 %v977, 1.442695
      %v1102 = vpow.pop %v1101
      %v1103 = vmul.f32 %v978, 1.442695
      %v1104 = vpow.pop %v1103
      %v1105 = vmul.f32 %v979, 1.442695
      %v1106 = vpow.pop %v1105
      %v1107 = vmul.f32 %v980, 1.442695
      %v1108 = vpow.pop %v1107
      %v1109 = vld [vmem:[#allocation3] sm:$0x3]
      %v1110 = vmul.f32 %v911, %v1109
      %v1111 = vadd.f32 %v982, %v986
      %v1112 = vadd.f32 %v1111, %v990
      %v1113 = vadd.f32 %v1112, %v994
      %v1114 = vadd.f32 %v1113, %v998
      %v1115 = vadd.f32 %v1114, %v1002
      %v1116 = vadd.f32 %v1115, %v1006
      %v1117 = vadd.f32 %v1116, %v1010
      %v1118 = vadd.f32 %v1117, %v1014
      %v1119 = vadd.f32 %v1118, %v1018
      %v1120 = vadd.f32 %v1119, %v1022
      %v1121 = vadd.f32 %v1120, %v1026
      %v1122 = vadd.f32 %v1121, %v1030
      %v1123 = vadd.f32 %v1122, %v1034
      %v1124 = vadd.f32 %v1123, %v1038
      %v1125 = vadd.f32 %v1124, %v1042
      %v1126 = vadd.f32 %v1125, %v1046
      %v1127 = vadd.f32 %v1126, %v1050
      %v1128 = vadd.f32 %v1127, %v1054
      %v1129 = vadd.f32 %v1128, %v1058
      %v1130 = vadd.f32 %v1129, %v1062
      %v1131 = vadd.f32 %v1130, %v1066
      %v1132 = vadd.f32 %v1131, %v1070
      %v1133 = vadd.f32 %v1132, %v1074
      %v1134 = vadd.f32 %v1133, %v1078
      %v1135 = vadd.f32 %v1134, %v1082
      %v1136 = vadd.f32 %v1135, %v1086
      %v1137 = vadd.f32 %v1136, %v1090
      %v1138 = vadd.f32 %v1137, %v1094
      %v1139 = vadd.f32 %v1138, %v1098
      %v1140 = vadd.f32 %v1139, %v1102
      %v1141 = vadd.f32 %v1140, %v1106
      %v1142 = vrot.slane %v1141, 4
      %v1143 = vadd.f32 %v1141, %v1142
      %v1144 = vrot.slane %v1143, 2
      %v1145 = vadd.f32 %v1143, %v1144
      %v1146 = vrot.slane %v1145, 1
      %v1147 = vadd.f32 %v1145, %v1146
      %v1148 = vadd.f32 %v984, %v988
      %v1149 = vadd.f32 %v1148, %v992
      %v1150 = vadd.f32 %v1149, %v996
      %v1151 = vadd.f32 %v1150, %v1000
      %v1152 = vadd.f32 %v1151, %v1004
      %v1153 = vadd.f32 %v1152, %v1008
      %v1154 = vadd.f32 %v1153, %v1012
      %v1155 = vadd.f32 %v1154, %v1016
      %v1156 = vadd.f32 %v1155, %v1020
      %v1157 = vadd.f32 %v1156, %v1024
      %v1158 = vadd.f32 %v1157, %v1028
      %v1159 = vadd.f32 %v1158, %v1032
      %v1160 = vadd.f32 %v1159, %v1036
      %v1161 = vadd.f32 %v1160, %v1040
      %v1162 = vadd.f32 %v1161, %v1044
      %v1163 = vadd.f32 %v1162, %v1048
      %v1164 = vadd.f32 %v1163, %v1052
      %v1165 = vadd.f32 %v1164, %v1056
      %v1166 = vadd.f32 %v1165, %v1060
      %v1167 = vadd.f32 %v1166, %v1064
      %v1168 = vadd.f32 %v1167, %v1068
      %v1169 = vadd.f32 %v1168, %v1072
      %v1170 = vadd.f32 %v1169, %v1076
      %v1171 = vadd.f32 %v1170, %v1080
      %v1172 = vadd.f32 %v1171, %v1084
      %v1173 = vadd.f32 %v1172, %v1088
      %v1174 = vadd.f32 %v1173, %v1092
      %v1175 = vadd.f32 %v1174, %v1096
      %v1176 = vadd.f32 %v1175, %v1100
      %v1177 = vadd.f32 %v1176, %v1104
      %v1178 = vadd.f32 %v1177, %v1108
      %v1179 = vrot.slane %v1178, 4
      %v1180 = vadd.f32 %v1178, %v1179
      %v1181 = vrot.slane %v1180, 2
      %v1182 = vadd.f32 %v1180, %v1181
      %v1183 = vrot.slane %v1182, 1
      %v1184 = vadd.f32 %v1182, %v1183
      %v1187 = vrot.slane %v1184, 7
      %v1188 = vsel %vm905, %v1147, %v1187
      %v1190 = vadd.f32 %v1110, %v1188
      %v1191 = vlaneseq
      %vm1192 = vcmp.ge.s32.totalorder %v1191, 0
      %vm1193 = vcmp.lt.s32.totalorder %v1191, 256
      %vm1194 = vmand %vm1192, %vm1193
      %1195 = vst.msk [vmem:[#allocation3] sm:$0x3] %vm1194, %v1190
      %v1196 = vld [vmem:[#allocation4] sm:$0xff]
      %v1197 = vld [vmem:[#allocation4 + $0x8] sm:$0xff]
      %v1198 = vld [vmem:[#allocation4 + $0x10] sm:$0xff]
      %v1199 = vld [vmem:[#allocation4 + $0x18] sm:$0xff]
      %v1200 = vld [vmem:[#allocation4 + $0x20] sm:$0xff]
      %v1201 = vld [vmem:[#allocation4 + $0x28] sm:$0xff]
      %v1202 = vld [vmem:[#allocation4 + $0x30] sm:$0xff]
      %v1203 = vld [vmem:[#allocation4 + $0x38] sm:$0xff]
      %v1204 = vld [vmem:[#allocation4 + $0x40] sm:$0xff]
      %v1205 = vld [vmem:[#allocation4 + $0x48] sm:$0xff]
      %v1206 = vld [vmem:[#allocation4 + $0x50] sm:$0xff]
      %v1207 = vld [vmem:[#allocation4 + $0x58] sm:$0xff]
      %v1208 = vld [vmem:[#allocation4 + $0x60] sm:$0xff]
      %v1209 = vld [vmem:[#allocation4 + $0x68] sm:$0xff]
      %v1210 = vld [vmem:[#allocation4 + $0x70] sm:$0xff]
      %v1211 = vld [vmem:[#allocation4 + $0x78] sm:$0xff]
      %v1213 = vperm.slane %v911, 0
      %v1214 = vperm.slane %v911, 1
      %v1217 = vmul.f32 %v1213, %v1196
      %v1218 = vmul.f32 %v1214, %v1197
      %v1219 = vmul.f32 %v1213, %v1198
      %v1220 = vmul.f32 %v1214, %v1199
      %v1221 = vmul.f32 %v1213, %v1200
      %v1222 = vmul.f32 %v1214, %v1201
      %v1223 = vmul.f32 %v1213, %v1202
      %v1224 = vmul.f32 %v1214, %v1203
      %v1225 = vmul.f32 %v1213, %v1204
      %v1226 = vmul.f32 %v1214, %v1205
      %v1227 = vmul.f32 %v1213, %v1206
      %v1228 = vmul.f32 %v1214, %v1207
      %v1229 = vmul.f32 %v1213, %v1208
      %v1230 = vmul.f32 %v1214, %v1209
      %v1231 = vmul.f32 %v1213, %v1210
      %v1232 = vmul.f32 %v1214, %v1211
      %v1233 = vpack.c.bf16 %v986, %v982
      %v1234 = vpack.c.bf16 %v988, %v984
      %v1235 = vpack.c.bf16 %v994, %v990
      %v1236 = vpack.c.bf16 %v996, %v992
      %v1237 = vpack.c.bf16 %v1002, %v998
      %v1238 = vpack.c.bf16 %v1004, %v1000
      %v1239 = vpack.c.bf16 %v1010, %v1006
      %v1240 = vpack.c.bf16 %v1012, %v1008
      %v1241 = vpack.c.bf16 %v1018, %v1014
      %v1242 = vpack.c.bf16 %v1020, %v1016
      %v1243 = vpack.c.bf16 %v1026, %v1022
      %v1244 = vpack.c.bf16 %v1028, %v1024
      %v1245 = vpack.c.bf16 %v1034, %v1030
      %v1246 = vpack.c.bf16 %v1036, %v1032
      %v1247 = vpack.c.bf16 %v1042, %v1038
      %v1248 = vpack.c.bf16 %v1044, %v1040
      %v1249 = vpack.c.bf16 %v1050, %v1046
      %v1250 = vpack.c.bf16 %v1052, %v1048
      %v1251 = vpack.c.bf16 %v1058, %v1054
      %v1252 = vpack.c.bf16 %v1060, %v1056
      %v1253 = vpack.c.bf16 %v1066, %v1062
      %v1254 = vpack.c.bf16 %v1068, %v1064
      %v1255 = vpack.c.bf16 %v1074, %v1070
      %v1256 = vpack.c.bf16 %v1076, %v1072
      %v1257 = vpack.c.bf16 %v1082, %v1078
      %v1258 = vpack.c.bf16 %v1084, %v1080
      %v1259 = vpack.c.bf16 %v1090, %v1086
      %v1260 = vpack.c.bf16 %v1092, %v1088
      %v1261 = vpack.c.bf16 %v1098, %v1094
      %v1262 = vpack.c.bf16 %v1100, %v1096
      %v1263 = vpack.c.bf16 %v1106, %v1102
      %v1264 = vpack.c.bf16 %v1108, %v1104
      %v1273 = vunpack.c.l.b16 %v424
      %v1274 = vunpack.c.h.b16 %v424
      %v1275 = vunpack.c.l.b16 %v425
      %v1276 = vunpack.c.h.b16 %v425
      %v1277 = vunpack.c.l.b16 %v426
      %v1278 = vunpack.c.h.b16 %v426
      %v1279 = vunpack.c.l.b16 %v427
      %v1280 = vunpack.c.h.b16 %v427
      %v1281 = vunpack.c.l.b16 %v428
      %v1282 = vunpack.c.h.b16 %v428
      %v1283 = vunpack.c.l.b16 %v429
      %v1284 = vunpack.c.h.b16 %v429
      %v1285 = vunpack.c.l.b16 %v430
      %v1286 = vunpack.c.h.b16 %v430
      %v1287 = vunpack.c.l.b16 %v431
      %v1288 = vunpack.c.h.b16 %v431
      %v1289 = vpack.c.b16 %v1275, %v1273
      %v1290 = vpack.c.b16 %v1276, %v1274
      %v1291 = vpack.c.b16 %v1279, %v1277
      %v1292 = vpack.c.b16 %v1280, %v1278
      %v1293 = vpack.c.b16 %v1283, %v1281
      %v1294 = vpack.c.b16 %v1284, %v1282
      %v1295 = vpack.c.b16 %v1287, %v1285
      %v1296 = vpack.c.b16 %v1288, %v1286
      %1305 = vmatpush.bf16.msra.mxu0 %v1247
      %1306 = vmatpush.bf16.msra.mxu0 %v1245
      %1307 = vmatpush.bf16.msra.mxu0 %v1243
      %1308 = vmatpush.bf16.msra.mxu0 %v1241
      %1309 = vmatpush.bf16.msra.mxu0 %v1239
      %1310 = vmatpush.bf16.msra.mxu0 %v1237
      %1311 = vmatpush.bf16.msra.mxu0 %v1235
      %1312 = vmatpush.bf16.msra.mxu0 %v1233
      %1313 = vmatmul.bf16.gmra.mxu0 %v1289
      %v1314 = vpop.f32.mrf.mxu0
      %v1315 = vadd.f32 0.0, %v1314
      %v1316 = vpop.f32.mrf.mxu0
      %v1317 = vadd.f32 0.0, %v1316
      %1318 = vmatmul.bf16.gmra.mxu0 %v1291
      %v1319 = vpop.f32.mrf.mxu0
      %v1320 = vadd.f32 0.0, %v1319
      %v1321 = vpop.f32.mrf.mxu0
      %v1322 = vadd.f32 0.0, %v1321
      %1323 = vmatmul.bf16.gmra.mxu0 %v1293
      %v1324 = vpop.f32.mrf.mxu0
      %v1325 = vadd.f32 0.0, %v1324
      %v1326 = vpop.f32.mrf.mxu0
      %v1327 = vadd.f32 0.0, %v1326
      %1328 = vmatmul.bf16.gmra.mxu0 %v1295
      %v1329 = vpop.f32.mrf.mxu0
      %v1330 = vadd.f32 0.0, %v1329
      %v1331 = vpop.f32.mrf.mxu0
      %v1332 = vadd.f32 0.0, %v1331
      %1333 = vdwg.mxu0
      %1334 = vmatpush.bf16.msra.mxu0 %v1263
      %1335 = vmatpush.bf16.msra.mxu0 %v1261
      %1336 = vmatpush.bf16.msra.mxu0 %v1259
      %1337 = vmatpush.bf16.msra.mxu0 %v1257
      %1338 = vmatpush.bf16.msra.mxu0 %v1255
      %1339 = vmatpush.bf16.msra.mxu0 %v1253
      %1340 = vmatpush.bf16.msra.mxu0 %v1251
      %1341 = vmatpush.bf16.msra.mxu0 %v1249
      %1342 = vmatmul.bf16.gmra.mxu0 %v1290
      %v1343 = vpop.f32.mrf.mxu0
      %v1344 = vadd.f32 %v1315, %v1343
      %v1345 = vpop.f32.mrf.mxu0
      %v1346 = vadd.f32 %v1317, %v1345
      %1347 = vmatmul.bf16.gmra.mxu0 %v1292
      %v1348 = vpop.f32.mrf.mxu0
      %v1349 = vadd.f32 %v1320, %v1348
      %v1350 = vpop.f32.mrf.mxu0
      %v1351 = vadd.f32 %v1322, %v1350
      %1352 = vmatmul.bf16.gmra.mxu0 %v1294
      %v1353 = vpop.f32.mrf.mxu0
      %v1354 = vadd.f32 %v1325, %v1353
      %v1355 = vpop.f32.mrf.mxu0
      %v1356 = vadd.f32 %v1327, %v1355
      %1357 = vmatmul.bf16.gmra.mxu0 %v1296
      %v1358 = vpop.f32.mrf.mxu0
      %v1359 = vadd.f32 %v1330, %v1358
      %v1360 = vpop.f32.mrf.mxu0
      %v1361 = vadd.f32 %v1332, %v1360
      %1362 = vdwg.mxu0
      %1363 = vmatpush.bf16.msra.mxu0 %v1248
      %1364 = vmatpush.bf16.msra.mxu0 %v1246
      %1365 = vmatpush.bf16.msra.mxu0 %v1244
      %1366 = vmatpush.bf16.msra.mxu0 %v1242
      %1367 = vmatpush.bf16.msra.mxu0 %v1240
      %1368 = vmatpush.bf16.msra.mxu0 %v1238
      %1369 = vmatpush.bf16.msra.mxu0 %v1236
      %1370 = vmatpush.bf16.msra.mxu0 %v1234
      %1371 = vmatmul.bf16.gmra.mxu0 %v1289
      %v1372 = vpop.f32.mrf.mxu0
      %v1373 = vadd.f32 0.0, %v1372
      %v1374 = vpop.f32.mrf.mxu0
      %v1375 = vadd.f32 0.0, %v1374
      %1376 = vmatmul.bf16.gmra.mxu0 %v1291
      %v1377 = vpop.f32.mrf.mxu0
      %v1378 = vadd.f32 0.0, %v1377
      %v1379 = vpop.f32.mrf.mxu0
      %v1380 = vadd.f32 0.0, %v1379
      %1381 = vmatmul.bf16.gmra.mxu0 %v1293
      %v1382 = vpop.f32.mrf.mxu0
      %v1383 = vadd.f32 0.0, %v1382
      %v1384 = vpop.f32.mrf.mxu0
      %v1385 = vadd.f32 0.0, %v1384
      %1386 = vmatmul.bf16.gmra.mxu0 %v1295
      %v1387 = vpop.f32.mrf.mxu0
      %v1388 = vadd.f32 0.0, %v1387
      %v1389 = vpop.f32.mrf.mxu0
      %v1390 = vadd.f32 0.0, %v1389
      %1391 = vdwg.mxu0
      %1392 = vmatpush.bf16.msra.mxu0 %v1264
      %1393 = vmatpush.bf16.msra.mxu0 %v1262
      %1394 = vmatpush.bf16.msra.mxu0 %v1260
      %1395 = vmatpush.bf16.msra.mxu0 %v1258
      %1396 = vmatpush.bf16.msra.mxu0 %v1256
      %1397 = vmatpush.bf16.msra.mxu0 %v1254
      %1398 = vmatpush.bf16.msra.mxu0 %v1252
      %1399 = vmatpush.bf16.msra.mxu0 %v1250
      %1400 = vmatmul.bf16.gmra.mxu0 %v1290
      %v1401 = vpop.f32.mrf.mxu0
      %v1402 = vadd.f32 %v1373, %v1401
      %v1403 = vpop.f32.mrf.mxu0
      %v1404 = vadd.f32 %v1375, %v1403
      %1405 = vmatmul.bf16.gmra.mxu0 %v1292
      %v1406 = vpop.f32.mrf.mxu0
      %v1407 = vadd.f32 %v1378, %v1406
      %v1408 = vpop.f32.mrf.mxu0
      %v1409 = vadd.f32 %v1380, %v1408
      %1410 = vmatmul.bf16.gmra.mxu0 %v1294
      %v1411 = vpop.f32.mrf.mxu0
      %v1412 = vadd.f32 %v1383, %v1411
      %v1413 = vpop.f32.mrf.mxu0
      %v1414 = vadd.f32 %v1385, %v1413
      %1415 = vmatmul.bf16.gmra.mxu0 %v1296
      %v1416 = vpop.f32.mrf.mxu0
      %v1417 = vadd.f32 %v1388, %v1416
      %v1418 = vpop.f32.mrf.mxu0
      %v1419 = vadd.f32 %v1390, %v1418
      %1420 = vdwg.mxu0
      %v1421 = vadd.f32 %v1217, %v1344
      %v1422 = vadd.f32 %v1218, %v1402
      %v1423 = vadd.f32 %v1219, %v1346
      %v1424 = vadd.f32 %v1220, %v1404
      %v1425 = vadd.f32 %v1221, %v1349
      %v1426 = vadd.f32 %v1222, %v1407
      %v1427 = vadd.f32 %v1223, %v1351
      %v1428 = vadd.f32 %v1224, %v1409
      %v1429 = vadd.f32 %v1225, %v1354
      %v1430 = vadd.f32 %v1226, %v1412
      %v1431 = vadd.f32 %v1227, %v1356
      %v1432 = vadd.f32 %v1228, %v1414
      %v1433 = vadd.f32 %v1229, %v1359
      %v1434 = vadd.f32 %v1230, %v1417
      %v1435 = vadd.f32 %v1231, %v1361
      %v1436 = vadd.f32 %v1232, %v1419
      %1437 = vst [vmem:[#allocation4] sm:$0xff] %v1421
      %1438 = vst [vmem:[#allocation4 + $0x8] sm:$0xff] %v1422
      %1439 = vst [vmem:[#allocation4 + $0x10] sm:$0xff] %v1423
      %1440 = vst [vmem:[#allocation4 + $0x18] sm:$0xff] %v1424
      %1441 = vst [vmem:[#allocation4 + $0x20] sm:$0xff] %v1425
      %1442 = vst [vmem:[#allocation4 + $0x28] sm:$0xff] %v1426
      %1443 = vst [vmem:[#allocation4 + $0x30] sm:$0xff] %v1427
      %1444 = vst [vmem:[#allocation4 + $0x38] sm:$0xff] %v1428
      %1445 = vst [vmem:[#allocation4 + $0x40] sm:$0xff] %v1429
      %1446 = vst [vmem:[#allocation4 + $0x48] sm:$0xff] %v1430
      %1447 = vst [vmem:[#allocation4 + $0x50] sm:$0xff] %v1431
      %1448 = vst [vmem:[#allocation4 + $0x58] sm:$0xff] %v1432
      %1449 = vst [vmem:[#allocation4 + $0x60] sm:$0xff] %v1433
      %1450 = vst [vmem:[#allocation4 + $0x68] sm:$0xff] %v1434
      %1451 = vst [vmem:[#allocation4 + $0x70] sm:$0xff] %v1435
      %1452 = vst [vmem:[#allocation4 + $0x78] sm:$0xff] %v1436
      %1453 = vst.msk [vmem:[#allocation2] sm:$0x3] %vm1194, %v908
      // Predicated region
      $region49: #{vae_attention_block.5} parent=43 // pred_check
        %p1454 = pneg %p375
      $region50: #{vae_attention_block.5} parent=43 // pred_check_branch
        %1456 = sbr.rel (%p1454) target = $region52
      $region51: #{vae_attention_block.5} parent=43 // pred_region
        %v1457 = vld [vmem:[#allocation3] sm:$0x3]
        %v1458 = vrcp.pop %v1457
        %v1459 = vld [vmem:[#allocation4] sm:$0xff]
        %v1460 = vld [vmem:[#allocation4 + $0x8] sm:$0xff]
        %v1461 = vld [vmem:[#allocation4 + $0x10] sm:$0xff]
        %v1462 = vld [vmem:[#allocation4 + $0x18] sm:$0xff]
        %v1463 = vld [vmem:[#allocation4 + $0x20] sm:$0xff]
        %v1464 = vld [vmem:[#allocation4 + $0x28] sm:$0xff]
        %v1465 = vld [vmem:[#allocation4 + $0x30] sm:$0xff]
        %v1466 = vld [vmem:[#allocation4 + $0x38] sm:$0xff]
        %v1467 = vld [vmem:[#allocation4 + $0x40] sm:$0xff]
        %v1468 = vld [vmem:[#allocation4 + $0x48] sm:$0xff]
        %v1469 = vld [vmem:[#allocation4 + $0x50] sm:$0xff]
        %v1470 = vld [vmem:[#allocation4 + $0x58] sm:$0xff]
        %v1471 = vld [vmem:[#allocation4 + $0x60] sm:$0xff]
        %v1472 = vld [vmem:[#allocation4 + $0x68] sm:$0xff]
        %v1473 = vld [vmem:[#allocation4 + $0x70] sm:$0xff]
        %v1474 = vld [vmem:[#allocation4 + $0x78] sm:$0xff]
        %v1476 = vperm.slane %v1458, 0
        %v1477 = vperm.slane %v1458, 1
        %v1480 = vmul.f32 %v1459, %v1476
        %v1481 = vmul.f32 %v1460, %v1477
        %v1482 = vmul.f32 %v1461, %v1476
        %v1483 = vmul.f32 %v1462, %v1477
        %v1484 = vmul.f32 %v1463, %v1476
        %v1485 = vmul.f32 %v1464, %v1477
        %v1486 = vmul.f32 %v1465, %v1476
        %v1487 = vmul.f32 %v1466, %v1477
        %v1488 = vmul.f32 %v1467, %v1476
        %v1489 = vmul.f32 %v1468, %v1477
        %v1490 = vmul.f32 %v1469, %v1476
        %v1491 = vmul.f32 %v1470, %v1477
        %v1492 = vmul.f32 %v1471, %v1476
        %v1493 = vmul.f32 %v1472, %v1477
        %v1494 = vmul.f32 %v1473, %v1476
        %v1495 = vmul.f32 %v1474, %v1477
        %v1496 = vpack.c.bf16 %v1482, %v1480
        %v1497 = vpack.c.bf16 %v1483, %v1481
        %v1498 = vpack.c.bf16 %v1486, %v1484
        %v1499 = vpack.c.bf16 %v1487, %v1485
        %v1500 = vpack.c.bf16 %v1490, %v1488
        %v1501 = vpack.c.bf16 %v1491, %v1489
        %v1502 = vpack.c.bf16 %v1494, %v1492
        %v1503 = vpack.c.bf16 %v1495, %v1493
        %v1504 = vld [vmem:[%s4] sm:$0xf]
        %v1505 = vld [vmem:[%s4 + $0x4] sm:$0xf]
        %v1506 = vld [vmem:[%s4 + $0x8] sm:$0xf]
        %v1507 = vld [vmem:[%s4 + $0xc] sm:$0xf]
        %v1508 = vld [vmem:[%s4 + $0x10] sm:$0xf]
        %v1509 = vld [vmem:[%s4 + $0x14] sm:$0xf]
        %v1510 = vld [vmem:[%s4 + $0x18] sm:$0xf]
        %v1511 = vld [vmem:[%s4 + $0x1c] sm:$0xf]
        %v1512 = vld [vmem:[%s5] sm:$0xff]
        %v1513 = vld [vmem:[%s5 + $0x8] sm:$0xff]
        %v1514 = vld [vmem:[%s5 + $0x10] sm:$0xff]
        %v1515 = vld [vmem:[%s5 + $0x18] sm:$0xff]
        %v1516 = vld [vmem:[%s5 + $0x20] sm:$0xff]
        %v1517 = vld [vmem:[%s5 + $0x28] sm:$0xff]
        %v1518 = vld [vmem:[%s5 + $0x30] sm:$0xff]
        %v1519 = vld [vmem:[%s5 + $0x38] sm:$0xff]
        %1521 = vset.pattern.permute.xlu0 0
        %1522 = vperm.xlu0 %1521, %v1512
        %v1523 = vpop.permute.xlu0 %1522
        %1526 = vset.pattern.permute.xlu0 0
        %1527 = vperm.xlu0 %1526, %v1513
        %v1528 = vpop.permute.xlu0 %1527
        %1531 = vset.pattern.permute.xlu0 0
        %1532 = vperm.xlu0 %1531, %v1514
        %v1533 = vpop.permute.xlu0 %1532
        %1536 = vset.pattern.permute.xlu0 0
        %1537 = vperm.xlu0 %1536, %v1515
        %v1538 = vpop.permute.xlu0 %1537
        %1541 = vset.pattern.permute.xlu0 0
        %1542 = vperm.xlu0 %1541, %v1516
        %v1543 = vpop.permute.xlu0 %1542
        %1546 = vset.pattern.permute.xlu0 0
        %1547 = vperm.xlu0 %1546, %v1517
        %v1548 = vpop.permute.xlu0 %1547
        %1551 = vset.pattern.permute.xlu0 0
        %1552 = vperm.xlu0 %1551, %v1518
        %v1553 = vpop.permute.xlu0 %1552
        %1556 = vset.pattern.permute.xlu0 0
        %1557 = vperm.xlu0 %1556, %v1519
        %v1558 = vpop.permute.xlu0 %1557
        %v1568 = vunpack.c.l.b16 %v1504
        %v1569 = vunpack.c.l.b16 %v1505
        %v1570 = vunpack.c.l.b16 %v1506
        %v1571 = vunpack.c.l.b16 %v1507
        %v1572 = vunpack.c.l.b16 %v1508
        %v1573 = vunpack.c.l.b16 %v1509
        %v1574 = vunpack.c.l.b16 %v1510
        %v1575 = vunpack.c.l.b16 %v1511
        %v1576 = vpack.c.b16 %v1569, %v1568
        %v1577 = vpack.c.b16 %v1571, %v1570
        %v1578 = vpack.c.b16 %v1573, %v1572
        %v1579 = vpack.c.b16 %v1575, %v1574
        %v1581 = vsel %vm536, %v1576, 0
        %v1584 = vsel %vm536, %v1577, 0
        %v1587 = vsel %vm536, %v1578, 0
        %v1590 = vsel %vm536, %v1579, 0
        %1592 = vmatpush.bf16.msra.mxu0 0
        %1593 = vmatpush.bf16.msra.mxu0 0
        %1594 = vmatpush.bf16.msra.mxu0 0
        %1595 = vmatpush.bf16.msra.mxu0 0
        %1596 = vmatpush.bf16.msra.mxu0 %v1502
        %1597 = vmatpush.bf16.msra.mxu0 %v1500
        %1598 = vmatpush.bf16.msra.mxu0 %v1498
        %1599 = vmatpush.bf16.msra.mxu0 %v1496
        %1600 = vmatmul.bf16.gmra.mxu0 %v1581
        %v1601 = vpop.f32.mrf.mxu0
        %v1602 = vadd.f32 %v1523, %v1601
        %v1603 = vpop.f32.mrf.mxu0
        %v1604 = vadd.f32 %v1528, %v1603
        %1605 = vmatmul.bf16.gmra.mxu0 %v1584
        %v1606 = vpop.f32.mrf.mxu0
        %v1607 = vadd.f32 %v1533, %v1606
        %v1608 = vpop.f32.mrf.mxu0
        %v1609 = vadd.f32 %v1538, %v1608
        %1610 = vmatmul.bf16.gmra.mxu0 %v1587
        %v1611 = vpop.f32.mrf.mxu0
        %v1612 = vadd.f32 %v1543, %v1611
        %v1613 = vpop.f32.mrf.mxu0
        %v1614 = vadd.f32 %v1548, %v1613
        %1615 = vmatmul.bf16.gmra.mxu0 %v1590
        %v1616 = vpop.f32.mrf.mxu0
        %v1617 = vadd.f32 %v1553, %v1616
        %v1618 = vpop.f32.mrf.mxu0
        %v1619 = vadd.f32 %v1558, %v1618
        %1620 = vdwg.mxu0
        %1621 = vmatpush.bf16.msra.mxu0 0
        %1622 = vmatpush.bf16.msra.mxu0 0
        %1623 = vmatpush.bf16.msra.mxu0 0
        %1624 = vmatpush.bf16.msra.mxu0 0
        %1625 = vmatpush.bf16.msra.mxu0 %v1503
        %1626 = vmatpush.bf16.msra.mxu0 %v1501
        %1627 = vmatpush.bf16.msra.mxu0 %v1499
        %1628 = vmatpush.bf16.msra.mxu0 %v1497
        %1629 = vmatmul.bf16.gmra.mxu0 %v1581
        %v1630 = vpop.f32.mrf.mxu0
        %v1631 = vadd.f32 %v1523, %v1630
        %v1632 = vpop.f32.mrf.mxu0
        %v1633 = vadd.f32 %v1528, %v1632
        %1634 = vmatmul.bf16.gmra.mxu0 %v1584
        %v1635 = vpop.f32.mrf.mxu0
        %v1636 = vadd.f32 %v1533, %v1635
        %v1637 = vpop.f32.mrf.mxu0
        %v1638 = vadd.f32 %v1538, %v1637
        %1639 = vmatmul.bf16.gmra.mxu0 %v1587
        %v1640 = vpop.f32.mrf.mxu0
        %v1641 = vadd.f32 %v1543, %v1640
        %v1642 = vpop.f32.mrf.mxu0
        %v1643 = vadd.f32 %v1548, %v1642
        %1644 = vmatmul.bf16.gmra.mxu0 %v1590
        %v1645 = vpop.f32.mrf.mxu0
        %v1646 = vadd.f32 %v1553, %v1645
        %v1647 = vpop.f32.mrf.mxu0
        %v1648 = vadd.f32 %v1558, %v1647
        %1649 = vdwg.mxu0
        %v1650 = vld [vmem:[%s362] sm:$0xff]
        %v1651 = vld [vmem:[%s362 + $0x8] sm:$0xff]
        %v1652 = vld [vmem:[%s362 + $0x10] sm:$0xff]
        %v1653 = vld [vmem:[%s362 + $0x18] sm:$0xff]
        %v1654 = vld [vmem:[%s362 + $0x20] sm:$0xff]
        %v1655 = vld [vmem:[%s362 + $0x28] sm:$0xff]
        %v1656 = vld [vmem:[%s362 + $0x30] sm:$0xff]
        %v1657 = vld [vmem:[%s362 + $0x38] sm:$0xff]
        %v1658 = vld [vmem:[%s362 + $0x40] sm:$0xff]
        %v1659 = vld [vmem:[%s362 + $0x48] sm:$0xff]
        %v1660 = vld [vmem:[%s362 + $0x50] sm:$0xff]
        %v1661 = vld [vmem:[%s362 + $0x58] sm:$0xff]
        %v1662 = vld [vmem:[%s362 + $0x60] sm:$0xff]
        %v1663 = vld [vmem:[%s362 + $0x68] sm:$0xff]
        %v1664 = vld [vmem:[%s362 + $0x70] sm:$0xff]
        %v1665 = vld [vmem:[%s362 + $0x78] sm:$0xff]
        %v1666 = vadd.f32 %v1602, %v1650
        %v1667 = vadd.f32 %v1631, %v1651
        %v1668 = vadd.f32 %v1604, %v1652
        %v1669 = vadd.f32 %v1633, %v1653
        %v1670 = vadd.f32 %v1607, %v1654
        %v1671 = vadd.f32 %v1636, %v1655
        %v1672 = vadd.f32 %v1609, %v1656
        %v1673 = vadd.f32 %v1638, %v1657
        %v1674 = vadd.f32 %v1612, %v1658
        %v1675 = vadd.f32 %v1641, %v1659
        %v1676 = vadd.f32 %v1614, %v1660
        %v1677 = vadd.f32 %v1643, %v1661
        %v1678 = vadd.f32 %v1617, %v1662
        %v1679 = vadd.f32 %v1646, %v1663
        %v1680 = vadd.f32 %v1619, %v1664
        %v1681 = vadd.f32 %v1648, %v1665
        %1682 = vst [vmem:[%s372] sm:$0xff] %v1666
        %1683 = vst [vmem:[%s372 + $0x8] sm:$0xff] %v1667
        %1684 = vst [vmem:[%s372 + $0x10] sm:$0xff] %v1668
        %1685 = vst [vmem:[%s372 + $0x18] sm:$0xff] %v1669
        %1686 = vst [vmem:[%s372 + $0x20] sm:$0xff] %v1670
        %1687 = vst [vmem:[%s372 + $0x28] sm:$0xff] %v1671
        %1688 = vst [vmem:[%s372 + $0x30] sm:$0xff] %v1672
        %1689 = vst [vmem:[%s372 + $0x38] sm:$0xff] %v1673
        %1690 = vst [vmem:[%s372 + $0x40] sm:$0xff] %v1674
        %1691 = vst [vmem:[%s372 + $0x48] sm:$0xff] %v1675
        %1692 = vst [vmem:[%s372 + $0x50] sm:$0xff] %v1676
        %1693 = vst [vmem:[%s372 + $0x58] sm:$0xff] %v1677
        %1694 = vst [vmem:[%s372 + $0x60] sm:$0xff] %v1678
        %1695 = vst [vmem:[%s372 + $0x68] sm:$0xff] %v1679
        %1696 = vst [vmem:[%s372 + $0x70] sm:$0xff] %v1680
        %1697 = vst [vmem:[%s372 + $0x78] sm:$0xff] %v1681
      $region52: #{vae_attention_block.5} parent=43 // pred_fallthru
        _
      %s1698 = smul.u32 2, %s23
      %p1699 = scmp.lt.s32.totalorder %s22, 1
      %s1700 = scalar_select %p1699, %s22, 1
      %p1701 = scmp.lt.s32.totalorder %s1698, 1
      %s1702 = scalar_select %p1701, %s1698, 1
      %s1703 = smul.addr %s1700, 16
      %s1704 = sadd.s32 %s1702, %s1703
      %s1705 = smul.addr %s1704, 8
      %s1706 = scalar_lea.vmem %s6, %s1705
      // Predicated region
      $region53: #{vae_attention_block.5} parent=43 // pred_check
        %p1707 = pneg %p206
      $region54: #{vae_attention_block.5} parent=43 // pred_check_branch
        %1709 = sbr.rel (%p1707) target = $region56
      $region55: #{vae_attention_block.5} parent=43 // pred_region
        %s1710 = smul.u32 2, %s23
      $region56: #{vae_attention_block.5} parent=43 // pred_fallthru
        _
    $region44: #{vae_attention_block.5} parent=5 // pred_fallthru
      _
    %p1711 = scmp.le.s32.totalorder 2, %s12
    // Predicated region
    $region57: #{vae_attention_block.5} parent=5 // pred_check
      %p1712 = pneg %p1711
    $region58: #{vae_attention_block.5} parent=5 // pred_check_branch
      %1714 = sbr.rel (%p1712) target = $region60
    $region59: #{vae_attention_block.5} parent=5 // pred_region
      %s1715 = ssub.s32 %s12, 2
      // Predicated region
      $region61: #{vae_attention_block.5} parent=59 // pred_check
        %p1716 = pneg %p212
      $region62: #{vae_attention_block.5} parent=59 // pred_check_branch
        %1718 = sbr.rel (%p1716) target = $region64
      $region63: #{vae_attention_block.5} parent=59 // pred_region
        %s1719 = smul.u32 2, %s26
        %p1720 = scmp.lt.s32.totalorder %s25, 1
        %s1721 = scalar_select %p1720, %s25, 1
        %p1722 = scmp.lt.s32.totalorder %s1719, 1
        %s1723 = scalar_select %p1722, %s1719, 1
        %s1724 = smul.addr %s1721, 16
        %s1725 = sadd.s32 %s1723, %s1724
        %s1726 = smul.addr %s1725, 8
        %s1727 = scalar_lea.vmem %s6, %s1726
      $region64: #{vae_attention_block.5} parent=59 // pred_fallthru
        _
    $region60: #{vae_attention_block.5} parent=5 // pred_fallthru
      _
  $region6: #{vae_attention_block.5} parent=0 // loop_footer
    %s16 = sadd.s32 1, %s12
  $region7: #{vae_attention_block.5} parent=0 // loop_footer_branch
    %11 = sbr.rel target = $region3
  $region8: #{vae_attention_block.5} parent=0 // loop_exit
    _

// kernel: vae_attention_block.3
$region0: #{vae_attention_block.3}
  #allocation0 [shape = 'u32[]', space=smem, size = 0x4, offset = 0x4, fixed_abs, tag = 'smem constant byte address 0x4 - core index']
  #allocation1 [shape = 'u32[72,128]{1,0:T(1,128)}', space=vmem, size = 0x9000, scoped, tag = 'internal scratch']
  %s0 = inlined_call_operand.vmem [shape: f32[2,32,2,256], index: 0, kind: input, shape index: {}]
  %s1 = inlined_call_operand.vmem [shape: f32[32,2,1], index: 1, kind: input, shape index: {}]
  %s2 = inlined_call_operand.vmem [shape: f32[32,2,1], index: 2, kind: input, shape index: {}]
  %s3 = inlined_call_operand.vmem [shape: f32[2,32,2,1], index: 3, kind: output, shape index: {0}]
  %s4 = inlined_call_operand.vmem [shape: f32[2,32,2,1], index: 4, kind: output, shape index: {1}]
  %5 = xla_tuple %s3, %s4
  %s6 = sld [smem:[#allocation0]]
  $region53: #{vae_attention_block.3} parent=0
    _
  %s8 = ssub.s32 1, %s6
  %s9 = scalar_select 0, %s8, %s6
  loop: start=0, step=1, limit=4
  $region2: #{vae_attention_block.3} parent=0 // loop_pre_header
    _
  $region3: #{vae_attention_block.3} parent=0 // loop_header
    %s11 = sphi 0, %s15
    %p12 = scmp.ge.s32.totalorder %s11, 4
    %s18 = sphi 0, %s30
    %s19 = sphi 0, %s26
    %s20 = sphi 0, %s18
    %s21 = sphi 0, %s19
    %s22 = sphi 0, %s20
    %s23 = sphi 0, %s21
    %s35 = sphi 0, %s37
    %s38 = sphi 0, %s35
    %s39 = sphi 0, %s38
    %s55 = sphi 0, %s39
    %s61 = sphi 0, %s63
    %s64 = sphi 0, %s61
    %s65 = sphi 0, %s64
    %s81 = sphi 0, %s65
    %s87 = sphi 0, %s89
    %s90 = sphi 0, %s87
    %s91 = sphi 0, %s90
    %s107 = sphi 0, %s91
    %s115 = sphi 0, %s117
    %s118 = sphi 0, %s115
    %s119 = sphi 0, %s118
    %s135 = sphi 0, %s119
    %s143 = sphi 0, %s145
    %s146 = sphi 0, %s143
    %s147 = sphi 0, %s146
    %s163 = sphi 0, %s147
  $region4: #{vae_attention_block.3} parent=0 // loop_header_branch
    %14 = sbr.rel (%p12) target = $region8
  $region5: #{vae_attention_block.3} parent=0 // loop_body
    %s16 = ssub.s32 %s11, 1
    %s17 = ssub.s32 %s11, 2
    %s24 = sadd.s32 1, %s19
    %p25 = scmp.ge.s32.totalorder %s24, 1
    %s26 = scalar_select %p25, 0, %s24
    %s27 = sadd.s32 1, %s18
    %s28 = scalar_select %p25, %s27, %s18
    %p29 = scmp.ge.s32.totalorder %s28, 2
    %s30 = scalar_select %p29, 0, %s28
    %s31 = ssub.s32 %s18, %s30
    %s32 = ssub.s32 %s19, %s26
    %s33 = sor.u32 %s31, %s32
    %p34 = scmp.eq.s32.totalorder %s33, 0
    %s36 = sadd.s32 %s35, 1
    %s37 = scalar_select %p34, %s35, %s36
    %p40 = pneg %p34
    %p41 = scmp.eq.s32.totalorder %s11, 1
    %p42 = por %p40, %p41
    %p43 = scmp.ne.s32.totalorder %s35, %s38
    %p44 = scmp.eq.s32.totalorder %s11, 0
    %p45 = por %p43, %p44
    %p46 = scmp.ne.s32.totalorder %s35, %s38
    %p47 = scmp.eq.s32.totalorder %s16, 1
    %p48 = por %p46, %p47
    %p49 = scmp.ne.s32.totalorder %s38, %s39
    %p50 = scmp.eq.s32.totalorder %s16, 0
    %p51 = por %p49, %p50
    %p52 = scmp.ne.s32.totalorder %s38, %s39
    %p53 = scmp.eq.s32.totalorder %s17, 1
    %p54 = por %p52, %p53
    %p56 = scmp.ne.s32.totalorder %s39, %s55
    %p57 = scmp.eq.s32.totalorder %s17, 0
    %p58 = por %p56, %p57
    %s59 = ssub.s32 %s19, %s26
    %p60 = scmp.eq.s32.totalorder %s59, 0
    %s62 = sadd.s32 %s61, 1
    %s63 = scalar_select %p60, %s61, %s62
    %p66 = pneg %p60
    %p67 = scmp.eq.s32.totalorder %s11, 1
    %p68 = por %p66, %p67
    %p69 = scmp.ne.s32.totalorder %s61, %s64
    %p70 = scmp.eq.s32.totalorder %s11, 0
    %p71 = por %p69, %p70
    %p72 = scmp.ne.s32.totalorder %s61, %s64
    %p73 = scmp.eq.s32.totalorder %s16, 1
    %p74 = por %p72, %p73
    %p75 = scmp.ne.s32.totalorder %s64, %s65
    %p76 = scmp.eq.s32.totalorder %s16, 0
    %p77 = por %p75, %p76
    %p78 = scmp.ne.s32.totalorder %s64, %s65
    %p79 = scmp.eq.s32.totalorder %s17, 1
    %p80 = por %p78, %p79
    %p82 = scmp.ne.s32.totalorder %s65, %s81
    %p83 = scmp.eq.s32.totalorder %s17, 0
    %p84 = por %p82, %p83
    %s85 = ssub.s32 %s19, %s26
    %p86 = scmp.eq.s32.totalorder %s85, 0
    %s88 = sadd.s32 %s87, 1
    %s89 = scalar_select %p86, %s87, %s88
    %p92 = pneg %p86
    %p93 = scmp.eq.s32.totalorder %s11, 1
    %p94 = por %p92, %p93
    %p95 = scmp.ne.s32.totalorder %s87, %s90
    %p96 = scmp.eq.s32.totalorder %s11, 0
    %p97 = por %p95, %p96
    %p98 = scmp.ne.s32.totalorder %s87, %s90
    %p99 = scmp.eq.s32.totalorder %s16, 1
    %p100 = por %p98, %p99
    %p101 = scmp.ne.s32.totalorder %s90, %s91
    %p102 = scmp.eq.s32.totalorder %s16, 0
    %p103 = por %p101, %p102
    %p104 = scmp.ne.s32.totalorder %s90, %s91
    %p105 = scmp.eq.s32.totalorder %s17, 1
    %p106 = por %p104, %p105
    %p108 = scmp.ne.s32.totalorder %s91, %s107
    %p109 = scmp.eq.s32.totalorder %s17, 0
    %p110 = por %p108, %p109
    %s111 = ssub.s32 %s18, %s30
    %s112 = ssub.s32 %s19, %s26
    %s113 = sor.u32 %s111, %s112
    %p114 = scmp.eq.s32.totalorder %s113, 0
    %s116 = sadd.s32 %s115, 1
    %s117 = scalar_select %p114, %s115, %s116
    %p120 = pneg %p114
    %p121 = scmp.eq.s32.totalorder %s11, 1
    %p122 = por %p120, %p121
    %p123 = scmp.ne.s32.totalorder %s115, %s118
    %p124 = scmp.eq.s32.totalorder %s11, 0
    %p125 = por %p123, %p124
    %p126 = scmp.ne.s32.totalorder %s115, %s118
    %p127 = scmp.eq.s32.totalorder %s16, 1
    %p128 = por %p126, %p127
    %p129 = scmp.ne.s32.totalorder %s118, %s119
    %p130 = scmp.eq.s32.totalorder %s16, 0
    %p131 = por %p129, %p130
    %p132 = scmp.ne.s32.totalorder %s118, %s119
    %p133 = scmp.eq.s32.totalorder %s17, 1
    %p134 = por %p132, %p133
    %p136 = scmp.ne.s32.totalorder %s119, %s135
    %p137 = scmp.eq.s32.totalorder %s17, 0
    %p138 = por %p136, %p137
    %s139 = ssub.s32 %s18, %s30
    %s140 = ssub.s32 %s19, %s26
    %s141 = sor.u32 %s139, %s140
    %p142 = scmp.eq.s32.totalorder %s141, 0
    %s144 = sadd.s32 %s143, 1
    %s145 = scalar_select %p142, %s143, %s144
    %p148 = pneg %p142
    %p149 = scmp.eq.s32.totalorder %s11, 1
    %p150 = por %p148, %p149
    %p151 = scmp.ne.s32.totalorder %s143, %s146
    %p152 = scmp.eq.s32.totalorder %s11, 0
    %p153 = por %p151, %p152
    %p154 = scmp.ne.s32.totalorder %s143, %s146
    %p155 = scmp.eq.s32.totalorder %s16, 1
    %p156 = por %p154, %p155
    %p157 = scmp.ne.s32.totalorder %s146, %s147
    %p158 = scmp.eq.s32.totalorder %s16, 0
    %p159 = por %p157, %p158
    %p160 = scmp.ne.s32.totalorder %s146, %s147
    %p161 = scmp.eq.s32.totalorder %s17, 1
    %p162 = por %p160, %p161
    %p164 = scmp.ne.s32.totalorder %s147, %s163
    %p165 = scmp.eq.s32.totalorder %s17, 0
    %p166 = por %p164, %p165
    %p167 = scmp.le.s32.totalorder 1, %s11
    %p168 = scmp.lt.s32.totalorder %s11, 3
    %p169 = pnand %p167, %p168
    %p170 = pneg %p169
    // Predicated region
    $region9: #{vae_attention_block.3} parent=5 // pred_check
      _
    $region10: #{vae_attention_block.3} parent=5 // pred_check_branch
      %172 = sbr.rel (%p169) target = $region12
    $region11: #{vae_attention_block.3} parent=5 // pred_region
      %s173 = ssub.s32 %s11, 1
      // Predicated region
      $region13: #{vae_attention_block.3} parent=11 // pred_check
        %p174 = pneg %p77
      $region14: #{vae_attention_block.3} parent=11 // pred_check_branch
        %176 = sbr.rel (%p174) target = $region16
      $region15: #{vae_attention_block.3} parent=11 // pred_region
        %s177 = smul.u32 32, %s21
        %p178 = scmp.lt.s32.totalorder %s177, 31
        %s179 = scalar_select %p178, %s177, 31
        %s180 = smul.addr %s179, 2
        %s181 = scalar_lea.vmem %s1, %s180
        %s182 = smul.u32 32, %s21
      $region16: #{vae_attention_block.3} parent=11 // pred_fallthru
        _
      // Predicated region
      $region17: #{vae_attention_block.3} parent=11 // pred_check
        %p183 = pneg %p103
      $region18: #{vae_attention_block.3} parent=11 // pred_check_branch
        %185 = sbr.rel (%p183) target = $region20
      $region19: #{vae_attention_block.3} parent=11 // pred_region
        %s186 = smul.u32 32, %s21
        %p187 = scmp.lt.s32.totalorder %s186, 31
        %s188 = scalar_select %p187, %s186, 31
        %s189 = smul.addr %s188, 2
        %s190 = scalar_lea.vmem %s2, %s189
        %s191 = smul.u32 32, %s21
      $region20: #{vae_attention_block.3} parent=11 // pred_fallthru
        _
    $region12: #{vae_attention_block.3} parent=5 // pred_fallthru
      _
    %p192 = scmp.lt.s32.totalorder %s11, 2
    // Predicated region
    $region21: #{vae_attention_block.3} parent=5 // pred_check
      %p193 = pneg %p192
    $region22: #{vae_attention_block.3} parent=5 // pred_check_branch
      %195 = sbr.rel (%p193) target = $region24
    $region23: #{vae_attention_block.3} parent=5 // pred_region
      // Predicated region
      $region25: #{vae_attention_block.3} parent=23 // pred_check
        %p196 = pneg %p45
      $region26: #{vae_attention_block.3} parent=23 // pred_check_branch
        %198 = sbr.rel (%p196) target = $region28
      $region27: #{vae_attention_block.3} parent=23 // pred_region
        %s199 = smul.u32 32, %s19
        %p200 = scmp.lt.s32.totalorder %s18, 1
        %s201 = scalar_select %p200, %s18, 1
        %p202 = scmp.lt.s32.totalorder %s199, 31
        %s203 = scalar_select %p202, %s199, 31
        %s204 = smul.addr %s203, 2
        %s205 = smul.addr %s201, 64
        %s206 = sadd.s32 %s204, %s205
        %s207 = smul.addr %s206, 2
        %s208 = scalar_lea.vmem %s0, %s207
        %s209 = smul.u32 32, %s19
      $region28: #{vae_attention_block.3} parent=23 // pred_fallthru
        _
    $region24: #{vae_attention_block.3} parent=5 // pred_fallthru
      _
    %p210 = scmp.le.s32.totalorder 1, %s11
    %p211 = scmp.lt.s32.totalorder %s11, 3
    %p212 = pnand %p210, %p211
    %p213 = pneg %p212
    // Predicated region
    $region29: #{vae_attention_block.3} parent=5 // pred_check
      _
    $region30: #{vae_attention_block.3} parent=5 // pred_check_branch
      %215 = sbr.rel (%p212) target = $region32
    $region31: #{vae_attention_block.3} parent=5 // pred_region
      %s216 = ssub.s32 %s11, 1
      %s217 = smul.u32 32, %s21
      %p218 = scmp.lt.s32.totalorder %s20, 1
      %s219 = scalar_select %p218, %s20, 1
      %p220 = scmp.lt.s32.totalorder %s217, 31
      %s221 = scalar_select %p220, %s217, 31
      %s222 = smul.addr %s221, 2
      %s223 = smul.addr %s219, 64
      %s224 = sadd.s32 %s222, %s223
      %s225 = smul.addr %s224, 2
      %s226 = scalar_lea.vmem %s0, %s225
      %p227 = pneg %p51
      %p228 = pneg %p48
      %s229 = smul.u32 32, %s21
      %p230 = scmp.lt.s32.totalorder %s229, 31
      %s231 = scalar_select %p230, %s229, 31
      %s232 = smul.addr %s231, 2
      %s233 = scalar_lea.vmem %s1, %s232
      %p234 = pneg %p77
      %p235 = pneg %p74
      %s236 = smul.u32 32, %s21
      %p237 = scmp.lt.s32.totalorder %s236, 31
      %s238 = scalar_select %p237, %s236, 31
      %s239 = smul.addr %s238, 2
      %s240 = scalar_lea.vmem %s2, %s239
      %p241 = pneg %p103
      %p242 = pneg %p100
      %p243 = pneg %p131
      %p244 = pneg %p128
      %s245 = smul.u32 32, %s21
      %p246 = scmp.lt.s32.totalorder %s20, 1
      %s247 = scalar_select %p246, %s20, 1
      %p248 = scmp.lt.s32.totalorder %s245, 31
      %s249 = scalar_select %p248, %s245, 31
      %s250 = smul.addr %s247, 32
      %s251 = sadd.s32 %s249, %s250
      %s252 = smul.addr %s251, 2
      %s253 = scalar_lea.vmem %s3, %s252
      %p254 = pneg %p159
      %p255 = pneg %p156
      %s256 = smul.u32 32, %s21
      %p257 = scmp.lt.s32.totalorder %s20, 1
      %s258 = scalar_select %p257, %s20, 1
      %p259 = scmp.lt.s32.totalorder %s256, 31
      %s260 = scalar_select %p259, %s256, 31
      %s261 = smul.addr %s258, 32
      %s262 = sadd.s32 %s260, %s261
      %s263 = smul.addr %s262, 2
      %s264 = scalar_lea.vmem %s4, %s263
      %s265 = smul.u32 32, %s21
      %p266 = scmp.lt.s32.totalorder %s20, 1
      %s267 = scalar_select %p266, %s20, 1
      %p268 = scmp.lt.s32.totalorder %s265, 31
      %s269 = scalar_select %p268, %s265, 31
      %s270 = smul.addr %s269, 2
      %s271 = smul.addr %s267, 64
      %s272 = sadd.s32 %s270, %s271
      %s273 = smul.addr %s272, 2
      %s274 = scalar_lea.vmem %s0, %s273
      %s275 = smul.u32 32, %s21
      %s276 = smul.u32 32, %s21
      %p277 = scmp.lt.s32.totalorder %s276, 31
      %s278 = scalar_select %p277, %s276, 31
      %s279 = smul.addr %s278, 2
      %s280 = scalar_lea.vmem %s1, %s279
      %s281 = smul.u32 32, %s21
      %s282 = smul.u32 32, %s21
      %p283 = scmp.lt.s32.totalorder %s282, 31
      %s284 = scalar_select %p283, %s282, 31
      %s285 = smul.addr %s284, 2
      %s286 = scalar_lea.vmem %s2, %s285
      %s287 = smul.u32 32, %s21
      %s288 = smul.u32 32, %s21
      %p289 = scmp.lt.s32.totalorder %s20, 1
      %s290 = scalar_select %p289, %s20, 1
      %p291 = scmp.lt.s32.totalorder %s288, 31
      %s292 = scalar_select %p291, %s288, 31
      %s293 = smul.addr %s290, 32
      %s294 = sadd.s32 %s292, %s293
      %s295 = smul.addr %s294, 2
      %s296 = scalar_lea.vmem %s3, %s295
      %s297 = smul.u32 32, %s21
      %s298 = smul.u32 32, %s21
      %p299 = scmp.lt.s32.totalorder %s20, 1
      %s300 = scalar_select %p299, %s20, 1
      %p301 = scmp.lt.s32.totalorder %s298, 31
      %s302 = scalar_select %p301, %s298, 31
      %s303 = smul.addr %s300, 32
      %s304 = sadd.s32 %s302, %s303
      %s305 = smul.addr %s304, 2
      %s306 = scalar_lea.vmem %s4, %s305
      %s307 = smul.u32 32, %s21
      %v308 = vld [vmem:[%s274] sm:$0xf]
      %310 = vst [vmem:[#allocation1] ss:$4 sm:$0xff] %v308
      %v311 = vld.sshfl [vmem:[#allocation1] sm:$0xff pattern:$0x73625140]
      %v312 = vld.sshfl [vmem:[#allocation1 + $0x8] sm:$0xff pattern:$0x73625140]
      %vm315 = vcmask 1041408
      %v316 = vsel %vm315, %v311, 0.0
      %v317 = vsel %vm315, %v312, 0.0
      %v318 = vadd.f32 %v316, %v317
      %319 = vadd.xlane.f32.xlu0 %v318
      %v320 = vpop.xlane.xlu0 %319
      %v321 = vrot.slane %v320, 4
      %v322 = vadd.f32 %v320, %v321
      %v323 = vrot.slane %v322, 2
      %v324 = vadd.f32 %v322, %v323
      %v325 = vrot.slane %v324, 1
      %v326 = vadd.f32 %v324, %v325
      %s327 = vtos %v326
      %v328 = vstv %s327
      %v329 = vrcp.pop 512.0
      %v330 = vmul.f32 512.0, %v329
      %v331 = vsub.f32 1.0, %v330
      %v332 = vmul.f32 %v329, %v331
      %v333 = vadd.f32 %v329, %v332
      %vm334 = vweird.f32 %v329
      %v335 = vsel %vm334, %v329, %v333
      %v336 = vmul.f32 %v328, %v335
      %v337 = vsub.f32 %v308, %v336
      %v338 = vmul.f32 %v337, %v337
      %340 = vst [vmem:[#allocation1] ss:$4 sm:$0xff] %v338
      %v341 = vld.sshfl [vmem:[#allocation1] sm:$0xff pattern:$0x73625140]
      %v342 = vld.sshfl [vmem:[#allocation1 + $0x8] sm:$0xff pattern:$0x73625140]
      %v345 = vsel %vm315, %v341, 0.0
      %v346 = vsel %vm315, %v342, 0.0
      %v347 = vadd.f32 %v345, %v346
      %348 = vadd.xlane.f32.xlu0 %v347
      %v349 = vpop.xlane.xlu0 %348
      %v350 = vrot.slane %v349, 4
      %v351 = vadd.f32 %v349, %v350
      %v352 = vrot.slane %v351, 2
      %v353 = vadd.f32 %v351, %v352
      %v354 = vrot.slane %v353, 1
      %v355 = vadd.f32 %v353, %v354
      %s356 = vtos %v355
      %v357 = vstv %s356
      %v358 = vmul.f32 %v357, %v335
      %v359 = vadd.f32 %v358, 1e-05
      %v360 = vrsqrt.pop %v359
      %v361 = vmul.f32 %v360, %v359
      %v362 = vmul.f32 %v361, %v360
      %v363 = vmul.f32 0.5, %v362
      %v364 = vsub.f32 1.5, %v363
      %v365 = vmul.f32 %v360, %v364
      %vm366 = vweird.f32 %v359
      %vm367 = vweird.f32 %v360
      %vm368 = vmor %vm366, %vm367
      %v369 = vsel %vm368, %v360, %v365
      %v370 = vld [vmem:[%s280] sm:$0x3]
      %v371 = vld [vmem:[%s286] sm:$0x3]
      %v372 = vmul.f32 %v370, %v369
      %vm373 = vcmask 1024
      %374 = vst.msk [vmem:[%s296] sm:$0x3] %vm373, %v372
      %v375 = vmul.f32 %v336, %v372
      %v376 = vsub.f32 %v371, %v375
      %377 = vst.msk [vmem:[%s306] sm:$0x3] %vm373, %v376
      %s378 = scalar_lea.vmem %s274, 4
      %v379 = vld [vmem:[%s378] sm:$0xf]
      %381 = vst [vmem:[#allocation1] ss:$4 sm:$0xff] %v379
      %v382 = vld.sshfl [vmem:[#allocation1] sm:$0xff pattern:$0x73625140]
      %v383 = vld.sshfl [vmem:[#allocation1 + $0x8] sm:$0xff pattern:$0x73625140]
      %v386 = vsel %vm315, %v382, 0.0
      %v387 = vsel %vm315, %v383, 0.0
      %v388 = vadd.f32 %v386, %v387
      %389 = vadd.xlane.f32.xlu0 %v388
      %v390 = vpop.xlane.xlu0 %389
      %v391 = vrot.slane %v390, 4
      %v392 = vadd.f32 %v390, %v391
      %v393 = vrot.slane %v392, 2
      %v394 = vadd.f32 %v392, %v393
      %v395 = vrot.slane %v394, 1
      %v396 = vadd.f32 %v394, %v395
      %s397 = vtos %v396
      %v398 = vstv %s397
      %v399 = vmul.f32 %v398, %v335
      %v400 = vsub.f32 %v379, %v399
      %v401 = vmul.f32 %v400, %v400
      %403 = vst [vmem:[#allocation1] ss:$4 sm:$0xff] %v401
      %v404 = vld.sshfl [vmem:[#allocation1] sm:$0xff pattern:$0x73625140]
      %v405 = vld.sshfl [vmem:[#allocation1 + $0x8] sm:$0xff pattern:$0x73625140]
      %v408 = vsel %vm315, %v404, 0.0
      %v409 = vsel %vm315, %v405, 0.0
      %v410 = vadd.f32 %v408, %v409
      %411 = vadd.xlane.f32.xlu0 %v410
      %v412 = vpop.xlane.xlu0 %411
      %v413 = vrot.slane %v412, 4
      %v414 = vadd.f32 %v412, %v413
      %v415 = vrot.slane %v414, 2
      %v416 = vadd.f32 %v414, %v415
      %v417 = vrot.slane %v416, 1
      %v418 = vadd.f32 %v416, %v417
      %s419 = vtos %v418
      %v420 = vstv %s419
      %v421 = vmul.f32 %v420, %v335
      %v422 = vadd.f32 %v421, 1e-05
      %v423 = vrsqrt.pop %v422
      %v424 = vmul.f32 %v423, %v422
      %v425 = vmul.f32 %v424, %v423
      %v426 = vmul.f32 0.5, %v425
      %v427 = vsub.f32 1.5, %v426
      %v428 = vmul.f32 %v423, %v427
      %vm429 = vweird.f32 %v422
      %vm430 = vweird.f32 %v423
      %vm431 = vmor %vm429, %vm430
      %v432 = vsel %vm431, %v423, %v428
      %s433 = scalar_lea.vmem %s280, 2
      %v434 = vld [vmem:[%s433] sm:$0x3]
      %s435 = scalar_lea.vmem %s286, 2
      %v436 = vld [vmem:[%s435] sm:$0x3]
      %v437 = vmul.f32 %v434, %v432
      %s438 = scalar_lea.vmem %s296, 2
      %439 = vst.msk [vmem:[%s438] sm:$0x3] %vm373, %v437
      %v440 = vmul.f32 %v399, %v437
      %v441 = vsub.f32 %v436, %v440
      %s442 = scalar_lea.vmem %s306, 2
      %443 = vst.msk [vmem:[%s442] sm:$0x3] %vm373, %v441
      %s444 = scalar_lea.vmem %s274, 8
      %v445 = vld [vmem:[%s444] sm:$0xf]
      %447 = vst [vmem:[#allocation1] ss:$4 sm:$0xff] %v445
      %v448 = vld.sshfl [vmem:[#allocation1] sm:$0xff pattern:$0x73625140]
      %v449 = vld.sshfl [vmem:[#allocation1 + $0x8] sm:$0xff pattern:$0x73625140]
      %v452 = vsel %vm315, %v448, 0.0
      %v453 = vsel %vm315, %v449, 0.0
      %v454 = vadd.f32 %v452, %v453
      %455 = vadd.xlane.f32.xlu0 %v454
      %v456 = vpop.xlane.xlu0 %455
      %v457 = vrot.slane %v456, 4
      %v458 = vadd.f32 %v456, %v457
      %v459 = vrot.slane %v458, 2
      %v460 = vadd.f32 %v458, %v459
      %v461 = vrot.slane %v460, 1
      %v462 = vadd.f32 %v460, %v461
      %s463 = vtos %v462
      %v464 = vstv %s463
      %v465 = vmul.f32 %v464, %v335
      %v466 = vsub.f32 %v445, %v465
      %v467 = vmul.f32 %v466, %v466
      %469 = vst [vmem:[#allocation1] ss:$4 sm:$0xff] %v467
      %v470 = vld.sshfl [vmem:[#allocation1] sm:$0xff pattern:$0x73625140]
      %v471 = vld.sshfl [vmem:[#allocation1 + $0x8] sm:$0xff pattern:$0x73625140]
      %v474 = vsel %vm315, %v470, 0.0
      %v475 = vsel %vm315, %v471, 0.0
      %v476 = vadd.f32 %v474, %v475
      %477 = vadd.xlane.f32.xlu0 %v476
      %v478 = vpop.xlane.xlu0 %477
      %v479 = vrot.slane %v478, 4
      %v480 = vadd.f32 %v478, %v479
      %v481 = vrot.slane %v480, 2
      %v482 = vadd.f32 %v480, %v481
      %v483 = vrot.slane %v482, 1
      %v484 = vadd.f32 %v482, %v483
      %s485 = vtos %v484
      %v486 = vstv %s485
      %v487 = vmul.f32 %v486, %v335
      %v488 = vadd.f32 %v487, 1e-05
      %v489 = vrsqrt.pop %v488
      %v490 = vmul.f32 %v489, %v488
      %v491 = vmul.f32 %v490, %v489
      %v492 = vmul.f32 0.5, %v491
      %v493 = vsub.f32 1.5, %v492
      %v494 = vmul.f32 %v489, %v493
      %vm495 = vweird.f32 %v488
      %vm496 = vweird.f32 %v489
      %vm497 = vmor %vm495, %vm496
      %v498 = vsel %vm497, %v489, %v494
      %s499 = scalar_lea.vmem %s280, 4
      %v500 = vld [vmem:[%s499] sm:$0x3]
      %s501 = scalar_lea.vmem %s286, 4
      %v502 = vld [vmem:[%s501] sm:$0x3]
      %v503 = vmul.f32 %v500, %v498
      %s504 = scalar_lea.vmem %s296, 4
      %505 = vst.msk [vmem:[%s504] sm:$0x3] %vm373, %v503
      %v506 = vmul.f32 %v465, %v503
      %v507 = vsub.f32 %v502, %v506
      %s508 = scalar_lea.vmem %s306, 4
      %509 = vst.msk [vmem:[%s508] sm:$0x3] %vm373, %v507
      %s510 = scalar_lea.vmem %s274, 12
      %v511 = vld [vmem:[%s510] sm:$0xf]
      %513 = vst [vmem:[#allocation1] ss:$4 sm:$0xff] %v511
      %v514 = vld.sshfl [vmem:[#allocation1] sm:$0xff pattern:$0x73625140]
      %v515 = vld.sshfl [vmem:[#allocation1 + $0x8] sm:$0xff pattern:$0x73625140]
      %v518 = vsel %vm315, %v514, 0.0
      %v519 = vsel %vm315, %v515, 0.0
      %v520 = vadd.f32 %v518, %v519
      %521 = vadd.xlane.f32.xlu0 %v520
      %v522 = vpop.xlane.xlu0 %521
      %v523 = vrot.slane %v522, 4
      %v524 = vadd.f32 %v522, %v523
      %v525 = vrot.slane %v524, 2
      %v526 = vadd.f32 %v524, %v525
      %v527 = vrot.slane %v526, 1
      %v528 = vadd.f32 %v526, %v527
      %s529 = vtos %v528
      %v530 = vstv %s529
      %v531 = vmul.f32 %v530, %v335
      %v532 = vsub.f32 %v511, %v531
      %v533 = vmul.f32 %v532, %v532
      %535 = vst [vmem:[#allocation1] ss:$4 sm:$0xff] %v533
      %v536 = vld.sshfl [vmem:[#allocation1] sm:$0xff pattern:$0x73625140]
      %v537 = vld.sshfl [vmem:[#allocation1 + $0x8] sm:$0xff pattern:$0x73625140]
      %v540 = vsel %vm315, %v536, 0.0
      %v541 = vsel %vm315, %v537, 0.0
      %v542 = vadd.f32 %v540, %v541
      %543 = vadd.xlane.f32.xlu0 %v542
      %v544 = vpop.xlane.xlu0 %543
      %v545 = vrot.slane %v544, 4
      %v546 = vadd.f32 %v544, %v545
      %v547 = vrot.slane %v546, 2
      %v548 = vadd.f32 %v546, %v547
      %v549 = vrot.slane %v548, 1
      %v550 = vadd.f32 %v548, %v549
      %s551 = vtos %v550
      %v552 = vstv %s551
      %v553 = vmul.f32 %v552, %v335
      %v554 = vadd.f32 %v553, 1e-05
      %v555 = vrsqrt.pop %v554
      %v556 = vmul.f32 %v555, %v554
      %v557 = vmul.f32 %v556, %v555
      %v558 = vmul.f32 0.5, %v557
      %v559 = vsub.f32 1.5, %v558
      %v560 = vmul.f32 %v555, %v559
      %vm561 = vweird.f32 %v554
      %vm562 = vweird.f32 %v555
      %vm563 = vmor %vm561, %vm562
      %v564 = vsel %vm563, %v555, %v560
      %s565 = scalar_lea.vmem %s280, 6
      %v566 = vld [vmem:[%s565] sm:$0x3]
      %s567 = scalar_lea.vmem %s286, 6
      %v568 = vld [vmem:[%s567] sm:$0x3]
      %v569 = vmul.f32 %v566, %v564
      %s570 = scalar_lea.vmem %s296, 6
      %571 = vst.msk [vmem:[%s570] sm:$0x3] %vm373, %v569
      %v572 = vmul.f32 %v531, %v569
      %v573 = vsub.f32 %v568, %v572
      %s574 = scalar_lea.vmem %s306, 6
      %575 = vst.msk [vmem:[%s574] sm:$0x3] %vm373, %v573
      %s576 = scalar_lea.vmem %s274, 16
      %v577 = vld [vmem:[%s576] sm:$0xf]
      %579 = vst [vmem:[#allocation1] ss:$4 sm:$0xff] %v577
      %v580 = vld.sshfl [vmem:[#allocation1] sm:$0xff pattern:$0x73625140]
      %v581 = vld.sshfl [vmem:[#allocation1 + $0x8] sm:$0xff pattern:$0x73625140]
      %v584 = vsel %vm315, %v580, 0.0
      %v585 = vsel %vm315, %v581, 0.0
      %v586 = vadd.f32 %v584, %v585
      %587 = vadd.xlane.f32.xlu0 %v586
      %v588 = vpop.xlane.xlu0 %587
      %v589 = vrot.slane %v588, 4
      %v590 = vadd.f32 %v588, %v589
      %v591 = vrot.slane %v590, 2
      %v592 = vadd.f32 %v590, %v591
      %v593 = vrot.slane %v592, 1
      %v594 = vadd.f32 %v592, %v593
      %s595 = vtos %v594
      %v596 = vstv %s595
      %v597 = vmul.f32 %v596, %v335
      %v598 = vsub.f32 %v577, %v597
      %v599 = vmul.f32 %v598, %v598
      %601 = vst [vmem:[#allocation1] ss:$4 sm:$0xff] %v599
      %v602 = vld.sshfl [vmem:[#allocation1] sm:$0xff pattern:$0x73625140]
      %v603 = vld.sshfl [vmem:[#allocation1 + $0x8] sm:$0xff pattern:$0x73625140]
      %v606 = vsel %vm315, %v602, 0.0
      %v607 = vsel %vm315, %v603, 0.0
      %v608 = vadd.f32 %v606, %v607
      %609 = vadd.xlane.f32.xlu0 %v608
      %v610 = vpop.xlane.xlu0 %609
      %v611 = vrot.slane %v610, 4
      %v612 = vadd.f32 %v610, %v611
      %v613 = vrot.slane %v612, 2
      %v614 = vadd.f32 %v612, %v613
      %v615 = vrot.slane %v614, 1
      %v616 = vadd.f32 %v614, %v615
      %s617 = vtos %v616
      %v618 = vstv %s617
      %v619 = vmul.f32 %v618, %v335
      %v620 = vadd.f32 %v619, 1e-05
      %v621 = vrsqrt.pop %v620
      %v622 = vmul.f32 %v621, %v620
      %v623 = vmul.f32 %v622, %v621
      %v624 = vmul.f32 0.5, %v623
      %v625 = vsub.f32 1.5, %v624
      %v626 = vmul.f32 %v621, %v625
      %vm627 = vweird.f32 %v620
      %vm628 = vweird.f32 %v621
      %vm629 = vmor %vm627, %vm628
      %v630 = vsel %vm629, %v621, %v626
      %s631 = scalar_lea.vmem %s280, 8
      %v632 = vld [vmem:[%s631] sm:$0x3]
      %s633 = scalar_lea.vmem %s286, 8
      %v634 = vld [vmem:[%s633] sm:$0x3]
      %v635 = vmul.f32 %v632, %v630
      %s636 = scalar_lea.vmem %s296, 8
      %637 = vst.msk [vmem:[%s636] sm:$0x3] %vm373, %v635
      %v638 = vmul.f32 %v597, %v635
      %v639 = vsub.f32 %v634, %v638
      %s640 = scalar_lea.vmem %s306, 8
      %641 = vst.msk [vmem:[%s640] sm:$0x3] %vm373, %v639
      %s642 = scalar_lea.vmem %s274, 20
      %v643 = vld [vmem:[%s642] sm:$0xf]
      %645 = vst [vmem:[#allocation1] ss:$4 sm:$0xff] %v643
      %v646 = vld.sshfl [vmem:[#allocation1] sm:$0xff pattern:$0x73625140]
      %v647 = vld.sshfl [vmem:[#allocation1 + $0x8] sm:$0xff pattern:$0x73625140]
      %v650 = vsel %vm315, %v646, 0.0
      %v651 = vsel %vm315, %v647, 0.0
      %v652 = vadd.f32 %v650, %v651
      %653 = vadd.xlane.f32.xlu0 %v652
      %v654 = vpop.xlane.xlu0 %653
      %v655 = vrot.slane %v654, 4
      %v656 = vadd.f32 %v654, %v655
      %v657 = vrot.slane %v656, 2
      %v658 = vadd.f32 %v656, %v657
      %v659 = vrot.slane %v658, 1
      %v660 = vadd.f32 %v658, %v659
      %s661 = vtos %v660
      %v662 = vstv %s661
      %v663 = vmul.f32 %v662, %v335
      %v664 = vsub.f32 %v643, %v663
      %v665 = vmul.f32 %v664, %v664
      %667 = vst [vmem:[#allocation1] ss:$4 sm:$0xff] %v665
      %v668 = vld.sshfl [vmem:[#allocation1] sm:$0xff pattern:$0x73625140]
      %v669 = vld.sshfl [vmem:[#allocation1 + $0x8] sm:$0xff pattern:$0x73625140]
      %v672 = vsel %vm315, %v668, 0.0
      %v673 = vsel %vm315, %v669, 0.0
      %v674 = vadd.f32 %v672, %v673
      %675 = vadd.xlane.f32.xlu0 %v674
      %v676 = vpop.xlane.xlu0 %675
      %v677 = vrot.slane %v676, 4
      %v678 = vadd.f32 %v676, %v677
      %v679 = vrot.slane %v678, 2
      %v680 = vadd.f32 %v678, %v679
      %v681 = vrot.slane %v680, 1
      %v682 = vadd.f32 %v680, %v681
      %s683 = vtos %v682
      %v684 = vstv %s683
      %v685 = vmul.f32 %v684, %v335
      %v686 = vadd.f32 %v685, 1e-05
      %v687 = vrsqrt.pop %v686
      %v688 = vmul.f32 %v687, %v686
      %v689 = vmul.f32 %v688, %v687
      %v690 = vmul.f32 0.5, %v689
      %v691 = vsub.f32 1.5, %v690
      %v692 = vmul.f32 %v687, %v691
      %vm693 = vweird.f32 %v686
      %vm694 = vweird.f32 %v687
      %vm695 = vmor %vm693, %vm694
      %v696 = vsel %vm695, %v687, %v692
      %s697 = scalar_lea.vmem %s280, 10
      %v698 = vld [vmem:[%s697] sm:$0x3]
      %s699 = scalar_lea.vmem %s286, 10
      %v700 = vld [vmem:[%s699] sm:$0x3]
      %v701 = vmul.f32 %v698, %v696
      %s702 = scalar_lea.vmem %s296, 10
      %703 = vst.msk [vmem:[%s702] sm:$0x3] %vm373, %v701
      %v704 = vmul.f32 %v663, %v701
      %v705 = vsub.f32 %v700, %v704
      %s706 = scalar_lea.vmem %s306, 10
      %707 = vst.msk [vmem:[%s706] sm:$0x3] %vm373, %v705
      %s708 = scalar_lea.vmem %s274, 24
      %v709 = vld [vmem:[%s708] sm:$0xf]
      %711 = vst [vmem:[#allocation1] ss:$4 sm:$0xff] %v709
      %v712 = vld.sshfl [vmem:[#allocation1] sm:$0xff pattern:$0x73625140]
      %v713 = vld.sshfl [vmem:[#allocation1 + $0x8] sm:$0xff pattern:$0x73625140]
      %v716 = vsel %vm315, %v712, 0.0
      %v717 = vsel %vm315, %v713, 0.0
      %v718 = vadd.f32 %v716, %v717
      %719 = vadd.xlane.f32.xlu0 %v718
      %v720 = vpop.xlane.xlu0 %719
      %v721 = vrot.slane %v720, 4
      %v722 = vadd.f32 %v720, %v721
      %v723 = vrot.slane %v722, 2
      %v724 = vadd.f32 %v722, %v723
      %v725 = vrot.slane %v724, 1
      %v726 = vadd.f32 %v724, %v725
      %s727 = vtos %v726
      %v728 = vstv %s727
      %v729 = vmul.f32 %v728, %v335
      %v730 = vsub.f32 %v709, %v729
      %v731 = vmul.f32 %v730, %v730
      %733 = vst [vmem:[#allocation1] ss:$4 sm:$0xff] %v731
      %v734 = vld.sshfl [vmem:[#allocation1] sm:$0xff pattern:$0x73625140]
      %v735 = vld.sshfl [vmem:[#allocation1 + $0x8] sm:$0xff pattern:$0x73625140]
      %v738 = vsel %vm315, %v734, 0.0
      %v739 = vsel %vm315, %v735, 0.0
      %v740 = vadd.f32 %v738, %v739
      %741 = vadd.xlane.f32.xlu0 %v740
      %v742 = vpop.xlane.xlu0 %741
      %v743 = vrot.slane %v742, 4
      %v744 = vadd.f32 %v742, %v743
      %v745 = vrot.slane %v744, 2
      %v746 = vadd.f32 %v744, %v745
      %v747 = vrot.slane %v746, 1
      %v748 = vadd.f32 %v746, %v747
      %s749 = vtos %v748
      %v750 = vstv %s749
      %v751 = vmul.f32 %v750, %v335
      %v752 = vadd.f32 %v751, 1e-05
      %v753 = vrsqrt.pop %v752
      %v754 = vmul.f32 %v753, %v752
      %v755 = vmul.f32 %v754, %v753
      %v756 = vmul.f32 0.5, %v755
      %v757 = vsub.f32 1.5, %v756
      %v758 = vmul.f32 %v753, %v757
      %vm759 = vweird.f32 %v752
      %vm760 = vweird.f32 %v753
      %vm761 = vmor %vm759, %vm760
      %v762 = vsel %vm761, %v753, %v758
      %s763 = scalar_lea.vmem %s280, 12
      %v764 = vld [vmem:[%s763] sm:$0x3]
      %s765 = scalar_lea.vmem %s286, 12
      %v766 = vld [vmem:[%s765] sm:$0x3]
      %v767 = vmul.f32 %v764, %v762
      %s768 = scalar_lea.vmem %s296, 12
      %769 = vst.msk [vmem:[%s768] sm:$0x3] %vm373, %v767
      %v770 = vmul.f32 %v729, %v767
      %v771 = vsub.f32 %v766, %v770
      %s772 = scalar_lea.vmem %s306, 12
      %773 = vst.msk [vmem:[%s772] sm:$0x3] %vm373, %v771
      %s774 = scalar_lea.vmem %s274, 28
      %v775 = vld [vmem:[%s774] sm:$0xf]
      %777 = vst [vmem:[#allocation1] ss:$4 sm:$0xff] %v775
      %v778 = vld.sshfl [vmem:[#allocation1] sm:$0xff pattern:$0x73625140]
      %v779 = vld.sshfl [vmem:[#allocation1 + $0x8] sm:$0xff pattern:$0x73625140]
      %v782 = vsel %vm315, %v778, 0.0
      %v783 = vsel %vm315, %v779, 0.0
      %v784 = vadd.f32 %v782, %v783
      %785 = vadd.xlane.f32.xlu0 %v784
      %v786 = vpop.xlane.xlu0 %785
      %v787 = vrot.slane %v786, 4
      %v788 = vadd.f32 %v786, %v787
      %v789 = vrot.slane %v788, 2
      %v790 = vadd.f32 %v788, %v789
      %v791 = vrot.slane %v790, 1
      %v792 = vadd.f32 %v790, %v791
      %s793 = vtos %v792
      %v794 = vstv %s793
      %v795 = vmul.f32 %v794, %v335
      %v796 = vsub.f32 %v775, %v795
      %v797 = vmul.f32 %v796, %v796
      %799 = vst [vmem:[#allocation1] ss:$4 sm:$0xff] %v797
      %v800 = vld.sshfl [vmem:[#allocation1] sm:$0xff pattern:$0x73625140]
      %v801 = vld.sshfl [vmem:[#allocation1 + $0x8] sm:$0xff pattern:$0x73625140]
      %v804 = vsel %vm315, %v800, 0.0
      %v805 = vsel %vm315, %v801, 0.0
      %v806 = vadd.f32 %v804, %v805
      %807 = vadd.xlane.f32.xlu0 %v806
      %v808 = vpop.xlane.xlu0 %807
      %v809 = vrot.slane %v808, 4
      %v810 = vadd.f32 %v808, %v809
      %v811 = vrot.slane %v810, 2
      %v812 = vadd.f32 %v810, %v811
      %v813 = vrot.slane %v812, 1
      %v814 = vadd.f32 %v812, %v813
      %s815 = vtos %v814
      %v816 = vstv %s815
      %v817 = vmul.f32 %v816, %v335
      %v818 = vadd.f32 %v817, 1e-05
      %v819 = vrsqrt.pop %v818
      %v820 = vmul.f32 %v819, %v818
      %v821 = vmul.f32 %v820, %v819
      %v822 = vmul.f32 0.5, %v821
      %v823 = vsub.f32 1.5, %v822
      %v824 = vmul.f32 %v819, %v823
      %vm825 = vweird.f32 %v818
      %vm826 = vweird.f32 %v819
      %vm827 = vmor %vm825, %vm826
      %v828 = vsel %vm827, %v819, %v824
      %s829 = scalar_lea.vmem %s280, 14
      %v830 = vld [vmem:[%s829] sm:$0x3]
      %s831 = scalar_lea.vmem %s286, 14
      %v832 = vld [vmem:[%s831] sm:$0x3]
      %v833 = vmul.f32 %v830, %v828
      %s834 = scalar_lea.vmem %s296, 14
      %835 = vst.msk [vmem:[%s834] sm:$0x3] %vm373, %v833
      %v836 = vmul.f32 %v795, %v833
      %v837 = vsub.f32 %v832, %v836
      %s838 = scalar_lea.vmem %s306, 14
      %839 = vst.msk [vmem:[%s838] sm:$0x3] %vm373, %v837
      %s840 = scalar_lea.vmem %s274, 32
      %v841 = vld [vmem:[%s840] sm:$0xf]
      %843 = vst [vmem:[#allocation1] ss:$4 sm:$0xff] %v841
      %v844 = vld.sshfl [vmem:[#allocation1] sm:$0xff pattern:$0x73625140]
      %v845 = vld.sshfl [vmem:[#allocation1 + $0x8] sm:$0xff pattern:$0x73625140]
      %v848 = vsel %vm315, %v844, 0.0
      %v849 = vsel %vm315, %v845, 0.0
      %v850 = vadd.f32 %v848, %v849
      %851 = vadd.xlane.f32.xlu0 %v850
      %v852 = vpop.xlane.xlu0 %851
      %v853 = vrot.slane %v852, 4
      %v854 = vadd.f32 %v852, %v853
      %v855 = vrot.slane %v854, 2
      %v856 = vadd.f32 %v854, %v855
      %v857 = vrot.slane %v856, 1
      %v858 = vadd.f32 %v856, %v857
      %s859 = vtos %v858
      %v860 = vstv %s859
      %v861 = vmul.f32 %v860, %v335
      %v862 = vsub.f32 %v841, %v861
      %v863 = vmul.f32 %v862, %v862
      %865 = vst [vmem:[#allocation1] ss:$4 sm:$0xff] %v863
      %v866 = vld.sshfl [vmem:[#allocation1] sm:$0xff pattern:$0x73625140]
      %v867 = vld.sshfl [vmem:[#allocation1 + $0x8] sm:$0xff pattern:$0x73625140]
      %v870 = vsel %vm315, %v866, 0.0
      %v871 = vsel %vm315, %v867, 0.0
      %v872 = vadd.f32 %v870, %v871
      %873 = vadd.xlane.f32.xlu0 %v872
      %v874 = vpop.xlane.xlu0 %873
      %v875 = vrot.slane %v874, 4
      %v876 = vadd.f32 %v874, %v875
      %v877 = vrot.slane %v876, 2
      %v878 = vadd.f32 %v876, %v877
      %v879 = vrot.slane %v878, 1
      %v880 = vadd.f32 %v878, %v879
      %s881 = vtos %v880
      %v882 = vstv %s881
      %v883 = vmul.f32 %v882, %v335
      %v884 = vadd.f32 %v883, 1e-05
      %v885 = vrsqrt.pop %v884
      %v886 = vmul.f32 %v885, %v884
      %v887 = vmul.f32 %v886, %v885
      %v888 = vmul.f32 0.5, %v887
      %v889 = vsub.f32 1.5, %v888
      %v890 = vmul.f32 %v885, %v889
      %vm891 = vweird.f32 %v884
      %vm892 = vweird.f32 %v885
      %vm893 = vmor %vm891, %vm892
      %v894 = vsel %vm893, %v885, %v890
      %s895 = scalar_lea.vmem %s280, 16
      %v896 = vld [vmem:[%s895] sm:$0x3]
      %s897 = scalar_lea.vmem %s286, 16
      %v898 = vld [vmem:[%s897] sm:$0x3]
      %v899 = vmul.f32 %v896, %v894
      %s900 = scalar_lea.vmem %s296, 16
      %901 = vst.msk [vmem:[%s900] sm:$0x3] %vm373, %v899
      %v902 = vmul.f32 %v861, %v899
      %v903 = vsub.f32 %v898, %v902
      %s904 = scalar_lea.vmem %s306, 16
      %905 = vst.msk [vmem:[%s904] sm:$0x3] %vm373, %v903
      %s906 = scalar_lea.vmem %s274, 36
      %v907 = vld [vmem:[%s906] sm:$0xf]
      %909 = vst [vmem:[#allocation1] ss:$4 sm:$0xff] %v907
      %v910 = vld.sshfl [vmem:[#allocation1] sm:$0xff pattern:$0x73625140]
      %v911 = vld.sshfl [vmem:[#allocation1 + $0x8] sm:$0xff pattern:$0x73625140]
      %v914 = vsel %vm315, %v910, 0.0
      %v915 = vsel %vm315, %v911, 0.0
      %v916 = vadd.f32 %v914, %v915
      %917 = vadd.xlane.f32.xlu0 %v916
      %v918 = vpop.xlane.xlu0 %917
      %v919 = vrot.slane %v918, 4
      %v920 = vadd.f32 %v918, %v919
      %v921 = vrot.slane %v920, 2
      %v922 = vadd.f32 %v920, %v921
      %v923 = vrot.slane %v922, 1
      %v924 = vadd.f32 %v922, %v923
      %s925 = vtos %v924
      %v926 = vstv %s925
      %v927 = vmul.f32 %v926, %v335
      %v928 = vsub.f32 %v907, %v927
      %v929 = vmul.f32 %v928, %v928
      %931 = vst [vmem:[#allocation1] ss:$4 sm:$0xff] %v929
      %v932 = vld.sshfl [vmem:[#allocation1] sm:$0xff pattern:$0x73625140]
      %v933 = vld.sshfl [vmem:[#allocation1 + $0x8] sm:$0xff pattern:$0x73625140]
      %v936 = vsel %vm315, %v932, 0.0
      %v937 = vsel %vm315, %v933, 0.0
      %v938 = vadd.f32 %v936, %v937
      %939 = vadd.xlane.f32.xlu0 %v938
      %v940 = vpop.xlane.xlu0 %939
      %v941 = vrot.slane %v940, 4
      %v942 = vadd.f32 %v940, %v941
      %v943 = vrot.slane %v942, 2
      %v944 = vadd.f32 %v942, %v943
      %v945 = vrot.slane %v944, 1
      %v946 = vadd.f32 %v944, %v945
      %s947 = vtos %v946
      %v948 = vstv %s947
      %v949 = vmul.f32 %v948, %v335
      %v950 = vadd.f32 %v949, 1e-05
      %v951 = vrsqrt.pop %v950
      %v952 = vmul.f32 %v951, %v950
      %v953 = vmul.f32 %v952, %v951
      %v954 = vmul.f32 0.5, %v953
      %v955 = vsub.f32 1.5, %v954
      %v956 = vmul.f32 %v951, %v955
      %vm957 = vweird.f32 %v950
      %vm958 = vweird.f32 %v951
      %vm959 = vmor %vm957, %vm958
      %v960 = vsel %vm959, %v951, %v956
      %s961 = scalar_lea.vmem %s280, 18
      %v962 = vld [vmem:[%s961] sm:$0x3]
      %s963 = scalar_lea.vmem %s286, 18
      %v964 = vld [vmem:[%s963] sm:$0x3]
      %v965 = vmul.f32 %v962, %v960
      %s966 = scalar_lea.vmem %s296, 18
      %967 = vst.msk [vmem:[%s966] sm:$0x3] %vm373, %v965
      %v968 = vmul.f32 %v927, %v965
      %v969 = vsub.f32 %v964, %v968
      %s970 = scalar_lea.vmem %s306, 18
      %971 = vst.msk [vmem:[%s970] sm:$0x3] %vm373, %v969
      %s972 = scalar_lea.vmem %s274, 40
      %v973 = vld [vmem:[%s972] sm:$0xf]
      %975 = vst [vmem:[#allocation1] ss:$4 sm:$0xff] %v973
      %v976 = vld.sshfl [vmem:[#allocation1] sm:$0xff pattern:$0x73625140]
      %v977 = vld.sshfl [vmem:[#allocation1 + $0x8] sm:$0xff pattern:$0x73625140]
      %v980 = vsel %vm315, %v976, 0.0
      %v981 = vsel %vm315, %v977, 0.0
      %v982 = vadd.f32 %v980, %v981
      %983 = vadd.xlane.f32.xlu0 %v982
      %v984 = vpop.xlane.xlu0 %983
      %v985 = vrot.slane %v984, 4
      %v986 = vadd.f32 %v984, %v985
      %v987 = vrot.slane %v986, 2
      %v988 = vadd.f32 %v986, %v987
      %v989 = vrot.slane %v988, 1
      %v990 = vadd.f32 %v988, %v989
      %s991 = vtos %v990
      %v992 = vstv %s991
      %v993 = vmul.f32 %v992, %v335
      %v994 = vsub.f32 %v973, %v993
      %v995 = vmul.f32 %v994, %v994
      %997 = vst [vmem:[#allocation1] ss:$4 sm:$0xff] %v995
      %v998 = vld.sshfl [vmem:[#allocation1] sm:$0xff pattern:$0x73625140]
      %v999 = vld.sshfl [vmem:[#allocation1 + $0x8] sm:$0xff pattern:$0x73625140]
      %v1002 = vsel %vm315, %v998, 0.0
      %v1003 = vsel %vm315, %v999, 0.0
      %v1004 = vadd.f32 %v1002, %v1003
      %1005 = vadd.xlane.f32.xlu0 %v1004
      %v1006 = vpop.xlane.xlu0 %1005
      %v1007 = vrot.slane %v1006, 4
      %v1008 = vadd.f32 %v1006, %v1007
      %v1009 = vrot.slane %v1008, 2
      %v1010 = vadd.f32 %v1008, %v1009
      %v1011 = vrot.slane %v1010, 1
      %v1012 = vadd.f32 %v1010, %v1011
      %s1013 = vtos %v1012
      %v1014 = vstv %s1013
      %v1015 = vmul.f32 %v1014, %v335
      %v1016 = vadd.f32 %v1015, 1e-05
      %v1017 = vrsqrt.pop %v1016
      %v1018 = vmul.f32 %v1017, %v1016
      %v1019 = vmul.f32 %v1018, %v1017
      %v1020 = vmul.f32 0.5, %v1019
      %v1021 = vsub.f32 1.5, %v1020
      %v1022 = vmul.f32 %v1017, %v1021
      %vm1023 = vweird.f32 %v1016
      %vm1024 = vweird.f32 %v1017
      %vm1025 = vmor %vm1023, %vm1024
      %v1026 = vsel %vm1025, %v1017, %v1022
      %s1027 = scalar_lea.vmem %s280, 20
      %v1028 = vld [vmem:[%s1027] sm:$0x3]
      %s1029 = scalar_lea.vmem %s286, 20
      %v1030 = vld [vmem:[%s1029] sm:$0x3]
      %v1031 = vmul.f32 %v1028, %v1026
      %s1032 = scalar_lea.vmem %s296, 20
      %1033 = vst.msk [vmem:[%s1032] sm:$0x3] %vm373, %v1031
      %v1034 = vmul.f32 %v993, %v1031
      %v1035 = vsub.f32 %v1030, %v1034
      %s1036 = scalar_lea.vmem %s306, 20
      %1037 = vst.msk [vmem:[%s1036] sm:$0x3] %vm373, %v1035
      %s1038 = scalar_lea.vmem %s274, 44
      %v1039 = vld [vmem:[%s1038] sm:$0xf]
      %1041 = vst [vmem:[#allocation1] ss:$4 sm:$0xff] %v1039
      %v1042 = vld.sshfl [vmem:[#allocation1] sm:$0xff pattern:$0x73625140]
      %v1043 = vld.sshfl [vmem:[#allocation1 + $0x8] sm:$0xff pattern:$0x73625140]
      %v1046 = vsel %vm315, %v1042, 0.0
      %v1047 = vsel %vm315, %v1043, 0.0
      %v1048 = vadd.f32 %v1046, %v1047
      %1049 = vadd.xlane.f32.xlu0 %v1048
      %v1050 = vpop.xlane.xlu0 %1049
      %v1051 = vrot.slane %v1050, 4
      %v1052 = vadd.f32 %v1050, %v1051
      %v1053 = vrot.slane %v1052, 2
      %v1054 = vadd.f32 %v1052, %v1053
      %v1055 = vrot.slane %v1054, 1
      %v1056 = vadd.f32 %v1054, %v1055
      %s1057 = vtos %v1056
      %v1058 = vstv %s1057
      %v1059 = vmul.f32 %v1058, %v335
      %v1060 = vsub.f32 %v1039, %v1059
      %v1061 = vmul.f32 %v1060, %v1060
      %1063 = vst [vmem:[#allocation1] ss:$4 sm:$0xff] %v1061
      %v1064 = vld.sshfl [vmem:[#allocation1] sm:$0xff pattern:$0x73625140]
      %v1065 = vld.sshfl [vmem:[#allocation1 + $0x8] sm:$0xff pattern:$0x73625140]
      %v1068 = vsel %vm315, %v1064, 0.0
      %v1069 = vsel %vm315, %v1065, 0.0
      %v1070 = vadd.f32 %v1068, %v1069
      %1071 = vadd.xlane.f32.xlu0 %v1070
      %v1072 = vpop.xlane.xlu0 %1071
      %v1073 = vrot.slane %v1072, 4
      %v1074 = vadd.f32 %v1072, %v1073
      %v1075 = vrot.slane %v1074, 2
      %v1076 = vadd.f32 %v1074, %v1075
      %v1077 = vrot.slane %v1076, 1
      %v1078 = vadd.f32 %v1076, %v1077
      %s1079 = vtos %v1078
      %v1080 = vstv %s1079
      %v1081 = vmul.f32 %v1080, %v335
      %v1082 = vadd.f32 %v1081, 1e-05
      %v1083 = vrsqrt.pop %v1082
      %v1084 = vmul.f32 %v1083, %v1082
      %v1085 = vmul.f32 %v1084, %v1083
      %v1086 = vmul.f32 0.5, %v1085
      %v1087 = vsub.f32 1.5, %v1086
      %v1088 = vmul.f32 %v1083, %v1087
      %vm1089 = vweird.f32 %v1082
      %vm1090 = vweird.f32 %v1083
      %vm1091 = vmor %vm1089, %vm1090
      %v1092 = vsel %vm1091, %v1083, %v1088
      %s1093 = scalar_lea.vmem %s280, 22
      %v1094 = vld [vmem:[%s1093] sm:$0x3]
      %s1095 = scalar_lea.vmem %s286, 22
      %v1096 = vld [vmem:[%s1095] sm:$0x3]
      %v1097 = vmul.f32 %v1094, %v1092
      %s1098 = scalar_lea.vmem %s296, 22
      %1099 = vst.msk [vmem:[%s1098] sm:$0x3] %vm373, %v1097
      %v1100 = vmul.f32 %v1059, %v1097
      %v1101 = vsub.f32 %v1096, %v1100
      %s1102 = scalar_lea.vmem %s306, 22
      %1103 = vst.msk [vmem:[%s1102] sm:$0x3] %vm373, %v1101
      %s1104 = scalar_lea.vmem %s274, 48
      %v1105 = vld [vmem:[%s1104] sm:$0xf]
      %1107 = vst [vmem:[#allocation1] ss:$4 sm:$0xff] %v1105
      %v1108 = vld.sshfl [vmem:[#allocation1] sm:$0xff pattern:$0x73625140]
      %v1109 = vld.sshfl [vmem:[#allocation1 + $0x8] sm:$0xff pattern:$0x73625140]
      %v1112 = vsel %vm315, %v1108, 0.0
      %v1113 = vsel %vm315, %v1109, 0.0
      %v1114 = vadd.f32 %v1112, %v1113
      %1115 = vadd.xlane.f32.xlu0 %v1114
      %v1116 = vpop.xlane.xlu0 %1115
      %v1117 = vrot.slane %v1116, 4
      %v1118 = vadd.f32 %v1116, %v1117
      %v1119 = vrot.slane %v1118, 2
      %v1120 = vadd.f32 %v1118, %v1119
      %v1121 = vrot.slane %v1120, 1
      %v1122 = vadd.f32 %v1120, %v1121
      %s1123 = vtos %v1122
      %v1124 = vstv %s1123
      %v1125 = vmul.f32 %v1124, %v335
      %v1126 = vsub.f32 %v1105, %v1125
      %v1127 = vmul.f32 %v1126, %v1126
      %1129 = vst [vmem:[#allocation1] ss:$4 sm:$0xff] %v1127
      %v1130 = vld.sshfl [vmem:[#allocation1] sm:$0xff pattern:$0x73625140]
      %v1131 = vld.sshfl [vmem:[#allocation1 + $0x8] sm:$0xff pattern:$0x73625140]
      %v1134 = vsel %vm315, %v1130, 0.0
      %v1135 = vsel %vm315, %v1131, 0.0
      %v1136 = vadd.f32 %v1134, %v1135
      %1137 = vadd.xlane.f32.xlu0 %v1136
      %v1138 = vpop.xlane.xlu0 %1137
      %v1139 = vrot.slane %v1138, 4
      %v1140 = vadd.f32 %v1138, %v1139
      %v1141 = vrot.slane %v1140, 2
      %v1142 = vadd.f32 %v1140, %v1141
      %v1143 = vrot.slane %v1142, 1
      %v1144 = vadd.f32 %v1142, %v1143
      %s1145 = vtos %v1144
      %v1146 = vstv %s1145
      %v1147 = vmul.f32 %v1146, %v335
      %v1148 = vadd.f32 %v1147, 1e-05
      %v1149 = vrsqrt.pop %v1148
      %v1150 = vmul.f32 %v1149, %v1148
      %v1151 = vmul.f32 %v1150, %v1149
      %v1152 = vmul.f32 0.5, %v1151
      %v1153 = vsub.f32 1.5, %v1152
      %v1154 = vmul.f32 %v1149, %v1153
      %vm1155 = vweird.f32 %v1148
      %vm1156 = vweird.f32 %v1149
      %vm1157 = vmor %vm1155, %vm1156
      %v1158 = vsel %vm1157, %v1149, %v1154
      %s1159 = scalar_lea.vmem %s280, 24
      %v1160 = vld [vmem:[%s1159] sm:$0x3]
      %s1161 = scalar_lea.vmem %s286, 24
      %v1162 = vld [vmem:[%s1161] sm:$0x3]
      %v1163 = vmul.f32 %v1160, %v1158
      %s1164 = scalar_lea.vmem %s296, 24
      %1165 = vst.msk [vmem:[%s1164] sm:$0x3] %vm373, %v1163
      %v1166 = vmul.f32 %v1125, %v1163
      %v1167 = vsub.f32 %v1162, %v1166
      %s1168 = scalar_lea.vmem %s306, 24
      %1169 = vst.msk [vmem:[%s1168] sm:$0x3] %vm373, %v1167
      %s1170 = scalar_lea.vmem %s274, 52
      %v1171 = vld [vmem:[%s1170] sm:$0xf]
      %1173 = vst [vmem:[#allocation1] ss:$4 sm:$0xff] %v1171
      %v1174 = vld.sshfl [vmem:[#allocation1] sm:$0xff pattern:$0x73625140]
      %v1175 = vld.sshfl [vmem:[#allocation1 + $0x8] sm:$0xff pattern:$0x73625140]
      %v1178 = vsel %vm315, %v1174, 0.0
      %v1179 = vsel %vm315, %v1175, 0.0
      %v1180 = vadd.f32 %v1178, %v1179
      %1181 = vadd.xlane.f32.xlu0 %v1180
      %v1182 = vpop.xlane.xlu0 %1181
      %v1183 = vrot.slane %v1182, 4
      %v1184 = vadd.f32 %v1182, %v1183
      %v1185 = vrot.slane %v1184, 2
      %v1186 = vadd.f32 %v1184, %v1185
      %v1187 = vrot.slane %v1186, 1
      %v1188 = vadd.f32 %v1186, %v1187
      %s1189 = vtos %v1188
      %v1190 = vstv %s1189
      %v1191 = vmul.f32 %v1190, %v335
      %v1192 = vsub.f32 %v1171, %v1191
      %v1193 = vmul.f32 %v1192, %v1192
      %1195 = vst [vmem:[#allocation1] ss:$4 sm:$0xff] %v1193
      %v1196 = vld.sshfl [vmem:[#allocation1] sm:$0xff pattern:$0x73625140]
      %v1197 = vld.sshfl [vmem:[#allocation1 + $0x8] sm:$0xff pattern:$0x73625140]
      %v1200 = vsel %vm315, %v1196, 0.0
      %v1201 = vsel %vm315, %v1197, 0.0
      %v1202 = vadd.f32 %v1200, %v1201
      %1203 = vadd.xlane.f32.xlu0 %v1202
      %v1204 = vpop.xlane.xlu0 %1203
      %v1205 = vrot.slane %v1204, 4
      %v1206 = vadd.f32 %v1204, %v1205
      %v1207 = vrot.slane %v1206, 2
      %v1208 = vadd.f32 %v1206, %v1207
      %v1209 = vrot.slane %v1208, 1
      %v1210 = vadd.f32 %v1208, %v1209
      %s1211 = vtos %v1210
      %v1212 = vstv %s1211
      %v1213 = vmul.f32 %v1212, %v335
      %v1214 = vadd.f32 %v1213, 1e-05
      %v1215 = vrsqrt.pop %v1214
      %v1216 = vmul.f32 %v1215, %v1214
      %v1217 = vmul.f32 %v1216, %v1215
      %v1218 = vmul.f32 0.5, %v1217
      %v1219 = vsub.f32 1.5, %v1218
      %v1220 = vmul.f32 %v1215, %v1219
      %vm1221 = vweird.f32 %v1214
      %vm1222 = vweird.f32 %v1215
      %vm1223 = vmor %vm1221, %vm1222
      %v1224 = vsel %vm1223, %v1215, %v1220
      %s1225 = scalar_lea.vmem %s280, 26
      %v1226 = vld [vmem:[%s1225] sm:$0x3]
      %s1227 = scalar_lea.vmem %s286, 26
      %v1228 = vld [vmem:[%s1227] sm:$0x3]
      %v1229 = vmul.f32 %v1226, %v1224
      %s1230 = scalar_lea.vmem %s296, 26
      %1231 = vst.msk [vmem:[%s1230] sm:$0x3] %vm373, %v1229
      %v1232 = vmul.f32 %v1191, %v1229
      %v1233 = vsub.f32 %v1228, %v1232
      %s1234 = scalar_lea.vmem %s306, 26
      %1235 = vst.msk [vmem:[%s1234] sm:$0x3] %vm373, %v1233
      %s1236 = scalar_lea.vmem %s274, 56
      %v1237 = vld [vmem:[%s1236] sm:$0xf]
      %1239 = vst [vmem:[#allocation1] ss:$4 sm:$0xff] %v1237
      %v1240 = vld.sshfl [vmem:[#allocation1] sm:$0xff pattern:$0x73625140]
      %v1241 = vld.sshfl [vmem:[#allocation1 + $0x8] sm:$0xff pattern:$0x73625140]
      %v1244 = vsel %vm315, %v1240, 0.0
      %v1245 = vsel %vm315, %v1241, 0.0
      %v1246 = vadd.f32 %v1244, %v1245
      %1247 = vadd.xlane.f32.xlu0 %v1246
      %v1248 = vpop.xlane.xlu0 %1247
      %v1249 = vrot.slane %v1248, 4
      %v1250 = vadd.f32 %v1248, %v1249
      %v1251 = vrot.slane %v1250, 2
      %v1252 = vadd.f32 %v1250, %v1251
      %v1253 = vrot.slane %v1252, 1
      %v1254 = vadd.f32 %v1252, %v1253
      %s1255 = vtos %v1254
      %v1256 = vstv %s1255
      %v1257 = vmul.f32 %v1256, %v335
      %v1258 = vsub.f32 %v1237, %v1257
      %v1259 = vmul.f32 %v1258, %v1258
      %1261 = vst [vmem:[#allocation1] ss:$4 sm:$0xff] %v1259
      %v1262 = vld.sshfl [vmem:[#allocation1] sm:$0xff pattern:$0x73625140]
      %v1263 = vld.sshfl [vmem:[#allocation1 + $0x8] sm:$0xff pattern:$0x73625140]
      %v1266 = vsel %vm315, %v1262, 0.0
      %v1267 = vsel %vm315, %v1263, 0.0
      %v1268 = vadd.f32 %v1266, %v1267
      %1269 = vadd.xlane.f32.xlu0 %v1268
      %v1270 = vpop.xlane.xlu0 %1269
      %v1271 = vrot.slane %v1270, 4
      %v1272 = vadd.f32 %v1270, %v1271
      %v1273 = vrot.slane %v1272, 2
      %v1274 = vadd.f32 %v1272, %v1273
      %v1275 = vrot.slane %v1274, 1
      %v1276 = vadd.f32 %v1274, %v1275
      %s1277 = vtos %v1276
      %v1278 = vstv %s1277
      %v1279 = vmul.f32 %v1278, %v335
      %v1280 = vadd.f32 %v1279, 1e-05
      %v1281 = vrsqrt.pop %v1280
      %v1282 = vmul.f32 %v1281, %v1280
      %v1283 = vmul.f32 %v1282, %v1281
      %v1284 = vmul.f32 0.5, %v1283
      %v1285 = vsub.f32 1.5, %v1284
      %v1286 = vmul.f32 %v1281, %v1285
      %vm1287 = vweird.f32 %v1280
      %vm1288 = vweird.f32 %v1281
      %vm1289 = vmor %vm1287, %vm1288
      %v1290 = vsel %vm1289, %v1281, %v1286
      %s1291 = scalar_lea.vmem %s280, 28
      %v1292 = vld [vmem:[%s1291] sm:$0x3]
      %s1293 = scalar_lea.vmem %s286, 28
      %v1294 = vld [vmem:[%s1293] sm:$0x3]
      %v1295 = vmul.f32 %v1292, %v1290
      %s1296 = scalar_lea.vmem %s296, 28
      %1297 = vst.msk [vmem:[%s1296] sm:$0x3] %vm373, %v1295
      %v1298 = vmul.f32 %v1257, %v1295
      %v1299 = vsub.f32 %v1294, %v1298
      %s1300 = scalar_lea.vmem %s306, 28
      %1301 = vst.msk [vmem:[%s1300] sm:$0x3] %vm373, %v1299
      %s1302 = scalar_lea.vmem %s274, 60
      %v1303 = vld [vmem:[%s1302] sm:$0xf]
      %1305 = vst [vmem:[#allocation1] ss:$4 sm:$0xff] %v1303
      %v1306 = vld.sshfl [vmem:[#allocation1] sm:$0xff pattern:$0x73625140]
      %v1307 = vld.sshfl [vmem:[#allocation1 + $0x8] sm:$0xff pattern:$0x73625140]
      %v1310 = vsel %vm315, %v1306, 0.0
      %v1311 = vsel %vm315, %v1307, 0.0
      %v1312 = vadd.f32 %v1310, %v1311
      %1313 = vadd.xlane.f32.xlu0 %v1312
      %v1314 = vpop.xlane.xlu0 %1313
      %v1315 = vrot.slane %v1314, 4
      %v1316 = vadd.f32 %v1314, %v1315
      %v1317 = vrot.slane %v1316, 2
      %v1318 = vadd.f32 %v1316, %v1317
      %v1319 = vrot.slane %v1318, 1
      %v1320 = vadd.f32 %v1318, %v1319
      %s1321 = vtos %v1320
      %v1322 = vstv %s1321
      %v1323 = vmul.f32 %v1322, %v335
      %v1324 = vsub.f32 %v1303, %v1323
      %v1325 = vmul.f32 %v1324, %v1324
      %1327 = vst [vmem:[#allocation1] ss:$4 sm:$0xff] %v1325
      %v1328 = vld.sshfl [vmem:[#allocation1] sm:$0xff pattern:$0x73625140]
      %v1329 = vld.sshfl [vmem:[#allocation1 + $0x8] sm:$0xff pattern:$0x73625140]
      %v1332 = vsel %vm315, %v1328, 0.0
      %v1333 = vsel %vm315, %v1329, 0.0
      %v1334 = vadd.f32 %v1332, %v1333
      %1335 = vadd.xlane.f32.xlu0 %v1334
      %v1336 = vpop.xlane.xlu0 %1335
      %v1337 = vrot.slane %v1336, 4
      %v1338 = vadd.f32 %v1336, %v1337
      %v1339 = vrot.slane %v1338, 2
      %v1340 = vadd.f32 %v1338, %v1339
      %v1341 = vrot.slane %v1340, 1
      %v1342 = vadd.f32 %v1340, %v1341
      %s1343 = vtos %v1342
      %v1344 = vstv %s1343
      %v1345 = vmul.f32 %v1344, %v335
      %v1346 = vadd.f32 %v1345, 1e-05
      %v1347 = vrsqrt.pop %v1346
      %v1348 = vmul.f32 %v1347, %v1346
      %v1349 = vmul.f32 %v1348, %v1347
      %v1350 = vmul.f32 0.5, %v1349
      %v1351 = vsub.f32 1.5, %v1350
      %v1352 = vmul.f32 %v1347, %v1351
      %vm1353 = vweird.f32 %v1346
      %vm1354 = vweird.f32 %v1347
      %vm1355 = vmor %vm1353, %vm1354
      %v1356 = vsel %vm1355, %v1347, %v1352
      %s1357 = scalar_lea.vmem %s280, 30
      %v1358 = vld [vmem:[%s1357] sm:$0x3]
      %s1359 = scalar_lea.vmem %s286, 30
      %v1360 = vld [vmem:[%s1359] sm:$0x3]
      %v1361 = vmul.f32 %v1358, %v1356
      %s1362 = scalar_lea.vmem %s296, 30
      %1363 = vst.msk [vmem:[%s1362] sm:$0x3] %vm373, %v1361
      %v1364 = vmul.f32 %v1323, %v1361
      %v1365 = vsub.f32 %v1360, %v1364
      %s1366 = scalar_lea.vmem %s306, 30
      %1367 = vst.msk [vmem:[%s1366] sm:$0x3] %vm373, %v1365
      %s1368 = scalar_lea.vmem %s274, 64
      %v1369 = vld [vmem:[%s1368] sm:$0xf]
      %1371 = vst [vmem:[#allocation1] ss:$4 sm:$0xff] %v1369
      %v1372 = vld.sshfl [vmem:[#allocation1] sm:$0xff pattern:$0x73625140]
      %v1373 = vld.sshfl [vmem:[#allocation1 + $0x8] sm:$0xff pattern:$0x73625140]
      %v1376 = vsel %vm315, %v1372, 0.0
      %v1377 = vsel %vm315, %v1373, 0.0
      %v1378 = vadd.f32 %v1376, %v1377
      %1379 = vadd.xlane.f32.xlu0 %v1378
      %v1380 = vpop.xlane.xlu0 %1379
      %v1381 = vrot.slane %v1380, 4
      %v1382 = vadd.f32 %v1380, %v1381
      %v1383 = vrot.slane %v1382, 2
      %v1384 = vadd.f32 %v1382, %v1383
      %v1385 = vrot.slane %v1384, 1
      %v1386 = vadd.f32 %v1384, %v1385
      %s1387 = vtos %v1386
      %v1388 = vstv %s1387
      %v1389 = vmul.f32 %v1388, %v335
      %v1390 = vsub.f32 %v1369, %v1389
      %v1391 = vmul.f32 %v1390, %v1390
      %1393 = vst [vmem:[#allocation1] ss:$4 sm:$0xff] %v1391
      %v1394 = vld.sshfl [vmem:[#allocation1] sm:$0xff pattern:$0x73625140]
      %v1395 = vld.sshfl [vmem:[#allocation1 + $0x8] sm:$0xff pattern:$0x73625140]
      %v1398 = vsel %vm315, %v1394, 0.0
      %v1399 = vsel %vm315, %v1395, 0.0
      %v1400 = vadd.f32 %v1398, %v1399
      %1401 = vadd.xlane.f32.xlu0 %v1400
      %v1402 = vpop.xlane.xlu0 %1401
      %v1403 = vrot.slane %v1402, 4
      %v1404 = vadd.f32 %v1402, %v1403
      %v1405 = vrot.slane %v1404, 2
      %v1406 = vadd.f32 %v1404, %v1405
      %v1407 = vrot.slane %v1406, 1
      %v1408 = vadd.f32 %v1406, %v1407
      %s1409 = vtos %v1408
      %v1410 = vstv %s1409
      %v1411 = vmul.f32 %v1410, %v335
      %v1412 = vadd.f32 %v1411, 1e-05
      %v1413 = vrsqrt.pop %v1412
      %v1414 = vmul.f32 %v1413, %v1412
      %v1415 = vmul.f32 %v1414, %v1413
      %v1416 = vmul.f32 0.5, %v1415
      %v1417 = vsub.f32 1.5, %v1416
      %v1418 = vmul.f32 %v1413, %v1417
      %vm1419 = vweird.f32 %v1412
      %vm1420 = vweird.f32 %v1413
      %vm1421 = vmor %vm1419, %vm1420
      %v1422 = vsel %vm1421, %v1413, %v1418
      %s1423 = scalar_lea.vmem %s280, 32
      %v1424 = vld [vmem:[%s1423] sm:$0x3]
      %s1425 = scalar_lea.vmem %s286, 32
      %v1426 = vld [vmem:[%s1425] sm:$0x3]
      %v1427 = vmul.f32 %v1424, %v1422
      %s1428 = scalar_lea.vmem %s296, 32
      %1429 = vst.msk [vmem:[%s1428] sm:$0x3] %vm373, %v1427
      %v1430 = vmul.f32 %v1389, %v1427
      %v1431 = vsub.f32 %v1426, %v1430
      %s1432 = scalar_lea.vmem %s306, 32
      %1433 = vst.msk [vmem:[%s1432] sm:$0x3] %vm373, %v1431
      %s1434 = scalar_lea.vmem %s274, 68
      %v1435 = vld [vmem:[%s1434] sm:$0xf]
      %1437 = vst [vmem:[#allocation1] ss:$4 sm:$0xff] %v1435
      %v1438 = vld.sshfl [vmem:[#allocation1] sm:$0xff pattern:$0x73625140]
      %v1439 = vld.sshfl [vmem:[#allocation1 + $0x8] sm:$0xff pattern:$0x73625140]
      %v1442 = vsel %vm315, %v1438, 0.0
      %v1443 = vsel %vm315, %v1439, 0.0
      %v1444 = vadd.f32 %v1442, %v1443
      %1445 = vadd.xlane.f32.xlu0 %v1444
      %v1446 = vpop.xlane.xlu0 %1445
      %v1447 = vrot.slane %v1446, 4
      %v1448 = vadd.f32 %v1446, %v1447
      %v1449 = vrot.slane %v1448, 2
      %v1450 = vadd.f32 %v1448, %v1449
      %v1451 = vrot.slane %v1450, 1
      %v1452 = vadd.f32 %v1450, %v1451
      %s1453 = vtos %v1452
      %v1454 = vstv %s1453
      %v1455 = vmul.f32 %v1454, %v335
      %v1456 = vsub.f32 %v1435, %v1455
      %v1457 = vmul.f32 %v1456, %v1456
      %1459 = vst [vmem:[#allocation1] ss:$4 sm:$0xff] %v1457
      %v1460 = vld.sshfl [vmem:[#allocation1] sm:$0xff pattern:$0x73625140]
      %v1461 = vld.sshfl [vmem:[#allocation1 + $0x8] sm:$0xff pattern:$0x73625140]
      %v1464 = vsel %vm315, %v1460, 0.0
      %v1465 = vsel %vm315, %v1461, 0.0
      %v1466 = vadd.f32 %v1464, %v1465
      %1467 = vadd.xlane.f32.xlu0 %v1466
      %v1468 = vpop.xlane.xlu0 %1467
      %v1469 = vrot.slane %v1468, 4
      %v1470 = vadd.f32 %v1468, %v1469
      %v1471 = vrot.slane %v1470, 2
      %v1472 = vadd.f32 %v1470, %v1471
      %v1473 = vrot.slane %v1472, 1
      %v1474 = vadd.f32 %v1472, %v1473
      %s1475 = vtos %v1474
      %v1476 = vstv %s1475
      %v1477 = vmul.f32 %v1476, %v335
      %v1478 = vadd.f32 %v1477, 1e-05
      %v1479 = vrsqrt.pop %v1478
      %v1480 = vmul.f32 %v1479, %v1478
      %v1481 = vmul.f32 %v1480, %v1479
      %v1482 = vmul.f32 0.5, %v1481
      %v1483 = vsub.f32 1.5, %v1482
      %v1484 = vmul.f32 %v1479, %v1483
      %vm1485 = vweird.f32 %v1478
      %vm1486 = vweird.f32 %v1479
      %vm1487 = vmor %vm1485, %vm1486
      %v1488 = vsel %vm1487, %v1479, %v1484
      %s1489 = scalar_lea.vmem %s280, 34
      %v1490 = vld [vmem:[%s1489] sm:$0x3]
      %s1491 = scalar_lea.vmem %s286, 34
      %v1492 = vld [vmem:[%s1491] sm:$0x3]
      %v1493 = vmul.f32 %v1490, %v1488
      %s1494 = scalar_lea.vmem %s296, 34
      %1495 = vst.msk [vmem:[%s1494] sm:$0x3] %vm373, %v1493
      %v1496 = vmul.f32 %v1455, %v1493
      %v1497 = vsub.f32 %v1492, %v1496
      %s1498 = scalar_lea.vmem %s306, 34
      %1499 = vst.msk [vmem:[%s1498] sm:$0x3] %vm373, %v1497
      %s1500 = scalar_lea.vmem %s274, 72
      %v1501 = vld [vmem:[%s1500] sm:$0xf]
      %1503 = vst [vmem:[#allocation1] ss:$4 sm:$0xff] %v1501
      %v1504 = vld.sshfl [vmem:[#allocation1] sm:$0xff pattern:$0x73625140]
      %v1505 = vld.sshfl [vmem:[#allocation1 + $0x8] sm:$0xff pattern:$0x73625140]
      %v1508 = vsel %vm315, %v1504, 0.0
      %v1509 = vsel %vm315, %v1505, 0.0
      %v1510 = vadd.f32 %v1508, %v1509
      %1511 = vadd.xlane.f32.xlu0 %v1510
      %v1512 = vpop.xlane.xlu0 %1511
      %v1513 = vrot.slane %v1512, 4
      %v1514 = vadd.f32 %v1512, %v1513
      %v1515 = vrot.slane %v1514, 2
      %v1516 = vadd.f32 %v1514, %v1515
      %v1517 = vrot.slane %v1516, 1
      %v1518 = vadd.f32 %v1516, %v1517
      %s1519 = vtos %v1518
      %v1520 = vstv %s1519
      %v1521 = vmul.f32 %v1520, %v335
      %v1522 = vsub.f32 %v1501, %v1521
      %v1523 = vmul.f32 %v1522, %v1522
      %1525 = vst [vmem:[#allocation1] ss:$4 sm:$0xff] %v1523
      %v1526 = vld.sshfl [vmem:[#allocation1] sm:$0xff pattern:$0x73625140]
      %v1527 = vld.sshfl [vmem:[#allocation1 + $0x8] sm:$0xff pattern:$0x73625140]
      %v1530 = vsel %vm315, %v1526, 0.0
      %v1531 = vsel %vm315, %v1527, 0.0
      %v1532 = vadd.f32 %v1530, %v1531
      %1533 = vadd.xlane.f32.xlu0 %v1532
      %v1534 = vpop.xlane.xlu0 %1533
      %v1535 = vrot.slane %v1534, 4
      %v1536 = vadd.f32 %v1534, %v1535
      %v1537 = vrot.slane %v1536, 2
      %v1538 = vadd.f32 %v1536, %v1537
      %v1539 = vrot.slane %v1538, 1
      %v1540 = vadd.f32 %v1538, %v1539
      %s1541 = vtos %v1540
      %v1542 = vstv %s1541
      %v1543 = vmul.f32 %v1542, %v335
      %v1544 = vadd.f32 %v1543, 1e-05
      %v1545 = vrsqrt.pop %v1544
      %v1546 = vmul.f32 %v1545, %v1544
      %v1547 = vmul.f32 %v1546, %v1545
      %v1548 = vmul.f32 0.5, %v1547
      %v1549 = vsub.f32 1.5, %v1548
      %v1550 = vmul.f32 %v1545, %v1549
      %vm1551 = vweird.f32 %v1544
      %vm1552 = vweird.f32 %v1545
      %vm1553 = vmor %vm1551, %vm1552
      %v1554 = vsel %vm1553, %v1545, %v1550
      %s1555 = scalar_lea.vmem %s280, 36
      %v1556 = vld [vmem:[%s1555] sm:$0x3]
      %s1557 = scalar_lea.vmem %s286, 36
      %v1558 = vld [vmem:[%s1557] sm:$0x3]
      %v1559 = vmul.f32 %v1556, %v1554
      %s1560 = scalar_lea.vmem %s296, 36
      %1561 = vst.msk [vmem:[%s1560] sm:$0x3] %vm373, %v1559
      %v1562 = vmul.f32 %v1521, %v1559
      %v1563 = vsub.f32 %v1558, %v1562
      %s1564 = scalar_lea.vmem %s306, 36
      %1565 = vst.msk [vmem:[%s1564] sm:$0x3] %vm373, %v1563
      %s1566 = scalar_lea.vmem %s274, 76
      %v1567 = vld [vmem:[%s1566] sm:$0xf]
      %1569 = vst [vmem:[#allocation1] ss:$4 sm:$0xff] %v1567
      %v1570 = vld.sshfl [vmem:[#allocation1] sm:$0xff pattern:$0x73625140]
      %v1571 = vld.sshfl [vmem:[#allocation1 + $0x8] sm:$0xff pattern:$0x73625140]
      %v1574 = vsel %vm315, %v1570, 0.0
      %v1575 = vsel %vm315, %v1571, 0.0
      %v1576 = vadd.f32 %v1574, %v1575
      %1577 = vadd.xlane.f32.xlu0 %v1576
      %v1578 = vpop.xlane.xlu0 %1577
      %v1579 = vrot.slane %v1578, 4
      %v1580 = vadd.f32 %v1578, %v1579
      %v1581 = vrot.slane %v1580, 2
      %v1582 = vadd.f32 %v1580, %v1581
      %v1583 = vrot.slane %v1582, 1
      %v1584 = vadd.f32 %v1582, %v1583
      %s1585 = vtos %v1584
      %v1586 = vstv %s1585
      %v1587 = vmul.f32 %v1586, %v335
      %v1588 = vsub.f32 %v1567, %v1587
      %v1589 = vmul.f32 %v1588, %v1588
      %1591 = vst [vmem:[#allocation1] ss:$4 sm:$0xff] %v1589
      %v1592 = vld.sshfl [vmem:[#allocation1] sm:$0xff pattern:$0x73625140]
      %v1593 = vld.sshfl [vmem:[#allocation1 + $0x8] sm:$0xff pattern:$0x73625140]
      %v1596 = vsel %vm315, %v1592, 0.0
      %v1597 = vsel %vm315, %v1593, 0.0
      %v1598 = vadd.f32 %v1596, %v1597
      %1599 = vadd.xlane.f32.xlu0 %v1598
      %v1600 = vpop.xlane.xlu0 %1599
      %v1601 = vrot.slane %v1600, 4
      %v1602 = vadd.f32 %v1600, %v1601
      %v1603 = vrot.slane %v1602, 2
      %v1604 = vadd.f32 %v1602, %v1603
      %v1605 = vrot.slane %v1604, 1
      %v1606 = vadd.f32 %v1604, %v1605
      %s1607 = vtos %v1606
      %v1608 = vstv %s1607
      %v1609 = vmul.f32 %v1608, %v335
      %v1610 = vadd.f32 %v1609, 1e-05
      %v1611 = vrsqrt.pop %v1610
      %v1612 = vmul.f32 %v1611, %v1610
      %v1613 = vmul.f32 %v1612, %v1611
      %v1614 = vmul.f32 0.5, %v1613
      %v1615 = vsub.f32 1.5, %v1614
      %v1616 = vmul.f32 %v1611, %v1615
      %vm1617 = vweird.f32 %v1610
      %vm1618 = vweird.f32 %v1611
      %vm1619 = vmor %vm1617, %vm1618
      %v1620 = vsel %vm1619, %v1611, %v1616
      %s1621 = scalar_lea.vmem %s280, 38
      %v1622 = vld [vmem:[%s1621] sm:$0x3]
      %s1623 = scalar_lea.vmem %s286, 38
      %v1624 = vld [vmem:[%s1623] sm:$0x3]
      %v1625 = vmul.f32 %v1622, %v1620
      %s1626 = scalar_lea.vmem %s296, 38
      %1627 = vst.msk [vmem:[%s1626] sm:$0x3] %vm373, %v1625
      %v1628 = vmul.f32 %v1587, %v1625
      %v1629 = vsub.f32 %v1624, %v1628
      %s1630 = scalar_lea.vmem %s306, 38
      %1631 = vst.msk [vmem:[%s1630] sm:$0x3] %vm373, %v1629
      %s1632 = scalar_lea.vmem %s274, 80
      %v1633 = vld [vmem:[%s1632] sm:$0xf]
      %1635 = vst [vmem:[#allocation1] ss:$4 sm:$0xff] %v1633
      %v1636 = vld.sshfl [vmem:[#allocation1] sm:$0xff pattern:$0x73625140]
      %v1637 = vld.sshfl [vmem:[#allocation1 + $0x8] sm:$0xff pattern:$0x73625140]
      %v1640 = vsel %vm315, %v1636, 0.0
      %v1641 = vsel %vm315, %v1637, 0.0
      %v1642 = vadd.f32 %v1640, %v1641
      %1643 = vadd.xlane.f32.xlu0 %v1642
      %v1644 = vpop.xlane.xlu0 %1643
      %v1645 = vrot.slane %v1644, 4
      %v1646 = vadd.f32 %v1644, %v1645
      %v1647 = vrot.slane %v1646, 2
      %v1648 = vadd.f32 %v1646, %v1647
      %v1649 = vrot.slane %v1648, 1
      %v1650 = vadd.f32 %v1648, %v1649
      %s1651 = vtos %v1650
      %v1652 = vstv %s1651
      %v1653 = vmul.f32 %v1652, %v335
      %v1654 = vsub.f32 %v1633, %v1653
      %v1655 = vmul.f32 %v1654, %v1654
      %1657 = vst [vmem:[#allocation1] ss:$4 sm:$0xff] %v1655
      %v1658 = vld.sshfl [vmem:[#allocation1] sm:$0xff pattern:$0x73625140]
      %v1659 = vld.sshfl [vmem:[#allocation1 + $0x8] sm:$0xff pattern:$0x73625140]
      %v1662 = vsel %vm315, %v1658, 0.0
      %v1663 = vsel %vm315, %v1659, 0.0
      %v1664 = vadd.f32 %v1662, %v1663
      %1665 = vadd.xlane.f32.xlu0 %v1664
      %v1666 = vpop.xlane.xlu0 %1665
      %v1667 = vrot.slane %v1666, 4
      %v1668 = vadd.f32 %v1666, %v1667
      %v1669 = vrot.slane %v1668, 2
      %v1670 = vadd.f32 %v1668, %v1669
      %v1671 = vrot.slane %v1670, 1
      %v1672 = vadd.f32 %v1670, %v1671
      %s1673 = vtos %v1672
      %v1674 = vstv %s1673
      %v1675 = vmul.f32 %v1674, %v335
      %v1676 = vadd.f32 %v1675, 1e-05
      %v1677 = vrsqrt.pop %v1676
      %v1678 = vmul.f32 %v1677, %v1676
      %v1679 = vmul.f32 %v1678, %v1677
      %v1680 = vmul.f32 0.5, %v1679
      %v1681 = vsub.f32 1.5, %v1680
      %v1682 = vmul.f32 %v1677, %v1681
      %vm1683 = vweird.f32 %v1676
      %vm1684 = vweird.f32 %v1677
      %vm1685 = vmor %vm1683, %vm1684
      %v1686 = vsel %vm1685, %v1677, %v1682
      %s1687 = scalar_lea.vmem %s280, 40
      %v1688 = vld [vmem:[%s1687] sm:$0x3]
      %s1689 = scalar_lea.vmem %s286, 40
      %v1690 = vld [vmem:[%s1689] sm:$0x3]
      %v1691 = vmul.f32 %v1688, %v1686
      %s1692 = scalar_lea.vmem %s296, 40
      %1693 = vst.msk [vmem:[%s1692] sm:$0x3] %vm373, %v1691
      %v1694 = vmul.f32 %v1653, %v1691
      %v1695 = vsub.f32 %v1690, %v1694
      %s1696 = scalar_lea.vmem %s306, 40
      %1697 = vst.msk [vmem:[%s1696] sm:$0x3] %vm373, %v1695
      %s1698 = scalar_lea.vmem %s274, 84
      %v1699 = vld [vmem:[%s1698] sm:$0xf]
      %1701 = vst [vmem:[#allocation1] ss:$4 sm:$0xff] %v1699
      %v1702 = vld.sshfl [vmem:[#allocation1] sm:$0xff pattern:$0x73625140]
      %v1703 = vld.sshfl [vmem:[#allocation1 + $0x8] sm:$0xff pattern:$0x73625140]
      %v1706 = vsel %vm315, %v1702, 0.0
      %v1707 = vsel %vm315, %v1703, 0.0
      %v1708 = vadd.f32 %v1706, %v1707
      %1709 = vadd.xlane.f32.xlu0 %v1708
      %v1710 = vpop.xlane.xlu0 %1709
      %v1711 = vrot.slane %v1710, 4
      %v1712 = vadd.f32 %v1710, %v1711
      %v1713 = vrot.slane %v1712, 2
      %v1714 = vadd.f32 %v1712, %v1713
      %v1715 = vrot.slane %v1714, 1
      %v1716 = vadd.f32 %v1714, %v1715
      %s1717 = vtos %v1716
      %v1718 = vstv %s1717
      %v1719 = vmul.f32 %v1718, %v335
      %v1720 = vsub.f32 %v1699, %v1719
      %v1721 = vmul.f32 %v1720, %v1720
      %1723 = vst [vmem:[#allocation1] ss:$4 sm:$0xff] %v1721
      %v1724 = vld.sshfl [vmem:[#allocation1] sm:$0xff pattern:$0x73625140]
      %v1725 = vld.sshfl [vmem:[#allocation1 + $0x8] sm:$0xff pattern:$0x73625140]
      %v1728 = vsel %vm315, %v1724, 0.0
      %v1729 = vsel %vm315, %v1725, 0.0
      %v1730 = vadd.f32 %v1728, %v1729
      %1731 = vadd.xlane.f32.xlu0 %v1730
      %v1732 = vpop.xlane.xlu0 %1731
      %v1733 = vrot.slane %v1732, 4
      %v1734 = vadd.f32 %v1732, %v1733
      %v1735 = vrot.slane %v1734, 2
      %v1736 = vadd.f32 %v1734, %v1735
      %v1737 = vrot.slane %v1736, 1
      %v1738 = vadd.f32 %v1736, %v1737
      %s1739 = vtos %v1738
      %v1740 = vstv %s1739
      %v1741 = vmul.f32 %v1740, %v335
      %v1742 = vadd.f32 %v1741, 1e-05
      %v1743 = vrsqrt.pop %v1742
      %v1744 = vmul.f32 %v1743, %v1742
      %v1745 = vmul.f32 %v1744, %v1743
      %v1746 = vmul.f32 0.5, %v1745
      %v1747 = vsub.f32 1.5, %v1746
      %v1748 = vmul.f32 %v1743, %v1747
      %vm1749 = vweird.f32 %v1742
      %vm1750 = vweird.f32 %v1743
      %vm1751 = vmor %vm1749, %vm1750
      %v1752 = vsel %vm1751, %v1743, %v1748
      %s1753 = scalar_lea.vmem %s280, 42
      %v1754 = vld [vmem:[%s1753] sm:$0x3]
      %s1755 = scalar_lea.vmem %s286, 42
      %v1756 = vld [vmem:[%s1755] sm:$0x3]
      %v1757 = vmul.f32 %v1754, %v1752
      %s1758 = scalar_lea.vmem %s296, 42
      %1759 = vst.msk [vmem:[%s1758] sm:$0x3] %vm373, %v1757
      %v1760 = vmul.f32 %v1719, %v1757
      %v1761 = vsub.f32 %v1756, %v1760
      %s1762 = scalar_lea.vmem %s306, 42
      %1763 = vst.msk [vmem:[%s1762] sm:$0x3] %vm373, %v1761
      %s1764 = scalar_lea.vmem %s274, 88
      %v1765 = vld [vmem:[%s1764] sm:$0xf]
      %1767 = vst [vmem:[#allocation1] ss:$4 sm:$0xff] %v1765
      %v1768 = vld.sshfl [vmem:[#allocation1] sm:$0xff pattern:$0x73625140]
      %v1769 = vld.sshfl [vmem:[#allocation1 + $0x8] sm:$0xff pattern:$0x73625140]
      %v1772 = vsel %vm315, %v1768, 0.0
      %v1773 = vsel %vm315, %v1769, 0.0
      %v1774 = vadd.f32 %v1772, %v1773
      %1775 = vadd.xlane.f32.xlu0 %v1774
      %v1776 = vpop.xlane.xlu0 %1775
      %v1777 = vrot.slane %v1776, 4
      %v1778 = vadd.f32 %v1776, %v1777
      %v1779 = vrot.slane %v1778, 2
      %v1780 = vadd.f32 %v1778, %v1779
      %v1781 = vrot.slane %v1780, 1
      %v1782 = vadd.f32 %v1780, %v1781
      %s1783 = vtos %v1782
      %v1784 = vstv %s1783
      %v1785 = vmul.f32 %v1784, %v335
      %v1786 = vsub.f32 %v1765, %v1785
      %v1787 = vmul.f32 %v1786, %v1786
      %1789 = vst [vmem:[#allocation1] ss:$4 sm:$0xff] %v1787
      %v1790 = vld.sshfl [vmem:[#allocation1] sm:$0xff pattern:$0x73625140]
      %v1791 = vld.sshfl [vmem:[#allocation1 + $0x8] sm:$0xff pattern:$0x73625140]
      %v1794 = vsel %vm315, %v1790, 0.0
      %v1795 = vsel %vm315, %v1791, 0.0
      %v1796 = vadd.f32 %v1794, %v1795
      %1797 = vadd.xlane.f32.xlu0 %v1796
      %v1798 = vpop.xlane.xlu0 %1797
      %v1799 = vrot.slane %v1798, 4
      %v1800 = vadd.f32 %v1798, %v1799
      %v1801 = vrot.slane %v1800, 2
      %v1802 = vadd.f32 %v1800, %v1801
      %v1803 = vrot.slane %v1802, 1
      %v1804 = vadd.f32 %v1802, %v1803
      %s1805 = vtos %v1804
      %v1806 = vstv %s1805
      %v1807 = vmul.f32 %v1806, %v335
      %v1808 = vadd.f32 %v1807, 1e-05
      %v1809 = vrsqrt.pop %v1808
      %v1810 = vmul.f32 %v1809, %v1808
      %v1811 = vmul.f32 %v1810, %v1809
      %v1812 = vmul.f32 0.5, %v1811
      %v1813 = vsub.f32 1.5, %v1812
      %v1814 = vmul.f32 %v1809, %v1813
      %vm1815 = vweird.f32 %v1808
      %vm1816 = vweird.f32 %v1809
      %vm1817 = vmor %vm1815, %vm1816
      %v1818 = vsel %vm1817, %v1809, %v1814
      %s1819 = scalar_lea.vmem %s280, 44
      %v1820 = vld [vmem:[%s1819] sm:$0x3]
      %s1821 = scalar_lea.vmem %s286, 44
      %v1822 = vld [vmem:[%s1821] sm:$0x3]
      %v1823 = vmul.f32 %v1820, %v1818
      %s1824 = scalar_lea.vmem %s296, 44
      %1825 = vst.msk [vmem:[%s1824] sm:$0x3] %vm373, %v1823
      %v1826 = vmul.f32 %v1785, %v1823
      %v1827 = vsub.f32 %v1822, %v1826
      %s1828 = scalar_lea.vmem %s306, 44
      %1829 = vst.msk [vmem:[%s1828] sm:$0x3] %vm373, %v1827
      %s1830 = scalar_lea.vmem %s274, 92
      %v1831 = vld [vmem:[%s1830] sm:$0xf]
      %1833 = vst [vmem:[#allocation1] ss:$4 sm:$0xff] %v1831
      %v1834 = vld.sshfl [vmem:[#allocation1] sm:$0xff pattern:$0x73625140]
      %v1835 = vld.sshfl [vmem:[#allocation1 + $0x8] sm:$0xff pattern:$0x73625140]
      %v1838 = vsel %vm315, %v1834, 0.0
      %v1839 = vsel %vm315, %v1835, 0.0
      %v1840 = vadd.f32 %v1838, %v1839
      %1841 = vadd.xlane.f32.xlu0 %v1840
      %v1842 = vpop.xlane.xlu0 %1841
      %v1843 = vrot.slane %v1842, 4
      %v1844 = vadd.f32 %v1842, %v1843
      %v1845 = vrot.slane %v1844, 2
      %v1846 = vadd.f32 %v1844, %v1845
      %v1847 = vrot.slane %v1846, 1
      %v1848 = vadd.f32 %v1846, %v1847
      %s1849 = vtos %v1848
      %v1850 = vstv %s1849
      %v1851 = vmul.f32 %v1850, %v335
      %v1852 = vsub.f32 %v1831, %v1851
      %v1853 = vmul.f32 %v1852, %v1852
      %1855 = vst [vmem:[#allocation1] ss:$4 sm:$0xff] %v1853
      %v1856 = vld.sshfl [vmem:[#allocation1] sm:$0xff pattern:$0x73625140]
      %v1857 = vld.sshfl [vmem:[#allocation1 + $0x8] sm:$0xff pattern:$0x73625140]
      %v1860 = vsel %vm315, %v1856, 0.0
      %v1861 = vsel %vm315, %v1857, 0.0
      %v1862 = vadd.f32 %v1860, %v1861
      %1863 = vadd.xlane.f32.xlu0 %v1862
      %v1864 = vpop.xlane.xlu0 %1863
      %v1865 = vrot.slane %v1864, 4
      %v1866 = vadd.f32 %v1864, %v1865
      %v1867 = vrot.slane %v1866, 2
      %v1868 = vadd.f32 %v1866, %v1867
      %v1869 = vrot.slane %v1868, 1
      %v1870 = vadd.f32 %v1868, %v1869
      %s1871 = vtos %v1870
      %v1872 = vstv %s1871
      %v1873 = vmul.f32 %v1872, %v335
      %v1874 = vadd.f32 %v1873, 1e-05
      %v1875 = vrsqrt.pop %v1874
      %v1876 = vmul.f32 %v1875, %v1874
      %v1877 = vmul.f32 %v1876, %v1875
      %v1878 = vmul.f32 0.5, %v1877
      %v1879 = vsub.f32 1.5, %v1878
      %v1880 = vmul.f32 %v1875, %v1879
      %vm1881 = vweird.f32 %v1874
      %vm1882 = vweird.f32 %v1875
      %vm1883 = vmor %vm1881, %vm1882
      %v1884 = vsel %vm1883, %v1875, %v1880
      %s1885 = scalar_lea.vmem %s280, 46
      %v1886 = vld [vmem:[%s1885] sm:$0x3]
      %s1887 = scalar_lea.vmem %s286, 46
      %v1888 = vld [vmem:[%s1887] sm:$0x3]
      %v1889 = vmul.f32 %v1886, %v1884
      %s1890 = scalar_lea.vmem %s296, 46
      %1891 = vst.msk [vmem:[%s1890] sm:$0x3] %vm373, %v1889
      %v1892 = vmul.f32 %v1851, %v1889
      %v1893 = vsub.f32 %v1888, %v1892
      %s1894 = scalar_lea.vmem %s306, 46
      %1895 = vst.msk [vmem:[%s1894] sm:$0x3] %vm373, %v1893
      %s1896 = scalar_lea.vmem %s274, 96
      %v1897 = vld [vmem:[%s1896] sm:$0xf]
      %1899 = vst [vmem:[#allocation1] ss:$4 sm:$0xff] %v1897
      %v1900 = vld.sshfl [vmem:[#allocation1] sm:$0xff pattern:$0x73625140]
      %v1901 = vld.sshfl [vmem:[#allocation1 + $0x8] sm:$0xff pattern:$0x73625140]
      %v1904 = vsel %vm315, %v1900, 0.0
      %v1905 = vsel %vm315, %v1901, 0.0
      %v1906 = vadd.f32 %v1904, %v1905
      %1907 = vadd.xlane.f32.xlu0 %v1906
      %v1908 = vpop.xlane.xlu0 %1907
      %v1909 = vrot.slane %v1908, 4
      %v1910 = vadd.f32 %v1908, %v1909
      %v1911 = vrot.slane %v1910, 2
      %v1912 = vadd.f32 %v1910, %v1911
      %v1913 = vrot.slane %v1912, 1
      %v1914 = vadd.f32 %v1912, %v1913
      %s1915 = vtos %v1914
      %v1916 = vstv %s1915
      %v1917 = vmul.f32 %v1916, %v335
      %v1918 = vsub.f32 %v1897, %v1917
      %v1919 = vmul.f32 %v1918, %v1918
      %1921 = vst [vmem:[#allocation1] ss:$4 sm:$0xff] %v1919
      %v1922 = vld.sshfl [vmem:[#allocation1] sm:$0xff pattern:$0x73625140]
      %v1923 = vld.sshfl [vmem:[#allocation1 + $0x8] sm:$0xff pattern:$0x73625140]
      %v1926 = vsel %vm315, %v1922, 0.0
      %v1927 = vsel %vm315, %v1923, 0.0
      %v1928 = vadd.f32 %v1926, %v1927
      %1929 = vadd.xlane.f32.xlu0 %v1928
      %v1930 = vpop.xlane.xlu0 %1929
      %v1931 = vrot.slane %v1930, 4
      %v1932 = vadd.f32 %v1930, %v1931
      %v1933 = vrot.slane %v1932, 2
      %v1934 = vadd.f32 %v1932, %v1933
      %v1935 = vrot.slane %v1934, 1
      %v1936 = vadd.f32 %v1934, %v1935
      %s1937 = vtos %v1936
      %v1938 = vstv %s1937
      %v1939 = vmul.f32 %v1938, %v335
      %v1940 = vadd.f32 %v1939, 1e-05
      %v1941 = vrsqrt.pop %v1940
      %v1942 = vmul.f32 %v1941, %v1940
      %v1943 = vmul.f32 %v1942, %v1941
      %v1944 = vmul.f32 0.5, %v1943
      %v1945 = vsub.f32 1.5, %v1944
      %v1946 = vmul.f32 %v1941, %v1945
      %vm1947 = vweird.f32 %v1940
      %vm1948 = vweird.f32 %v1941
      %vm1949 = vmor %vm1947, %vm1948
      %v1950 = vsel %vm1949, %v1941, %v1946
      %s1951 = scalar_lea.vmem %s280, 48
      %v1952 = vld [vmem:[%s1951] sm:$0x3]
      %s1953 = scalar_lea.vmem %s286, 48
      %v1954 = vld [vmem:[%s1953] sm:$0x3]
      %v1955 = vmul.f32 %v1952, %v1950
      %s1956 = scalar_lea.vmem %s296, 48
      %1957 = vst.msk [vmem:[%s1956] sm:$0x3] %vm373, %v1955
      %v1958 = vmul.f32 %v1917, %v1955
      %v1959 = vsub.f32 %v1954, %v1958
      %s1960 = scalar_lea.vmem %s306, 48
      %1961 = vst.msk [vmem:[%s1960] sm:$0x3] %vm373, %v1959
      %s1962 = scalar_lea.vmem %s274, 100
      %v1963 = vld [vmem:[%s1962] sm:$0xf]
      %1965 = vst [vmem:[#allocation1] ss:$4 sm:$0xff] %v1963
      %v1966 = vld.sshfl [vmem:[#allocation1] sm:$0xff pattern:$0x73625140]
      %v1967 = vld.sshfl [vmem:[#allocation1 + $0x8] sm:$0xff pattern:$0x73625140]
      %v1970 = vsel %vm315, %v1966, 0.0
      %v1971 = vsel %vm315, %v1967, 0.0
      %v1972 = vadd.f32 %v1970, %v1971
      %1973 = vadd.xlane.f32.xlu0 %v1972
      %v1974 = vpop.xlane.xlu0 %1973
      %v1975 = vrot.slane %v1974, 4
      %v1976 = vadd.f32 %v1974, %v1975
      %v1977 = vrot.slane %v1976, 2
      %v1978 = vadd.f32 %v1976, %v1977
      %v1979 = vrot.slane %v1978, 1
      %v1980 = vadd.f32 %v1978, %v1979
      %s1981 = vtos %v1980
      %v1982 = vstv %s1981
      %v1983 = vmul.f32 %v1982, %v335
      %v1984 = vsub.f32 %v1963, %v1983
      %v1985 = vmul.f32 %v1984, %v1984
      %1987 = vst [vmem:[#allocation1] ss:$4 sm:$0xff] %v1985
      %v1988 = vld.sshfl [vmem:[#allocation1] sm:$0xff pattern:$0x73625140]
      %v1989 = vld.sshfl [vmem:[#allocation1 + $0x8] sm:$0xff pattern:$0x73625140]
      %v1992 = vsel %vm315, %v1988, 0.0
      %v1993 = vsel %vm315, %v1989, 0.0
      %v1994 = vadd.f32 %v1992, %v1993
      %1995 = vadd.xlane.f32.xlu0 %v1994
      %v1996 = vpop.xlane.xlu0 %1995
      %v1997 = vrot.slane %v1996, 4
      %v1998 = vadd.f32 %v1996, %v1997
      %v1999 = vrot.slane %v1998, 2
      %v2000 = vadd.f32 %v1998, %v1999
      %v2001 = vrot.slane %v2000, 1
      %v2002 = vadd.f32 %v2000, %v2001
      %s2003 = vtos %v2002
      %v2004 = vstv %s2003
      %v2005 = vmul.f32 %v2004, %v335
      %v2006 = vadd.f32 %v2005, 1e-05
      %v2007 = vrsqrt.pop %v2006
      %v2008 = vmul.f32 %v2007, %v2006
      %v2009 = vmul.f32 %v2008, %v2007
      %v2010 = vmul.f32 0.5, %v2009
      %v2011 = vsub.f32 1.5, %v2010
      %v2012 = vmul.f32 %v2007, %v2011
      %vm2013 = vweird.f32 %v2006
      %vm2014 = vweird.f32 %v2007
      %vm2015 = vmor %vm2013, %vm2014
      %v2016 = vsel %vm2015, %v2007, %v2012
      %s2017 = scalar_lea.vmem %s280, 50
      %v2018 = vld [vmem:[%s2017] sm:$0x3]
      %s2019 = scalar_lea.vmem %s286, 50
      %v2020 = vld [vmem:[%s2019] sm:$0x3]
      %v2021 = vmul.f32 %v2018, %v2016
      %s2022 = scalar_lea.vmem %s296, 50
      %2023 = vst.msk [vmem:[%s2022] sm:$0x3] %vm373, %v2021
      %v2024 = vmul.f32 %v1983, %v2021
      %v2025 = vsub.f32 %v2020, %v2024
      %s2026 = scalar_lea.vmem %s306, 50
      %2027 = vst.msk [vmem:[%s2026] sm:$0x3] %vm373, %v2025
      %s2028 = scalar_lea.vmem %s274, 104
      %v2029 = vld [vmem:[%s2028] sm:$0xf]
      %2031 = vst [vmem:[#allocation1] ss:$4 sm:$0xff] %v2029
      %v2032 = vld.sshfl [vmem:[#allocation1] sm:$0xff pattern:$0x73625140]
      %v2033 = vld.sshfl [vmem:[#allocation1 + $0x8] sm:$0xff pattern:$0x73625140]
      %v2036 = vsel %vm315, %v2032, 0.0
      %v2037 = vsel %vm315, %v2033, 0.0
      %v2038 = vadd.f32 %v2036, %v2037
      %2039 = vadd.xlane.f32.xlu0 %v2038
      %v2040 = vpop.xlane.xlu0 %2039
      %v2041 = vrot.slane %v2040, 4
      %v2042 = vadd.f32 %v2040, %v2041
      %v2043 = vrot.slane %v2042, 2
      %v2044 = vadd.f32 %v2042, %v2043
      %v2045 = vrot.slane %v2044, 1
      %v2046 = vadd.f32 %v2044, %v2045
      %s2047 = vtos %v2046
      %v2048 = vstv %s2047
      %v2049 = vmul.f32 %v2048, %v335
      %v2050 = vsub.f32 %v2029, %v2049
      %v2051 = vmul.f32 %v2050, %v2050
      %2053 = vst [vmem:[#allocation1] ss:$4 sm:$0xff] %v2051
      %v2054 = vld.sshfl [vmem:[#allocation1] sm:$0xff pattern:$0x73625140]
      %v2055 = vld.sshfl [vmem:[#allocation1 + $0x8] sm:$0xff pattern:$0x73625140]
      %v2058 = vsel %vm315, %v2054, 0.0
      %v2059 = vsel %vm315, %v2055, 0.0
      %v2060 = vadd.f32 %v2058, %v2059
      %2061 = vadd.xlane.f32.xlu0 %v2060
      %v2062 = vpop.xlane.xlu0 %2061
      %v2063 = vrot.slane %v2062, 4
      %v2064 = vadd.f32 %v2062, %v2063
      %v2065 = vrot.slane %v2064, 2
      %v2066 = vadd.f32 %v2064, %v2065
      %v2067 = vrot.slane %v2066, 1
      %v2068 = vadd.f32 %v2066, %v2067
      %s2069 = vtos %v2068
      %v2070 = vstv %s2069
      %v2071 = vmul.f32 %v2070, %v335
      %v2072 = vadd.f32 %v2071, 1e-05
      %v2073 = vrsqrt.pop %v2072
      %v2074 = vmul.f32 %v2073, %v2072
      %v2075 = vmul.f32 %v2074, %v2073
      %v2076 = vmul.f32 0.5, %v2075
      %v2077 = vsub.f32 1.5, %v2076
      %v2078 = vmul.f32 %v2073, %v2077
      %vm2079 = vweird.f32 %v2072
      %vm2080 = vweird.f32 %v2073
      %vm2081 = vmor %vm2079, %vm2080
      %v2082 = vsel %vm2081, %v2073, %v2078
      %s2083 = scalar_lea.vmem %s280, 52
      %v2084 = vld [vmem:[%s2083] sm:$0x3]
      %s2085 = scalar_lea.vmem %s286, 52
      %v2086 = vld [vmem:[%s2085] sm:$0x3]
      %v2087 = vmul.f32 %v2084, %v2082
      %s2088 = scalar_lea.vmem %s296, 52
      %2089 = vst.msk [vmem:[%s2088] sm:$0x3] %vm373, %v2087
      %v2090 = vmul.f32 %v2049, %v2087
      %v2091 = vsub.f32 %v2086, %v2090
      %s2092 = scalar_lea.vmem %s306, 52
      %2093 = vst.msk [vmem:[%s2092] sm:$0x3] %vm373, %v2091
      %s2094 = scalar_lea.vmem %s274, 108
      %v2095 = vld [vmem:[%s2094] sm:$0xf]
      %2097 = vst [vmem:[#allocation1] ss:$4 sm:$0xff] %v2095
      %v2098 = vld.sshfl [vmem:[#allocation1] sm:$0xff pattern:$0x73625140]
      %v2099 = vld.sshfl [vmem:[#allocation1 + $0x8] sm:$0xff pattern:$0x73625140]
      %v2102 = vsel %vm315, %v2098, 0.0
      %v2103 = vsel %vm315, %v2099, 0.0
      %v2104 = vadd.f32 %v2102, %v2103
      %2105 = vadd.xlane.f32.xlu0 %v2104
      %v2106 = vpop.xlane.xlu0 %2105
      %v2107 = vrot.slane %v2106, 4
      %v2108 = vadd.f32 %v2106, %v2107
      %v2109 = vrot.slane %v2108, 2
      %v2110 = vadd.f32 %v2108, %v2109
      %v2111 = vrot.slane %v2110, 1
      %v2112 = vadd.f32 %v2110, %v2111
      %s2113 = vtos %v2112
      %v2114 = vstv %s2113
      %v2115 = vmul.f32 %v2114, %v335
      %v2116 = vsub.f32 %v2095, %v2115
      %v2117 = vmul.f32 %v2116, %v2116
      %2119 = vst [vmem:[#allocation1] ss:$4 sm:$0xff] %v2117
      %v2120 = vld.sshfl [vmem:[#allocation1] sm:$0xff pattern:$0x73625140]
      %v2121 = vld.sshfl [vmem:[#allocation1 + $0x8] sm:$0xff pattern:$0x73625140]
      %v2124 = vsel %vm315, %v2120, 0.0
      %v2125 = vsel %vm315, %v2121, 0.0
      %v2126 = vadd.f32 %v2124, %v2125
      %2127 = vadd.xlane.f32.xlu0 %v2126
      %v2128 = vpop.xlane.xlu0 %2127
      %v2129 = vrot.slane %v2128, 4
      %v2130 = vadd.f32 %v2128, %v2129
      %v2131 = vrot.slane %v2130, 2
      %v2132 = vadd.f32 %v2130, %v2131
      %v2133 = vrot.slane %v2132, 1
      %v2134 = vadd.f32 %v2132, %v2133
      %s2135 = vtos %v2134
      %v2136 = vstv %s2135
      %v2137 = vmul.f32 %v2136, %v335
      %v2138 = vadd.f32 %v2137, 1e-05
      %v2139 = vrsqrt.pop %v2138
      %v2140 = vmul.f32 %v2139, %v2138
      %v2141 = vmul.f32 %v2140, %v2139
      %v2142 = vmul.f32 0.5, %v2141
      %v2143 = vsub.f32 1.5, %v2142
      %v2144 = vmul.f32 %v2139, %v2143
      %vm2145 = vweird.f32 %v2138
      %vm2146 = vweird.f32 %v2139
      %vm2147 = vmor %vm2145, %vm2146
      %v2148 = vsel %vm2147, %v2139, %v2144
      %s2149 = scalar_lea.vmem %s280, 54
      %v2150 = vld [vmem:[%s2149] sm:$0x3]
      %s2151 = scalar_lea.vmem %s286, 54
      %v2152 = vld [vmem:[%s2151] sm:$0x3]
      %v2153 = vmul.f32 %v2150, %v2148
      %s2154 = scalar_lea.vmem %s296, 54
      %2155 = vst.msk [vmem:[%s2154] sm:$0x3] %vm373, %v2153
      %v2156 = vmul.f32 %v2115, %v2153
      %v2157 = vsub.f32 %v2152, %v2156
      %s2158 = scalar_lea.vmem %s306, 54
      %2159 = vst.msk [vmem:[%s2158] sm:$0x3] %vm373, %v2157
      %s2160 = scalar_lea.vmem %s274, 112
      %v2161 = vld [vmem:[%s2160] sm:$0xf]
      %2163 = vst [vmem:[#allocation1] ss:$4 sm:$0xff] %v2161
      %v2164 = vld.sshfl [vmem:[#allocation1] sm:$0xff pattern:$0x73625140]
      %v2165 = vld.sshfl [vmem:[#allocation1 + $0x8] sm:$0xff pattern:$0x73625140]
      %v2168 = vsel %vm315, %v2164, 0.0
      %v2169 = vsel %vm315, %v2165, 0.0
      %v2170 = vadd.f32 %v2168, %v2169
      %2171 = vadd.xlane.f32.xlu0 %v2170
      %v2172 = vpop.xlane.xlu0 %2171
      %v2173 = vrot.slane %v2172, 4
      %v2174 = vadd.f32 %v2172, %v2173
      %v2175 = vrot.slane %v2174, 2
      %v2176 = vadd.f32 %v2174, %v2175
      %v2177 = vrot.slane %v2176, 1
      %v2178 = vadd.f32 %v2176, %v2177
      %s2179 = vtos %v2178
      %v2180 = vstv %s2179
      %v2181 = vmul.f32 %v2180, %v335
      %v2182 = vsub.f32 %v2161, %v2181
      %v2183 = vmul.f32 %v2182, %v2182
      %2185 = vst [vmem:[#allocation1] ss:$4 sm:$0xff] %v2183
      %v2186 = vld.sshfl [vmem:[#allocation1] sm:$0xff pattern:$0x73625140]
      %v2187 = vld.sshfl [vmem:[#allocation1 + $0x8] sm:$0xff pattern:$0x73625140]
      %v2190 = vsel %vm315, %v2186, 0.0
      %v2191 = vsel %vm315, %v2187, 0.0
      %v2192 = vadd.f32 %v2190, %v2191
      %2193 = vadd.xlane.f32.xlu0 %v2192
      %v2194 = vpop.xlane.xlu0 %2193
      %v2195 = vrot.slane %v2194, 4
      %v2196 = vadd.f32 %v2194, %v2195
      %v2197 = vrot.slane %v2196, 2
      %v2198 = vadd.f32 %v2196, %v2197
      %v2199 = vrot.slane %v2198, 1
      %v2200 = vadd.f32 %v2198, %v2199
      %s2201 = vtos %v2200
      %v2202 = vstv %s2201
      %v2203 = vmul.f32 %v2202, %v335
      %v2204 = vadd.f32 %v2203, 1e-05
      %v2205 = vrsqrt.pop %v2204
      %v2206 = vmul.f32 %v2205, %v2204
      %v2207 = vmul.f32 %v2206, %v2205
      %v2208 = vmul.f32 0.5, %v2207
      %v2209 = vsub.f32 1.5, %v2208
      %v2210 = vmul.f32 %v2205, %v2209
      %vm2211 = vweird.f32 %v2204
      %vm2212 = vweird.f32 %v2205
      %vm2213 = vmor %vm2211, %vm2212
      %v2214 = vsel %vm2213, %v2205, %v2210
      %s2215 = scalar_lea.vmem %s280, 56
      %v2216 = vld [vmem:[%s2215] sm:$0x3]
      %s2217 = scalar_lea.vmem %s286, 56
      %v2218 = vld [vmem:[%s2217] sm:$0x3]
      %v2219 = vmul.f32 %v2216, %v2214
      %s2220 = scalar_lea.vmem %s296, 56
      %2221 = vst.msk [vmem:[%s2220] sm:$0x3] %vm373, %v2219
      %v2222 = vmul.f32 %v2181, %v2219
      %v2223 = vsub.f32 %v2218, %v2222
      %s2224 = scalar_lea.vmem %s306, 56
      %2225 = vst.msk [vmem:[%s2224] sm:$0x3] %vm373, %v2223
      %s2226 = scalar_lea.vmem %s274, 116
      %v2227 = vld [vmem:[%s2226] sm:$0xf]
      %2229 = vst [vmem:[#allocation1] ss:$4 sm:$0xff] %v2227
      %v2230 = vld.sshfl [vmem:[#allocation1] sm:$0xff pattern:$0x73625140]
      %v2231 = vld.sshfl [vmem:[#allocation1 + $0x8] sm:$0xff pattern:$0x73625140]
      %v2234 = vsel %vm315, %v2230, 0.0
      %v2235 = vsel %vm315, %v2231, 0.0
      %v2236 = vadd.f32 %v2234, %v2235
      %2237 = vadd.xlane.f32.xlu0 %v2236
      %v2238 = vpop.xlane.xlu0 %2237
      %v2239 = vrot.slane %v2238, 4
      %v2240 = vadd.f32 %v2238, %v2239
      %v2241 = vrot.slane %v2240, 2
      %v2242 = vadd.f32 %v2240, %v2241
      %v2243 = vrot.slane %v2242, 1
      %v2244 = vadd.f32 %v2242, %v2243
      %s2245 = vtos %v2244
      %v2246 = vstv %s2245
      %v2247 = vmul.f32 %v2246, %v335
      %v2248 = vsub.f32 %v2227, %v2247
      %v2249 = vmul.f32 %v2248, %v2248
      %2251 = vst [vmem:[#allocation1] ss:$4 sm:$0xff] %v2249
      %v2252 = vld.sshfl [vmem:[#allocation1] sm:$0xff pattern:$0x73625140]
      %v2253 = vld.sshfl [vmem:[#allocation1 + $0x8] sm:$0xff pattern:$0x73625140]
      %v2256 = vsel %vm315, %v2252, 0.0
      %v2257 = vsel %vm315, %v2253, 0.0
      %v2258 = vadd.f32 %v2256, %v2257
      %2259 = vadd.xlane.f32.xlu0 %v2258
      %v2260 = vpop.xlane.xlu0 %2259
      %v2261 = vrot.slane %v2260, 4
      %v2262 = vadd.f32 %v2260, %v2261
      %v2263 = vrot.slane %v2262, 2
      %v2264 = vadd.f32 %v2262, %v2263
      %v2265 = vrot.slane %v2264, 1
      %v2266 = vadd.f32 %v2264, %v2265
      %s2267 = vtos %v2266
      %v2268 = vstv %s2267
      %v2269 = vmul.f32 %v2268, %v335
      %v2270 = vadd.f32 %v2269, 1e-05
      %v2271 = vrsqrt.pop %v2270
      %v2272 = vmul.f32 %v2271, %v2270
      %v2273 = vmul.f32 %v2272, %v2271
      %v2274 = vmul.f32 0.5, %v2273
      %v2275 = vsub.f32 1.5, %v2274
      %v2276 = vmul.f32 %v2271, %v2275
      %vm2277 = vweird.f32 %v2270
      %vm2278 = vweird.f32 %v2271
      %vm2279 = vmor %vm2277, %vm2278
      %v2280 = vsel %vm2279, %v2271, %v2276
      %s2281 = scalar_lea.vmem %s280, 58
      %v2282 = vld [vmem:[%s2281] sm:$0x3]
      %s2283 = scalar_lea.vmem %s286, 58
      %v2284 = vld [vmem:[%s2283] sm:$0x3]
      %v2285 = vmul.f32 %v2282, %v2280
      %s2286 = scalar_lea.vmem %s296, 58
      %2287 = vst.msk [vmem:[%s2286] sm:$0x3] %vm373, %v2285
      %v2288 = vmul.f32 %v2247, %v2285
      %v2289 = vsub.f32 %v2284, %v2288
      %s2290 = scalar_lea.vmem %s306, 58
      %2291 = vst.msk [vmem:[%s2290] sm:$0x3] %vm373, %v2289
      %s2292 = scalar_lea.vmem %s274, 120
      %v2293 = vld [vmem:[%s2292] sm:$0xf]
      %2295 = vst [vmem:[#allocation1] ss:$4 sm:$0xff] %v2293
      %v2296 = vld.sshfl [vmem:[#allocation1] sm:$0xff pattern:$0x73625140]
      %v2297 = vld.sshfl [vmem:[#allocation1 + $0x8] sm:$0xff pattern:$0x73625140]
      %v2300 = vsel %vm315, %v2296, 0.0
      %v2301 = vsel %vm315, %v2297, 0.0
      %v2302 = vadd.f32 %v2300, %v2301
      %2303 = vadd.xlane.f32.xlu0 %v2302
      %v2304 = vpop.xlane.xlu0 %2303
      %v2305 = vrot.slane %v2304, 4
      %v2306 = vadd.f32 %v2304, %v2305
      %v2307 = vrot.slane %v2306, 2
      %v2308 = vadd.f32 %v2306, %v2307
      %v2309 = vrot.slane %v2308, 1
      %v2310 = vadd.f32 %v2308, %v2309
      %s2311 = vtos %v2310
      %v2312 = vstv %s2311
      %v2313 = vmul.f32 %v2312, %v335
      %v2314 = vsub.f32 %v2293, %v2313
      %v2315 = vmul.f32 %v2314, %v2314
      %2317 = vst [vmem:[#allocation1] ss:$4 sm:$0xff] %v2315
      %v2318 = vld.sshfl [vmem:[#allocation1] sm:$0xff pattern:$0x73625140]
      %v2319 = vld.sshfl [vmem:[#allocation1 + $0x8] sm:$0xff pattern:$0x73625140]
      %v2322 = vsel %vm315, %v2318, 0.0
      %v2323 = vsel %vm315, %v2319, 0.0
      %v2324 = vadd.f32 %v2322, %v2323
      %2325 = vadd.xlane.f32.xlu0 %v2324
      %v2326 = vpop.xlane.xlu0 %2325
      %v2327 = vrot.slane %v2326, 4
      %v2328 = vadd.f32 %v2326, %v2327
      %v2329 = vrot.slane %v2328, 2
      %v2330 = vadd.f32 %v2328, %v2329
      %v2331 = vrot.slane %v2330, 1
      %v2332 = vadd.f32 %v2330, %v2331
      %s2333 = vtos %v2332
      %v2334 = vstv %s2333
      %v2335 = vmul.f32 %v2334, %v335
      %v2336 = vadd.f32 %v2335, 1e-05
      %v2337 = vrsqrt.pop %v2336
      %v2338 = vmul.f32 %v2337, %v2336
      %v2339 = vmul.f32 %v2338, %v2337
      %v2340 = vmul.f32 0.5, %v2339
      %v2341 = vsub.f32 1.5, %v2340
      %v2342 = vmul.f32 %v2337, %v2341
      %vm2343 = vweird.f32 %v2336
      %vm2344 = vweird.f32 %v2337
      %vm2345 = vmor %vm2343, %vm2344
      %v2346 = vsel %vm2345, %v2337, %v2342
      %s2347 = scalar_lea.vmem %s280, 60
      %v2348 = vld [vmem:[%s2347] sm:$0x3]
      %s2349 = scalar_lea.vmem %s286, 60
      %v2350 = vld [vmem:[%s2349] sm:$0x3]
      %v2351 = vmul.f32 %v2348, %v2346
      %s2352 = scalar_lea.vmem %s296, 60
      %2353 = vst.msk [vmem:[%s2352] sm:$0x3] %vm373, %v2351
      %v2354 = vmul.f32 %v2313, %v2351
      %v2355 = vsub.f32 %v2350, %v2354
      %s2356 = scalar_lea.vmem %s306, 60
      %2357 = vst.msk [vmem:[%s2356] sm:$0x3] %vm373, %v2355
      %s2358 = scalar_lea.vmem %s274, 124
      %v2359 = vld [vmem:[%s2358] sm:$0xf]
      %2361 = vst [vmem:[#allocation1] ss:$4 sm:$0xff] %v2359
      %v2362 = vld.sshfl [vmem:[#allocation1] sm:$0xff pattern:$0x73625140]
      %v2363 = vld.sshfl [vmem:[#allocation1 + $0x8] sm:$0xff pattern:$0x73625140]
      %v2366 = vsel %vm315, %v2362, 0.0
      %v2367 = vsel %vm315, %v2363, 0.0
      %v2368 = vadd.f32 %v2366, %v2367
      %2369 = vadd.xlane.f32.xlu0 %v2368
      %v2370 = vpop.xlane.xlu0 %2369
      %v2371 = vrot.slane %v2370, 4
      %v2372 = vadd.f32 %v2370, %v2371
      %v2373 = vrot.slane %v2372, 2
      %v2374 = vadd.f32 %v2372, %v2373
      %v2375 = vrot.slane %v2374, 1
      %v2376 = vadd.f32 %v2374, %v2375
      %s2377 = vtos %v2376
      %v2378 = vstv %s2377
      %v2379 = vmul.f32 %v2378, %v335
      %v2380 = vsub.f32 %v2359, %v2379
      %v2381 = vmul.f32 %v2380, %v2380
      %2383 = vst [vmem:[#allocation1] ss:$4 sm:$0xff] %v2381
      %v2384 = vld.sshfl [vmem:[#allocation1] sm:$0xff pattern:$0x73625140]
      %v2385 = vld.sshfl [vmem:[#allocation1 + $0x8] sm:$0xff pattern:$0x73625140]
      %v2388 = vsel %vm315, %v2384, 0.0
      %v2389 = vsel %vm315, %v2385, 0.0
      %v2390 = vadd.f32 %v2388, %v2389
      %2391 = vadd.xlane.f32.xlu0 %v2390
      %v2392 = vpop.xlane.xlu0 %2391
      %v2393 = vrot.slane %v2392, 4
      %v2394 = vadd.f32 %v2392, %v2393
      %v2395 = vrot.slane %v2394, 2
      %v2396 = vadd.f32 %v2394, %v2395
      %v2397 = vrot.slane %v2396, 1
      %v2398 = vadd.f32 %v2396, %v2397
      %s2399 = vtos %v2398
      %v2400 = vstv %s2399
      %v2401 = vmul.f32 %v2400, %v335
      %v2402 = vadd.f32 %v2401, 1e-05
      %v2403 = vrsqrt.pop %v2402
      %v2404 = vmul.f32 %v2403, %v2402
      %v2405 = vmul.f32 %v2404, %v2403
      %v2406 = vmul.f32 0.5, %v2405
      %v2407 = vsub.f32 1.5, %v2406
      %v2408 = vmul.f32 %v2403, %v2407
      %vm2409 = vweird.f32 %v2402
      %vm2410 = vweird.f32 %v2403
      %vm2411 = vmor %vm2409, %vm2410
      %v2412 = vsel %vm2411, %v2403, %v2408
      %s2413 = scalar_lea.vmem %s280, 62
      %v2414 = vld [vmem:[%s2413] sm:$0x3]
      %s2415 = scalar_lea.vmem %s286, 62
      %v2416 = vld [vmem:[%s2415] sm:$0x3]
      %v2417 = vmul.f32 %v2414, %v2412
      %s2418 = scalar_lea.vmem %s296, 62
      %2419 = vst.msk [vmem:[%s2418] sm:$0x3] %vm373, %v2417
      %v2420 = vmul.f32 %v2379, %v2417
      %v2421 = vsub.f32 %v2416, %v2420
      %s2422 = scalar_lea.vmem %s306, 62
      %2423 = vst.msk [vmem:[%s2422] sm:$0x3] %vm373, %v2421
      %s2424 = smul.u32 32, %s21
      %p2425 = scmp.lt.s32.totalorder %s20, 1
      %s2426 = scalar_select %p2425, %s20, 1
      %p2427 = scmp.lt.s32.totalorder %s2424, 31
      %s2428 = scalar_select %p2427, %s2424, 31
      %s2429 = smul.addr %s2426, 32
      %s2430 = sadd.s32 %s2428, %s2429
      %s2431 = smul.addr %s2430, 2
      %s2432 = scalar_lea.vmem %s3, %s2431
      %s2433 = smul.u32 32, %s21
      %p2434 = scmp.lt.s32.totalorder %s20, 1
      %s2435 = scalar_select %p2434, %s20, 1
      %p2436 = scmp.lt.s32.totalorder %s2433, 31
      %s2437 = scalar_select %p2436, %s2433, 31
      %s2438 = smul.addr %s2435, 32
      %s2439 = sadd.s32 %s2437, %s2438
      %s2440 = smul.addr %s2439, 2
      %s2441 = scalar_lea.vmem %s4, %s2440
      // Predicated region
      $region33: #{vae_attention_block.3} parent=31 // pred_check
        %p2442 = pneg %p128
      $region34: #{vae_attention_block.3} parent=31 // pred_check_branch
        %2444 = sbr.rel (%p2442) target = $region36
      $region35: #{vae_attention_block.3} parent=31 // pred_region
        %s2445 = smul.u32 32, %s21
      $region36: #{vae_attention_block.3} parent=31 // pred_fallthru
        _
      // Predicated region
      $region37: #{vae_attention_block.3} parent=31 // pred_check
        %p2446 = pneg %p156
      $region38: #{vae_attention_block.3} parent=31 // pred_check_branch
        %2448 = sbr.rel (%p2446) target = $region40
      $region39: #{vae_attention_block.3} parent=31 // pred_region
        %s2449 = smul.u32 32, %s21
      $region40: #{vae_attention_block.3} parent=31 // pred_fallthru
        _
    $region32: #{vae_attention_block.3} parent=5 // pred_fallthru
      _
    %p2450 = scmp.le.s32.totalorder 2, %s11
    // Predicated region
    $region41: #{vae_attention_block.3} parent=5 // pred_check
      %p2451 = pneg %p2450
    $region42: #{vae_attention_block.3} parent=5 // pred_check_branch
      %2453 = sbr.rel (%p2451) target = $region44
    $region43: #{vae_attention_block.3} parent=5 // pred_region
      %s2454 = ssub.s32 %s11, 2
      // Predicated region
      $region45: #{vae_attention_block.3} parent=43 // pred_check
        %p2455 = pneg %p134
      $region46: #{vae_attention_block.3} parent=43 // pred_check_branch
        %2457 = sbr.rel (%p2455) target = $region48
      $region47: #{vae_attention_block.3} parent=43 // pred_region
        %s2458 = smul.u32 32, %s23
        %p2459 = scmp.lt.s32.totalorder %s22, 1
        %s2460 = scalar_select %p2459, %s22, 1
        %p2461 = scmp.lt.s32.totalorder %s2458, 31
        %s2462 = scalar_select %p2461, %s2458, 31
        %s2463 = smul.addr %s2460, 32
        %s2464 = sadd.s32 %s2462, %s2463
        %s2465 = smul.addr %s2464, 2
        %s2466 = scalar_lea.vmem %s3, %s2465
      $region48: #{vae_attention_block.3} parent=43 // pred_fallthru
        _
      // Predicated region
      $region49: #{vae_attention_block.3} parent=43 // pred_check
        %p2467 = pneg %p162
      $region50: #{vae_attention_block.3} parent=43 // pred_check_branch
        %2469 = sbr.rel (%p2467) target = $region52
      $region51: #{vae_attention_block.3} parent=43 // pred_region
        %s2470 = smul.u32 32, %s23
        %p2471 = scmp.lt.s32.totalorder %s22, 1
        %s2472 = scalar_select %p2471, %s22, 1
        %p2473 = scmp.lt.s32.totalorder %s2470, 31
        %s2474 = scalar_select %p2473, %s2470, 31
        %s2475 = smul.addr %s2472, 32
        %s2476 = sadd.s32 %s2474, %s2475
        %s2477 = smul.addr %s2476, 2
        %s2478 = scalar_lea.vmem %s4, %s2477
      $region52: #{vae_attention_block.3} parent=43 // pred_fallthru
        _
    $region44: #{vae_attention_block.3} parent=5 // pred_fallthru
      _
  $region6: #{vae_attention_block.3} parent=0 // loop_footer
    %s15 = sadd.s32 1, %s11
  $region7: #{vae_attention_block.3} parent=0 // loop_footer_branch
    %10 = sbr.rel target = $region3
  $region8: #{vae_attention_block.3} parent=0 // loop_exit
    _

</llo_original>
